<compile_context>
chip_gen: v5e
topology: v5e:2x2
jax: 0.10.0
libtpu: 0.0.40
codegen_flags: <defaults>
</compile_context>

<pallas_src>
import math
import jax
import jax.numpy as jnp
from jax import lax
from jax.experimental import pallas as pl
from jax.experimental.pallas import tpu as pltpu

# ----------------------------------------------------------------------------
# Tiled Pallas MXU matmuls: NN (A@B), NT (A@B^T), TN (A^T@B).
# ----------------------------------------------------------------------------
_TM_MAX, _TN_MAX, _TK_MAX = 256, 256, 512


def _round_up(x, m):
    return (x + m - 1) // m * m


def _pick_tile(size, granule, max_tile):
    """Return (tile, padded_size): largest tile <= max_tile dividing padded size."""
    size_r = _round_up(size, granule)
    if size_r <= max_tile:
        return size_r, size_r
    t = max_tile
    while size_r % t != 0:
        t //= 2
    return t, size_r


def _pad2d(x, shape):
    pr, pc = shape[0] - x.shape[0], shape[1] - x.shape[1]
    if pr == 0 and pc == 0:
        return x
    return jnp.pad(x, ((0, pr), (0, pc)))


def _mm_kernel_nn(a_ref, b_ref, o_ref):
    @pl.when(pl.program_id(2) == 0)
    def _():
        o_ref[...] = jnp.zeros_like(o_ref)

    o_ref[...] += jnp.dot(a_ref[...], b_ref[...],
                          preferred_element_type=jnp.float32)


def _mm_kernel_nt(a_ref, b_ref, o_ref):
    @pl.when(pl.program_id(2) == 0)
    def _():
        o_ref[...] = jnp.zeros_like(o_ref)

    o_ref[...] += lax.dot_general(
        a_ref[...], b_ref[...],
        dimension_numbers=(((1,), (1,)), ((), ())),
        preferred_element_type=jnp.float32)


def _mm_kernel_tn(a_ref, b_ref, o_ref):
    @pl.when(pl.program_id(2) == 0)
    def _():
        o_ref[...] = jnp.zeros_like(o_ref)

    o_ref[...] += lax.dot_general(
        a_ref[...], b_ref[...],
        dimension_numbers=(((0,), (0,)), ((), ())),
        preferred_element_type=jnp.float32)


def _mxu_matmul(a, b, mode):
    """f32 result (M, N) of:
         'nn': a(M,K)   @ b(K,N)
         'nt': a(M,K)   @ b(N,K)^T
         'tn': a(K,M)^T @ b(K,N)
       Operands are fed to the MXU as bf16; accumulation is f32."""
    a = a.astype(jnp.bfloat16)
    b = b.astype(jnp.bfloat16)
    if mode == "nn":
        M, K = a.shape
        K2, N = b.shape
        gM, gN, gK = 16, 128, 128
    elif mode == "nt":
        M, K = a.shape
        N, K2 = b.shape
        gM, gN, gK = 16, 128, 128
    else:  # "tn"
        K, M = a.shape
        K2, N = b.shape
        gM, gN, gK = 128, 128, 16
    assert K == K2, (a.shape, b.shape, mode)

    TM, Mp = _pick_tile(M, gM, _TM_MAX)
    TN, Np = _pick_tile(N, gN, _TN_MAX)
    TK, Kp = _pick_tile(K, gK, _TK_MAX)

    if mode == "nn":
        a_p, b_p = _pad2d(a, (Mp, Kp)), _pad2d(b, (Kp, Np))
        a_spec = pl.BlockSpec((TM, TK), lambda i, j, k: (i, k))
        b_spec = pl.BlockSpec((TK, TN), lambda i, j, k: (k, j))
        kernel = _mm_kernel_nn
    elif mode == "nt":
        a_p, b_p = _pad2d(a, (Mp, Kp)), _pad2d(b, (Np, Kp))
        a_spec = pl.BlockSpec((TM, TK), lambda i, j, k: (i, k))
        b_spec = pl.BlockSpec((TN, TK), lambda i, j, k: (j, k))
        kernel = _mm_kernel_nt
    else:
        a_p, b_p = _pad2d(a, (Kp, Mp)), _pad2d(b, (Kp, Np))
        a_spec = pl.BlockSpec((TK, TM), lambda i, j, k: (k, i))
        b_spec = pl.BlockSpec((TK, TN), lambda i, j, k: (k, j))
        kernel = _mm_kernel_tn

    out = pl.pallas_call(
        kernel,
        out_shape=jax.ShapeDtypeStruct((Mp, Np), jnp.float32),
        grid_spec=pltpu.PrefetchScalarGridSpec(
            num_scalar_prefetch=0,
            grid=(Mp // TM, Np // TN, Kp // TK),
            in_specs=[a_spec, b_spec],
            out_specs=pl.BlockSpec((TM, TN), lambda i, j, k: (i, j)),
        ),
        compiler_params=pltpu.CompilerParams(
            dimension_semantics=("parallel", "parallel", "arbitrary")),
        cost_estimate=pl.CostEstimate(
            flops=2 * Mp * Np * Kp,
            transcendentals=0,
            bytes_accessed=(a_p.size + b_p.size) * 2 + Mp * Np * 4),
    )(a_p, b_p)
    return out[:M, :N]


# ----------------------------------------------------------------------------
# Convolutions (im2col around the Pallas matmuls) with custom VJPs that use
# the transposed-operand Pallas matmuls in the backward pass.
# ----------------------------------------------------------------------------
def _im2col3x3(x):
    """x (N,H,W,Ci) -> (N*H*W, 9*Ci); K layout = (dh, dw, ci)."""
    N, H, W, Ci = x.shape
    xp = jnp.pad(x, ((0, 0), (1, 1), (1, 1), (0, 0)))
    patches = [xp[:, dh:dh + H, dw:dw + W, :]
               for dh in range(3) for dw in range(3)]
    return jnp.concatenate(patches, axis=-1).reshape(-1, 9 * Ci)


def _conv3x3_fwd(x, w):
    N, H, W, Ci = x.shape
    Co = w.shape[-1]
    col = _im2col3x3(x.astype(jnp.bfloat16))                     # bf16 im2col
    wf = w.reshape(9 * Ci, Co).astype(jnp.bfloat16)
    out = _mxu_matmul(col, wf, "nn").reshape(N, H, W, Co)        # f32 out
    return out, (col, wf)


def _conv3x3_bwd(res, g):
    col, wf = res
    N, H, W, Co = g.shape
    Ci = wf.shape[0] // 9
    g2d = g.reshape(-1, Co)
    dcol = _mxu_matmul(g2d, wf, "nt")                            # g @ wf^T, f32
    dcol = dcol.reshape(N, H, W, 3, 3, Ci)
    dxp = jnp.zeros((N, H + 2, W + 2, Ci), jnp.float32)
    for dh in range(3):
        for dw in range(3):
            dxp = dxp.at[:, dh:dh + H, dw:dw + W, :].add(dcol[:, :, :, dh, dw, :])
    dx = dxp[:, 1:H + 1, 1:W + 1, :]
    # weight grad (dead code for the forward Dg pass -> DCE'd by XLA)
    dw_ = _mxu_matmul(col, g2d, "tn")                            # col^T @ g
    return dx, dw_.reshape(3, 3, Ci, Co).astype(wf.dtype)


@jax.custom_vjp
def conv3x3(x, w):
    """3x3, stride 1, pad 1, no bias. x: (N,H,W,Ci) f32, w: (3,3,Ci,Co)."""
    return _conv3x3_fwd(x, w)[0]


conv3x3.defvjp(_conv3x3_fwd, _conv3x3_bwd)


def _conv2x2_fwd(x, w):
    N, H, W, Ci = x.shape
    Co = w.shape[-1]
    Ho, Wo = H // 2, W // 2
    col = x.astype(jnp.bfloat16).reshape(N, Ho, 2, Wo, 2, Ci)
    col = col.transpose(0, 1, 3, 2, 4, 5).reshape(-1, 4 * Ci)
    wf = w.reshape(4 * Ci, Co).astype(jnp.bfloat16)
    out = _mxu_matmul(col, wf, "nn").reshape(N, Ho, Wo, Co)
    return out, (col, wf)


def _conv2x2_bwd(res, g):
    col, wf = res
    N, Ho, Wo, Co = g.shape
    Ci = wf.shape[0] // 4
    g2d = g.reshape(-1, Co)
    dcol = _mxu_matmul(g2d, wf, "nt").reshape(N, Ho, Wo, 2, 2, Ci)
    dx = dcol.transpose(0, 1, 3, 2, 4, 5).reshape(N, 2 * Ho, 2 * Wo, Ci)
    dw_ = _mxu_matmul(col, g2d, "tn")
    return dx, dw_.reshape(2, 2, Ci, Co).astype(wf.dtype)


@jax.custom_vjp
def conv2x2_s2(x, w):
    """2x2, stride 2, pad 0, no bias (downsample_strideconv)."""
    return _conv2x2_fwd(x, w)[0]


conv2x2_s2.defvjp(_conv2x2_fwd, _conv2x2_bwd)


def _convT2x2_fwd(x, w):
    N, H, W, Ci = x.shape
    Co = w.shape[-1]
    wf = w.transpose(2, 0, 1, 3).reshape(Ci, 4 * Co).astype(jnp.bfloat16)
    x2d = x.astype(jnp.bfloat16).reshape(-1, Ci)
    out = _mxu_matmul(x2d, wf, "nn").reshape(N, H, W, 2, 2, Co)
    out = out.transpose(0, 1, 3, 2, 4, 5).reshape(N, 2 * H, 2 * W, Co)
    return out, (x2d, wf)


def _convT2x2_bwd(res, g):
    x2d, wf = res
    N, H2, W2, Co = g.shape
    H, W = H2 // 2, W2 // 2
    Ci = wf.shape[0]
    g2d = g.reshape(N, H, 2, W, 2, Co).transpose(0, 1, 3, 2, 4, 5)
    g2d = g2d.reshape(-1, 4 * Co)
    dx = _mxu_matmul(g2d, wf, "nt").reshape(N, H, W, Ci)
    dwf = _mxu_matmul(x2d, g2d, "tn")                            # (Ci, 4*Co)
    dw = dwf.reshape(Ci, 2, 2, Co).transpose(1, 2, 0, 3).astype(wf.dtype)
    return dx, dw


@jax.custom_vjp
def convT2x2_s2(x, w):
    """ConvTranspose 2x2, stride 2, pad 0, no bias (upsample_convtranspose).
    Internal weight convention (kh, kw, Ci, Co); transpose when importing
    PyTorch ConvTranspose2d weights stored as (Ci, Co, kh, kw)."""
    return _convT2x2_fwd(x, w)[0]


convT2x2_s2.defvjp(_convT2x2_fwd, _convT2x2_bwd)


# ----------------------------------------------------------------------------
# Pallas elementwise subtract (x_hat = x - Dg), lane-dense row-tiled
# ----------------------------------------------------------------------------
def _sub_kernel(a_ref, b_ref, o_ref):
    o_ref[...] = a_ref[...] - b_ref[...]


def pallas_sub(a, b):
    shape, n = a.shape, a.size
    lane = 512
    pad = (-n) % (8 * lane)
    af = jnp.pad(a.reshape(-1), (0, pad)).reshape(-1, lane)
    bf = jnp.pad(b.reshape(-1), (0, pad)).reshape(-1, lane)
    rows = af.shape[0]
    br = rows if rows <= 256 else 256
    if rows % br:
        extra = br - rows % br
        af = jnp.pad(af, ((0, extra), (0, 0)))
        bf = jnp.pad(bf, ((0, extra), (0, 0)))
        rows += extra
    out = pl.pallas_call(
        _sub_kernel,
        out_shape=jax.ShapeDtypeStruct((rows, lane), a.dtype),
        grid_spec=pltpu.PrefetchScalarGridSpec(
            num_scalar_prefetch=0,
            grid=(rows // br,),
            in_specs=[pl.BlockSpec((br, lane), lambda i: (i, 0)),
                      pl.BlockSpec((br, lane), lambda i: (i, 0))],
            out_specs=pl.BlockSpec((br, lane), lambda i: (i, 0)),
        ),
        compiler_params=pltpu.CompilerParams(dimension_semantics=("parallel",)),
    )(af, bf)
    return out.reshape(-1)[:n].reshape(shape)


# ----------------------------------------------------------------------------
# UNetRes(in_nc=2, out_nc=2, nc=[64,128,256,512], nb=3, act='E' (ELU))
# ----------------------------------------------------------------------------
NC = (64, 128, 256, 512)
NB = 3
IN_NC = OUT_NC = 2


def resblock(x, w1, w2):
    r = conv3x3(x, w1)
    r = jax.nn.elu(r)                      # act_mode 'E' -> nn.ELU
    r = conv3x3(r, w2)
    return x + r


def down_stage(x, ws):
    for (w1, w2) in ws["res"]:
        x = resblock(x, w1, w2)
    return conv2x2_s2(x, ws["down"])


def up_stage(x, ws):
    x = convT2x2_s2(x, ws["up"])
    for (w1, w2) in ws["res"]:
        x = resblock(x, w1, w2)
    return x


def unet_forward(params, x):
    x1 = conv3x3(x, params["head"])
    x2 = down_stage(x1, params["down1"])
    x3 = down_stage(x2, params["down2"])
    x4 = down_stage(x3, params["down3"])
    xb = x4
    for (w1, w2) in params["body"]:
        xb = resblock(xb, w1, w2)
    u = up_stage(xb + x4, params["up3"])
    u = up_stage(u + x3, params["up2"])
    u = up_stage(u + x2, params["up1"])
    return conv3x3(u + x1, params["tail"])


def init_params(key):
    keys = iter(jax.random.split(key, 256))

    def cw(kh, kw, ci, co):
        std = 0.5 / math.sqrt(kh * kw * ci)
        return jax.random.normal(next(keys), (kh, kw, ci, co), jnp.float32) * std

    def res_list(c):
        return [(cw(3, 3, c, c), cw(3, 3, c, c)) for _ in range(NB)]

    return {
        "head": cw(3, 3, IN_NC, NC[0]),
        "down1": {"res": res_list(NC[0]), "down": cw(2, 2, NC[0], NC[1])},
        "down2": {"res": res_list(NC[1]), "down": cw(2, 2, NC[1], NC[2])},
        "down3": {"res": res_list(NC[2]), "down": cw(2, 2, NC[2], NC[3])},
        "body": res_list(NC[3]),
        "up3": {"up": cw(2, 2, NC[3], NC[2]), "res": res_list(NC[2])},
        "up2": {"up": cw(2, 2, NC[2], NC[1]), "res": res_list(NC[1])},
        "up1": {"up": cw(2, 2, NC[1], NC[0]), "res": res_list(NC[0])},
        "tail": cw(3, 3, NC[0], OUT_NC),
    }


# ----------------------------------------------------------------------------
# GradStepSTD.forward:  Dg = d/dx [ 0.5 * || x - N(x) ||^2 ],  x_hat = x - Dg
# ----------------------------------------------------------------------------
@jax.jit
def grad_step_std_forward(params, x_nchw):
    # Pre-pack once per call: bf16 weights (reused by fwd AND bwd via residuals).
    params = jax.tree_util.tree_map(lambda p: p.astype(jnp.bfloat16), params)
    x = jnp.transpose(x_nchw.astype(jnp.float32), (0, 2, 3, 1))  # -> NHWC

    def g_fn(xin):
        out = unet_forward(params, xin)
        r = xin - out                      # f32 residual
        return 0.5 * jnp.sum(r * r)        # f32 loss

    Dg = jax.grad(g_fn)(x)                 # == torch.autograd.grad(g, x)
    x_hat = pallas_sub(x, Dg)              # x - Dg (Pallas elementwise)
    return jnp.transpose(x_hat, (0, 3, 1, 2))  # back to NCHW


if __name__ == "__main__":
    key = jax.random.PRNGKey(0)
    kp, kx = jax.random.split(key)
    params = init_params(kp)
    # NCHW input, in_nc=2, spatial 16 (divisible by 2**3 for 3 downsamples)
    x = jax.random.normal(kx, (2, 2, 16, 16), jnp.float32)
    x_hat = grad_step_std_forward(params, x)
    jax.block_until_ready(x_hat)
    assert x_hat.shape == (2, 2, 16, 16)
    assert bool(jnp.all(jnp.isfinite(x_hat)))
    print("KERNEL_OK")
</pallas_src>

<mosaic_0001>
module attributes {stable_mosaic.version = 11 : i64} {
  func.func @_mm_kernel_nn(%arg0: i32, %arg1: i32, %arg2: i32, %arg3: memref<256x128xbf16, #tpu.memory_space<vmem>>, %arg4: memref<128x128xbf16, #tpu.memory_space<vmem>>, %arg5: memref<256x128xf32, #tpu.memory_space<vmem>>) attributes {dimension_semantics = [#tpu.dimension_semantics<parallel>, #tpu.dimension_semantics<parallel>, #tpu.dimension_semantics<arbitrary>], iteration_bounds = array<i64: 2, 1, 1>, scalar_prefetch = 0 : i64, scratch_operands = 0 : i64, tpu.core_type = #tpu.core_type<tc>, window_params = [{transform_indices = @transform_0, window_bounds = array<i64: 256, 128>}, {transform_indices = @transform_1, window_bounds = array<i64: 128, 128>}, {transform_indices = @transform_2, window_bounds = array<i64: 256, 128>}]} {
    %c0_i32 = arith.constant 0 : i32
    %0 = arith.cmpi eq, %arg2, %c0_i32 : i32
    %1 = arith.extui %0 : i1 to i32
    %c0_i32_0 = arith.constant 0 : i32
    %2 = arith.cmpi ne, %1, %c0_i32_0 : i32
    scf.if %2 {
      %cst_8 = arith.constant 0.000000e+00 : f32
      %9 = vector.broadcast %cst_8 : f32 to vector<256x128xf32>
      %c0_9 = arith.constant 0 : index
      %c0_10 = arith.constant 0 : index
      %10 = vector.load %arg5[%c0_9, %c0_10] : memref<256x128xf32, #tpu.memory_space<vmem>>, vector<256x128xf32>
      tpu.vector_store %arg5[%c0_9, %c0_10], %9 {strides = array<i32>} : memref<256x128xf32, #tpu.memory_space<vmem>>, vector<256x128xf32>,
    } else {
    }
    %c0 = arith.constant 0 : index
    %c0_1 = arith.constant 0 : index
    %3 = vector.load %arg5[%c0, %c0_1] : memref<256x128xf32, #tpu.memory_space<vmem>>, vector<256x128xf32>
    %c0_2 = arith.constant 0 : index
    %c0_3 = arith.constant 0 : index
    %4 = vector.load %arg3[%c0_2, %c0_3] : memref<256x128xbf16, #tpu.memory_space<vmem>>, vector<256x128xbf16>
    %c0_4 = arith.constant 0 : index
    %c0_5 = arith.constant 0 : index
    %5 = vector.load %arg4[%c0_4, %c0_5] : memref<128x128xbf16, #tpu.memory_space<vmem>>, vector<128x128xbf16>
    %cst = arith.constant dense<0.000000e+00> : vector<256x128xf32>
    %6 = tpu.matmul %4, %5, %cst {dimension_numbers = #tpu.dot_dimension_numbers<[1], [0], [0], [1], [0, 0, 1, 1], [], []>} : vector<256x128xbf16>, vector<128x128xbf16>, vector<256x128xf32> -> vector<256x128xf32>
    %7 = arith.addf %3, %6 : vector<256x128xf32>
    %c0_6 = arith.constant 0 : index
    %c0_7 = arith.constant 0 : index
    %8 = vector.load %arg5[%c0_6, %c0_7] : memref<256x128xf32, #tpu.memory_space<vmem>>, vector<256x128xf32>
    tpu.vector_store %arg5[%c0_6, %c0_7], %7 {strides = array<i32>} : memref<256x128xf32, #tpu.memory_space<vmem>>, vector<256x128xf32>,
    return
  }
  func.func @transform_0(%arg0: i32, %arg1: i32, %arg2: i32) -> (i32, i32) {
    %c0_i32 = arith.constant 0 : i32
    return %arg0, %arg2 : i32, i32
  }
  func.func @transform_1(%arg0: i32, %arg1: i32, %arg2: i32) -> (i32, i32) {
    %c0_i32 = arith.constant 0 : i32
    return %arg2, %arg1 : i32, i32
  }
  func.func @transform_2(%arg0: i32, %arg1: i32, %arg2: i32) -> (i32, i32) {
    %c0_i32 = arith.constant 0 : i32
    return %arg0, %arg1 : i32, i32
  }
}

module attributes {stable_mosaic.version = 11 : i64} {
  func.func @_mm_kernel_nn(%arg0: i32, %arg1: i32, %arg2: i32, %arg3: memref<256x128xbf16, #tpu.memory_space<vmem>>, %arg4: memref<128x128xbf16, #tpu.memory_space<vmem>>, %arg5: memref<256x128xf32, #tpu.memory_space<vmem>>) attributes {dimension_semantics = [#tpu.dimension_semantics<parallel>, #tpu.dimension_semantics<parallel>, #tpu.dimension_semantics<arbitrary>], iteration_bounds = array<i64: 2, 1, 5>, scalar_prefetch = 0 : i64, scratch_operands = 0 : i64, tpu.core_type = #tpu.core_type<tc>, window_params = [{transform_indices = @transform_0, window_bounds = array<i64: 256, 128>}, {transform_indices = @transform_1, window_bounds = array<i64: 128, 128>}, {transform_indices = @transform_2, window_bounds = array<i64: 256, 128>}]} {
    %c0_i32 = arith.constant 0 : i32
    %0 = arith.cmpi eq, %arg2, %c0_i32 : i32
    %1 = arith.extui %0 : i1 to i32
    %c0_i32_0 = arith.constant 0 : i32
    %2 = arith.cmpi ne, %1, %c0_i32_0 : i32
    scf.if %2 {
      %cst_8 = arith.constant 0.000000e+00 : f32
      %9 = vector.broadcast %cst_8 : f32 to vector<256x128xf32>
      %c0_9 = arith.constant 0 : index
      %c0_10 = arith.constant 0 : index
      %10 = vector.load %arg5[%c0_9, %c0_10] : memref<256x128xf32, #tpu.memory_space<vmem>>, vector<256x128xf32>
      tpu.vector_store %arg5[%c0_9, %c0_10], %9 {strides = array<i32>} : memref<256x128xf32, #tpu.memory_space<vmem>>, vector<256x128xf32>,
    } else {
    }
    %c0 = arith.constant 0 : index
    %c0_1 = arith.constant 0 : index
    %3 = vector.load %arg5[%c0, %c0_1] : memref<256x128xf32, #tpu.memory_space<vmem>>, vector<256x128xf32>
    %c0_2 = arith.constant 0 : index
    %c0_3 = arith.constant 0 : index
    %4 = vector.load %arg3[%c0_2, %c0_3] : memref<256x128xbf16, #tpu.memory_space<vmem>>, vector<256x128xbf16>
    %c0_4 = arith.constant 0 : index
    %c0_5 = arith.constant 0 : index
    %5 = vector.load %arg4[%c0_4, %c0_5] : memref<128x128xbf16, #tpu.memory_space<vmem>>, vector<128x128xbf16>
    %cst = arith.constant dense<0.000000e+00> : vector<256x128xf32>
    %6 = tpu.matmul %4, %5, %cst {dimension_numbers = #tpu.dot_dimension_numbers<[1], [0], [0], [1], [0, 0, 1, 1], [], []>} : vector<256x128xbf16>, vector<128x128xbf16>, vector<256x128xf32> -> vector<256x128xf32>
    %7 = arith.addf %3, %6 : vector<256x128xf32>
    %c0_6 = arith.constant 0 : index
    %c0_7 = arith.constant 0 : index
    %8 = vector.load %arg5[%c0_6, %c0_7] : memref<256x128xf32, #tpu.memory_space<vmem>>, vector<256x128xf32>
    tpu.vector_store %arg5[%c0_6, %c0_7], %7 {strides = array<i32>} : memref<256x128xf32, #tpu.memory_space<vmem>>, vector<256x128xf32>,
    return
  }
  func.func @transform_0(%arg0: i32, %arg1: i32, %arg2: i32) -> (i32, i32) {
    %c0_i32 = arith.constant 0 : i32
    return %arg0, %arg2 : i32, i32
  }
  func.func @transform_1(%arg0: i32, %arg1: i32, %arg2: i32) -> (i32, i32) {
    %c0_i32 = arith.constant 0 : i32
    return %arg2, %arg1 : i32, i32
  }
  func.func @transform_2(%arg0: i32, %arg1: i32, %arg2: i32) -> (i32, i32) {
    %c0_i32 = arith.constant 0 : i32
    return %arg0, %arg1 : i32, i32
  }
}

module attributes {stable_mosaic.version = 11 : i64} {
  func.func @_mm_kernel_nn(%arg0: i32, %arg1: i32, %arg2: i32, %arg3: memref<128x256xbf16, #tpu.memory_space<vmem>>, %arg4: memref<256x128xbf16, #tpu.memory_space<vmem>>, %arg5: memref<128x128xf32, #tpu.memory_space<vmem>>) attributes {dimension_semantics = [#tpu.dimension_semantics<parallel>, #tpu.dimension_semantics<parallel>, #tpu.dimension_semantics<arbitrary>], iteration_bounds = array<i64: 1, 1, 1>, scalar_prefetch = 0 : i64, scratch_operands = 0 : i64, tpu.core_type = #tpu.core_type<tc>, window_params = [{transform_indices = @transform_0, window_bounds = array<i64: 128, 256>}, {transform_indices = @transform_1, window_bounds = array<i64: 256, 128>}, {transform_indices = @transform_2, window_bounds = array<i64: 128, 128>}]} {
    %c0_i32 = arith.constant 0 : i32
    %0 = arith.cmpi eq, %arg2, %c0_i32 : i32
    %1 = arith.extui %0 : i1 to i32
    %c0_i32_0 = arith.constant 0 : i32
    %2 = arith.cmpi ne, %1, %c0_i32_0 : i32
    scf.if %2 {
      %cst_8 = arith.constant 0.000000e+00 : f32
      %9 = vector.broadcast %cst_8 : f32 to vector<128x128xf32>
      %c0_9 = arith.constant 0 : index
      %c0_10 = arith.constant 0 : index
      %10 = vector.load %arg5[%c0_9, %c0_10] : memref<128x128xf32, #tpu.memory_space<vmem>>, vector<128x128xf32>
      tpu.vector_store %arg5[%c0_9, %c0_10], %9 {strides = array<i32>} : memref<128x128xf32, #tpu.memory_space<vmem>>, vector<128x128xf32>,
    } else {
    }
    %c0 = arith.constant 0 : index
    %c0_1 = arith.constant 0 : index
    %3 = vector.load %arg5[%c0, %c0_1] : memref<128x128xf32, #tpu.memory_space<vmem>>, vector<128x128xf32>
    %c0_2 = arith.constant 0 : index
    %c0_3 = arith.constant 0 : index
    %4 = vector.load %arg3[%c0_2, %c0_3] : memref<128x256xbf16, #tpu.memory_space<vmem>>, vector<128x256xbf16>
    %c0_4 = arith.constant 0 : index
    %c0_5 = arith.constant 0 : index
    %5 = vector.load %arg4[%c0_4, %c0_5] : memref<256x128xbf16, #tpu.memory_space<vmem>>, vector<256x128xbf16>
    %cst = arith.constant dense<0.000000e+00> : vector<128x128xf32>
    %6 = tpu.matmul %4, %5, %cst {dimension_numbers = #tpu.dot_dimension_numbers<[1], [0], [0], [1], [0, 0, 1, 1], [], []>} : vector<128x256xbf16>, vector<256x128xbf16>, vector<128x128xf32> -> vector<128x128xf32>
    %7 = arith.addf %3, %6 : vector<128x128xf32>
    %c0_6 = arith.constant 0 : index
    %c0_7 = arith.constant 0 : index
    %8 = vector.load %arg5[%c0_6, %c0_7] : memref<128x128xf32, #tpu.memory_space<vmem>>, vector<128x128xf32>
    tpu.vector_store %arg5[%c0_6, %c0_7], %7 {strides = array<i32>} : memref<128x128xf32, #tpu.memory_space<vmem>>, vector<128x128xf32>,
    return
  }
  func.func @transform_0(%arg0: i32, %arg1: i32, %arg2: i32) -> (i32, i32) {
    %c0_i32 = arith.constant 0 : i32
    return %arg0, %arg2 : i32, i32
  }
  func.func @transform_1(%arg0: i32, %arg1: i32, %arg2: i32) -> (i32, i32) {
    %c0_i32 = arith.constant 0 : i32
    return %arg2, %arg1 : i32, i32
  }
  func.func @transform_2(%arg0: i32, %arg1: i32, %arg2: i32) -> (i32, i32) {
    %c0_i32 = arith.constant 0 : i32
    return %arg0, %arg1 : i32, i32
  }
}

module attributes {stable_mosaic.version = 11 : i64} {
  func.func @_mm_kernel_nn(%arg0: i32, %arg1: i32, %arg2: i32, %arg3: memref<128x128xbf16, #tpu.memory_space<vmem>>, %arg4: memref<128x128xbf16, #tpu.memory_space<vmem>>, %arg5: memref<128x128xf32, #tpu.memory_space<vmem>>) attributes {dimension_semantics = [#tpu.dimension_semantics<parallel>, #tpu.dimension_semantics<parallel>, #tpu.dimension_semantics<arbitrary>], iteration_bounds = array<i64: 1, 1, 9>, scalar_prefetch = 0 : i64, scratch_operands = 0 : i64, tpu.core_type = #tpu.core_type<tc>, window_params = [{transform_indices = @transform_0, window_bounds = array<i64: 128, 128>}, {transform_indices = @transform_1, window_bounds = array<i64: 128, 128>}, {transform_indices = @transform_2, window_bounds = array<i64: 128, 128>}]} {
    %c0_i32 = arith.constant 0 : i32
    %0 = arith.cmpi eq, %arg2, %c0_i32 : i32
    %1 = arith.extui %0 : i1 to i32
    %c0_i32_0 = arith.constant 0 : i32
    %2 = arith.cmpi ne, %1, %c0_i32_0 : i32
    scf.if %2 {
      %cst_8 = arith.constant 0.000000e+00 : f32
      %9 = vector.broadcast %cst_8 : f32 to vector<128x128xf32>
      %c0_9 = arith.constant 0 : index
      %c0_10 = arith.constant 0 : index
      %10 = vector.load %arg5[%c0_9, %c0_10] : memref<128x128xf32, #tpu.memory_space<vmem>>, vector<128x128xf32>
      tpu.vector_store %arg5[%c0_9, %c0_10], %9 {strides = array<i32>} : memref<128x128xf32, #tpu.memory_space<vmem>>, vector<128x128xf32>,
    } else {
    }
    %c0 = arith.constant 0 : index
    %c0_1 = arith.constant 0 : index
    %3 = vector.load %arg5[%c0, %c0_1] : memref<128x128xf32, #tpu.memory_space<vmem>>, vector<128x128xf32>
    %c0_2 = arith.constant 0 : index
    %c0_3 = arith.constant 0 : index
    %4 = vector.load %arg3[%c0_2, %c0_3] : memref<128x128xbf16, #tpu.memory_space<vmem>>, vector<128x128xbf16>
    %c0_4 = arith.constant 0 : index
    %c0_5 = arith.constant 0 : index
    %5 = vector.load %arg4[%c0_4, %c0_5] : memref<128x128xbf16, #tpu.memory_space<vmem>>, vector<128x128xbf16>
    %cst = arith.constant dense<0.000000e+00> : vector<128x128xf32>
    %6 = tpu.matmul %4, %5, %cst {dimension_numbers = #tpu.dot_dimension_numbers<[1], [0], [0], [1], [0, 0, 1, 1], [], []>} : vector<128x128xbf16>, vector<128x128xbf16>, vector<128x128xf32> -> vector<128x128xf32>
    %7 = arith.addf %3, %6 : vector<128x128xf32>
    %c0_6 = arith.constant 0 : index
    %c0_7 = arith.constant 0 : index
    %8 = vector.load %arg5[%c0_6, %c0_7] : memref<128x128xf32, #tpu.memory_space<vmem>>, vector<128x128xf32>
    tpu.vector_store %arg5[%c0_6, %c0_7], %7 {strides = array<i32>} : memref<128x128xf32, #tpu.memory_space<vmem>>, vector<128x128xf32>,
    return
  }
  func.func @transform_0(%arg0: i32, %arg1: i32, %arg2: i32) -> (i32, i32) {
    %c0_i32 = arith.constant 0 : i32
    return %arg0, %arg2 : i32, i32
  }
  func.func @transform_1(%arg0: i32, %arg1: i32, %arg2: i32) -> (i32, i32) {
    %c0_i32 = arith.constant 0 : i32
    return %arg2, %arg1 : i32, i32
  }
  func.func @transform_2(%arg0: i32, %arg1: i32, %arg2: i32) -> (i32, i32) {
    %c0_i32 = arith.constant 0 : i32
    return %arg0, %arg1 : i32, i32
  }
}

module attributes {stable_mosaic.version = 11 : i64} {
  func.func @_mm_kernel_nn(%arg0: i32, %arg1: i32, %arg2: i32, %arg3: memref<32x512xbf16, #tpu.memory_space<vmem>>, %arg4: memref<512x256xbf16, #tpu.memory_space<vmem>>, %arg5: memref<32x256xf32, #tpu.memory_space<vmem>>) attributes {dimension_semantics = [#tpu.dimension_semantics<parallel>, #tpu.dimension_semantics<parallel>, #tpu.dimension_semantics<arbitrary>], iteration_bounds = array<i64: 1, 1, 1>, scalar_prefetch = 0 : i64, scratch_operands = 0 : i64, tpu.core_type = #tpu.core_type<tc>, window_params = [{transform_indices = @transform_0, window_bounds = array<i64: 32, 512>}, {transform_indices = @transform_1, window_bounds = array<i64: 512, 256>}, {transform_indices = @transform_2, window_bounds = array<i64: 32, 256>}]} {
    %c0_i32 = arith.constant 0 : i32
    %0 = arith.cmpi eq, %arg2, %c0_i32 : i32
    %1 = arith.extui %0 : i1 to i32
    %c0_i32_0 = arith.constant 0 : i32
    %2 = arith.cmpi ne, %1, %c0_i32_0 : i32
    scf.if %2 {
      %cst_8 = arith.constant 0.000000e+00 : f32
      %9 = vector.broadcast %cst_8 : f32 to vector<32x256xf32>
      %c0_9 = arith.constant 0 : index
      %c0_10 = arith.constant 0 : index
      %10 = vector.load %arg5[%c0_9, %c0_10] : memref<32x256xf32, #tpu.memory_space<vmem>>, vector<32x256xf32>
      tpu.vector_store %arg5[%c0_9, %c0_10], %9 {strides = array<i32>} : memref<32x256xf32, #tpu.memory_space<vmem>>, vector<32x256xf32>,
    } else {
    }
    %c0 = arith.constant 0 : index
    %c0_1 = arith.constant 0 : index
    %3 = vector.load %arg5[%c0, %c0_1] : memref<32x256xf32, #tpu.memory_space<vmem>>, vector<32x256xf32>
    %c0_2 = arith.constant 0 : index
    %c0_3 = arith.constant 0 : index
    %4 = vector.load %arg3[%c0_2, %c0_3] : memref<32x512xbf16, #tpu.memory_space<vmem>>, vector<32x512xbf16>
    %c0_4 = arith.constant 0 : index
    %c0_5 = arith.constant 0 : index
    %5 = vector.load %arg4[%c0_4, %c0_5] : memref<512x256xbf16, #tpu.memory_space<vmem>>, vector<512x256xbf16>
    %cst = arith.constant dense<0.000000e+00> : vector<32x256xf32>
    %6 = tpu.matmul %4, %5, %cst {dimension_numbers = #tpu.dot_dimension_numbers<[1], [0], [0], [1], [0, 0, 1, 1], [], []>} : vector<32x512xbf16>, vector<512x256xbf16>, vector<32x256xf32> -> vector<32x256xf32>
    %7 = arith.addf %3, %6 : vector<32x256xf32>
    %c0_6 = arith.constant 0 : index
    %c0_7 = arith.constant 0 : index
    %8 = vector.load %arg5[%c0_6, %c0_7] : memref<32x256xf32, #tpu.memory_space<vmem>>, vector<32x256xf32>
    tpu.vector_store %arg5[%c0_6, %c0_7], %7 {strides = array<i32>} : memref<32x256xf32, #tpu.memory_space<vmem>>, vector<32x256xf32>,
    return
  }
  func.func @transform_0(%arg0: i32, %arg1: i32, %arg2: i32) -> (i32, i32) {
    %c0_i32 = arith.constant 0 : i32
    return %arg0, %arg2 : i32, i32
  }
  func.func @transform_1(%arg0: i32, %arg1: i32, %arg2: i32) -> (i32, i32) {
    %c0_i32 = arith.constant 0 : i32
    return %arg2, %arg1 : i32, i32
  }
  func.func @transform_2(%arg0: i32, %arg1: i32, %arg2: i32) -> (i32, i32) {
    %c0_i32 = arith.constant 0 : i32
    return %arg0, %arg1 : i32, i32
  }
}

module attributes {stable_mosaic.version = 11 : i64} {
  func.func @_mm_kernel_nn(%arg0: i32, %arg1: i32, %arg2: i32, %arg3: memref<32x256xbf16, #tpu.memory_space<vmem>>, %arg4: memref<256x256xbf16, #tpu.memory_space<vmem>>, %arg5: memref<32x256xf32, #tpu.memory_space<vmem>>) attributes {dimension_semantics = [#tpu.dimension_semantics<parallel>, #tpu.dimension_semantics<parallel>, #tpu.dimension_semantics<arbitrary>], iteration_bounds = array<i64: 1, 1, 9>, scalar_prefetch = 0 : i64, scratch_operands = 0 : i64, tpu.core_type = #tpu.core_type<tc>, window_params = [{transform_indices = @transform_0, window_bounds = array<i64: 32, 256>}, {transform_indices = @transform_1, window_bounds = array<i64: 256, 256>}, {transform_indices = @transform_2, window_bounds = array<i64: 32, 256>}]} {
    %c0_i32 = arith.constant 0 : i32
    %0 = arith.cmpi eq, %arg2, %c0_i32 : i32
    %1 = arith.extui %0 : i1 to i32
    %c0_i32_0 = arith.constant 0 : i32
    %2 = arith.cmpi ne, %1, %c0_i32_0 : i32
    scf.if %2 {
      %cst_8 = arith.constant 0.000000e+00 : f32
      %9 = vector.broadcast %cst_8 : f32 to vector<32x256xf32>
      %c0_9 = arith.constant 0 : index
      %c0_10 = arith.constant 0 : index
      %10 = vector.load %arg5[%c0_9, %c0_10] : memref<32x256xf32, #tpu.memory_space<vmem>>, vector<32x256xf32>
      tpu.vector_store %arg5[%c0_9, %c0_10], %9 {strides = array<i32>} : memref<32x256xf32, #tpu.memory_space<vmem>>, vector<32x256xf32>,
    } else {
    }
    %c0 = arith.constant 0 : index
    %c0_1 = arith.constant 0 : index
    %3 = vector.load %arg5[%c0, %c0_1] : memref<32x256xf32, #tpu.memory_space<vmem>>, vector<32x256xf32>
    %c0_2 = arith.constant 0 : index
    %c0_3 = arith.constant 0 : index
    %4 = vector.load %arg3[%c0_2, %c0_3] : memref<32x256xbf16, #tpu.memory_space<vmem>>, vector<32x256xbf16>
    %c0_4 = arith.constant 0 : index
    %c0_5 = arith.constant 0 : index
    %5 = vector.load %arg4[%c0_4, %c0_5] : memref<256x256xbf16, #tpu.memory_space<vmem>>, vector<256x256xbf16>
    %cst = arith.constant dense<0.000000e+00> : vector<32x256xf32>
    %6 = tpu.matmul %4, %5, %cst {dimension_numbers = #tpu.dot_dimension_numbers<[1], [0], [0], [1], [0, 0, 1, 1], [], []>} : vector<32x256xbf16>, vector<256x256xbf16>, vector<32x256xf32> -> vector<32x256xf32>
    %7 = arith.addf %3, %6 : vector<32x256xf32>
    %c0_6 = arith.constant 0 : index
    %c0_7 = arith.constant 0 : index
    %8 = vector.load %arg5[%c0_6, %c0_7] : memref<32x256xf32, #tpu.memory_space<vmem>>, vector<32x256xf32>
    tpu.vector_store %arg5[%c0_6, %c0_7], %7 {strides = array<i32>} : memref<32x256xf32, #tpu.memory_space<vmem>>, vector<32x256xf32>,
    return
  }
  func.func @transform_0(%arg0: i32, %arg1: i32, %arg2: i32) -> (i32, i32) {
    %c0_i32 = arith.constant 0 : i32
    return %arg0, %arg2 : i32, i32
  }
  func.func @transform_1(%arg0: i32, %arg1: i32, %arg2: i32) -> (i32, i32) {
    %c0_i32 = arith.constant 0 : i32
    return %arg2, %arg1 : i32, i32
  }
  func.func @transform_2(%arg0: i32, %arg1: i32, %arg2: i32) -> (i32, i32) {
    %c0_i32 = arith.constant 0 : i32
    return %arg0, %arg1 : i32, i32
  }
}

module attributes {stable_mosaic.version = 11 : i64} {
  func.func @_mm_kernel_nn(%arg0: i32, %arg1: i32, %arg2: i32, %arg3: memref<16x512xbf16, #tpu.memory_space<vmem>>, %arg4: memref<512x256xbf16, #tpu.memory_space<vmem>>, %arg5: memref<16x256xf32, #tpu.memory_space<vmem>>) attributes {dimension_semantics = [#tpu.dimension_semantics<parallel>, #tpu.dimension_semantics<parallel>, #tpu.dimension_semantics<arbitrary>], iteration_bounds = array<i64: 1, 2, 2>, scalar_prefetch = 0 : i64, scratch_operands = 0 : i64, tpu.core_type = #tpu.core_type<tc>, window_params = [{transform_indices = @transform_0, window_bounds = array<i64: 16, 512>}, {transform_indices = @transform_1, window_bounds = array<i64: 512, 256>}, {transform_indices = @transform_2, window_bounds = array<i64: 16, 256>}]} {
    %c0_i32 = arith.constant 0 : i32
    %0 = arith.cmpi eq, %arg2, %c0_i32 : i32
    %1 = arith.extui %0 : i1 to i32
    %c0_i32_0 = arith.constant 0 : i32
    %2 = arith.cmpi ne, %1, %c0_i32_0 : i32
    scf.if %2 {
      %cst_8 = arith.constant 0.000000e+00 : f32
      %9 = vector.broadcast %cst_8 : f32 to vector<16x256xf32>
      %c0_9 = arith.constant 0 : index
      %c0_10 = arith.constant 0 : index
      %10 = vector.load %arg5[%c0_9, %c0_10] : memref<16x256xf32, #tpu.memory_space<vmem>>, vector<16x256xf32>
      tpu.vector_store %arg5[%c0_9, %c0_10], %9 {strides = array<i32>} : memref<16x256xf32, #tpu.memory_space<vmem>>, vector<16x256xf32>,
    } else {
    }
    %c0 = arith.constant 0 : index
    %c0_1 = arith.constant 0 : index
    %3 = vector.load %arg5[%c0, %c0_1] : memref<16x256xf32, #tpu.memory_space<vmem>>, vector<16x256xf32>
    %c0_2 = arith.constant 0 : index
    %c0_3 = arith.constant 0 : index
    %4 = vector.load %arg3[%c0_2, %c0_3] : memref<16x512xbf16, #tpu.memory_space<vmem>>, vector<16x512xbf16>
    %c0_4 = arith.constant 0 : index
    %c0_5 = arith.constant 0 : index
    %5 = vector.load %arg4[%c0_4, %c0_5] : memref<512x256xbf16, #tpu.memory_space<vmem>>, vector<512x256xbf16>
    %cst = arith.constant dense<0.000000e+00> : vector<16x256xf32>
    %6 = tpu.matmul %4, %5, %cst {dimension_numbers = #tpu.dot_dimension_numbers<[1], [0], [0], [1], [0, 0, 1, 1], [], []>} : vector<16x512xbf16>, vector<512x256xbf16>, vector<16x256xf32> -> vector<16x256xf32>
    %7 = arith.addf %3, %6 : vector<16x256xf32>
    %c0_6 = arith.constant 0 : index
    %c0_7 = arith.constant 0 : index
    %8 = vector.load %arg5[%c0_6, %c0_7] : memref<16x256xf32, #tpu.memory_space<vmem>>, vector<16x256xf32>
    tpu.vector_store %arg5[%c0_6, %c0_7], %7 {strides = array<i32>} : memref<16x256xf32, #tpu.memory_space<vmem>>, vector<16x256xf32>,
    return
  }
  func.func @transform_0(%arg0: i32, %arg1: i32, %arg2: i32) -> (i32, i32) {
    %c0_i32 = arith.constant 0 : i32
    return %arg0, %arg2 : i32, i32
  }
  func.func @transform_1(%arg0: i32, %arg1: i32, %arg2: i32) -> (i32, i32) {
    %c0_i32 = arith.constant 0 : i32
    return %arg2, %arg1 : i32, i32
  }
  func.func @transform_2(%arg0: i32, %arg1: i32, %arg2: i32) -> (i32, i32) {
    %c0_i32 = arith.constant 0 : i32
    return %arg0, %arg1 : i32, i32
  }
}

module attributes {stable_mosaic.version = 11 : i64} {
  func.func @_mm_kernel_nn(%arg0: i32, %arg1: i32, %arg2: i32, %arg3: memref<16x512xbf16, #tpu.memory_space<vmem>>, %arg4: memref<512x256xbf16, #tpu.memory_space<vmem>>, %arg5: memref<16x256xf32, #tpu.memory_space<vmem>>) attributes {dimension_semantics = [#tpu.dimension_semantics<parallel>, #tpu.dimension_semantics<parallel>, #tpu.dimension_semantics<arbitrary>], iteration_bounds = array<i64: 1, 2, 9>, scalar_prefetch = 0 : i64, scratch_operands = 0 : i64, tpu.core_type = #tpu.core_type<tc>, window_params = [{transform_indices = @transform_0, window_bounds = array<i64: 16, 512>}, {transform_indices = @transform_1, window_bounds = array<i64: 512, 256>}, {transform_indices = @transform_2, window_bounds = array<i64: 16, 256>}]} {
    %c0_i32 = arith.constant 0 : i32
    %0 = arith.cmpi eq, %arg2, %c0_i32 : i32
    %1 = arith.extui %0 : i1 to i32
    %c0_i32_0 = arith.constant 0 : i32
    %2 = arith.cmpi ne, %1, %c0_i32_0 : i32
    scf.if %2 {
      %cst_8 = arith.constant 0.000000e+00 : f32
      %9 = vector.broadcast %cst_8 : f32 to vector<16x256xf32>
      %c0_9 = arith.constant 0 : index
      %c0_10 = arith.constant 0 : index
      %10 = vector.load %arg5[%c0_9, %c0_10] : memref<16x256xf32, #tpu.memory_space<vmem>>, vector<16x256xf32>
      tpu.vector_store %arg5[%c0_9, %c0_10], %9 {strides = array<i32>} : memref<16x256xf32, #tpu.memory_space<vmem>>, vector<16x256xf32>,
    } else {
    }
    %c0 = arith.constant 0 : index
    %c0_1 = arith.constant 0 : index
    %3 = vector.load %arg5[%c0, %c0_1] : memref<16x256xf32, #tpu.memory_space<vmem>>, vector<16x256xf32>
    %c0_2 = arith.constant 0 : index
    %c0_3 = arith.constant 0 : index
    %4 = vector.load %arg3[%c0_2, %c0_3] : memref<16x512xbf16, #tpu.memory_space<vmem>>, vector<16x512xbf16>
    %c0_4 = arith.constant 0 : index
    %c0_5 = arith.constant 0 : index
    %5 = vector.load %arg4[%c0_4, %c0_5] : memref<512x256xbf16, #tpu.memory_space<vmem>>, vector<512x256xbf16>
    %cst = arith.constant dense<0.000000e+00> : vector<16x256xf32>
    %6 = tpu.matmul %4, %5, %cst {dimension_numbers = #tpu.dot_dimension_numbers<[1], [0], [0], [1], [0, 0, 1, 1], [], []>} : vector<16x512xbf16>, vector<512x256xbf16>, vector<16x256xf32> -> vector<16x256xf32>
    %7 = arith.addf %3, %6 : vector<16x256xf32>
    %c0_6 = arith.constant 0 : index
    %c0_7 = arith.constant 0 : index
    %8 = vector.load %arg5[%c0_6, %c0_7] : memref<16x256xf32, #tpu.memory_space<vmem>>, vector<16x256xf32>
    tpu.vector_store %arg5[%c0_6, %c0_7], %7 {strides = array<i32>} : memref<16x256xf32, #tpu.memory_space<vmem>>, vector<16x256xf32>,
    return
  }
  func.func @transform_0(%arg0: i32, %arg1: i32, %arg2: i32) -> (i32, i32) {
    %c0_i32 = arith.constant 0 : i32
    return %arg0, %arg2 : i32, i32
  }
  func.func @transform_1(%arg0: i32, %arg1: i32, %arg2: i32) -> (i32, i32) {
    %c0_i32 = arith.constant 0 : i32
    return %arg2, %arg1 : i32, i32
  }
  func.func @transform_2(%arg0: i32, %arg1: i32, %arg2: i32) -> (i32, i32) {
    %c0_i32 = arith.constant 0 : i32
    return %arg0, %arg1 : i32, i32
  }
}

module attributes {stable_mosaic.version = 11 : i64} {
  func.func @_mm_kernel_nn(%arg0: i32, %arg1: i32, %arg2: i32, %arg3: memref<16x512xbf16, #tpu.memory_space<vmem>>, %arg4: memref<512x256xbf16, #tpu.memory_space<vmem>>, %arg5: memref<16x256xf32, #tpu.memory_space<vmem>>) attributes {dimension_semantics = [#tpu.dimension_semantics<parallel>, #tpu.dimension_semantics<parallel>, #tpu.dimension_semantics<arbitrary>], iteration_bounds = array<i64: 1, 4, 1>, scalar_prefetch = 0 : i64, scratch_operands = 0 : i64, tpu.core_type = #tpu.core_type<tc>, window_params = [{transform_indices = @transform_0, window_bounds = array<i64: 16, 512>}, {transform_indices = @transform_1, window_bounds = array<i64: 512, 256>}, {transform_indices = @transform_2, window_bounds = array<i64: 16, 256>}]} {
    %c0_i32 = arith.constant 0 : i32
    %0 = arith.cmpi eq, %arg2, %c0_i32 : i32
    %1 = arith.extui %0 : i1 to i32
    %c0_i32_0 = arith.constant 0 : i32
    %2 = arith.cmpi ne, %1, %c0_i32_0 : i32
    scf.if %2 {
      %cst_8 = arith.constant 0.000000e+00 : f32
      %9 = vector.broadcast %cst_8 : f32 to vector<16x256xf32>
      %c0_9 = arith.constant 0 : index
      %c0_10 = arith.constant 0 : index
      %10 = vector.load %arg5[%c0_9, %c0_10] : memref<16x256xf32, #tpu.memory_space<vmem>>, vector<16x256xf32>
      tpu.vector_store %arg5[%c0_9, %c0_10], %9 {strides = array<i32>} : memref<16x256xf32, #tpu.memory_space<vmem>>, vector<16x256xf32>,
    } else {
    }
    %c0 = arith.constant 0 : index
    %c0_1 = arith.constant 0 : index
    %3 = vector.load %arg5[%c0, %c0_1] : memref<16x256xf32, #tpu.memory_space<vmem>>, vector<16x256xf32>
    %c0_2 = arith.constant 0 : index
    %c0_3 = arith.constant 0 : index
    %4 = vector.load %arg3[%c0_2, %c0_3] : memref<16x512xbf16, #tpu.memory_space<vmem>>, vector<16x512xbf16>
    %c0_4 = arith.constant 0 : index
    %c0_5 = arith.constant 0 : index
    %5 = vector.load %arg4[%c0_4, %c0_5] : memref<512x256xbf16, #tpu.memory_space<vmem>>, vector<512x256xbf16>
    %cst = arith.constant dense<0.000000e+00> : vector<16x256xf32>
    %6 = tpu.matmul %4, %5, %cst {dimension_numbers = #tpu.dot_dimension_numbers<[1], [0], [0], [1], [0, 0, 1, 1], [], []>} : vector<16x512xbf16>, vector<512x256xbf16>, vector<16x256xf32> -> vector<16x256xf32>
    %7 = arith.addf %3, %6 : vector<16x256xf32>
    %c0_6 = arith.constant 0 : index
    %c0_7 = arith.constant 0 : index
    %8 = vector.load %arg5[%c0_6, %c0_7] : memref<16x256xf32, #tpu.memory_space<vmem>>, vector<16x256xf32>
    tpu.vector_store %arg5[%c0_6, %c0_7], %7 {strides = array<i32>} : memref<16x256xf32, #tpu.memory_space<vmem>>, vector<16x256xf32>,
    return
  }
  func.func @transform_0(%arg0: i32, %arg1: i32, %arg2: i32) -> (i32, i32) {
    %c0_i32 = arith.constant 0 : i32
    return %arg0, %arg2 : i32, i32
  }
  func.func @transform_1(%arg0: i32, %arg1: i32, %arg2: i32) -> (i32, i32) {
    %c0_i32 = arith.constant 0 : i32
    return %arg2, %arg1 : i32, i32
  }
  func.func @transform_2(%arg0: i32, %arg1: i32, %arg2: i32) -> (i32, i32) {
    %c0_i32 = arith.constant 0 : i32
    return %arg0, %arg1 : i32, i32
  }
}

module attributes {stable_mosaic.version = 11 : i64} {
  func.func @_mm_kernel_nn(%arg0: i32, %arg1: i32, %arg2: i32, %arg3: memref<32x256xbf16, #tpu.memory_space<vmem>>, %arg4: memref<256x256xbf16, #tpu.memory_space<vmem>>, %arg5: memref<32x256xf32, #tpu.memory_space<vmem>>) attributes {dimension_semantics = [#tpu.dimension_semantics<parallel>, #tpu.dimension_semantics<parallel>, #tpu.dimension_semantics<arbitrary>], iteration_bounds = array<i64: 1, 2, 1>, scalar_prefetch = 0 : i64, scratch_operands = 0 : i64, tpu.core_type = #tpu.core_type<tc>, window_params = [{transform_indices = @transform_0, window_bounds = array<i64: 32, 256>}, {transform_indices = @transform_1, window_bounds = array<i64: 256, 256>}, {transform_indices = @transform_2, window_bounds = array<i64: 32, 256>}]} {
    %c0_i32 = arith.constant 0 : i32
    %0 = arith.cmpi eq, %arg2, %c0_i32 : i32
    %1 = arith.extui %0 : i1 to i32
    %c0_i32_0 = arith.constant 0 : i32
    %2 = arith.cmpi ne, %1, %c0_i32_0 : i32
    scf.if %2 {
      %cst_8 = arith.constant 0.000000e+00 : f32
      %9 = vector.broadcast %cst_8 : f32 to vector<32x256xf32>
      %c0_9 = arith.constant 0 : index
      %c0_10 = arith.constant 0 : index
      %10 = vector.load %arg5[%c0_9, %c0_10] : memref<32x256xf32, #tpu.memory_space<vmem>>, vector<32x256xf32>
      tpu.vector_store %arg5[%c0_9, %c0_10], %9 {strides = array<i32>} : memref<32x256xf32, #tpu.memory_space<vmem>>, vector<32x256xf32>,
    } else {
    }
    %c0 = arith.constant 0 : index
    %c0_1 = arith.constant 0 : index
    %3 = vector.load %arg5[%c0, %c0_1] : memref<32x256xf32, #tpu.memory_space<vmem>>, vector<32x256xf32>
    %c0_2 = arith.constant 0 : index
    %c0_3 = arith.constant 0 : index
    %4 = vector.load %arg3[%c0_2, %c0_3] : memref<32x256xbf16, #tpu.memory_space<vmem>>, vector<32x256xbf16>
    %c0_4 = arith.constant 0 : index
    %c0_5 = arith.constant 0 : index
    %5 = vector.load %arg4[%c0_4, %c0_5] : memref<256x256xbf16, #tpu.memory_space<vmem>>, vector<256x256xbf16>
    %cst = arith.constant dense<0.000000e+00> : vector<32x256xf32>
    %6 = tpu.matmul %4, %5, %cst {dimension_numbers = #tpu.dot_dimension_numbers<[1], [0], [0], [1], [0, 0, 1, 1], [], []>} : vector<32x256xbf16>, vector<256x256xbf16>, vector<32x256xf32> -> vector<32x256xf32>
    %7 = arith.addf %3, %6 : vector<32x256xf32>
    %c0_6 = arith.constant 0 : index
    %c0_7 = arith.constant 0 : index
    %8 = vector.load %arg5[%c0_6, %c0_7] : memref<32x256xf32, #tpu.memory_space<vmem>>, vector<32x256xf32>
    tpu.vector_store %arg5[%c0_6, %c0_7], %7 {strides = array<i32>} : memref<32x256xf32, #tpu.memory_space<vmem>>, vector<32x256xf32>,
    return
  }
  func.func @transform_0(%arg0: i32, %arg1: i32, %arg2: i32) -> (i32, i32) {
    %c0_i32 = arith.constant 0 : i32
    return %arg0, %arg2 : i32, i32
  }
  func.func @transform_1(%arg0: i32, %arg1: i32, %arg2: i32) -> (i32, i32) {
    %c0_i32 = arith.constant 0 : i32
    return %arg2, %arg1 : i32, i32
  }
  func.func @transform_2(%arg0: i32, %arg1: i32, %arg2: i32) -> (i32, i32) {
    %c0_i32 = arith.constant 0 : i32
    return %arg0, %arg1 : i32, i32
  }
}

module attributes {stable_mosaic.version = 11 : i64} {
  func.func @_mm_kernel_nn(%arg0: i32, %arg1: i32, %arg2: i32, %arg3: memref<128x128xbf16, #tpu.memory_space<vmem>>, %arg4: memref<128x256xbf16, #tpu.memory_space<vmem>>, %arg5: memref<128x256xf32, #tpu.memory_space<vmem>>) attributes {dimension_semantics = [#tpu.dimension_semantics<parallel>, #tpu.dimension_semantics<parallel>, #tpu.dimension_semantics<arbitrary>], iteration_bounds = array<i64: 1, 1, 1>, scalar_prefetch = 0 : i64, scratch_operands = 0 : i64, tpu.core_type = #tpu.core_type<tc>, window_params = [{transform_indices = @transform_0, window_bounds = array<i64: 128, 128>}, {transform_indices = @transform_1, window_bounds = array<i64: 128, 256>}, {transform_indices = @transform_2, window_bounds = array<i64: 128, 256>}]} {
    %c0_i32 = arith.constant 0 : i32
    %0 = arith.cmpi eq, %arg2, %c0_i32 : i32
    %1 = arith.extui %0 : i1 to i32
    %c0_i32_0 = arith.constant 0 : i32
    %2 = arith.cmpi ne, %1, %c0_i32_0 : i32
    scf.if %2 {
      %cst_8 = arith.constant 0.000000e+00 : f32
      %9 = vector.broadcast %cst_8 : f32 to vector<128x256xf32>
      %c0_9 = arith.constant 0 : index
      %c0_10 = arith.constant 0 : index
      %10 = vector.load %arg5[%c0_9, %c0_10] : memref<128x256xf32, #tpu.memory_space<vmem>>, vector<128x256xf32>
      tpu.vector_store %arg5[%c0_9, %c0_10], %9 {strides = array<i32>} : memref<128x256xf32, #tpu.memory_space<vmem>>, vector<128x256xf32>,
    } else {
    }
    %c0 = arith.constant 0 : index
    %c0_1 = arith.constant 0 : index
    %3 = vector.load %arg5[%c0, %c0_1] : memref<128x256xf32, #tpu.memory_space<vmem>>, vector<128x256xf32>
    %c0_2 = arith.constant 0 : index
    %c0_3 = arith.constant 0 : index
    %4 = vector.load %arg3[%c0_2, %c0_3] : memref<128x128xbf16, #tpu.memory_space<vmem>>, vector<128x128xbf16>
    %c0_4 = arith.constant 0 : index
    %c0_5 = arith.constant 0 : index
    %5 = vector.load %arg4[%c0_4, %c0_5] : memref<128x256xbf16, #tpu.memory_space<vmem>>, vector<128x256xbf16>
    %cst = arith.constant dense<0.000000e+00> : vector<128x256xf32>
    %6 = tpu.matmul %4, %5, %cst {dimension_numbers = #tpu.dot_dimension_numbers<[1], [0], [0], [1], [0, 0, 1, 1], [], []>} : vector<128x128xbf16>, vector<128x256xbf16>, vector<128x256xf32> -> vector<128x256xf32>
    %7 = arith.addf %3, %6 : vector<128x256xf32>
    %c0_6 = arith.constant 0 : index
    %c0_7 = arith.constant 0 : index
    %8 = vector.load %arg5[%c0_6, %c0_7] : memref<128x256xf32, #tpu.memory_space<vmem>>, vector<128x256xf32>
    tpu.vector_store %arg5[%c0_6, %c0_7], %7 {strides = array<i32>} : memref<128x256xf32, #tpu.memory_space<vmem>>, vector<128x256xf32>,
    return
  }
  func.func @transform_0(%arg0: i32, %arg1: i32, %arg2: i32) -> (i32, i32) {
    %c0_i32 = arith.constant 0 : i32
    return %arg0, %arg2 : i32, i32
  }
  func.func @transform_1(%arg0: i32, %arg1: i32, %arg2: i32) -> (i32, i32) {
    %c0_i32 = arith.constant 0 : i32
    return %arg2, %arg1 : i32, i32
  }
  func.func @transform_2(%arg0: i32, %arg1: i32, %arg2: i32) -> (i32, i32) {
    %c0_i32 = arith.constant 0 : i32
    return %arg0, %arg1 : i32, i32
  }
}

module attributes {stable_mosaic.version = 11 : i64} {
  func.func @_mm_kernel_nt(%arg0: i32, %arg1: i32, %arg2: i32, %arg3: memref<256x128xbf16, #tpu.memory_space<vmem>>, %arg4: memref<128x128xbf16, #tpu.memory_space<vmem>>, %arg5: memref<256x128xf32, #tpu.memory_space<vmem>>) attributes {dimension_semantics = [#tpu.dimension_semantics<parallel>, #tpu.dimension_semantics<parallel>, #tpu.dimension_semantics<arbitrary>], iteration_bounds = array<i64: 2, 5, 1>, scalar_prefetch = 0 : i64, scratch_operands = 0 : i64, tpu.core_type = #tpu.core_type<tc>, window_params = [{transform_indices = @transform_0, window_bounds = array<i64: 256, 128>}, {transform_indices = @transform_1, window_bounds = array<i64: 128, 128>}, {transform_indices = @transform_2, window_bounds = array<i64: 256, 128>}]} {
    %c0_i32 = arith.constant 0 : i32
    %0 = arith.cmpi eq, %arg2, %c0_i32 : i32
    %1 = arith.extui %0 : i1 to i32
    %c0_i32_0 = arith.constant 0 : i32
    %2 = arith.cmpi ne, %1, %c0_i32_0 : i32
    scf.if %2 {
      %cst_8 = arith.constant 0.000000e+00 : f32
      %9 = vector.broadcast %cst_8 : f32 to vector<256x128xf32>
      %c0_9 = arith.constant 0 : index
      %c0_10 = arith.constant 0 : index
      %10 = vector.load %arg5[%c0_9, %c0_10] : memref<256x128xf32, #tpu.memory_space<vmem>>, vector<256x128xf32>
      tpu.vector_store %arg5[%c0_9, %c0_10], %9 {strides = array<i32>} : memref<256x128xf32, #tpu.memory_space<vmem>>, vector<256x128xf32>,
    } else {
    }
    %c0 = arith.constant 0 : index
    %c0_1 = arith.constant 0 : index
    %3 = vector.load %arg5[%c0, %c0_1] : memref<256x128xf32, #tpu.memory_space<vmem>>, vector<256x128xf32>
    %c0_2 = arith.constant 0 : index
    %c0_3 = arith.constant 0 : index
    %4 = vector.load %arg3[%c0_2, %c0_3] : memref<256x128xbf16, #tpu.memory_space<vmem>>, vector<256x128xbf16>
    %c0_4 = arith.constant 0 : index
    %c0_5 = arith.constant 0 : index
    %5 = vector.load %arg4[%c0_4, %c0_5] : memref<128x128xbf16, #tpu.memory_space<vmem>>, vector<128x128xbf16>
    %cst = arith.constant dense<0.000000e+00> : vector<256x128xf32>
    %6 = tpu.matmul %4, %5, %cst {dimension_numbers = #tpu.dot_dimension_numbers<[1], [1], [0], [0], [0, 0, 1, 0], [], []>} : vector<256x128xbf16>, vector<128x128xbf16>, vector<256x128xf32> -> vector<256x128xf32>
    %7 = arith.addf %3, %6 : vector<256x128xf32>
    %c0_6 = arith.constant 0 : index
    %c0_7 = arith.constant 0 : index
    %8 = vector.load %arg5[%c0_6, %c0_7] : memref<256x128xf32, #tpu.memory_space<vmem>>, vector<256x128xf32>
    tpu.vector_store %arg5[%c0_6, %c0_7], %7 {strides = array<i32>} : memref<256x128xf32, #tpu.memory_space<vmem>>, vector<256x128xf32>,
    return
  }
  func.func @transform_0(%arg0: i32, %arg1: i32, %arg2: i32) -> (i32, i32) {
    %c0_i32 = arith.constant 0 : i32
    return %arg0, %arg2 : i32, i32
  }
  func.func @transform_1(%arg0: i32, %arg1: i32, %arg2: i32) -> (i32, i32) {
    %c0_i32 = arith.constant 0 : i32
    return %arg1, %arg2 : i32, i32
  }
  func.func @transform_2(%arg0: i32, %arg1: i32, %arg2: i32) -> (i32, i32) {
    %c0_i32 = arith.constant 0 : i32
    return %arg0, %arg1 : i32, i32
  }
}

module attributes {stable_mosaic.version = 11 : i64} {
  func.func @_mm_kernel_nt(%arg0: i32, %arg1: i32, %arg2: i32, %arg3: memref<256x128xbf16, #tpu.memory_space<vmem>>, %arg4: memref<128x128xbf16, #tpu.memory_space<vmem>>, %arg5: memref<256x128xf32, #tpu.memory_space<vmem>>) attributes {dimension_semantics = [#tpu.dimension_semantics<parallel>, #tpu.dimension_semantics<parallel>, #tpu.dimension_semantics<arbitrary>], iteration_bounds = array<i64: 2, 5, 1>, scalar_prefetch = 0 : i64, scratch_operands = 0 : i64, tpu.core_type = #tpu.core_type<tc>, window_params = [{transform_indices = @transform_0, window_bounds = array<i64: 256, 128>}, {transform_indices = @transform_1, window_bounds = array<i64: 128, 128>}, {transform_indices = @transform_2, window_bounds = array<i64: 256, 128>}]} {
    %c0_i32 = arith.constant 0 : i32
    %0 = arith.cmpi eq, %arg2, %c0_i32 : i32
    %1 = arith.extui %0 : i1 to i32
    %c0_i32_0 = arith.constant 0 : i32
    %2 = arith.cmpi ne, %1, %c0_i32_0 : i32
    scf.if %2 {
      %cst_8 = arith.constant 0.000000e+00 : f32
      %9 = vector.broadcast %cst_8 : f32 to vector<256x128xf32>
      %c0_9 = arith.constant 0 : index
      %c0_10 = arith.constant 0 : index
      %10 = vector.load %arg5[%c0_9, %c0_10] : memref<256x128xf32, #tpu.memory_space<vmem>>, vector<256x128xf32>
      tpu.vector_store %arg5[%c0_9, %c0_10], %9 {strides = array<i32>} : memref<256x128xf32, #tpu.memory_space<vmem>>, vector<256x128xf32>,
    } else {
    }
    %c0 = arith.constant 0 : index
    %c0_1 = arith.constant 0 : index
    %3 = vector.load %arg5[%c0, %c0_1] : memref<256x128xf32, #tpu.memory_space<vmem>>, vector<256x128xf32>
    %c0_2 = arith.constant 0 : index
    %c0_3 = arith.constant 0 : index
    %4 = vector.load %arg3[%c0_2, %c0_3] : memref<256x128xbf16, #tpu.memory_space<vmem>>, vector<256x128xbf16>
    %c0_4 = arith.constant 0 : index
    %c0_5 = arith.constant 0 : index
    %5 = vector.load %arg4[%c0_4, %c0_5] : memref<128x128xbf16, #tpu.memory_space<vmem>>, vector<128x128xbf16>
    %cst = arith.constant dense<0.000000e+00> : vector<256x128xf32>
    %6 = tpu.matmul %4, %5, %cst {dimension_numbers = #tpu.dot_dimension_numbers<[1], [1], [0], [0], [0, 0, 1, 0], [], []>} : vector<256x128xbf16>, vector<128x128xbf16>, vector<256x128xf32> -> vector<256x128xf32>
    %7 = arith.addf %3, %6 : vector<256x128xf32>
    %c0_6 = arith.constant 0 : index
    %c0_7 = arith.constant 0 : index
    %8 = vector.load %arg5[%c0_6, %c0_7] : memref<256x128xf32, #tpu.memory_space<vmem>>, vector<256x128xf32>
    tpu.vector_store %arg5[%c0_6, %c0_7], %7 {strides = array<i32>} : memref<256x128xf32, #tpu.memory_space<vmem>>, vector<256x128xf32>,
    return
  }
  func.func @transform_0(%arg0: i32, %arg1: i32, %arg2: i32) -> (i32, i32) {
    %c0_i32 = arith.constant 0 : i32
    return %arg0, %arg2 : i32, i32
  }
  func.func @transform_1(%arg0: i32, %arg1: i32, %arg2: i32) -> (i32, i32) {
    %c0_i32 = arith.constant 0 : i32
    return %arg1, %arg2 : i32, i32
  }
  func.func @transform_2(%arg0: i32, %arg1: i32, %arg2: i32) -> (i32, i32) {
    %c0_i32 = arith.constant 0 : i32
    return %arg0, %arg1 : i32, i32
  }
}

module attributes {stable_mosaic.version = 11 : i64} {
  func.func @_mm_kernel_nt(%arg0: i32, %arg1: i32, %arg2: i32, %arg3: memref<256x128xbf16, #tpu.memory_space<vmem>>, %arg4: memref<128x128xbf16, #tpu.memory_space<vmem>>, %arg5: memref<256x128xf32, #tpu.memory_space<vmem>>) attributes {dimension_semantics = [#tpu.dimension_semantics<parallel>, #tpu.dimension_semantics<parallel>, #tpu.dimension_semantics<arbitrary>], iteration_bounds = array<i64: 2, 5, 1>, scalar_prefetch = 0 : i64, scratch_operands = 0 : i64, tpu.core_type = #tpu.core_type<tc>, window_params = [{transform_indices = @transform_0, window_bounds = array<i64: 256, 128>}, {transform_indices = @transform_1, window_bounds = array<i64: 128, 128>}, {transform_indices = @transform_2, window_bounds = array<i64: 256, 128>}]} {
    %c0_i32 = arith.constant 0 : i32
    %0 = arith.cmpi eq, %arg2, %c0_i32 : i32
    %1 = arith.extui %0 : i1 to i32
    %c0_i32_0 = arith.constant 0 : i32
    %2 = arith.cmpi ne, %1, %c0_i32_0 : i32
    scf.if %2 {
      %cst_8 = arith.constant 0.000000e+00 : f32
      %9 = vector.broadcast %cst_8 : f32 to vector<256x128xf32>
      %c0_9 = arith.constant 0 : index
      %c0_10 = arith.constant 0 : index
      %10 = vector.load %arg5[%c0_9, %c0_10] : memref<256x128xf32, #tpu.memory_space<vmem>>, vector<256x128xf32>
      tpu.vector_store %arg5[%c0_9, %c0_10], %9 {strides = array<i32>} : memref<256x128xf32, #tpu.memory_space<vmem>>, vector<256x128xf32>,
    } else {
    }
    %c0 = arith.constant 0 : index
    %c0_1 = arith.constant 0 : index
    %3 = vector.load %arg5[%c0, %c0_1] : memref<256x128xf32, #tpu.memory_space<vmem>>, vector<256x128xf32>
    %c0_2 = arith.constant 0 : index
    %c0_3 = arith.constant 0 : index
    %4 = vector.load %arg3[%c0_2, %c0_3] : memref<256x128xbf16, #tpu.memory_space<vmem>>, vector<256x128xbf16>
    %c0_4 = arith.constant 0 : index
    %c0_5 = arith.constant 0 : index
    %5 = vector.load %arg4[%c0_4, %c0_5] : memref<128x128xbf16, #tpu.memory_space<vmem>>, vector<128x128xbf16>
    %cst = arith.constant dense<0.000000e+00> : vector<256x128xf32>
    %6 = tpu.matmul %4, %5, %cst {dimension_numbers = #tpu.dot_dimension_numbers<[1], [1], [0], [0], [0, 0, 1, 0], [], []>} : vector<256x128xbf16>, vector<128x128xbf16>, vector<256x128xf32> -> vector<256x128xf32>
    %7 = arith.addf %3, %6 : vector<256x128xf32>
    %c0_6 = arith.constant 0 : index
    %c0_7 = arith.constant 0 : index
    %8 = vector.load %arg5[%c0_6, %c0_7] : memref<256x128xf32, #tpu.memory_space<vmem>>, vector<256x128xf32>
    tpu.vector_store %arg5[%c0_6, %c0_7], %7 {strides = array<i32>} : memref<256x128xf32, #tpu.memory_space<vmem>>, vector<256x128xf32>,
    return
  }
  func.func @transform_0(%arg0: i32, %arg1: i32, %arg2: i32) -> (i32, i32) {
    %c0_i32 = arith.constant 0 : i32
    return %arg0, %arg2 : i32, i32
  }
  func.func @transform_1(%arg0: i32, %arg1: i32, %arg2: i32) -> (i32, i32) {
    %c0_i32 = arith.constant 0 : i32
    return %arg1, %arg2 : i32, i32
  }
  func.func @transform_2(%arg0: i32, %arg1: i32, %arg2: i32) -> (i32, i32) {
    %c0_i32 = arith.constant 0 : i32
    return %arg0, %arg1 : i32, i32
  }
}

module attributes {stable_mosaic.version = 11 : i64} {
  func.func @_mm_kernel_nt(%arg0: i32, %arg1: i32, %arg2: i32, %arg3: memref<128x256xbf16, #tpu.memory_space<vmem>>, %arg4: memref<128x256xbf16, #tpu.memory_space<vmem>>, %arg5: memref<128x128xf32, #tpu.memory_space<vmem>>) attributes {dimension_semantics = [#tpu.dimension_semantics<parallel>, #tpu.dimension_semantics<parallel>, #tpu.dimension_semantics<arbitrary>], iteration_bounds = array<i64: 1, 1, 1>, scalar_prefetch = 0 : i64, scratch_operands = 0 : i64, tpu.core_type = #tpu.core_type<tc>, window_params = [{transform_indices = @transform_0, window_bounds = array<i64: 128, 256>}, {transform_indices = @transform_1, window_bounds = array<i64: 128, 256>}, {transform_indices = @transform_2, window_bounds = array<i64: 128, 128>}]} {
    %c0_i32 = arith.constant 0 : i32
    %0 = arith.cmpi eq, %arg2, %c0_i32 : i32
    %1 = arith.extui %0 : i1 to i32
    %c0_i32_0 = arith.constant 0 : i32
    %2 = arith.cmpi ne, %1, %c0_i32_0 : i32
    scf.if %2 {
      %cst_8 = arith.constant 0.000000e+00 : f32
      %9 = vector.broadcast %cst_8 : f32 to vector<128x128xf32>
      %c0_9 = arith.constant 0 : index
      %c0_10 = arith.constant 0 : index
      %10 = vector.load %arg5[%c0_9, %c0_10] : memref<128x128xf32, #tpu.memory_space<vmem>>, vector<128x128xf32>
      tpu.vector_store %arg5[%c0_9, %c0_10], %9 {strides = array<i32>} : memref<128x128xf32, #tpu.memory_space<vmem>>, vector<128x128xf32>,
    } else {
    }
    %c0 = arith.constant 0 : index
    %c0_1 = arith.constant 0 : index
    %3 = vector.load %arg5[%c0, %c0_1] : memref<128x128xf32, #tpu.memory_space<vmem>>, vector<128x128xf32>
    %c0_2 = arith.constant 0 : index
    %c0_3 = arith.constant 0 : index
    %4 = vector.load %arg3[%c0_2, %c0_3] : memref<128x256xbf16, #tpu.memory_space<vmem>>, vector<128x256xbf16>
    %c0_4 = arith.constant 0 : index
    %c0_5 = arith.constant 0 : index
    %5 = vector.load %arg4[%c0_4, %c0_5] : memref<128x256xbf16, #tpu.memory_space<vmem>>, vector<128x256xbf16>
    %cst = arith.constant dense<0.000000e+00> : vector<128x128xf32>
    %6 = tpu.matmul %4, %5, %cst {dimension_numbers = #tpu.dot_dimension_numbers<[1], [1], [0], [0], [0, 0, 1, 0], [], []>} : vector<128x256xbf16>, vector<128x256xbf16>, vector<128x128xf32> -> vector<128x128xf32>
    %7 = arith.addf %3, %6 : vector<128x128xf32>
    %c0_6 = arith.constant 0 : index
    %c0_7 = arith.constant 0 : index
    %8 = vector.load %arg5[%c0_6, %c0_7] : memref<128x128xf32, #tpu.memory_space<vmem>>, vector<128x128xf32>
    tpu.vector_store %arg5[%c0_6, %c0_7], %7 {strides = array<i32>} : memref<128x128xf32, #tpu.memory_space<vmem>>, vector<128x128xf32>,
    return
  }
  func.func @transform_0(%arg0: i32, %arg1: i32, %arg2: i32) -> (i32, i32) {
    %c0_i32 = arith.constant 0 : i32
    return %arg0, %arg2 : i32, i32
  }
  func.func @transform_1(%arg0: i32, %arg1: i32, %arg2: i32) -> (i32, i32) {
    %c0_i32 = arith.constant 0 : i32
    return %arg1, %arg2 : i32, i32
  }
  func.func @transform_2(%arg0: i32, %arg1: i32, %arg2: i32) -> (i32, i32) {
    %c0_i32 = arith.constant 0 : i32
    return %arg0, %arg1 : i32, i32
  }
}

module attributes {stable_mosaic.version = 11 : i64} {
  func.func @_mm_kernel_nt(%arg0: i32, %arg1: i32, %arg2: i32, %arg3: memref<128x128xbf16, #tpu.memory_space<vmem>>, %arg4: memref<128x128xbf16, #tpu.memory_space<vmem>>, %arg5: memref<128x128xf32, #tpu.memory_space<vmem>>) attributes {dimension_semantics = [#tpu.dimension_semantics<parallel>, #tpu.dimension_semantics<parallel>, #tpu.dimension_semantics<arbitrary>], iteration_bounds = array<i64: 1, 9, 1>, scalar_prefetch = 0 : i64, scratch_operands = 0 : i64, tpu.core_type = #tpu.core_type<tc>, window_params = [{transform_indices = @transform_0, window_bounds = array<i64: 128, 128>}, {transform_indices = @transform_1, window_bounds = array<i64: 128, 128>}, {transform_indices = @transform_2, window_bounds = array<i64: 128, 128>}]} {
    %c0_i32 = arith.constant 0 : i32
    %0 = arith.cmpi eq, %arg2, %c0_i32 : i32
    %1 = arith.extui %0 : i1 to i32
    %c0_i32_0 = arith.constant 0 : i32
    %2 = arith.cmpi ne, %1, %c0_i32_0 : i32
    scf.if %2 {
      %cst_8 = arith.constant 0.000000e+00 : f32
      %9 = vector.broadcast %cst_8 : f32 to vector<128x128xf32>
      %c0_9 = arith.constant 0 : index
      %c0_10 = arith.constant 0 : index
      %10 = vector.load %arg5[%c0_9, %c0_10] : memref<128x128xf32, #tpu.memory_space<vmem>>, vector<128x128xf32>
      tpu.vector_store %arg5[%c0_9, %c0_10], %9 {strides = array<i32>} : memref<128x128xf32, #tpu.memory_space<vmem>>, vector<128x128xf32>,
    } else {
    }
    %c0 = arith.constant 0 : index
    %c0_1 = arith.constant 0 : index
    %3 = vector.load %arg5[%c0, %c0_1] : memref<128x128xf32, #tpu.memory_space<vmem>>, vector<128x128xf32>
    %c0_2 = arith.constant 0 : index
    %c0_3 = arith.constant 0 : index
    %4 = vector.load %arg3[%c0_2, %c0_3] : memref<128x128xbf16, #tpu.memory_space<vmem>>, vector<128x128xbf16>
    %c0_4 = arith.constant 0 : index
    %c0_5 = arith.constant 0 : index
    %5 = vector.load %arg4[%c0_4, %c0_5] : memref<128x128xbf16, #tpu.memory_space<vmem>>, vector<128x128xbf16>
    %cst = arith.constant dense<0.000000e+00> : vector<128x128xf32>
    %6 = tpu.matmul %4, %5, %cst {dimension_numbers = #tpu.dot_dimension_numbers<[1], [1], [0], [0], [0, 0, 1, 0], [], []>} : vector<128x128xbf16>, vector<128x128xbf16>, vector<128x128xf32> -> vector<128x128xf32>
    %7 = arith.addf %3, %6 : vector<128x128xf32>
    %c0_6 = arith.constant 0 : index
    %c0_7 = arith.constant 0 : index
    %8 = vector.load %arg5[%c0_6, %c0_7] : memref<128x128xf32, #tpu.memory_space<vmem>>, vector<128x128xf32>
    tpu.vector_store %arg5[%c0_6, %c0_7], %7 {strides = array<i32>} : memref<128x128xf32, #tpu.memory_space<vmem>>, vector<128x128xf32>,
    return
  }
  func.func @transform_0(%arg0: i32, %arg1: i32, %arg2: i32) -> (i32, i32) {
    %c0_i32 = arith.constant 0 : i32
    return %arg0, %arg2 : i32, i32
  }
  func.func @transform_1(%arg0: i32, %arg1: i32, %arg2: i32) -> (i32, i32) {
    %c0_i32 = arith.constant 0 : i32
    return %arg1, %arg2 : i32, i32
  }
  func.func @transform_2(%arg0: i32, %arg1: i32, %arg2: i32) -> (i32, i32) {
    %c0_i32 = arith.constant 0 : i32
    return %arg0, %arg1 : i32, i32
  }
}

module attributes {stable_mosaic.version = 11 : i64} {
  func.func @_mm_kernel_nt(%arg0: i32, %arg1: i32, %arg2: i32, %arg3: memref<32x256xbf16, #tpu.memory_space<vmem>>, %arg4: memref<256x256xbf16, #tpu.memory_space<vmem>>, %arg5: memref<32x256xf32, #tpu.memory_space<vmem>>) attributes {dimension_semantics = [#tpu.dimension_semantics<parallel>, #tpu.dimension_semantics<parallel>, #tpu.dimension_semantics<arbitrary>], iteration_bounds = array<i64: 1, 9, 1>, scalar_prefetch = 0 : i64, scratch_operands = 0 : i64, tpu.core_type = #tpu.core_type<tc>, window_params = [{transform_indices = @transform_0, window_bounds = array<i64: 32, 256>}, {transform_indices = @transform_1, window_bounds = array<i64: 256, 256>}, {transform_indices = @transform_2, window_bounds = array<i64: 32, 256>}]} {
    %c0_i32 = arith.constant 0 : i32
    %0 = arith.cmpi eq, %arg2, %c0_i32 : i32
    %1 = arith.extui %0 : i1 to i32
    %c0_i32_0 = arith.constant 0 : i32
    %2 = arith.cmpi ne, %1, %c0_i32_0 : i32
    scf.if %2 {
      %cst_8 = arith.constant 0.000000e+00 : f32
      %9 = vector.broadcast %cst_8 : f32 to vector<32x256xf32>
      %c0_9 = arith.constant 0 : index
      %c0_10 = arith.constant 0 : index
      %10 = vector.load %arg5[%c0_9, %c0_10] : memref<32x256xf32, #tpu.memory_space<vmem>>, vector<32x256xf32>
      tpu.vector_store %arg5[%c0_9, %c0_10], %9 {strides = array<i32>} : memref<32x256xf32, #tpu.memory_space<vmem>>, vector<32x256xf32>,
    } else {
    }
    %c0 = arith.constant 0 : index
    %c0_1 = arith.constant 0 : index
    %3 = vector.load %arg5[%c0, %c0_1] : memref<32x256xf32, #tpu.memory_space<vmem>>, vector<32x256xf32>
    %c0_2 = arith.constant 0 : index
    %c0_3 = arith.constant 0 : index
    %4 = vector.load %arg3[%c0_2, %c0_3] : memref<32x256xbf16, #tpu.memory_space<vmem>>, vector<32x256xbf16>
    %c0_4 = arith.constant 0 : index
    %c0_5 = arith.constant 0 : index
    %5 = vector.load %arg4[%c0_4, %c0_5] : memref<256x256xbf16, #tpu.memory_space<vmem>>, vector<256x256xbf16>
    %cst = arith.constant dense<0.000000e+00> : vector<32x256xf32>
    %6 = tpu.matmul %4, %5, %cst {dimension_numbers = #tpu.dot_dimension_numbers<[1], [1], [0], [0], [0, 0, 1, 0], [], []>} : vector<32x256xbf16>, vector<256x256xbf16>, vector<32x256xf32> -> vector<32x256xf32>
    %7 = arith.addf %3, %6 : vector<32x256xf32>
    %c0_6 = arith.constant 0 : index
    %c0_7 = arith.constant 0 : index
    %8 = vector.load %arg5[%c0_6, %c0_7] : memref<32x256xf32, #tpu.memory_space<vmem>>, vector<32x256xf32>
    tpu.vector_store %arg5[%c0_6, %c0_7], %7 {strides = array<i32>} : memref<32x256xf32, #tpu.memory_space<vmem>>, vector<32x256xf32>,
    return
  }
  func.func @transform_0(%arg0: i32, %arg1: i32, %arg2: i32) -> (i32, i32) {
    %c0_i32 = arith.constant 0 : i32
    return %arg0, %arg2 : i32, i32
  }
  func.func @transform_1(%arg0: i32, %arg1: i32, %arg2: i32) -> (i32, i32) {
    %c0_i32 = arith.constant 0 : i32
    return %arg1, %arg2 : i32, i32
  }
  func.func @transform_2(%arg0: i32, %arg1: i32, %arg2: i32) -> (i32, i32) {
    %c0_i32 = arith.constant 0 : i32
    return %arg0, %arg1 : i32, i32
  }
}

module attributes {stable_mosaic.version = 11 : i64} {
  func.func @_mm_kernel_nt(%arg0: i32, %arg1: i32, %arg2: i32, %arg3: memref<128x128xbf16, #tpu.memory_space<vmem>>, %arg4: memref<128x128xbf16, #tpu.memory_space<vmem>>, %arg5: memref<128x128xf32, #tpu.memory_space<vmem>>) attributes {dimension_semantics = [#tpu.dimension_semantics<parallel>, #tpu.dimension_semantics<parallel>, #tpu.dimension_semantics<arbitrary>], iteration_bounds = array<i64: 1, 9, 1>, scalar_prefetch = 0 : i64, scratch_operands = 0 : i64, tpu.core_type = #tpu.core_type<tc>, window_params = [{transform_indices = @transform_0, window_bounds = array<i64: 128, 128>}, {transform_indices = @transform_1, window_bounds = array<i64: 128, 128>}, {transform_indices = @transform_2, window_bounds = array<i64: 128, 128>}]} {
    %c0_i32 = arith.constant 0 : i32
    %0 = arith.cmpi eq, %arg2, %c0_i32 : i32
    %1 = arith.extui %0 : i1 to i32
    %c0_i32_0 = arith.constant 0 : i32
    %2 = arith.cmpi ne, %1, %c0_i32_0 : i32
    scf.if %2 {
      %cst_8 = arith.constant 0.000000e+00 : f32
      %9 = vector.broadcast %cst_8 : f32 to vector<128x128xf32>
      %c0_9 = arith.constant 0 : index
      %c0_10 = arith.constant 0 : index
      %10 = vector.load %arg5[%c0_9, %c0_10] : memref<128x128xf32, #tpu.memory_space<vmem>>, vector<128x128xf32>
      tpu.vector_store %arg5[%c0_9, %c0_10], %9 {strides = array<i32>} : memref<128x128xf32, #tpu.memory_space<vmem>>, vector<128x128xf32>,
    } else {
    }
    %c0 = arith.constant 0 : index
    %c0_1 = arith.constant 0 : index
    %3 = vector.load %arg5[%c0, %c0_1] : memref<128x128xf32, #tpu.memory_space<vmem>>, vector<128x128xf32>
    %c0_2 = arith.constant 0 : index
    %c0_3 = arith.constant 0 : index
    %4 = vector.load %arg3[%c0_2, %c0_3] : memref<128x128xbf16, #tpu.memory_space<vmem>>, vector<128x128xbf16>
    %c0_4 = arith.constant 0 : index
    %c0_5 = arith.constant 0 : index
    %5 = vector.load %arg4[%c0_4, %c0_5] : memref<128x128xbf16, #tpu.memory_space<vmem>>, vector<128x128xbf16>
    %cst = arith.constant dense<0.000000e+00> : vector<128x128xf32>
    %6 = tpu.matmul %4, %5, %cst {dimension_numbers = #tpu.dot_dimension_numbers<[1], [1], [0], [0], [0, 0, 1, 0], [], []>} : vector<128x128xbf16>, vector<128x128xbf16>, vector<128x128xf32> -> vector<128x128xf32>
    %7 = arith.addf %3, %6 : vector<128x128xf32>
    %c0_6 = arith.constant 0 : index
    %c0_7 = arith.constant 0 : index
    %8 = vector.load %arg5[%c0_6, %c0_7] : memref<128x128xf32, #tpu.memory_space<vmem>>, vector<128x128xf32>
    tpu.vector_store %arg5[%c0_6, %c0_7], %7 {strides = array<i32>} : memref<128x128xf32, #tpu.memory_space<vmem>>, vector<128x128xf32>,
    return
  }
  func.func @transform_0(%arg0: i32, %arg1: i32, %arg2: i32) -> (i32, i32) {
    %c0_i32 = arith.constant 0 : i32
    return %arg0, %arg2 : i32, i32
  }
  func.func @transform_1(%arg0: i32, %arg1: i32, %arg2: i32) -> (i32, i32) {
    %c0_i32 = arith.constant 0 : i32
    return %arg1, %arg2 : i32, i32
  }
  func.func @transform_2(%arg0: i32, %arg1: i32, %arg2: i32) -> (i32, i32) {
    %c0_i32 = arith.constant 0 : i32
    return %arg0, %arg1 : i32, i32
  }
}

module attributes {stable_mosaic.version = 11 : i64} {
  func.func @_mm_kernel_nt(%arg0: i32, %arg1: i32, %arg2: i32, %arg3: memref<32x512xbf16, #tpu.memory_space<vmem>>, %arg4: memref<256x512xbf16, #tpu.memory_space<vmem>>, %arg5: memref<32x256xf32, #tpu.memory_space<vmem>>) attributes {dimension_semantics = [#tpu.dimension_semantics<parallel>, #tpu.dimension_semantics<parallel>, #tpu.dimension_semantics<arbitrary>], iteration_bounds = array<i64: 1, 1, 1>, scalar_prefetch = 0 : i64, scratch_operands = 0 : i64, tpu.core_type = #tpu.core_type<tc>, window_params = [{transform_indices = @transform_0, window_bounds = array<i64: 32, 512>}, {transform_indices = @transform_1, window_bounds = array<i64: 256, 512>}, {transform_indices = @transform_2, window_bounds = array<i64: 32, 256>}]} {
    %c0_i32 = arith.constant 0 : i32
    %0 = arith.cmpi eq, %arg2, %c0_i32 : i32
    %1 = arith.extui %0 : i1 to i32
    %c0_i32_0 = arith.constant 0 : i32
    %2 = arith.cmpi ne, %1, %c0_i32_0 : i32
    scf.if %2 {
      %cst_8 = arith.constant 0.000000e+00 : f32
      %9 = vector.broadcast %cst_8 : f32 to vector<32x256xf32>
      %c0_9 = arith.constant 0 : index
      %c0_10 = arith.constant 0 : index
      %10 = vector.load %arg5[%c0_9, %c0_10] : memref<32x256xf32, #tpu.memory_space<vmem>>, vector<32x256xf32>
      tpu.vector_store %arg5[%c0_9, %c0_10], %9 {strides = array<i32>} : memref<32x256xf32, #tpu.memory_space<vmem>>, vector<32x256xf32>,
    } else {
    }
    %c0 = arith.constant 0 : index
    %c0_1 = arith.constant 0 : index
    %3 = vector.load %arg5[%c0, %c0_1] : memref<32x256xf32, #tpu.memory_space<vmem>>, vector<32x256xf32>
    %c0_2 = arith.constant 0 : index
    %c0_3 = arith.constant 0 : index
    %4 = vector.load %arg3[%c0_2, %c0_3] : memref<32x512xbf16, #tpu.memory_space<vmem>>, vector<32x512xbf16>
    %c0_4 = arith.constant 0 : index
    %c0_5 = arith.constant 0 : index
    %5 = vector.load %arg4[%c0_4, %c0_5] : memref<256x512xbf16, #tpu.memory_space<vmem>>, vector<256x512xbf16>
    %cst = arith.constant dense<0.000000e+00> : vector<32x256xf32>
    %6 = tpu.matmul %4, %5, %cst {dimension_numbers = #tpu.dot_dimension_numbers<[1], [1], [0], [0], [0, 0, 1, 0], [], []>} : vector<32x512xbf16>, vector<256x512xbf16>, vector<32x256xf32> -> vector<32x256xf32>
    %7 = arith.addf %3, %6 : vector<32x256xf32>
    %c0_6 = arith.constant 0 : index
    %c0_7 = arith.constant 0 : index
    %8 = vector.load %arg5[%c0_6, %c0_7] : memref<32x256xf32, #tpu.memory_space<vmem>>, vector<32x256xf32>
    tpu.vector_store %arg5[%c0_6, %c0_7], %7 {strides = array<i32>} : memref<32x256xf32, #tpu.memory_space<vmem>>, vector<32x256xf32>,
    return
  }
  func.func @transform_0(%arg0: i32, %arg1: i32, %arg2: i32) -> (i32, i32) {
    %c0_i32 = arith.constant 0 : i32
    return %arg0, %arg2 : i32, i32
  }
  func.func @transform_1(%arg0: i32, %arg1: i32, %arg2: i32) -> (i32, i32) {
    %c0_i32 = arith.constant 0 : i32
    return %arg1, %arg2 : i32, i32
  }
  func.func @transform_2(%arg0: i32, %arg1: i32, %arg2: i32) -> (i32, i32) {
    %c0_i32 = arith.constant 0 : i32
    return %arg0, %arg1 : i32, i32
  }
}

module attributes {stable_mosaic.version = 11 : i64} {
  func.func @_mm_kernel_nt(%arg0: i32, %arg1: i32, %arg2: i32, %arg3: memref<32x256xbf16, #tpu.memory_space<vmem>>, %arg4: memref<256x256xbf16, #tpu.memory_space<vmem>>, %arg5: memref<32x256xf32, #tpu.memory_space<vmem>>) attributes {dimension_semantics = [#tpu.dimension_semantics<parallel>, #tpu.dimension_semantics<parallel>, #tpu.dimension_semantics<arbitrary>], iteration_bounds = array<i64: 1, 9, 1>, scalar_prefetch = 0 : i64, scratch_operands = 0 : i64, tpu.core_type = #tpu.core_type<tc>, window_params = [{transform_indices = @transform_0, window_bounds = array<i64: 32, 256>}, {transform_indices = @transform_1, window_bounds = array<i64: 256, 256>}, {transform_indices = @transform_2, window_bounds = array<i64: 32, 256>}]} {
    %c0_i32 = arith.constant 0 : i32
    %0 = arith.cmpi eq, %arg2, %c0_i32 : i32
    %1 = arith.extui %0 : i1 to i32
    %c0_i32_0 = arith.constant 0 : i32
    %2 = arith.cmpi ne, %1, %c0_i32_0 : i32
    scf.if %2 {
      %cst_8 = arith.constant 0.000000e+00 : f32
      %9 = vector.broadcast %cst_8 : f32 to vector<32x256xf32>
      %c0_9 = arith.constant 0 : index
      %c0_10 = arith.constant 0 : index
      %10 = vector.load %arg5[%c0_9, %c0_10] : memref<32x256xf32, #tpu.memory_space<vmem>>, vector<32x256xf32>
      tpu.vector_store %arg5[%c0_9, %c0_10], %9 {strides = array<i32>} : memref<32x256xf32, #tpu.memory_space<vmem>>, vector<32x256xf32>,
    } else {
    }
    %c0 = arith.constant 0 : index
    %c0_1 = arith.constant 0 : index
    %3 = vector.load %arg5[%c0, %c0_1] : memref<32x256xf32, #tpu.memory_space<vmem>>, vector<32x256xf32>
    %c0_2 = arith.constant 0 : index
    %c0_3 = arith.constant 0 : index
    %4 = vector.load %arg3[%c0_2, %c0_3] : memref<32x256xbf16, #tpu.memory_space<vmem>>, vector<32x256xbf16>
    %c0_4 = arith.constant 0 : index
    %c0_5 = arith.constant 0 : index
    %5 = vector.load %arg4[%c0_4, %c0_5] : memref<256x256xbf16, #tpu.memory_space<vmem>>, vector<256x256xbf16>
    %cst = arith.constant dense<0.000000e+00> : vector<32x256xf32>
    %6 = tpu.matmul %4, %5, %cst {dimension_numbers = #tpu.dot_dimension_numbers<[1], [1], [0], [0], [0, 0, 1, 0], [], []>} : vector<32x256xbf16>, vector<256x256xbf16>, vector<32x256xf32> -> vector<32x256xf32>
    %7 = arith.addf %3, %6 : vector<32x256xf32>
    %c0_6 = arith.constant 0 : index
    %c0_7 = arith.constant 0 : index
    %8 = vector.load %arg5[%c0_6, %c0_7] : memref<32x256xf32, #tpu.memory_space<vmem>>, vector<32x256xf32>
    tpu.vector_store %arg5[%c0_6, %c0_7], %7 {strides = array<i32>} : memref<32x256xf32, #tpu.memory_space<vmem>>, vector<32x256xf32>,
    return
  }
  func.func @transform_0(%arg0: i32, %arg1: i32, %arg2: i32) -> (i32, i32) {
    %c0_i32 = arith.constant 0 : i32
    return %arg0, %arg2 : i32, i32
  }
  func.func @transform_1(%arg0: i32, %arg1: i32, %arg2: i32) -> (i32, i32) {
    %c0_i32 = arith.constant 0 : i32
    return %arg1, %arg2 : i32, i32
  }
  func.func @transform_2(%arg0: i32, %arg1: i32, %arg2: i32) -> (i32, i32) {
    %c0_i32 = arith.constant 0 : i32
    return %arg0, %arg1 : i32, i32
  }
}

module attributes {stable_mosaic.version = 11 : i64} {
  func.func @_mm_kernel_nt(%arg0: i32, %arg1: i32, %arg2: i32, %arg3: memref<16x512xbf16, #tpu.memory_space<vmem>>, %arg4: memref<256x512xbf16, #tpu.memory_space<vmem>>, %arg5: memref<16x256xf32, #tpu.memory_space<vmem>>) attributes {dimension_semantics = [#tpu.dimension_semantics<parallel>, #tpu.dimension_semantics<parallel>, #tpu.dimension_semantics<arbitrary>], iteration_bounds = array<i64: 1, 2, 2>, scalar_prefetch = 0 : i64, scratch_operands = 0 : i64, tpu.core_type = #tpu.core_type<tc>, window_params = [{transform_indices = @transform_0, window_bounds = array<i64: 16, 512>}, {transform_indices = @transform_1, window_bounds = array<i64: 256, 512>}, {transform_indices = @transform_2, window_bounds = array<i64: 16, 256>}]} {
    %c0_i32 = arith.constant 0 : i32
    %0 = arith.cmpi eq, %arg2, %c0_i32 : i32
    %1 = arith.extui %0 : i1 to i32
    %c0_i32_0 = arith.constant 0 : i32
    %2 = arith.cmpi ne, %1, %c0_i32_0 : i32
    scf.if %2 {
      %cst_8 = arith.constant 0.000000e+00 : f32
      %9 = vector.broadcast %cst_8 : f32 to vector<16x256xf32>
      %c0_9 = arith.constant 0 : index
      %c0_10 = arith.constant 0 : index
      %10 = vector.load %arg5[%c0_9, %c0_10] : memref<16x256xf32, #tpu.memory_space<vmem>>, vector<16x256xf32>
      tpu.vector_store %arg5[%c0_9, %c0_10], %9 {strides = array<i32>} : memref<16x256xf32, #tpu.memory_space<vmem>>, vector<16x256xf32>,
    } else {
    }
    %c0 = arith.constant 0 : index
    %c0_1 = arith.constant 0 : index
    %3 = vector.load %arg5[%c0, %c0_1] : memref<16x256xf32, #tpu.memory_space<vmem>>, vector<16x256xf32>
    %c0_2 = arith.constant 0 : index
    %c0_3 = arith.constant 0 : index
    %4 = vector.load %arg3[%c0_2, %c0_3] : memref<16x512xbf16, #tpu.memory_space<vmem>>, vector<16x512xbf16>
    %c0_4 = arith.constant 0 : index
    %c0_5 = arith.constant 0 : index
    %5 = vector.load %arg4[%c0_4, %c0_5] : memref<256x512xbf16, #tpu.memory_space<vmem>>, vector<256x512xbf16>
    %cst = arith.constant dense<0.000000e+00> : vector<16x256xf32>
    %6 = tpu.matmul %4, %5, %cst {dimension_numbers = #tpu.dot_dimension_numbers<[1], [1], [0], [0], [0, 0, 1, 0], [], []>} : vector<16x512xbf16>, vector<256x512xbf16>, vector<16x256xf32> -> vector<16x256xf32>
    %7 = arith.addf %3, %6 : vector<16x256xf32>
    %c0_6 = arith.constant 0 : index
    %c0_7 = arith.constant 0 : index
    %8 = vector.load %arg5[%c0_6, %c0_7] : memref<16x256xf32, #tpu.memory_space<vmem>>, vector<16x256xf32>
    tpu.vector_store %arg5[%c0_6, %c0_7], %7 {strides = array<i32>} : memref<16x256xf32, #tpu.memory_space<vmem>>, vector<16x256xf32>,
    return
  }
  func.func @transform_0(%arg0: i32, %arg1: i32, %arg2: i32) -> (i32, i32) {
    %c0_i32 = arith.constant 0 : i32
    return %arg0, %arg2 : i32, i32
  }
  func.func @transform_1(%arg0: i32, %arg1: i32, %arg2: i32) -> (i32, i32) {
    %c0_i32 = arith.constant 0 : i32
    return %arg1, %arg2 : i32, i32
  }
  func.func @transform_2(%arg0: i32, %arg1: i32, %arg2: i32) -> (i32, i32) {
    %c0_i32 = arith.constant 0 : i32
    return %arg0, %arg1 : i32, i32
  }
}

module attributes {stable_mosaic.version = 11 : i64} {
  func.func @_mm_kernel_nt(%arg0: i32, %arg1: i32, %arg2: i32, %arg3: memref<16x512xbf16, #tpu.memory_space<vmem>>, %arg4: memref<256x512xbf16, #tpu.memory_space<vmem>>, %arg5: memref<16x256xf32, #tpu.memory_space<vmem>>) attributes {dimension_semantics = [#tpu.dimension_semantics<parallel>, #tpu.dimension_semantics<parallel>, #tpu.dimension_semantics<arbitrary>], iteration_bounds = array<i64: 1, 18, 1>, scalar_prefetch = 0 : i64, scratch_operands = 0 : i64, tpu.core_type = #tpu.core_type<tc>, window_params = [{transform_indices = @transform_0, window_bounds = array<i64: 16, 512>}, {transform_indices = @transform_1, window_bounds = array<i64: 256, 512>}, {transform_indices = @transform_2, window_bounds = array<i64: 16, 256>}]} {
    %c0_i32 = arith.constant 0 : i32
    %0 = arith.cmpi eq, %arg2, %c0_i32 : i32
    %1 = arith.extui %0 : i1 to i32
    %c0_i32_0 = arith.constant 0 : i32
    %2 = arith.cmpi ne, %1, %c0_i32_0 : i32
    scf.if %2 {
      %cst_8 = arith.constant 0.000000e+00 : f32
      %9 = vector.broadcast %cst_8 : f32 to vector<16x256xf32>
      %c0_9 = arith.constant 0 : index
      %c0_10 = arith.constant 0 : index
      %10 = vector.load %arg5[%c0_9, %c0_10] : memref<16x256xf32, #tpu.memory_space<vmem>>, vector<16x256xf32>
      tpu.vector_store %arg5[%c0_9, %c0_10], %9 {strides = array<i32>} : memref<16x256xf32, #tpu.memory_space<vmem>>, vector<16x256xf32>,
    } else {
    }
    %c0 = arith.constant 0 : index
    %c0_1 = arith.constant 0 : index
    %3 = vector.load %arg5[%c0, %c0_1] : memref<16x256xf32, #tpu.memory_space<vmem>>, vector<16x256xf32>
    %c0_2 = arith.constant 0 : index
    %c0_3 = arith.constant 0 : index
    %4 = vector.load %arg3[%c0_2, %c0_3] : memref<16x512xbf16, #tpu.memory_space<vmem>>, vector<16x512xbf16>
    %c0_4 = arith.constant 0 : index
    %c0_5 = arith.constant 0 : index
    %5 = vector.load %arg4[%c0_4, %c0_5] : memref<256x512xbf16, #tpu.memory_space<vmem>>, vector<256x512xbf16>
    %cst = arith.constant dense<0.000000e+00> : vector<16x256xf32>
    %6 = tpu.matmul %4, %5, %cst {dimension_numbers = #tpu.dot_dimension_numbers<[1], [1], [0], [0], [0, 0, 1, 0], [], []>} : vector<16x512xbf16>, vector<256x512xbf16>, vector<16x256xf32> -> vector<16x256xf32>
    %7 = arith.addf %3, %6 : vector<16x256xf32>
    %c0_6 = arith.constant 0 : index
    %c0_7 = arith.constant 0 : index
    %8 = vector.load %arg5[%c0_6, %c0_7] : memref<16x256xf32, #tpu.memory_space<vmem>>, vector<16x256xf32>
    tpu.vector_store %arg5[%c0_6, %c0_7], %7 {strides = array<i32>} : memref<16x256xf32, #tpu.memory_space<vmem>>, vector<16x256xf32>,
    return
  }
  func.func @transform_0(%arg0: i32, %arg1: i32, %arg2: i32) -> (i32, i32) {
    %c0_i32 = arith.constant 0 : i32
    return %arg0, %arg2 : i32, i32
  }
  func.func @transform_1(%arg0: i32, %arg1: i32, %arg2: i32) -> (i32, i32) {
    %c0_i32 = arith.constant 0 : i32
    return %arg1, %arg2 : i32, i32
  }
  func.func @transform_2(%arg0: i32, %arg1: i32, %arg2: i32) -> (i32, i32) {
    %c0_i32 = arith.constant 0 : i32
    return %arg0, %arg1 : i32, i32
  }
}

module attributes {stable_mosaic.version = 11 : i64} {
  func.func @_mm_kernel_nt(%arg0: i32, %arg1: i32, %arg2: i32, %arg3: memref<16x512xbf16, #tpu.memory_space<vmem>>, %arg4: memref<256x512xbf16, #tpu.memory_space<vmem>>, %arg5: memref<16x256xf32, #tpu.memory_space<vmem>>) attributes {dimension_semantics = [#tpu.dimension_semantics<parallel>, #tpu.dimension_semantics<parallel>, #tpu.dimension_semantics<arbitrary>], iteration_bounds = array<i64: 1, 18, 1>, scalar_prefetch = 0 : i64, scratch_operands = 0 : i64, tpu.core_type = #tpu.core_type<tc>, window_params = [{transform_indices = @transform_0, window_bounds = array<i64: 16, 512>}, {transform_indices = @transform_1, window_bounds = array<i64: 256, 512>}, {transform_indices = @transform_2, window_bounds = array<i64: 16, 256>}]} {
    %c0_i32 = arith.constant 0 : i32
    %0 = arith.cmpi eq, %arg2, %c0_i32 : i32
    %1 = arith.extui %0 : i1 to i32
    %c0_i32_0 = arith.constant 0 : i32
    %2 = arith.cmpi ne, %1, %c0_i32_0 : i32
    scf.if %2 {
      %cst_8 = arith.constant 0.000000e+00 : f32
      %9 = vector.broadcast %cst_8 : f32 to vector<16x256xf32>
      %c0_9 = arith.constant 0 : index
      %c0_10 = arith.constant 0 : index
      %10 = vector.load %arg5[%c0_9, %c0_10] : memref<16x256xf32, #tpu.memory_space<vmem>>, vector<16x256xf32>
      tpu.vector_store %arg5[%c0_9, %c0_10], %9 {strides = array<i32>} : memref<16x256xf32, #tpu.memory_space<vmem>>, vector<16x256xf32>,
    } else {
    }
    %c0 = arith.constant 0 : index
    %c0_1 = arith.constant 0 : index
    %3 = vector.load %arg5[%c0, %c0_1] : memref<16x256xf32, #tpu.memory_space<vmem>>, vector<16x256xf32>
    %c0_2 = arith.constant 0 : index
    %c0_3 = arith.constant 0 : index
    %4 = vector.load %arg3[%c0_2, %c0_3] : memref<16x512xbf16, #tpu.memory_space<vmem>>, vector<16x512xbf16>
    %c0_4 = arith.constant 0 : index
    %c0_5 = arith.constant 0 : index
    %5 = vector.load %arg4[%c0_4, %c0_5] : memref<256x512xbf16, #tpu.memory_space<vmem>>, vector<256x512xbf16>
    %cst = arith.constant dense<0.000000e+00> : vector<16x256xf32>
    %6 = tpu.matmul %4, %5, %cst {dimension_numbers = #tpu.dot_dimension_numbers<[1], [1], [0], [0], [0, 0, 1, 0], [], []>} : vector<16x512xbf16>, vector<256x512xbf16>, vector<16x256xf32> -> vector<16x256xf32>
    %7 = arith.addf %3, %6 : vector<16x256xf32>
    %c0_6 = arith.constant 0 : index
    %c0_7 = arith.constant 0 : index
    %8 = vector.load %arg5[%c0_6, %c0_7] : memref<16x256xf32, #tpu.memory_space<vmem>>, vector<16x256xf32>
    tpu.vector_store %arg5[%c0_6, %c0_7], %7 {strides = array<i32>} : memref<16x256xf32, #tpu.memory_space<vmem>>, vector<16x256xf32>,
    return
  }
  func.func @transform_0(%arg0: i32, %arg1: i32, %arg2: i32) -> (i32, i32) {
    %c0_i32 = arith.constant 0 : i32
    return %arg0, %arg2 : i32, i32
  }
  func.func @transform_1(%arg0: i32, %arg1: i32, %arg2: i32) -> (i32, i32) {
    %c0_i32 = arith.constant 0 : i32
    return %arg1, %arg2 : i32, i32
  }
  func.func @transform_2(%arg0: i32, %arg1: i32, %arg2: i32) -> (i32, i32) {
    %c0_i32 = arith.constant 0 : i32
    return %arg0, %arg1 : i32, i32
  }
}

module attributes {stable_mosaic.version = 11 : i64} {
  func.func @_mm_kernel_nt(%arg0: i32, %arg1: i32, %arg2: i32, %arg3: memref<32x256xbf16, #tpu.memory_space<vmem>>, %arg4: memref<256x256xbf16, #tpu.memory_space<vmem>>, %arg5: memref<32x256xf32, #tpu.memory_space<vmem>>) attributes {dimension_semantics = [#tpu.dimension_semantics<parallel>, #tpu.dimension_semantics<parallel>, #tpu.dimension_semantics<arbitrary>], iteration_bounds = array<i64: 1, 9, 1>, scalar_prefetch = 0 : i64, scratch_operands = 0 : i64, tpu.core_type = #tpu.core_type<tc>, window_params = [{transform_indices = @transform_0, window_bounds = array<i64: 32, 256>}, {transform_indices = @transform_1, window_bounds = array<i64: 256, 256>}, {transform_indices = @transform_2, window_bounds = array<i64: 32, 256>}]} {
    %c0_i32 = arith.constant 0 : i32
    %0 = arith.cmpi eq, %arg2, %c0_i32 : i32
    %1 = arith.extui %0 : i1 to i32
    %c0_i32_0 = arith.constant 0 : i32
    %2 = arith.cmpi ne, %1, %c0_i32_0 : i32
    scf.if %2 {
      %cst_8 = arith.constant 0.000000e+00 : f32
      %9 = vector.broadcast %cst_8 : f32 to vector<32x256xf32>
      %c0_9 = arith.constant 0 : index
      %c0_10 = arith.constant 0 : index
      %10 = vector.load %arg5[%c0_9, %c0_10] : memref<32x256xf32, #tpu.memory_space<vmem>>, vector<32x256xf32>
      tpu.vector_store %arg5[%c0_9, %c0_10], %9 {strides = array<i32>} : memref<32x256xf32, #tpu.memory_space<vmem>>, vector<32x256xf32>,
    } else {
    }
    %c0 = arith.constant 0 : index
    %c0_1 = arith.constant 0 : index
    %3 = vector.load %arg5[%c0, %c0_1] : memref<32x256xf32, #tpu.memory_space<vmem>>, vector<32x256xf32>
    %c0_2 = arith.constant 0 : index
    %c0_3 = arith.constant 0 : index
    %4 = vector.load %arg3[%c0_2, %c0_3] : memref<32x256xbf16, #tpu.memory_space<vmem>>, vector<32x256xbf16>
    %c0_4 = arith.constant 0 : index
    %c0_5 = arith.constant 0 : index
    %5 = vector.load %arg4[%c0_4, %c0_5] : memref<256x256xbf16, #tpu.memory_space<vmem>>, vector<256x256xbf16>
    %cst = arith.constant dense<0.000000e+00> : vector<32x256xf32>
    %6 = tpu.matmul %4, %5, %cst {dimension_numbers = #tpu.dot_dimension_numbers<[1], [1], [0], [0], [0, 0, 1, 0], [], []>} : vector<32x256xbf16>, vector<256x256xbf16>, vector<32x256xf32> -> vector<32x256xf32>
    %7 = arith.addf %3, %6 : vector<32x256xf32>
    %c0_6 = arith.constant 0 : index
    %c0_7 = arith.constant 0 : index
    %8 = vector.load %arg5[%c0_6, %c0_7] : memref<32x256xf32, #tpu.memory_space<vmem>>, vector<32x256xf32>
    tpu.vector_store %arg5[%c0_6, %c0_7], %7 {strides = array<i32>} : memref<32x256xf32, #tpu.memory_space<vmem>>, vector<32x256xf32>,
    return
  }
  func.func @transform_0(%arg0: i32, %arg1: i32, %arg2: i32) -> (i32, i32) {
    %c0_i32 = arith.constant 0 : i32
    return %arg0, %arg2 : i32, i32
  }
  func.func @transform_1(%arg0: i32, %arg1: i32, %arg2: i32) -> (i32, i32) {
    %c0_i32 = arith.constant 0 : i32
    return %arg1, %arg2 : i32, i32
  }
  func.func @transform_2(%arg0: i32, %arg1: i32, %arg2: i32) -> (i32, i32) {
    %c0_i32 = arith.constant 0 : i32
    return %arg0, %arg1 : i32, i32
  }
}

module attributes {stable_mosaic.version = 11 : i64} {
  func.func @_mm_kernel_nt(%arg0: i32, %arg1: i32, %arg2: i32, %arg3: memref<16x512xbf16, #tpu.memory_space<vmem>>, %arg4: memref<256x512xbf16, #tpu.memory_space<vmem>>, %arg5: memref<16x256xf32, #tpu.memory_space<vmem>>) attributes {dimension_semantics = [#tpu.dimension_semantics<parallel>, #tpu.dimension_semantics<parallel>, #tpu.dimension_semantics<arbitrary>], iteration_bounds = array<i64: 1, 4, 1>, scalar_prefetch = 0 : i64, scratch_operands = 0 : i64, tpu.core_type = #tpu.core_type<tc>, window_params = [{transform_indices = @transform_0, window_bounds = array<i64: 16, 512>}, {transform_indices = @transform_1, window_bounds = array<i64: 256, 512>}, {transform_indices = @transform_2, window_bounds = array<i64: 16, 256>}]} {
    %c0_i32 = arith.constant 0 : i32
    %0 = arith.cmpi eq, %arg2, %c0_i32 : i32
    %1 = arith.extui %0 : i1 to i32
    %c0_i32_0 = arith.constant 0 : i32
    %2 = arith.cmpi ne, %1, %c0_i32_0 : i32
    scf.if %2 {
      %cst_8 = arith.constant 0.000000e+00 : f32
      %9 = vector.broadcast %cst_8 : f32 to vector<16x256xf32>
      %c0_9 = arith.constant 0 : index
      %c0_10 = arith.constant 0 : index
      %10 = vector.load %arg5[%c0_9, %c0_10] : memref<16x256xf32, #tpu.memory_space<vmem>>, vector<16x256xf32>
      tpu.vector_store %arg5[%c0_9, %c0_10], %9 {strides = array<i32>} : memref<16x256xf32, #tpu.memory_space<vmem>>, vector<16x256xf32>,
    } else {
    }
    %c0 = arith.constant 0 : index
    %c0_1 = arith.constant 0 : index
    %3 = vector.load %arg5[%c0, %c0_1] : memref<16x256xf32, #tpu.memory_space<vmem>>, vector<16x256xf32>
    %c0_2 = arith.constant 0 : index
    %c0_3 = arith.constant 0 : index
    %4 = vector.load %arg3[%c0_2, %c0_3] : memref<16x512xbf16, #tpu.memory_space<vmem>>, vector<16x512xbf16>
    %c0_4 = arith.constant 0 : index
    %c0_5 = arith.constant 0 : index
    %5 = vector.load %arg4[%c0_4, %c0_5] : memref<256x512xbf16, #tpu.memory_space<vmem>>, vector<256x512xbf16>
    %cst = arith.constant dense<0.000000e+00> : vector<16x256xf32>
    %6 = tpu.matmul %4, %5, %cst {dimension_numbers = #tpu.dot_dimension_numbers<[1], [1], [0], [0], [0, 0, 1, 0], [], []>} : vector<16x512xbf16>, vector<256x512xbf16>, vector<16x256xf32> -> vector<16x256xf32>
    %7 = arith.addf %3, %6 : vector<16x256xf32>
    %c0_6 = arith.constant 0 : index
    %c0_7 = arith.constant 0 : index
    %8 = vector.load %arg5[%c0_6, %c0_7] : memref<16x256xf32, #tpu.memory_space<vmem>>, vector<16x256xf32>
    tpu.vector_store %arg5[%c0_6, %c0_7], %7 {strides = array<i32>} : memref<16x256xf32, #tpu.memory_space<vmem>>, vector<16x256xf32>,
    return
  }
  func.func @transform_0(%arg0: i32, %arg1: i32, %arg2: i32) -> (i32, i32) {
    %c0_i32 = arith.constant 0 : i32
    return %arg0, %arg2 : i32, i32
  }
  func.func @transform_1(%arg0: i32, %arg1: i32, %arg2: i32) -> (i32, i32) {
    %c0_i32 = arith.constant 0 : i32
    return %arg1, %arg2 : i32, i32
  }
  func.func @transform_2(%arg0: i32, %arg1: i32, %arg2: i32) -> (i32, i32) {
    %c0_i32 = arith.constant 0 : i32
    return %arg0, %arg1 : i32, i32
  }
}

module attributes {stable_mosaic.version = 11 : i64} {
  func.func @_mm_kernel_nt(%arg0: i32, %arg1: i32, %arg2: i32, %arg3: memref<32x256xbf16, #tpu.memory_space<vmem>>, %arg4: memref<256x256xbf16, #tpu.memory_space<vmem>>, %arg5: memref<32x256xf32, #tpu.memory_space<vmem>>) attributes {dimension_semantics = [#tpu.dimension_semantics<parallel>, #tpu.dimension_semantics<parallel>, #tpu.dimension_semantics<arbitrary>], iteration_bounds = array<i64: 1, 9, 1>, scalar_prefetch = 0 : i64, scratch_operands = 0 : i64, tpu.core_type = #tpu.core_type<tc>, window_params = [{transform_indices = @transform_0, window_bounds = array<i64: 32, 256>}, {transform_indices = @transform_1, window_bounds = array<i64: 256, 256>}, {transform_indices = @transform_2, window_bounds = array<i64: 32, 256>}]} {
    %c0_i32 = arith.constant 0 : i32
    %0 = arith.cmpi eq, %arg2, %c0_i32 : i32
    %1 = arith.extui %0 : i1 to i32
    %c0_i32_0 = arith.constant 0 : i32
    %2 = arith.cmpi ne, %1, %c0_i32_0 : i32
    scf.if %2 {
      %cst_8 = arith.constant 0.000000e+00 : f32
      %9 = vector.broadcast %cst_8 : f32 to vector<32x256xf32>
      %c0_9 = arith.constant 0 : index
      %c0_10 = arith.constant 0 : index
      %10 = vector.load %arg5[%c0_9, %c0_10] : memref<32x256xf32, #tpu.memory_space<vmem>>, vector<32x256xf32>
      tpu.vector_store %arg5[%c0_9, %c0_10], %9 {strides = array<i32>} : memref<32x256xf32, #tpu.memory_space<vmem>>, vector<32x256xf32>,
    } else {
    }
    %c0 = arith.constant 0 : index
    %c0_1 = arith.constant 0 : index
    %3 = vector.load %arg5[%c0, %c0_1] : memref<32x256xf32, #tpu.memory_space<vmem>>, vector<32x256xf32>
    %c0_2 = arith.constant 0 : index
    %c0_3 = arith.constant 0 : index
    %4 = vector.load %arg3[%c0_2, %c0_3] : memref<32x256xbf16, #tpu.memory_space<vmem>>, vector<32x256xbf16>
    %c0_4 = arith.constant 0 : index
    %c0_5 = arith.constant 0 : index
    %5 = vector.load %arg4[%c0_4, %c0_5] : memref<256x256xbf16, #tpu.memory_space<vmem>>, vector<256x256xbf16>
    %cst = arith.constant dense<0.000000e+00> : vector<32x256xf32>
    %6 = tpu.matmul %4, %5, %cst {dimension_numbers = #tpu.dot_dimension_numbers<[1], [1], [0], [0], [0, 0, 1, 0], [], []>} : vector<32x256xbf16>, vector<256x256xbf16>, vector<32x256xf32> -> vector<32x256xf32>
    %7 = arith.addf %3, %6 : vector<32x256xf32>
    %c0_6 = arith.constant 0 : index
    %c0_7 = arith.constant 0 : index
    %8 = vector.load %arg5[%c0_6, %c0_7] : memref<32x256xf32, #tpu.memory_space<vmem>>, vector<32x256xf32>
    tpu.vector_store %arg5[%c0_6, %c0_7], %7 {strides = array<i32>} : memref<32x256xf32, #tpu.memory_space<vmem>>, vector<32x256xf32>,
    return
  }
  func.func @transform_0(%arg0: i32, %arg1: i32, %arg2: i32) -> (i32, i32) {
    %c0_i32 = arith.constant 0 : i32
    return %arg0, %arg2 : i32, i32
  }
  func.func @transform_1(%arg0: i32, %arg1: i32, %arg2: i32) -> (i32, i32) {
    %c0_i32 = arith.constant 0 : i32
    return %arg1, %arg2 : i32, i32
  }
  func.func @transform_2(%arg0: i32, %arg1: i32, %arg2: i32) -> (i32, i32) {
    %c0_i32 = arith.constant 0 : i32
    return %arg0, %arg1 : i32, i32
  }
}

module attributes {stable_mosaic.version = 11 : i64} {
  func.func @_mm_kernel_nt(%arg0: i32, %arg1: i32, %arg2: i32, %arg3: memref<32x256xbf16, #tpu.memory_space<vmem>>, %arg4: memref<256x256xbf16, #tpu.memory_space<vmem>>, %arg5: memref<32x256xf32, #tpu.memory_space<vmem>>) attributes {dimension_semantics = [#tpu.dimension_semantics<parallel>, #tpu.dimension_semantics<parallel>, #tpu.dimension_semantics<arbitrary>], iteration_bounds = array<i64: 1, 2, 1>, scalar_prefetch = 0 : i64, scratch_operands = 0 : i64, tpu.core_type = #tpu.core_type<tc>, window_params = [{transform_indices = @transform_0, window_bounds = array<i64: 32, 256>}, {transform_indices = @transform_1, window_bounds = array<i64: 256, 256>}, {transform_indices = @transform_2, window_bounds = array<i64: 32, 256>}]} {
    %c0_i32 = arith.constant 0 : i32
    %0 = arith.cmpi eq, %arg2, %c0_i32 : i32
    %1 = arith.extui %0 : i1 to i32
    %c0_i32_0 = arith.constant 0 : i32
    %2 = arith.cmpi ne, %1, %c0_i32_0 : i32
    scf.if %2 {
      %cst_8 = arith.constant 0.000000e+00 : f32
      %9 = vector.broadcast %cst_8 : f32 to vector<32x256xf32>
      %c0_9 = arith.constant 0 : index
      %c0_10 = arith.constant 0 : index
      %10 = vector.load %arg5[%c0_9, %c0_10] : memref<32x256xf32, #tpu.memory_space<vmem>>, vector<32x256xf32>
      tpu.vector_store %arg5[%c0_9, %c0_10], %9 {strides = array<i32>} : memref<32x256xf32, #tpu.memory_space<vmem>>, vector<32x256xf32>,
    } else {
    }
    %c0 = arith.constant 0 : index
    %c0_1 = arith.constant 0 : index
    %3 = vector.load %arg5[%c0, %c0_1] : memref<32x256xf32, #tpu.memory_space<vmem>>, vector<32x256xf32>
    %c0_2 = arith.constant 0 : index
    %c0_3 = arith.constant 0 : index
    %4 = vector.load %arg3[%c0_2, %c0_3] : memref<32x256xbf16, #tpu.memory_space<vmem>>, vector<32x256xbf16>
    %c0_4 = arith.constant 0 : index
    %c0_5 = arith.constant 0 : index
    %5 = vector.load %arg4[%c0_4, %c0_5] : memref<256x256xbf16, #tpu.memory_space<vmem>>, vector<256x256xbf16>
    %cst = arith.constant dense<0.000000e+00> : vector<32x256xf32>
    %6 = tpu.matmul %4, %5, %cst {dimension_numbers = #tpu.dot_dimension_numbers<[1], [1], [0], [0], [0, 0, 1, 0], [], []>} : vector<32x256xbf16>, vector<256x256xbf16>, vector<32x256xf32> -> vector<32x256xf32>
    %7 = arith.addf %3, %6 : vector<32x256xf32>
    %c0_6 = arith.constant 0 : index
    %c0_7 = arith.constant 0 : index
    %8 = vector.load %arg5[%c0_6, %c0_7] : memref<32x256xf32, #tpu.memory_space<vmem>>, vector<32x256xf32>
    tpu.vector_store %arg5[%c0_6, %c0_7], %7 {strides = array<i32>} : memref<32x256xf32, #tpu.memory_space<vmem>>, vector<32x256xf32>,
    return
  }
  func.func @transform_0(%arg0: i32, %arg1: i32, %arg2: i32) -> (i32, i32) {
    %c0_i32 = arith.constant 0 : i32
    return %arg0, %arg2 : i32, i32
  }
  func.func @transform_1(%arg0: i32, %arg1: i32, %arg2: i32) -> (i32, i32) {
    %c0_i32 = arith.constant 0 : i32
    return %arg1, %arg2 : i32, i32
  }
  func.func @transform_2(%arg0: i32, %arg1: i32, %arg2: i32) -> (i32, i32) {
    %c0_i32 = arith.constant 0 : i32
    return %arg0, %arg1 : i32, i32
  }
}

module attributes {stable_mosaic.version = 11 : i64} {
  func.func @_mm_kernel_nt(%arg0: i32, %arg1: i32, %arg2: i32, %arg3: memref<128x128xbf16, #tpu.memory_space<vmem>>, %arg4: memref<128x128xbf16, #tpu.memory_space<vmem>>, %arg5: memref<128x128xf32, #tpu.memory_space<vmem>>) attributes {dimension_semantics = [#tpu.dimension_semantics<parallel>, #tpu.dimension_semantics<parallel>, #tpu.dimension_semantics<arbitrary>], iteration_bounds = array<i64: 1, 9, 1>, scalar_prefetch = 0 : i64, scratch_operands = 0 : i64, tpu.core_type = #tpu.core_type<tc>, window_params = [{transform_indices = @transform_0, window_bounds = array<i64: 128, 128>}, {transform_indices = @transform_1, window_bounds = array<i64: 128, 128>}, {transform_indices = @transform_2, window_bounds = array<i64: 128, 128>}]} {
    %c0_i32 = arith.constant 0 : i32
    %0 = arith.cmpi eq, %arg2, %c0_i32 : i32
    %1 = arith.extui %0 : i1 to i32
    %c0_i32_0 = arith.constant 0 : i32
    %2 = arith.cmpi ne, %1, %c0_i32_0 : i32
    scf.if %2 {
      %cst_8 = arith.constant 0.000000e+00 : f32
      %9 = vector.broadcast %cst_8 : f32 to vector<128x128xf32>
      %c0_9 = arith.constant 0 : index
      %c0_10 = arith.constant 0 : index
      %10 = vector.load %arg5[%c0_9, %c0_10] : memref<128x128xf32, #tpu.memory_space<vmem>>, vector<128x128xf32>
      tpu.vector_store %arg5[%c0_9, %c0_10], %9 {strides = array<i32>} : memref<128x128xf32, #tpu.memory_space<vmem>>, vector<128x128xf32>,
    } else {
    }
    %c0 = arith.constant 0 : index
    %c0_1 = arith.constant 0 : index
    %3 = vector.load %arg5[%c0, %c0_1] : memref<128x128xf32, #tpu.memory_space<vmem>>, vector<128x128xf32>
    %c0_2 = arith.constant 0 : index
    %c0_3 = arith.constant 0 : index
    %4 = vector.load %arg3[%c0_2, %c0_3] : memref<128x128xbf16, #tpu.memory_space<vmem>>, vector<128x128xbf16>
    %c0_4 = arith.constant 0 : index
    %c0_5 = arith.constant 0 : index
    %5 = vector.load %arg4[%c0_4, %c0_5] : memref<128x128xbf16, #tpu.memory_space<vmem>>, vector<128x128xbf16>
    %cst = arith.constant dense<0.000000e+00> : vector<128x128xf32>
    %6 = tpu.matmul %4, %5, %cst {dimension_numbers = #tpu.dot_dimension_numbers<[1], [1], [0], [0], [0, 0, 1, 0], [], []>} : vector<128x128xbf16>, vector<128x128xbf16>, vector<128x128xf32> -> vector<128x128xf32>
    %7 = arith.addf %3, %6 : vector<128x128xf32>
    %c0_6 = arith.constant 0 : index
    %c0_7 = arith.constant 0 : index
    %8 = vector.load %arg5[%c0_6, %c0_7] : memref<128x128xf32, #tpu.memory_space<vmem>>, vector<128x128xf32>
    tpu.vector_store %arg5[%c0_6, %c0_7], %7 {strides = array<i32>} : memref<128x128xf32, #tpu.memory_space<vmem>>, vector<128x128xf32>,
    return
  }
  func.func @transform_0(%arg0: i32, %arg1: i32, %arg2: i32) -> (i32, i32) {
    %c0_i32 = arith.constant 0 : i32
    return %arg0, %arg2 : i32, i32
  }
  func.func @transform_1(%arg0: i32, %arg1: i32, %arg2: i32) -> (i32, i32) {
    %c0_i32 = arith.constant 0 : i32
    return %arg1, %arg2 : i32, i32
  }
  func.func @transform_2(%arg0: i32, %arg1: i32, %arg2: i32) -> (i32, i32) {
    %c0_i32 = arith.constant 0 : i32
    return %arg0, %arg1 : i32, i32
  }
}

module attributes {stable_mosaic.version = 11 : i64} {
  func.func @_mm_kernel_nt(%arg0: i32, %arg1: i32, %arg2: i32, %arg3: memref<128x128xbf16, #tpu.memory_space<vmem>>, %arg4: memref<128x128xbf16, #tpu.memory_space<vmem>>, %arg5: memref<128x128xf32, #tpu.memory_space<vmem>>) attributes {dimension_semantics = [#tpu.dimension_semantics<parallel>, #tpu.dimension_semantics<parallel>, #tpu.dimension_semantics<arbitrary>], iteration_bounds = array<i64: 1, 9, 1>, scalar_prefetch = 0 : i64, scratch_operands = 0 : i64, tpu.core_type = #tpu.core_type<tc>, window_params = [{transform_indices = @transform_0, window_bounds = array<i64: 128, 128>}, {transform_indices = @transform_1, window_bounds = array<i64: 128, 128>}, {transform_indices = @transform_2, window_bounds = array<i64: 128, 128>}]} {
    %c0_i32 = arith.constant 0 : i32
    %0 = arith.cmpi eq, %arg2, %c0_i32 : i32
    %1 = arith.extui %0 : i1 to i32
    %c0_i32_0 = arith.constant 0 : i32
    %2 = arith.cmpi ne, %1, %c0_i32_0 : i32
    scf.if %2 {
      %cst_8 = arith.constant 0.000000e+00 : f32
      %9 = vector.broadcast %cst_8 : f32 to vector<128x128xf32>
      %c0_9 = arith.constant 0 : index
      %c0_10 = arith.constant 0 : index
      %10 = vector.load %arg5[%c0_9, %c0_10] : memref<128x128xf32, #tpu.memory_space<vmem>>, vector<128x128xf32>
      tpu.vector_store %arg5[%c0_9, %c0_10], %9 {strides = array<i32>} : memref<128x128xf32, #tpu.memory_space<vmem>>, vector<128x128xf32>,
    } else {
    }
    %c0 = arith.constant 0 : index
    %c0_1 = arith.constant 0 : index
    %3 = vector.load %arg5[%c0, %c0_1] : memref<128x128xf32, #tpu.memory_space<vmem>>, vector<128x128xf32>
    %c0_2 = arith.constant 0 : index
    %c0_3 = arith.constant 0 : index
    %4 = vector.load %arg3[%c0_2, %c0_3] : memref<128x128xbf16, #tpu.memory_space<vmem>>, vector<128x128xbf16>
    %c0_4 = arith.constant 0 : index
    %c0_5 = arith.constant 0 : index
    %5 = vector.load %arg4[%c0_4, %c0_5] : memref<128x128xbf16, #tpu.memory_space<vmem>>, vector<128x128xbf16>
    %cst = arith.constant dense<0.000000e+00> : vector<128x128xf32>
    %6 = tpu.matmul %4, %5, %cst {dimension_numbers = #tpu.dot_dimension_numbers<[1], [1], [0], [0], [0, 0, 1, 0], [], []>} : vector<128x128xbf16>, vector<128x128xbf16>, vector<128x128xf32> -> vector<128x128xf32>
    %7 = arith.addf %3, %6 : vector<128x128xf32>
    %c0_6 = arith.constant 0 : index
    %c0_7 = arith.constant 0 : index
    %8 = vector.load %arg5[%c0_6, %c0_7] : memref<128x128xf32, #tpu.memory_space<vmem>>, vector<128x128xf32>
    tpu.vector_store %arg5[%c0_6, %c0_7], %7 {strides = array<i32>} : memref<128x128xf32, #tpu.memory_space<vmem>>, vector<128x128xf32>,
    return
  }
  func.func @transform_0(%arg0: i32, %arg1: i32, %arg2: i32) -> (i32, i32) {
    %c0_i32 = arith.constant 0 : i32
    return %arg0, %arg2 : i32, i32
  }
  func.func @transform_1(%arg0: i32, %arg1: i32, %arg2: i32) -> (i32, i32) {
    %c0_i32 = arith.constant 0 : i32
    return %arg1, %arg2 : i32, i32
  }
  func.func @transform_2(%arg0: i32, %arg1: i32, %arg2: i32) -> (i32, i32) {
    %c0_i32 = arith.constant 0 : i32
    return %arg0, %arg1 : i32, i32
  }
}

module attributes {stable_mosaic.version = 11 : i64} {
  func.func @_mm_kernel_nt(%arg0: i32, %arg1: i32, %arg2: i32, %arg3: memref<128x128xbf16, #tpu.memory_space<vmem>>, %arg4: memref<256x128xbf16, #tpu.memory_space<vmem>>, %arg5: memref<128x256xf32, #tpu.memory_space<vmem>>) attributes {dimension_semantics = [#tpu.dimension_semantics<parallel>, #tpu.dimension_semantics<parallel>, #tpu.dimension_semantics<arbitrary>], iteration_bounds = array<i64: 1, 1, 1>, scalar_prefetch = 0 : i64, scratch_operands = 0 : i64, tpu.core_type = #tpu.core_type<tc>, window_params = [{transform_indices = @transform_0, window_bounds = array<i64: 128, 128>}, {transform_indices = @transform_1, window_bounds = array<i64: 256, 128>}, {transform_indices = @transform_2, window_bounds = array<i64: 128, 256>}]} {
    %c0_i32 = arith.constant 0 : i32
    %0 = arith.cmpi eq, %arg2, %c0_i32 : i32
    %1 = arith.extui %0 : i1 to i32
    %c0_i32_0 = arith.constant 0 : i32
    %2 = arith.cmpi ne, %1, %c0_i32_0 : i32
    scf.if %2 {
      %cst_8 = arith.constant 0.000000e+00 : f32
      %9 = vector.broadcast %cst_8 : f32 to vector<128x256xf32>
      %c0_9 = arith.constant 0 : index
      %c0_10 = arith.constant 0 : index
      %10 = vector.load %arg5[%c0_9, %c0_10] : memref<128x256xf32, #tpu.memory_space<vmem>>, vector<128x256xf32>
      tpu.vector_store %arg5[%c0_9, %c0_10], %9 {strides = array<i32>} : memref<128x256xf32, #tpu.memory_space<vmem>>, vector<128x256xf32>,
    } else {
    }
    %c0 = arith.constant 0 : index
    %c0_1 = arith.constant 0 : index
    %3 = vector.load %arg5[%c0, %c0_1] : memref<128x256xf32, #tpu.memory_space<vmem>>, vector<128x256xf32>
    %c0_2 = arith.constant 0 : index
    %c0_3 = arith.constant 0 : index
    %4 = vector.load %arg3[%c0_2, %c0_3] : memref<128x128xbf16, #tpu.memory_space<vmem>>, vector<128x128xbf16>
    %c0_4 = arith.constant 0 : index
    %c0_5 = arith.constant 0 : index
    %5 = vector.load %arg4[%c0_4, %c0_5] : memref<256x128xbf16, #tpu.memory_space<vmem>>, vector<256x128xbf16>
    %cst = arith.constant dense<0.000000e+00> : vector<128x256xf32>
    %6 = tpu.matmul %4, %5, %cst {dimension_numbers = #tpu.dot_dimension_numbers<[1], [1], [0], [0], [0, 0, 1, 0], [], []>} : vector<128x128xbf16>, vector<256x128xbf16>, vector<128x256xf32> -> vector<128x256xf32>
    %7 = arith.addf %3, %6 : vector<128x256xf32>
    %c0_6 = arith.constant 0 : index
    %c0_7 = arith.constant 0 : index
    %8 = vector.load %arg5[%c0_6, %c0_7] : memref<128x256xf32, #tpu.memory_space<vmem>>, vector<128x256xf32>
    tpu.vector_store %arg5[%c0_6, %c0_7], %7 {strides = array<i32>} : memref<128x256xf32, #tpu.memory_space<vmem>>, vector<128x256xf32>,
    return
  }
  func.func @transform_0(%arg0: i32, %arg1: i32, %arg2: i32) -> (i32, i32) {
    %c0_i32 = arith.constant 0 : i32
    return %arg0, %arg2 : i32, i32
  }
  func.func @transform_1(%arg0: i32, %arg1: i32, %arg2: i32) -> (i32, i32) {
    %c0_i32 = arith.constant 0 : i32
    return %arg1, %arg2 : i32, i32
  }
  func.func @transform_2(%arg0: i32, %arg1: i32, %arg2: i32) -> (i32, i32) {
    %c0_i32 = arith.constant 0 : i32
    return %arg0, %arg1 : i32, i32
  }
}

module attributes {stable_mosaic.version = 11 : i64} {
  func.func @_mm_kernel_nt(%arg0: i32, %arg1: i32, %arg2: i32, %arg3: memref<256x128xbf16, #tpu.memory_space<vmem>>, %arg4: memref<128x128xbf16, #tpu.memory_space<vmem>>, %arg5: memref<256x128xf32, #tpu.memory_space<vmem>>) attributes {dimension_semantics = [#tpu.dimension_semantics<parallel>, #tpu.dimension_semantics<parallel>, #tpu.dimension_semantics<arbitrary>], iteration_bounds = array<i64: 2, 5, 1>, scalar_prefetch = 0 : i64, scratch_operands = 0 : i64, tpu.core_type = #tpu.core_type<tc>, window_params = [{transform_indices = @transform_0, window_bounds = array<i64: 256, 128>}, {transform_indices = @transform_1, window_bounds = array<i64: 128, 128>}, {transform_indices = @transform_2, window_bounds = array<i64: 256, 128>}]} {
    %c0_i32 = arith.constant 0 : i32
    %0 = arith.cmpi eq, %arg2, %c0_i32 : i32
    %1 = arith.extui %0 : i1 to i32
    %c0_i32_0 = arith.constant 0 : i32
    %2 = arith.cmpi ne, %1, %c0_i32_0 : i32
    scf.if %2 {
      %cst_8 = arith.constant 0.000000e+00 : f32
      %9 = vector.broadcast %cst_8 : f32 to vector<256x128xf32>
      %c0_9 = arith.constant 0 : index
      %c0_10 = arith.constant 0 : index
      %10 = vector.load %arg5[%c0_9, %c0_10] : memref<256x128xf32, #tpu.memory_space<vmem>>, vector<256x128xf32>
      tpu.vector_store %arg5[%c0_9, %c0_10], %9 {strides = array<i32>} : memref<256x128xf32, #tpu.memory_space<vmem>>, vector<256x128xf32>,
    } else {
    }
    %c0 = arith.constant 0 : index
    %c0_1 = arith.constant 0 : index
    %3 = vector.load %arg5[%c0, %c0_1] : memref<256x128xf32, #tpu.memory_space<vmem>>, vector<256x128xf32>
    %c0_2 = arith.constant 0 : index
    %c0_3 = arith.constant 0 : index
    %4 = vector.load %arg3[%c0_2, %c0_3] : memref<256x128xbf16, #tpu.memory_space<vmem>>, vector<256x128xbf16>
    %c0_4 = arith.constant 0 : index
    %c0_5 = arith.constant 0 : index
    %5 = vector.load %arg4[%c0_4, %c0_5] : memref<128x128xbf16, #tpu.memory_space<vmem>>, vector<128x128xbf16>
    %cst = arith.constant dense<0.000000e+00> : vector<256x128xf32>
    %6 = tpu.matmul %4, %5, %cst {dimension_numbers = #tpu.dot_dimension_numbers<[1], [1], [0], [0], [0, 0, 1, 0], [], []>} : vector<256x128xbf16>, vector<128x128xbf16>, vector<256x128xf32> -> vector<256x128xf32>
    %7 = arith.addf %3, %6 : vector<256x128xf32>
    %c0_6 = arith.constant 0 : index
    %c0_7 = arith.constant 0 : index
    %8 = vector.load %arg5[%c0_6, %c0_7] : memref<256x128xf32, #tpu.memory_space<vmem>>, vector<256x128xf32>
    tpu.vector_store %arg5[%c0_6, %c0_7], %7 {strides = array<i32>} : memref<256x128xf32, #tpu.memory_space<vmem>>, vector<256x128xf32>,
    return
  }
  func.func @transform_0(%arg0: i32, %arg1: i32, %arg2: i32) -> (i32, i32) {
    %c0_i32 = arith.constant 0 : i32
    return %arg0, %arg2 : i32, i32
  }
  func.func @transform_1(%arg0: i32, %arg1: i32, %arg2: i32) -> (i32, i32) {
    %c0_i32 = arith.constant 0 : i32
    return %arg1, %arg2 : i32, i32
  }
  func.func @transform_2(%arg0: i32, %arg1: i32, %arg2: i32) -> (i32, i32) {
    %c0_i32 = arith.constant 0 : i32
    return %arg0, %arg1 : i32, i32
  }
}

module attributes {stable_mosaic.version = 11 : i64} {
  func.func @_mm_kernel_nt(%arg0: i32, %arg1: i32, %arg2: i32, %arg3: memref<256x128xbf16, #tpu.memory_space<vmem>>, %arg4: memref<128x128xbf16, #tpu.memory_space<vmem>>, %arg5: memref<256x128xf32, #tpu.memory_space<vmem>>) attributes {dimension_semantics = [#tpu.dimension_semantics<parallel>, #tpu.dimension_semantics<parallel>, #tpu.dimension_semantics<arbitrary>], iteration_bounds = array<i64: 2, 5, 1>, scalar_prefetch = 0 : i64, scratch_operands = 0 : i64, tpu.core_type = #tpu.core_type<tc>, window_params = [{transform_indices = @transform_0, window_bounds = array<i64: 256, 128>}, {transform_indices = @transform_1, window_bounds = array<i64: 128, 128>}, {transform_indices = @transform_2, window_bounds = array<i64: 256, 128>}]} {
    %c0_i32 = arith.constant 0 : i32
    %0 = arith.cmpi eq, %arg2, %c0_i32 : i32
    %1 = arith.extui %0 : i1 to i32
    %c0_i32_0 = arith.constant 0 : i32
    %2 = arith.cmpi ne, %1, %c0_i32_0 : i32
    scf.if %2 {
      %cst_8 = arith.constant 0.000000e+00 : f32
      %9 = vector.broadcast %cst_8 : f32 to vector<256x128xf32>
      %c0_9 = arith.constant 0 : index
      %c0_10 = arith.constant 0 : index
      %10 = vector.load %arg5[%c0_9, %c0_10] : memref<256x128xf32, #tpu.memory_space<vmem>>, vector<256x128xf32>
      tpu.vector_store %arg5[%c0_9, %c0_10], %9 {strides = array<i32>} : memref<256x128xf32, #tpu.memory_space<vmem>>, vector<256x128xf32>,
    } else {
    }
    %c0 = arith.constant 0 : index
    %c0_1 = arith.constant 0 : index
    %3 = vector.load %arg5[%c0, %c0_1] : memref<256x128xf32, #tpu.memory_space<vmem>>, vector<256x128xf32>
    %c0_2 = arith.constant 0 : index
    %c0_3 = arith.constant 0 : index
    %4 = vector.load %arg3[%c0_2, %c0_3] : memref<256x128xbf16, #tpu.memory_space<vmem>>, vector<256x128xbf16>
    %c0_4 = arith.constant 0 : index
    %c0_5 = arith.constant 0 : index
    %5 = vector.load %arg4[%c0_4, %c0_5] : memref<128x128xbf16, #tpu.memory_space<vmem>>, vector<128x128xbf16>
    %cst = arith.constant dense<0.000000e+00> : vector<256x128xf32>
    %6 = tpu.matmul %4, %5, %cst {dimension_numbers = #tpu.dot_dimension_numbers<[1], [1], [0], [0], [0, 0, 1, 0], [], []>} : vector<256x128xbf16>, vector<128x128xbf16>, vector<256x128xf32> -> vector<256x128xf32>
    %7 = arith.addf %3, %6 : vector<256x128xf32>
    %c0_6 = arith.constant 0 : index
    %c0_7 = arith.constant 0 : index
    %8 = vector.load %arg5[%c0_6, %c0_7] : memref<256x128xf32, #tpu.memory_space<vmem>>, vector<256x128xf32>
    tpu.vector_store %arg5[%c0_6, %c0_7], %7 {strides = array<i32>} : memref<256x128xf32, #tpu.memory_space<vmem>>, vector<256x128xf32>,
    return
  }
  func.func @transform_0(%arg0: i32, %arg1: i32, %arg2: i32) -> (i32, i32) {
    %c0_i32 = arith.constant 0 : i32
    return %arg0, %arg2 : i32, i32
  }
  func.func @transform_1(%arg0: i32, %arg1: i32, %arg2: i32) -> (i32, i32) {
    %c0_i32 = arith.constant 0 : i32
    return %arg1, %arg2 : i32, i32
  }
  func.func @transform_2(%arg0: i32, %arg1: i32, %arg2: i32) -> (i32, i32) {
    %c0_i32 = arith.constant 0 : i32
    return %arg0, %arg1 : i32, i32
  }
}

module attributes {stable_mosaic.version = 11 : i64} {
  func.func @_mm_kernel_nt(%arg0: i32, %arg1: i32, %arg2: i32, %arg3: memref<256x128xbf16, #tpu.memory_space<vmem>>, %arg4: memref<128x128xbf16, #tpu.memory_space<vmem>>, %arg5: memref<256x128xf32, #tpu.memory_space<vmem>>) attributes {dimension_semantics = [#tpu.dimension_semantics<parallel>, #tpu.dimension_semantics<parallel>, #tpu.dimension_semantics<arbitrary>], iteration_bounds = array<i64: 2, 1, 1>, scalar_prefetch = 0 : i64, scratch_operands = 0 : i64, tpu.core_type = #tpu.core_type<tc>, window_params = [{transform_indices = @transform_0, window_bounds = array<i64: 256, 128>}, {transform_indices = @transform_1, window_bounds = array<i64: 128, 128>}, {transform_indices = @transform_2, window_bounds = array<i64: 256, 128>}]} {
    %c0_i32 = arith.constant 0 : i32
    %0 = arith.cmpi eq, %arg2, %c0_i32 : i32
    %1 = arith.extui %0 : i1 to i32
    %c0_i32_0 = arith.constant 0 : i32
    %2 = arith.cmpi ne, %1, %c0_i32_0 : i32
    scf.if %2 {
      %cst_8 = arith.constant 0.000000e+00 : f32
      %9 = vector.broadcast %cst_8 : f32 to vector<256x128xf32>
      %c0_9 = arith.constant 0 : index
      %c0_10 = arith.constant 0 : index
      %10 = vector.load %arg5[%c0_9, %c0_10] : memref<256x128xf32, #tpu.memory_space<vmem>>, vector<256x128xf32>
      tpu.vector_store %arg5[%c0_9, %c0_10], %9 {strides = array<i32>} : memref<256x128xf32, #tpu.memory_space<vmem>>, vector<256x128xf32>,
    } else {
    }
    %c0 = arith.constant 0 : index
    %c0_1 = arith.constant 0 : index
    %3 = vector.load %arg5[%c0, %c0_1] : memref<256x128xf32, #tpu.memory_space<vmem>>, vector<256x128xf32>
    %c0_2 = arith.constant 0 : index
    %c0_3 = arith.constant 0 : index
    %4 = vector.load %arg3[%c0_2, %c0_3] : memref<256x128xbf16, #tpu.memory_space<vmem>>, vector<256x128xbf16>
    %c0_4 = arith.constant 0 : index
    %c0_5 = arith.constant 0 : index
    %5 = vector.load %arg4[%c0_4, %c0_5] : memref<128x128xbf16, #tpu.memory_space<vmem>>, vector<128x128xbf16>
    %cst = arith.constant dense<0.000000e+00> : vector<256x128xf32>
    %6 = tpu.matmul %4, %5, %cst {dimension_numbers = #tpu.dot_dimension_numbers<[1], [1], [0], [0], [0, 0, 1, 0], [], []>} : vector<256x128xbf16>, vector<128x128xbf16>, vector<256x128xf32> -> vector<256x128xf32>
    %7 = arith.addf %3, %6 : vector<256x128xf32>
    %c0_6 = arith.constant 0 : index
    %c0_7 = arith.constant 0 : index
    %8 = vector.load %arg5[%c0_6, %c0_7] : memref<256x128xf32, #tpu.memory_space<vmem>>, vector<256x128xf32>
    tpu.vector_store %arg5[%c0_6, %c0_7], %7 {strides = array<i32>} : memref<256x128xf32, #tpu.memory_space<vmem>>, vector<256x128xf32>,
    return
  }
  func.func @transform_0(%arg0: i32, %arg1: i32, %arg2: i32) -> (i32, i32) {
    %c0_i32 = arith.constant 0 : i32
    return %arg0, %arg2 : i32, i32
  }
  func.func @transform_1(%arg0: i32, %arg1: i32, %arg2: i32) -> (i32, i32) {
    %c0_i32 = arith.constant 0 : i32
    return %arg1, %arg2 : i32, i32
  }
  func.func @transform_2(%arg0: i32, %arg1: i32, %arg2: i32) -> (i32, i32) {
    %c0_i32 = arith.constant 0 : i32
    return %arg0, %arg1 : i32, i32
  }
}

module attributes {stable_mosaic.version = 11 : i64} {
  func.func @_sub_kernel(%arg0: i32, %arg1: memref<8x512xf32, #tpu.memory_space<vmem>>, %arg2: memref<8x512xf32, #tpu.memory_space<vmem>>, %arg3: memref<8x512xf32, #tpu.memory_space<vmem>>) attributes {dimension_semantics = [#tpu.dimension_semantics<parallel>], iteration_bounds = array<i64: 1>, scalar_prefetch = 0 : i64, scratch_operands = 0 : i64, tpu.core_type = #tpu.core_type<tc>, window_params = [{transform_indices = @transform_0, window_bounds = array<i64: 8, 512>}, {transform_indices = @transform_1, window_bounds = array<i64: 8, 512>}, {transform_indices = @transform_2, window_bounds = array<i64: 8, 512>}]} {
    %c0 = arith.constant 0 : index
    %c0_0 = arith.constant 0 : index
    %0 = vector.load %arg1[%c0, %c0_0] : memref<8x512xf32, #tpu.memory_space<vmem>>, vector<8x512xf32>
    %c0_1 = arith.constant 0 : index
    %c0_2 = arith.constant 0 : index
    %1 = vector.load %arg2[%c0_1, %c0_2] : memref<8x512xf32, #tpu.memory_space<vmem>>, vector<8x512xf32>
    %2 = arith.subf %0, %1 : vector<8x512xf32>
    %c0_3 = arith.constant 0 : index
    %c0_4 = arith.constant 0 : index
    %3 = vector.load %arg3[%c0_3, %c0_4] : memref<8x512xf32, #tpu.memory_space<vmem>>, vector<8x512xf32>
    tpu.vector_store %arg3[%c0_3, %c0_4], %2 {strides = array<i32>} : memref<8x512xf32, #tpu.memory_space<vmem>>, vector<8x512xf32>,
    return
  }
  func.func @transform_0(%arg0: i32) -> (i32, i32) {
    %c0_i32 = arith.constant 0 : i32
    %c0_i32_0 = arith.constant 0 : i32
    return %arg0, %c0_i32 : i32, i32
  }
  func.func @transform_1(%arg0: i32) -> (i32, i32) {
    %c0_i32 = arith.constant 0 : i32
    %c0_i32_0 = arith.constant 0 : i32
    return %arg0, %c0_i32 : i32, i32
  }
  func.func @transform_2(%arg0: i32) -> (i32, i32) {
    %c0_i32 = arith.constant 0 : i32
    %c0_i32_0 = arith.constant 0 : i32
    return %arg0, %c0_i32 : i32, i32
  }
}

</mosaic_0001>

<llo_original>
// kernel: jvp__.50
$region0: #{jvp__.50}
  #allocation0 [shape = 'u32[]', space=smem, size = 0x4, offset = 0x4, fixed_abs, tag = 'smem constant byte address 0x4 - core index']
  #allocation1 [shape = 'u32[72,128]{1,0:T(1,128)}', space=vmem, size = 0x9000, scoped, tag = 'internal scratch']
  %s0 = inlined_call_operand.vmem [shape: bf16[512,128], index: 0, kind: input, shape index: {}]
  %s1 = inlined_call_operand.vmem [shape: bf16[128,128], index: 1, kind: input, shape index: {}]
  %s2 = inlined_call_operand.vmem [shape: f32[512,128], index: 2, kind: output, shape index: {}]
  %s3 = sld [smem:[#allocation0]]
  $region45: #{jvp__.50} parent=0
    _
  %s5 = ssub.s32 1, %s3
  %s6 = scalar_select 0, %s5, %s3
  loop: start=0, step=1, limit=4
  $region2: #{jvp__.50} parent=0 // loop_pre_header
    _
  $region3: #{jvp__.50} parent=0 // loop_header
    %s8 = sphi 0, %s12
    %p9 = scmp.ge.s32.totalorder %s8, 4
    %s15 = sphi 0, %s34
    %s16 = sphi 0, %s30
    %s17 = sphi 0, %s26
    %s18 = sphi 0, %s15
    %s19 = sphi 0, %s16
    %s20 = sphi 0, %s17
    %s21 = sphi 0, %s18
    %s22 = sphi 0, %s19
    %s23 = sphi 0, %s20
    %s39 = sphi 0, %s41
    %s42 = sphi 0, %s39
    %s43 = sphi 0, %s42
    %s59 = sphi 0, %s43
    %s67 = sphi 0, %s69
    %s70 = sphi 0, %s67
    %s71 = sphi 0, %s70
    %s87 = sphi 0, %s71
    %s95 = sphi 0, %s97
    %s98 = sphi 0, %s95
    %s99 = sphi 0, %s98
    %s115 = sphi 0, %s99
  $region4: #{jvp__.50} parent=0 // loop_header_branch
    %11 = sbr.rel (%p9) target = $region8
  $region5: #{jvp__.50} parent=0 // loop_body
    %s13 = ssub.s32 %s8, 1
    %s14 = ssub.s32 %s8, 2
    %s24 = sadd.s32 1, %s17
    %p25 = scmp.ge.s32.totalorder %s24, 1
    %s26 = scalar_select %p25, 0, %s24
    %s27 = sadd.s32 1, %s16
    %s28 = scalar_select %p25, %s27, %s16
    %p29 = scmp.ge.s32.totalorder %s28, 1
    %s30 = scalar_select %p29, 0, %s28
    %s31 = sadd.s32 1, %s15
    %s32 = scalar_select %p29, %s31, %s15
    %p33 = scmp.ge.s32.totalorder %s32, 2
    %s34 = scalar_select %p33, 0, %s32
    %s35 = ssub.s32 %s15, %s34
    %s36 = ssub.s32 %s17, %s26
    %s37 = sor.u32 %s35, %s36
    %p38 = scmp.eq.s32.totalorder %s37, 0
    %s40 = sadd.s32 %s39, 1
    %s41 = scalar_select %p38, %s39, %s40
    %p44 = pneg %p38
    %p45 = scmp.eq.s32.totalorder %s8, 1
    %p46 = por %p44, %p45
    %p47 = scmp.ne.s32.totalorder %s39, %s42
    %p48 = scmp.eq.s32.totalorder %s8, 0
    %p49 = por %p47, %p48
    %p50 = scmp.ne.s32.totalorder %s39, %s42
    %p51 = scmp.eq.s32.totalorder %s13, 1
    %p52 = por %p50, %p51
    %p53 = scmp.ne.s32.totalorder %s42, %s43
    %p54 = scmp.eq.s32.totalorder %s13, 0
    %p55 = por %p53, %p54
    %p56 = scmp.ne.s32.totalorder %s42, %s43
    %p57 = scmp.eq.s32.totalorder %s14, 1
    %p58 = por %p56, %p57
    %p60 = scmp.ne.s32.totalorder %s43, %s59
    %p61 = scmp.eq.s32.totalorder %s14, 0
    %p62 = por %p60, %p61
    %s63 = ssub.s32 %s17, %s26
    %s64 = ssub.s32 %s16, %s30
    %s65 = sor.u32 %s63, %s64
    %p66 = scmp.eq.s32.totalorder %s65, 0
    %s68 = sadd.s32 %s67, 1
    %s69 = scalar_select %p66, %s67, %s68
    %p72 = pneg %p66
    %p73 = scmp.eq.s32.totalorder %s8, 1
    %p74 = por %p72, %p73
    %p75 = scmp.ne.s32.totalorder %s67, %s70
    %p76 = scmp.eq.s32.totalorder %s8, 0
    %p77 = por %p75, %p76
    %p78 = scmp.ne.s32.totalorder %s67, %s70
    %p79 = scmp.eq.s32.totalorder %s13, 1
    %p80 = por %p78, %p79
    %p81 = scmp.ne.s32.totalorder %s70, %s71
    %p82 = scmp.eq.s32.totalorder %s13, 0
    %p83 = por %p81, %p82
    %p84 = scmp.ne.s32.totalorder %s70, %s71
    %p85 = scmp.eq.s32.totalorder %s14, 1
    %p86 = por %p84, %p85
    %p88 = scmp.ne.s32.totalorder %s71, %s87
    %p89 = scmp.eq.s32.totalorder %s14, 0
    %p90 = por %p88, %p89
    %s91 = ssub.s32 %s15, %s34
    %s92 = ssub.s32 %s16, %s30
    %s93 = sor.u32 %s91, %s92
    %p94 = scmp.eq.s32.totalorder %s93, 0
    %s96 = sadd.s32 %s95, 1
    %s97 = scalar_select %p94, %s95, %s96
    %p100 = pneg %p94
    %p101 = scmp.eq.s32.totalorder %s8, 1
    %p102 = por %p100, %p101
    %p103 = scmp.ne.s32.totalorder %s95, %s98
    %p104 = scmp.eq.s32.totalorder %s8, 0
    %p105 = por %p103, %p104
    %p106 = scmp.ne.s32.totalorder %s95, %s98
    %p107 = scmp.eq.s32.totalorder %s13, 1
    %p108 = por %p106, %p107
    %p109 = scmp.ne.s32.totalorder %s98, %s99
    %p110 = scmp.eq.s32.totalorder %s13, 0
    %p111 = por %p109, %p110
    %p112 = scmp.ne.s32.totalorder %s98, %s99
    %p113 = scmp.eq.s32.totalorder %s14, 1
    %p114 = por %p112, %p113
    %p116 = scmp.ne.s32.totalorder %s99, %s115
    %p117 = scmp.eq.s32.totalorder %s14, 0
    %p118 = por %p116, %p117
    %p119 = scmp.le.s32.totalorder 1, %s8
    %p120 = scmp.lt.s32.totalorder %s8, 3
    %p121 = pnand %p119, %p120
    %p122 = pneg %p121
    // Predicated region
    $region9: #{jvp__.50} parent=5 // pred_check
      _
    $region10: #{jvp__.50} parent=5 // pred_check_branch
      %124 = sbr.rel (%p121) target = $region12
    $region11: #{jvp__.50} parent=5 // pred_region
      %s125 = ssub.s32 %s8, 1
      // Predicated region
      $region13: #{jvp__.50} parent=11 // pred_check
        %p126 = pneg %p83
      $region14: #{jvp__.50} parent=11 // pred_check_branch
        %128 = sbr.rel (%p126) target = $region16
      $region15: #{jvp__.50} parent=11 // pred_region
        %s129 = smul.u32 16, %s20
        %p130 = scmp.lt.s32.totalorder %s129, 15
        %s131 = scalar_select %p130, %s129, 15
        %p132 = scmp.lt.s32.totalorder %s19, 0
        %s133 = scalar_select %p132, %s19, 0
        %s134 = sadd.s32 %s133, %s131
        %s135 = smul.addr %s134, 4
        %s136 = scalar_lea.vmem %s1, %s135
        %s137 = smul.u32 16, %s20
      $region16: #{jvp__.50} parent=11 // pred_fallthru
        _
    $region12: #{jvp__.50} parent=5 // pred_fallthru
      _
    %p138 = scmp.lt.s32.totalorder %s8, 2
    // Predicated region
    $region17: #{jvp__.50} parent=5 // pred_check
      %p139 = pneg %p138
    $region18: #{jvp__.50} parent=5 // pred_check_branch
      %141 = sbr.rel (%p139) target = $region20
    $region19: #{jvp__.50} parent=5 // pred_region
      // Predicated region
      $region21: #{jvp__.50} parent=19 // pred_check
        %p142 = pneg %p49
      $region22: #{jvp__.50} parent=19 // pred_check_branch
        %144 = sbr.rel (%p142) target = $region24
      $region23: #{jvp__.50} parent=19 // pred_region
        %s145 = smul.u32 32, %s15
        %p146 = scmp.lt.s32.totalorder %s145, 63
        %s147 = scalar_select %p146, %s145, 63
        %p148 = scmp.lt.s32.totalorder %s17, 0
        %s149 = scalar_select %p148, %s17, 0
        %s150 = sadd.s32 %s149, %s147
        %s151 = smul.addr %s150, 4
        %s152 = scalar_lea.vmem %s0, %s151
        %s153 = smul.u32 32, %s15
      $region24: #{jvp__.50} parent=19 // pred_fallthru
        _
    $region20: #{jvp__.50} parent=5 // pred_fallthru
      _
    %p154 = scmp.le.s32.totalorder 1, %s8
    %p155 = scmp.lt.s32.totalorder %s8, 3
    %p156 = pnand %p154, %p155
    %p157 = pneg %p156
    // Predicated region
    $region25: #{jvp__.50} parent=5 // pred_check
      _
    $region26: #{jvp__.50} parent=5 // pred_check_branch
      %159 = sbr.rel (%p156) target = $region28
    $region27: #{jvp__.50} parent=5 // pred_region
      %s160 = ssub.s32 %s8, 1
      %s161 = smul.u32 32, %s18
      %p162 = scmp.lt.s32.totalorder %s161, 63
      %s163 = scalar_select %p162, %s161, 63
      %p164 = scmp.lt.s32.totalorder %s20, 0
      %s165 = scalar_select %p164, %s20, 0
      %s166 = sadd.s32 %s165, %s163
      %s167 = smul.addr %s166, 4
      %s168 = scalar_lea.vmem %s0, %s167
      %p169 = pneg %p55
      %p170 = pneg %p52
      %s171 = smul.u32 16, %s20
      %p172 = scmp.lt.s32.totalorder %s171, 15
      %s173 = scalar_select %p172, %s171, 15
      %p174 = scmp.lt.s32.totalorder %s19, 0
      %s175 = scalar_select %p174, %s19, 0
      %s176 = sadd.s32 %s175, %s173
      %s177 = smul.addr %s176, 4
      %s178 = scalar_lea.vmem %s1, %s177
      %p179 = pneg %p83
      %p180 = pneg %p80
      %p181 = pneg %p111
      %p182 = pneg %p108
      %s183 = smul.u32 32, %s18
      %p184 = scmp.lt.s32.totalorder %s183, 63
      %s185 = scalar_select %p184, %s183, 63
      %p186 = scmp.lt.s32.totalorder %s19, 0
      %s187 = scalar_select %p186, %s19, 0
      %s188 = sadd.s32 %s187, %s185
      %s189 = smul.addr %s188, 8
      %s190 = scalar_lea.vmem %s2, %s189
      %s191 = smul.u32 32, %s18
      %p192 = scmp.lt.s32.totalorder %s191, 63
      %s193 = scalar_select %p192, %s191, 63
      %p194 = scmp.lt.s32.totalorder %s20, 0
      %s195 = scalar_select %p194, %s20, 0
      %s196 = sadd.s32 %s195, %s193
      %s197 = smul.addr %s196, 4
      %s198 = scalar_lea.vmem %s0, %s197
      %s199 = smul.u32 32, %s18
      %s200 = smul.u32 16, %s20
      %p201 = scmp.lt.s32.totalorder %s200, 15
      %s202 = scalar_select %p201, %s200, 15
      %p203 = scmp.lt.s32.totalorder %s19, 0
      %s204 = scalar_select %p203, %s19, 0
      %s205 = sadd.s32 %s204, %s202
      %s206 = smul.addr %s205, 4
      %s207 = scalar_lea.vmem %s1, %s206
      %s208 = smul.u32 16, %s20
      %s209 = smul.u32 32, %s18
      %p210 = scmp.lt.s32.totalorder %s209, 63
      %s211 = scalar_select %p210, %s209, 63
      %p212 = scmp.lt.s32.totalorder %s19, 0
      %s213 = scalar_select %p212, %s19, 0
      %s214 = sadd.s32 %s213, %s211
      %s215 = smul.addr %s214, 8
      %s216 = scalar_lea.vmem %s2, %s215
      %s217 = smul.u32 32, %s18
      %p218 = scmp.eq.s32.totalorder %s20, 0
      // Predicated region
      $region29: #{jvp__.50} parent=27 // pred_check
        %p219 = pneg %p218
      $region30: #{jvp__.50} parent=27 // pred_check_branch
        %221 = sbr.rel (%p219) target = $region32
      $region31: #{jvp__.50} parent=27 // pred_region
        %222 = vst [vmem:[%s216] sm:$0xff] 0.0
        %223 = vst [vmem:[%s216 + $0x8] sm:$0xff] 0.0
        %224 = vst [vmem:[%s216 + $0x10] sm:$0xff] 0.0
        %225 = vst [vmem:[%s216 + $0x18] sm:$0xff] 0.0
        %226 = vst [vmem:[%s216 + $0x20] sm:$0xff] 0.0
        %227 = vst [vmem:[%s216 + $0x28] sm:$0xff] 0.0
        %228 = vst [vmem:[%s216 + $0x30] sm:$0xff] 0.0
        %229 = vst [vmem:[%s216 + $0x38] sm:$0xff] 0.0
        %230 = vst [vmem:[%s216 + $0x40] sm:$0xff] 0.0
        %231 = vst [vmem:[%s216 + $0x48] sm:$0xff] 0.0
        %232 = vst [vmem:[%s216 + $0x50] sm:$0xff] 0.0
        %233 = vst [vmem:[%s216 + $0x58] sm:$0xff] 0.0
        %234 = vst [vmem:[%s216 + $0x60] sm:$0xff] 0.0
        %235 = vst [vmem:[%s216 + $0x68] sm:$0xff] 0.0
        %236 = vst [vmem:[%s216 + $0x70] sm:$0xff] 0.0
        %237 = vst [vmem:[%s216 + $0x78] sm:$0xff] 0.0
        %238 = vst [vmem:[%s216 + $0x80] sm:$0xff] 0.0
        %239 = vst [vmem:[%s216 + $0x88] sm:$0xff] 0.0
        %240 = vst [vmem:[%s216 + $0x90] sm:$0xff] 0.0
        %241 = vst [vmem:[%s216 + $0x98] sm:$0xff] 0.0
        %242 = vst [vmem:[%s216 + $0xa0] sm:$0xff] 0.0
        %243 = vst [vmem:[%s216 + $0xa8] sm:$0xff] 0.0
        %244 = vst [vmem:[%s216 + $0xb0] sm:$0xff] 0.0
        %245 = vst [vmem:[%s216 + $0xb8] sm:$0xff] 0.0
        %246 = vst [vmem:[%s216 + $0xc0] sm:$0xff] 0.0
        %247 = vst [vmem:[%s216 + $0xc8] sm:$0xff] 0.0
        %248 = vst [vmem:[%s216 + $0xd0] sm:$0xff] 0.0
        %249 = vst [vmem:[%s216 + $0xd8] sm:$0xff] 0.0
        %250 = vst [vmem:[%s216 + $0xe0] sm:$0xff] 0.0
        %251 = vst [vmem:[%s216 + $0xe8] sm:$0xff] 0.0
        %252 = vst [vmem:[%s216 + $0xf0] sm:$0xff] 0.0
        %253 = vst [vmem:[%s216 + $0xf8] sm:$0xff] 0.0
      $region32: #{jvp__.50} parent=27 // pred_fallthru
        _
      %v254 = vld [vmem:[%s216] sm:$0xff]
      %v255 = vld [vmem:[%s216 + $0x8] sm:$0xff]
      %v256 = vld [vmem:[%s216 + $0x10] sm:$0xff]
      %v257 = vld [vmem:[%s216 + $0x18] sm:$0xff]
      %v258 = vld [vmem:[%s216 + $0x20] sm:$0xff]
      %v259 = vld [vmem:[%s216 + $0x28] sm:$0xff]
      %v260 = vld [vmem:[%s216 + $0x30] sm:$0xff]
      %v261 = vld [vmem:[%s216 + $0x38] sm:$0xff]
      %v262 = vld [vmem:[%s216 + $0x40] sm:$0xff]
      %v263 = vld [vmem:[%s216 + $0x48] sm:$0xff]
      %v264 = vld [vmem:[%s216 + $0x50] sm:$0xff]
      %v265 = vld [vmem:[%s216 + $0x58] sm:$0xff]
      %v266 = vld [vmem:[%s216 + $0x60] sm:$0xff]
      %v267 = vld [vmem:[%s216 + $0x68] sm:$0xff]
      %v268 = vld [vmem:[%s216 + $0x70] sm:$0xff]
      %v269 = vld [vmem:[%s216 + $0x78] sm:$0xff]
      %v270 = vld [vmem:[%s216 + $0x80] sm:$0xff]
      %v271 = vld [vmem:[%s216 + $0x88] sm:$0xff]
      %v272 = vld [vmem:[%s216 + $0x90] sm:$0xff]
      %v273 = vld [vmem:[%s216 + $0x98] sm:$0xff]
      %v274 = vld [vmem:[%s216 + $0xa0] sm:$0xff]
      %v275 = vld [vmem:[%s216 + $0xa8] sm:$0xff]
      %v276 = vld [vmem:[%s216 + $0xb0] sm:$0xff]
      %v277 = vld [vmem:[%s216 + $0xb8] sm:$0xff]
      %v278 = vld [vmem:[%s216 + $0xc0] sm:$0xff]
      %v279 = vld [vmem:[%s216 + $0xc8] sm:$0xff]
      %v280 = vld [vmem:[%s216 + $0xd0] sm:$0xff]
      %v281 = vld [vmem:[%s216 + $0xd8] sm:$0xff]
      %v282 = vld [vmem:[%s216 + $0xe0] sm:$0xff]
      %v283 = vld [vmem:[%s216 + $0xe8] sm:$0xff]
      %v284 = vld [vmem:[%s216 + $0xf0] sm:$0xff]
      %v285 = vld [vmem:[%s216 + $0xf8] sm:$0xff]
      %v286 = vld [vmem:[%s198] sm:$0xf]
      %v287 = vld [vmem:[%s198 + $0x4] sm:$0xf]
      %v288 = vld [vmem:[%s198 + $0x8] sm:$0xf]
      %v289 = vld [vmem:[%s198 + $0xc] sm:$0xf]
      %v290 = vld [vmem:[%s198 + $0x10] sm:$0xf]
      %v291 = vld [vmem:[%s198 + $0x14] sm:$0xf]
      %v292 = vld [vmem:[%s198 + $0x18] sm:$0xf]
      %v293 = vld [vmem:[%s198 + $0x1c] sm:$0xf]
      %v294 = vld [vmem:[%s198 + $0x20] sm:$0xf]
      %v295 = vld [vmem:[%s198 + $0x24] sm:$0xf]
      %v296 = vld [vmem:[%s198 + $0x28] sm:$0xf]
      %v297 = vld [vmem:[%s198 + $0x2c] sm:$0xf]
      %v298 = vld [vmem:[%s198 + $0x30] sm:$0xf]
      %v299 = vld [vmem:[%s198 + $0x34] sm:$0xf]
      %v300 = vld [vmem:[%s198 + $0x38] sm:$0xf]
      %v301 = vld [vmem:[%s198 + $0x3c] sm:$0xf]
      %v302 = vld [vmem:[%s198 + $0x40] sm:$0xf]
      %v303 = vld [vmem:[%s198 + $0x44] sm:$0xf]
      %v304 = vld [vmem:[%s198 + $0x48] sm:$0xf]
      %v305 = vld [vmem:[%s198 + $0x4c] sm:$0xf]
      %v306 = vld [vmem:[%s198 + $0x50] sm:$0xf]
      %v307 = vld [vmem:[%s198 + $0x54] sm:$0xf]
      %v308 = vld [vmem:[%s198 + $0x58] sm:$0xf]
      %v309 = vld [vmem:[%s198 + $0x5c] sm:$0xf]
      %v310 = vld [vmem:[%s198 + $0x60] sm:$0xf]
      %v311 = vld [vmem:[%s198 + $0x64] sm:$0xf]
      %v312 = vld [vmem:[%s198 + $0x68] sm:$0xf]
      %v313 = vld [vmem:[%s198 + $0x6c] sm:$0xf]
      %v314 = vld [vmem:[%s198 + $0x70] sm:$0xf]
      %v315 = vld [vmem:[%s198 + $0x74] sm:$0xf]
      %v316 = vld [vmem:[%s198 + $0x78] sm:$0xf]
      %v317 = vld [vmem:[%s198 + $0x7c] sm:$0xf]
      %v318 = vld [vmem:[%s207] sm:$0xf]
      %v319 = vld [vmem:[%s207 + $0x4] sm:$0xf]
      %v320 = vld [vmem:[%s207 + $0x8] sm:$0xf]
      %v321 = vld [vmem:[%s207 + $0xc] sm:$0xf]
      %v322 = vld [vmem:[%s207 + $0x10] sm:$0xf]
      %v323 = vld [vmem:[%s207 + $0x14] sm:$0xf]
      %v324 = vld [vmem:[%s207 + $0x18] sm:$0xf]
      %v325 = vld [vmem:[%s207 + $0x1c] sm:$0xf]
      %v326 = vld [vmem:[%s207 + $0x20] sm:$0xf]
      %v327 = vld [vmem:[%s207 + $0x24] sm:$0xf]
      %v328 = vld [vmem:[%s207 + $0x28] sm:$0xf]
      %v329 = vld [vmem:[%s207 + $0x2c] sm:$0xf]
      %v330 = vld [vmem:[%s207 + $0x30] sm:$0xf]
      %v331 = vld [vmem:[%s207 + $0x34] sm:$0xf]
      %v332 = vld [vmem:[%s207 + $0x38] sm:$0xf]
      %v333 = vld [vmem:[%s207 + $0x3c] sm:$0xf]
      %v366 = vunpack.c.l.b16 %v286
      %v367 = vunpack.c.l.b16 %v287
      %v368 = vunpack.c.l.b16 %v288
      %v369 = vunpack.c.l.b16 %v289
      %v370 = vunpack.c.l.b16 %v290
      %v371 = vunpack.c.l.b16 %v291
      %v372 = vunpack.c.l.b16 %v292
      %v373 = vunpack.c.l.b16 %v293
      %v374 = vunpack.c.l.b16 %v294
      %v375 = vunpack.c.l.b16 %v295
      %v376 = vunpack.c.l.b16 %v296
      %v377 = vunpack.c.l.b16 %v297
      %v378 = vunpack.c.l.b16 %v298
      %v379 = vunpack.c.l.b16 %v299
      %v380 = vunpack.c.l.b16 %v300
      %v381 = vunpack.c.l.b16 %v301
      %v382 = vunpack.c.l.b16 %v302
      %v383 = vunpack.c.l.b16 %v303
      %v384 = vunpack.c.l.b16 %v304
      %v385 = vunpack.c.l.b16 %v305
      %v386 = vunpack.c.l.b16 %v306
      %v387 = vunpack.c.l.b16 %v307
      %v388 = vunpack.c.l.b16 %v308
      %v389 = vunpack.c.l.b16 %v309
      %v390 = vunpack.c.l.b16 %v310
      %v391 = vunpack.c.l.b16 %v311
      %v392 = vunpack.c.l.b16 %v312
      %v393 = vunpack.c.l.b16 %v313
      %v394 = vunpack.c.l.b16 %v314
      %v395 = vunpack.c.l.b16 %v315
      %v396 = vunpack.c.l.b16 %v316
      %v397 = vunpack.c.l.b16 %v317
      %v398 = vpack.c.b16 %v367, %v366
      %v399 = vpack.c.b16 %v369, %v368
      %v400 = vpack.c.b16 %v371, %v370
      %v401 = vpack.c.b16 %v373, %v372
      %v402 = vpack.c.b16 %v375, %v374
      %v403 = vpack.c.b16 %v377, %v376
      %v404 = vpack.c.b16 %v379, %v378
      %v405 = vpack.c.b16 %v381, %v380
      %v406 = vpack.c.b16 %v383, %v382
      %v407 = vpack.c.b16 %v385, %v384
      %v408 = vpack.c.b16 %v387, %v386
      %v409 = vpack.c.b16 %v389, %v388
      %v410 = vpack.c.b16 %v391, %v390
      %v411 = vpack.c.b16 %v393, %v392
      %v412 = vpack.c.b16 %v395, %v394
      %v413 = vpack.c.b16 %v397, %v396
      %v446 = vunpack.c.l.b16 %v318
      %v447 = vunpack.c.l.b16 %v319
      %v448 = vunpack.c.l.b16 %v320
      %v449 = vunpack.c.l.b16 %v321
      %v450 = vunpack.c.l.b16 %v322
      %v451 = vunpack.c.l.b16 %v323
      %v452 = vunpack.c.l.b16 %v324
      %v453 = vunpack.c.l.b16 %v325
      %v454 = vunpack.c.l.b16 %v326
      %v455 = vunpack.c.l.b16 %v327
      %v456 = vunpack.c.l.b16 %v328
      %v457 = vunpack.c.l.b16 %v329
      %v458 = vunpack.c.l.b16 %v330
      %v459 = vunpack.c.l.b16 %v331
      %v460 = vunpack.c.l.b16 %v332
      %v461 = vunpack.c.l.b16 %v333
      %v462 = vpack.c.b16 %v447, %v446
      %v463 = vpack.c.b16 %v449, %v448
      %v464 = vpack.c.b16 %v451, %v450
      %v465 = vpack.c.b16 %v453, %v452
      %v466 = vpack.c.b16 %v455, %v454
      %v467 = vpack.c.b16 %v457, %v456
      %v468 = vpack.c.b16 %v459, %v458
      %v469 = vpack.c.b16 %v461, %v460
      %478 = vmatpush.bf16.msra.mxu0 %v469
      %479 = vmatpush.bf16.msra.mxu0 %v468
      %480 = vmatpush.bf16.msra.mxu0 %v467
      %481 = vmatpush.bf16.msra.mxu0 %v466
      %482 = vmatpush.bf16.msra.mxu0 %v465
      %483 = vmatpush.bf16.msra.mxu0 %v464
      %484 = vmatpush.bf16.msra.mxu0 %v463
      %485 = vmatpush.bf16.msra.mxu0 %v462
      %486 = vmatmul.bf16.gmra.mxu0 %v398
      %v487 = vpop.f32.mrf.mxu0
      %v488 = vadd.f32 0.0, %v487
      %v489 = vpop.f32.mrf.mxu0
      %v490 = vadd.f32 0.0, %v489
      %491 = vmatmul.bf16.gmra.mxu0 %v399
      %v492 = vpop.f32.mrf.mxu0
      %v493 = vadd.f32 0.0, %v492
      %v494 = vpop.f32.mrf.mxu0
      %v495 = vadd.f32 0.0, %v494
      %496 = vmatmul.bf16.gmra.mxu0 %v400
      %v497 = vpop.f32.mrf.mxu0
      %v498 = vadd.f32 0.0, %v497
      %v499 = vpop.f32.mrf.mxu0
      %v500 = vadd.f32 0.0, %v499
      %501 = vmatmul.bf16.gmra.mxu0 %v401
      %v502 = vpop.f32.mrf.mxu0
      %v503 = vadd.f32 0.0, %v502
      %v504 = vpop.f32.mrf.mxu0
      %v505 = vadd.f32 0.0, %v504
      %506 = vmatmul.bf16.gmra.mxu0 %v402
      %v507 = vpop.f32.mrf.mxu0
      %v508 = vadd.f32 0.0, %v507
      %v509 = vpop.f32.mrf.mxu0
      %v510 = vadd.f32 0.0, %v509
      %511 = vmatmul.bf16.gmra.mxu0 %v403
      %v512 = vpop.f32.mrf.mxu0
      %v513 = vadd.f32 0.0, %v512
      %v514 = vpop.f32.mrf.mxu0
      %v515 = vadd.f32 0.0, %v514
      %516 = vmatmul.bf16.gmra.mxu0 %v404
      %v517 = vpop.f32.mrf.mxu0
      %v518 = vadd.f32 0.0, %v517
      %v519 = vpop.f32.mrf.mxu0
      %v520 = vadd.f32 0.0, %v519
      %521 = vmatmul.bf16.gmra.mxu0 %v405
      %v522 = vpop.f32.mrf.mxu0
      %v523 = vadd.f32 0.0, %v522
      %v524 = vpop.f32.mrf.mxu0
      %v525 = vadd.f32 0.0, %v524
      %526 = vmatmul.bf16.gmra.mxu0 %v406
      %v527 = vpop.f32.mrf.mxu0
      %v528 = vadd.f32 0.0, %v527
      %v529 = vpop.f32.mrf.mxu0
      %v530 = vadd.f32 0.0, %v529
      %531 = vmatmul.bf16.gmra.mxu0 %v407
      %v532 = vpop.f32.mrf.mxu0
      %v533 = vadd.f32 0.0, %v532
      %v534 = vpop.f32.mrf.mxu0
      %v535 = vadd.f32 0.0, %v534
      %536 = vmatmul.bf16.gmra.mxu0 %v408
      %v537 = vpop.f32.mrf.mxu0
      %v538 = vadd.f32 0.0, %v537
      %v539 = vpop.f32.mrf.mxu0
      %v540 = vadd.f32 0.0, %v539
      %541 = vmatmul.bf16.gmra.mxu0 %v409
      %v542 = vpop.f32.mrf.mxu0
      %v543 = vadd.f32 0.0, %v542
      %v544 = vpop.f32.mrf.mxu0
      %v545 = vadd.f32 0.0, %v544
      %546 = vmatmul.bf16.gmra.mxu0 %v410
      %v547 = vpop.f32.mrf.mxu0
      %v548 = vadd.f32 0.0, %v547
      %v549 = vpop.f32.mrf.mxu0
      %v550 = vadd.f32 0.0, %v549
      %551 = vmatmul.bf16.gmra.mxu0 %v411
      %v552 = vpop.f32.mrf.mxu0
      %v553 = vadd.f32 0.0, %v552
      %v554 = vpop.f32.mrf.mxu0
      %v555 = vadd.f32 0.0, %v554
      %556 = vmatmul.bf16.gmra.mxu0 %v412
      %v557 = vpop.f32.mrf.mxu0
      %v558 = vadd.f32 0.0, %v557
      %v559 = vpop.f32.mrf.mxu0
      %v560 = vadd.f32 0.0, %v559
      %561 = vmatmul.bf16.gmra.mxu0 %v413
      %v562 = vpop.f32.mrf.mxu0
      %v563 = vadd.f32 0.0, %v562
      %v564 = vpop.f32.mrf.mxu0
      %v565 = vadd.f32 0.0, %v564
      %566 = vdwg.mxu0
      %v567 = vadd.f32 %v254, %v488
      %v568 = vadd.f32 %v255, %v490
      %v569 = vadd.f32 %v256, %v493
      %v570 = vadd.f32 %v257, %v495
      %v571 = vadd.f32 %v258, %v498
      %v572 = vadd.f32 %v259, %v500
      %v573 = vadd.f32 %v260, %v503
      %v574 = vadd.f32 %v261, %v505
      %v575 = vadd.f32 %v262, %v508
      %v576 = vadd.f32 %v263, %v510
      %v577 = vadd.f32 %v264, %v513
      %v578 = vadd.f32 %v265, %v515
      %v579 = vadd.f32 %v266, %v518
      %v580 = vadd.f32 %v267, %v520
      %v581 = vadd.f32 %v268, %v523
      %v582 = vadd.f32 %v269, %v525
      %v583 = vadd.f32 %v270, %v528
      %v584 = vadd.f32 %v271, %v530
      %v585 = vadd.f32 %v272, %v533
      %v586 = vadd.f32 %v273, %v535
      %v587 = vadd.f32 %v274, %v538
      %v588 = vadd.f32 %v275, %v540
      %v589 = vadd.f32 %v276, %v543
      %v590 = vadd.f32 %v277, %v545
      %v591 = vadd.f32 %v278, %v548
      %v592 = vadd.f32 %v279, %v550
      %v593 = vadd.f32 %v280, %v553
      %v594 = vadd.f32 %v281, %v555
      %v595 = vadd.f32 %v282, %v558
      %v596 = vadd.f32 %v283, %v560
      %v597 = vadd.f32 %v284, %v563
      %v598 = vadd.f32 %v285, %v565
      %599 = vst [vmem:[%s216] sm:$0xff] %v567
      %600 = vst [vmem:[%s216 + $0x8] sm:$0xff] %v568
      %601 = vst [vmem:[%s216 + $0x10] sm:$0xff] %v569
      %602 = vst [vmem:[%s216 + $0x18] sm:$0xff] %v570
      %603 = vst [vmem:[%s216 + $0x20] sm:$0xff] %v571
      %604 = vst [vmem:[%s216 + $0x28] sm:$0xff] %v572
      %605 = vst [vmem:[%s216 + $0x30] sm:$0xff] %v573
      %606 = vst [vmem:[%s216 + $0x38] sm:$0xff] %v574
      %607 = vst [vmem:[%s216 + $0x40] sm:$0xff] %v575
      %608 = vst [vmem:[%s216 + $0x48] sm:$0xff] %v576
      %609 = vst [vmem:[%s216 + $0x50] sm:$0xff] %v577
      %610 = vst [vmem:[%s216 + $0x58] sm:$0xff] %v578
      %611 = vst [vmem:[%s216 + $0x60] sm:$0xff] %v579
      %612 = vst [vmem:[%s216 + $0x68] sm:$0xff] %v580
      %613 = vst [vmem:[%s216 + $0x70] sm:$0xff] %v581
      %614 = vst [vmem:[%s216 + $0x78] sm:$0xff] %v582
      %615 = vst [vmem:[%s216 + $0x80] sm:$0xff] %v583
      %616 = vst [vmem:[%s216 + $0x88] sm:$0xff] %v584
      %617 = vst [vmem:[%s216 + $0x90] sm:$0xff] %v585
      %618 = vst [vmem:[%s216 + $0x98] sm:$0xff] %v586
      %619 = vst [vmem:[%s216 + $0xa0] sm:$0xff] %v587
      %620 = vst [vmem:[%s216 + $0xa8] sm:$0xff] %v588
      %621 = vst [vmem:[%s216 + $0xb0] sm:$0xff] %v589
      %622 = vst [vmem:[%s216 + $0xb8] sm:$0xff] %v590
      %623 = vst [vmem:[%s216 + $0xc0] sm:$0xff] %v591
      %624 = vst [vmem:[%s216 + $0xc8] sm:$0xff] %v592
      %625 = vst [vmem:[%s216 + $0xd0] sm:$0xff] %v593
      %626 = vst [vmem:[%s216 + $0xd8] sm:$0xff] %v594
      %627 = vst [vmem:[%s216 + $0xe0] sm:$0xff] %v595
      %628 = vst [vmem:[%s216 + $0xe8] sm:$0xff] %v596
      %629 = vst [vmem:[%s216 + $0xf0] sm:$0xff] %v597
      %630 = vst [vmem:[%s216 + $0xf8] sm:$0xff] %v598
      %s631 = smul.u32 32, %s18
      %p632 = scmp.lt.s32.totalorder %s631, 63
      %s633 = scalar_select %p632, %s631, 63
      %p634 = scmp.lt.s32.totalorder %s19, 0
      %s635 = scalar_select %p634, %s19, 0
      %s636 = sadd.s32 %s635, %s633
      %s637 = smul.addr %s636, 8
      %s638 = scalar_lea.vmem %s2, %s637
      // Predicated region
      $region33: #{jvp__.50} parent=27 // pred_check
        %p639 = pneg %p108
      $region34: #{jvp__.50} parent=27 // pred_check_branch
        %641 = sbr.rel (%p639) target = $region36
      $region35: #{jvp__.50} parent=27 // pred_region
        %s642 = smul.u32 32, %s18
      $region36: #{jvp__.50} parent=27 // pred_fallthru
        _
    $region28: #{jvp__.50} parent=5 // pred_fallthru
      _
    %p643 = scmp.le.s32.totalorder 2, %s8
    // Predicated region
    $region37: #{jvp__.50} parent=5 // pred_check
      %p644 = pneg %p643
    $region38: #{jvp__.50} parent=5 // pred_check_branch
      %646 = sbr.rel (%p644) target = $region40
    $region39: #{jvp__.50} parent=5 // pred_region
      %s647 = ssub.s32 %s8, 2
      // Predicated region
      $region41: #{jvp__.50} parent=39 // pred_check
        %p648 = pneg %p114
      $region42: #{jvp__.50} parent=39 // pred_check_branch
        %650 = sbr.rel (%p648) target = $region44
      $region43: #{jvp__.50} parent=39 // pred_region
        %s651 = smul.u32 32, %s21
        %p652 = scmp.lt.s32.totalorder %s651, 63
        %s653 = scalar_select %p652, %s651, 63
        %p654 = scmp.lt.s32.totalorder %s22, 0
        %s655 = scalar_select %p654, %s22, 0
        %s656 = sadd.s32 %s655, %s653
        %s657 = smul.addr %s656, 8
        %s658 = scalar_lea.vmem %s2, %s657
      $region44: #{jvp__.50} parent=39 // pred_fallthru
        _
    $region40: #{jvp__.50} parent=5 // pred_fallthru
      _
  $region6: #{jvp__.50} parent=0 // loop_footer
    %s12 = sadd.s32 1, %s8
  $region7: #{jvp__.50} parent=0 // loop_footer_branch
    %7 = sbr.rel target = $region3
  $region8: #{jvp__.50} parent=0 // loop_exit
    _

// kernel: jvp__.51
$region0: #{jvp__.51}
  #allocation0 [shape = 'u32[]', space=smem, size = 0x4, offset = 0x4, fixed_abs, tag = 'smem constant byte address 0x4 - core index']
  #allocation1 [shape = 'u32[72,128]{1,0:T(1,128)}', space=vmem, size = 0x9000, scoped, tag = 'internal scratch']
  %s0 = inlined_call_operand.vmem [shape: bf16[512,640], index: 0, kind: input, shape index: {}]
  %s1 = inlined_call_operand.vmem [shape: bf16[640,128], index: 1, kind: input, shape index: {}]
  %s2 = inlined_call_operand.vmem [shape: f32[512,128], index: 2, kind: output, shape index: {}]
  %s3 = sld [smem:[#allocation0]]
  $region86: #{jvp__.51} parent=0
    _
  %s5 = ssub.s32 1, %s3
  %s6 = scalar_select 0, %s5, %s3
  $region1: #{jvp__.51} parent=0
    #allocation2 [shape = 'u8[131072]{0}', space=vmem, size = 0x20000, scoped, tag = 'input window, operand 0']
    loop: start=0, step=1, limit=12
    $region2: #{jvp__.51} parent=1 // loop_pre_header
      _
    $region3: #{jvp__.51} parent=1 // loop_header
      %s8 = sphi 0, %s12
      %p9 = scmp.ge.s32.totalorder %s8, 12
      %s15 = sphi 0, %s34
      %s16 = sphi 0, %s30
      %s17 = sphi 0, %s26
      %s18 = sphi 0, %s15
      %s19 = sphi 0, %s16
      %s20 = sphi 0, %s17
      %s21 = sphi 0, %s18
      %s22 = sphi 0, %s19
      %s23 = sphi 0, %s20
      %s39 = sphi 0, %s41
      %s42 = sphi 0, %s39
      %s43 = sphi 0, %s42
      %s59 = sphi 0, %s43
      %s67 = sphi 0, %s69
      %s70 = sphi 0, %s67
      %s71 = sphi 0, %s70
      %s87 = sphi 0, %s71
      %s95 = sphi 0, %s97
      %s98 = sphi 0, %s95
      %s99 = sphi 0, %s98
      %s115 = sphi 0, %s99
    $region4: #{jvp__.51} parent=1 // loop_header_branch
      %11 = sbr.rel (%p9) target = $region8
    $region5: #{jvp__.51} parent=1 // loop_body
      %s13 = ssub.s32 %s8, 1
      %s14 = ssub.s32 %s8, 2
      %s24 = sadd.s32 1, %s17
      %p25 = scmp.ge.s32.totalorder %s24, 5
      %s26 = scalar_select %p25, 0, %s24
      %s27 = sadd.s32 1, %s16
      %s28 = scalar_select %p25, %s27, %s16
      %p29 = scmp.ge.s32.totalorder %s28, 1
      %s30 = scalar_select %p29, 0, %s28
      %s31 = sadd.s32 1, %s15
      %s32 = scalar_select %p29, %s31, %s15
      %p33 = scmp.ge.s32.totalorder %s32, 2
      %s34 = scalar_select %p33, 0, %s32
      %s35 = ssub.s32 %s15, %s34
      %s36 = ssub.s32 %s17, %s26
      %s37 = sor.u32 %s35, %s36
      %p38 = scmp.eq.s32.totalorder %s37, 0
      %s40 = sadd.s32 %s39, 1
      %s41 = scalar_select %p38, %s39, %s40
      %p44 = pneg %p38
      %p45 = scmp.eq.s32.totalorder %s8, 9
      %p46 = por %p44, %p45
      %p47 = scmp.ne.s32.totalorder %s39, %s42
      %p48 = scmp.eq.s32.totalorder %s8, 0
      %p49 = por %p47, %p48
      %p50 = scmp.ne.s32.totalorder %s39, %s42
      %p51 = scmp.eq.s32.totalorder %s13, 9
      %p52 = por %p50, %p51
      %p53 = scmp.ne.s32.totalorder %s42, %s43
      %p54 = scmp.eq.s32.totalorder %s13, 0
      %p55 = por %p53, %p54
      %p56 = scmp.ne.s32.totalorder %s42, %s43
      %p57 = scmp.eq.s32.totalorder %s14, 9
      %p58 = por %p56, %p57
      %p60 = scmp.ne.s32.totalorder %s43, %s59
      %p61 = scmp.eq.s32.totalorder %s14, 0
      %p62 = por %p60, %p61
      %s63 = ssub.s32 %s17, %s26
      %s64 = ssub.s32 %s16, %s30
      %s65 = sor.u32 %s63, %s64
      %p66 = scmp.eq.s32.totalorder %s65, 0
      %s68 = sadd.s32 %s67, 1
      %s69 = scalar_select %p66, %s67, %s68
      %p72 = pneg %p66
      %p73 = scmp.eq.s32.totalorder %s8, 9
      %p74 = por %p72, %p73
      %p75 = scmp.ne.s32.totalorder %s67, %s70
      %p76 = scmp.eq.s32.totalorder %s8, 0
      %p77 = por %p75, %p76
      %p78 = scmp.ne.s32.totalorder %s67, %s70
      %p79 = scmp.eq.s32.totalorder %s13, 9
      %p80 = por %p78, %p79
      %p81 = scmp.ne.s32.totalorder %s70, %s71
      %p82 = scmp.eq.s32.totalorder %s13, 0
      %p83 = por %p81, %p82
      %p84 = scmp.ne.s32.totalorder %s70, %s71
      %p85 = scmp.eq.s32.totalorder %s14, 9
      %p86 = por %p84, %p85
      %p88 = scmp.ne.s32.totalorder %s71, %s87
      %p89 = scmp.eq.s32.totalorder %s14, 0
      %p90 = por %p88, %p89
      %s91 = ssub.s32 %s15, %s34
      %s92 = ssub.s32 %s16, %s30
      %s93 = sor.u32 %s91, %s92
      %p94 = scmp.eq.s32.totalorder %s93, 0
      %s96 = sadd.s32 %s95, 1
      %s97 = scalar_select %p94, %s95, %s96
      %p100 = pneg %p94
      %p101 = scmp.eq.s32.totalorder %s8, 9
      %p102 = por %p100, %p101
      %p103 = scmp.ne.s32.totalorder %s95, %s98
      %p104 = scmp.eq.s32.totalorder %s8, 0
      %p105 = por %p103, %p104
      %p106 = scmp.ne.s32.totalorder %s95, %s98
      %p107 = scmp.eq.s32.totalorder %s13, 9
      %p108 = por %p106, %p107
      %p109 = scmp.ne.s32.totalorder %s98, %s99
      %p110 = scmp.eq.s32.totalorder %s13, 0
      %p111 = por %p109, %p110
      %p112 = scmp.ne.s32.totalorder %s98, %s99
      %p113 = scmp.eq.s32.totalorder %s14, 9
      %p114 = por %p112, %p113
      %p116 = scmp.ne.s32.totalorder %s99, %s115
      %p117 = scmp.eq.s32.totalorder %s14, 0
      %p118 = por %p116, %p117
      %p119 = scmp.le.s32.totalorder 1, %s8
      %p120 = scmp.lt.s32.totalorder %s8, 11
      %p121 = pnand %p119, %p120
      %p122 = pneg %p121
      // Predicated region
      $region9: #{jvp__.51} parent=5 // pred_check
        _
      $region10: #{jvp__.51} parent=5 // pred_check_branch
        %124 = sbr.rel (%p121) target = $region12
      $region11: #{jvp__.51} parent=5 // pred_region
        %s125 = ssub.s32 %s8, 1
      $region12: #{jvp__.51} parent=5 // pred_fallthru
        _
      %p126 = scmp.lt.s32.totalorder %s8, 10
      // Predicated region
      $region13: #{jvp__.51} parent=5 // pred_check
        %p127 = pneg %p126
      $region14: #{jvp__.51} parent=5 // pred_check_branch
        %129 = sbr.rel (%p127) target = $region16
      $region15: #{jvp__.51} parent=5 // pred_region
        // Predicated region
        $region17: #{jvp__.51} parent=15 // pred_check
          %p130 = pneg %p49
        $region18: #{jvp__.51} parent=15 // pred_check_branch
          %132 = sbr.rel (%p130) target = $region20
        $region19: #{jvp__.51} parent=15 // pred_region
          %s133 = sand.u32 %s39, 1
          %s134 = sand.u32 %s39, 1
          %s135 = smul.addr %s134, 128
          %s136 = scalar_lea.vmem [#allocation2], %s135
          %s137 = smul.u32 32, %s15
          %s138 = smul.addr %s137, 5
          %s139 = sadd.s32 %s17, %s138
          %s140 = smul.addr %s139, 4
          %s141 = scalar_lea.vmem %s0, %s140
          // Predicated region
          $region21: #{jvp__.51} parent=19 // pred_check
            _
          $region22: #{jvp__.51} parent=19 // pred_check_branch
            %143 = sbr.rel (0) target = $region24
          $region23: #{jvp__.51} parent=19 // pred_region
            // Predicated region
            $region25: #{jvp__.51} parent=23 // pred_check
              _
            $region26: #{jvp__.51} parent=23 // pred_check_branch
              %145 = sbr.rel target = $region28
            $region27: #{jvp__.51} parent=23 // pred_region
              // Predicated region
              $region40: #{jvp__.51} parent=27 // pred_check
                _
              $region41: #{jvp__.51} parent=27 // pred_check_branch
                %223 = sbr.rel (0) target = $region43
              $region42: #{jvp__.51} parent=27 // pred_region
                loop: start=0, step=1, limit=1
                $region44: #{jvp__.51} parent=42 // loop_pre_header
                  _
                $region45: #{jvp__.51} parent=42 // loop_header
                  %s225 = sphi 0, %s229
                  %p226 = scmp.ge.s32.totalorder %s225, 1
                  %s230 = sphi %s141, %s141
                  %s231 = sphi %s136, %s136
                $region46: #{jvp__.51} parent=42 // loop_header_branch
                  %228 = sbr.rel (%p226) target = $region50
                $region47: #{jvp__.51} parent=42 // loop_body
                  _
                $region48: #{jvp__.51} parent=42 // loop_footer
                  %s229 = sadd.s32 1, %s225
                $region49: #{jvp__.51} parent=42 // loop_footer_branch
                  %224 = sbr.rel target = $region45
                $region50: #{jvp__.51} parent=42 // loop_exit
                  _
                %s233 = ssub.s32 16, 1
                loop: start=0, step=1, limit=1
                $region51: #{jvp__.51} parent=42 // loop_pre_header
                  _
                $region52: #{jvp__.51} parent=42 // loop_header
                  %s235 = sphi 0, %s239
                  %p236 = scmp.ge.s32.totalorder %s235, 1
                  %s240 = sphi %s141, %s141
                  %s241 = sphi %s136, %s136
                $region53: #{jvp__.51} parent=42 // loop_header_branch
                  %238 = sbr.rel (%p236) target = $region57
                $region54: #{jvp__.51} parent=42 // loop_body
                  %v242 = vld [vmem:[%s240] sm:%s233]
                  %243 = vst [vmem:[%s241] sm:%s233] %v242
                  %v244 = vld [vmem:[%s240 + $0x14] sm:%s233]
                  %245 = vst [vmem:[%s241 + $0x4] sm:%s233] %v244
                  %v246 = vld [vmem:[%s240 + $0x28] sm:%s233]
                  %247 = vst [vmem:[%s241 + $0x8] sm:%s233] %v246
                  %v248 = vld [vmem:[%s240 + $0x3c] sm:%s233]
                  %249 = vst [vmem:[%s241 + $0xc] sm:%s233] %v248
                  %v250 = vld [vmem:[%s240 + $0x50] sm:%s233]
                  %251 = vst [vmem:[%s241 + $0x10] sm:%s233] %v250
                  %v252 = vld [vmem:[%s240 + $0x64] sm:%s233]
                  %253 = vst [vmem:[%s241 + $0x14] sm:%s233] %v252
                  %v254 = vld [vmem:[%s240 + $0x78] sm:%s233]
                  %255 = vst [vmem:[%s241 + $0x18] sm:%s233] %v254
                  %v256 = vld [vmem:[%s240 + $0x8c] sm:%s233]
                  %257 = vst [vmem:[%s241 + $0x1c] sm:%s233] %v256
                  %v258 = vld [vmem:[%s240 + $0xa0] sm:%s233]
                  %259 = vst [vmem:[%s241 + $0x20] sm:%s233] %v258
                  %v260 = vld [vmem:[%s240 + $0xb4] sm:%s233]
                  %261 = vst [vmem:[%s241 + $0x24] sm:%s233] %v260
                  %v262 = vld [vmem:[%s240 + $0xc8] sm:%s233]
                  %263 = vst [vmem:[%s241 + $0x28] sm:%s233] %v262
                  %v264 = vld [vmem:[%s240 + $0xdc] sm:%s233]
                  %265 = vst [vmem:[%s241 + $0x2c] sm:%s233] %v264
                  %v266 = vld [vmem:[%s240 + $0xf0] sm:%s233]
                  %267 = vst [vmem:[%s241 + $0x30] sm:%s233] %v266
                  %v268 = vld [vmem:[%s240 + $0x104] sm:%s233]
                  %269 = vst [vmem:[%s241 + $0x34] sm:%s233] %v268
                  %v270 = vld [vmem:[%s240 + $0x118] sm:%s233]
                  %271 = vst [vmem:[%s241 + $0x38] sm:%s233] %v270
                  %v272 = vld [vmem:[%s240 + $0x12c] sm:%s233]
                  %273 = vst [vmem:[%s241 + $0x3c] sm:%s233] %v272
                  %v274 = vld [vmem:[%s240 + $0x140] sm:%s233]
                  %275 = vst [vmem:[%s241 + $0x40] sm:%s233] %v274
                  %v276 = vld [vmem:[%s240 + $0x154] sm:%s233]
                  %277 = vst [vmem:[%s241 + $0x44] sm:%s233] %v276
                  %v278 = vld [vmem:[%s240 + $0x168] sm:%s233]
                  %279 = vst [vmem:[%s241 + $0x48] sm:%s233] %v278
                  %v280 = vld [vmem:[%s240 + $0x17c] sm:%s233]
                  %281 = vst [vmem:[%s241 + $0x4c] sm:%s233] %v280
                  %v282 = vld [vmem:[%s240 + $0x190] sm:%s233]
                  %283 = vst [vmem:[%s241 + $0x50] sm:%s233] %v282
                  %v284 = vld [vmem:[%s240 + $0x1a4] sm:%s233]
                  %285 = vst [vmem:[%s241 + $0x54] sm:%s233] %v284
                  %v286 = vld [vmem:[%s240 + $0x1b8] sm:%s233]
                  %287 = vst [vmem:[%s241 + $0x58] sm:%s233] %v286
                  %v288 = vld [vmem:[%s240 + $0x1cc] sm:%s233]
                  %289 = vst [vmem:[%s241 + $0x5c] sm:%s233] %v288
                  %v290 = vld [vmem:[%s240 + $0x1e0] sm:%s233]
                  %291 = vst [vmem:[%s241 + $0x60] sm:%s233] %v290
                  %v292 = vld [vmem:[%s240 + $0x1f4] sm:%s233]
                  %293 = vst [vmem:[%s241 + $0x64] sm:%s233] %v292
                  %v294 = vld [vmem:[%s240 + $0x208] sm:%s233]
                  %295 = vst [vmem:[%s241 + $0x68] sm:%s233] %v294
                  %v296 = vld [vmem:[%s240 + $0x21c] sm:%s233]
                  %297 = vst [vmem:[%s241 + $0x6c] sm:%s233] %v296
                  %v298 = vld [vmem:[%s240 + $0x230] sm:%s233]
                  %299 = vst [vmem:[%s241 + $0x70] sm:%s233] %v298
                  %v300 = vld [vmem:[%s240 + $0x244] sm:%s233]
                  %301 = vst [vmem:[%s241 + $0x74] sm:%s233] %v300
                  %v302 = vld [vmem:[%s240 + $0x258] sm:%s233]
                  %303 = vst [vmem:[%s241 + $0x78] sm:%s233] %v302
                  %v304 = vld [vmem:[%s240 + $0x26c] sm:%s233]
                  %305 = vst [vmem:[%s241 + $0x7c] sm:%s233] %v304
                $region55: #{jvp__.51} parent=42 // loop_footer
                  %s239 = sadd.s32 1, %s235
                $region56: #{jvp__.51} parent=42 // loop_footer_branch
                  %234 = sbr.rel target = $region52
                $region57: #{jvp__.51} parent=42 // loop_exit
                  _
              $region43: #{jvp__.51} parent=27 // pred_fallthru
                _
            $region28: #{jvp__.51} parent=23 // pred_fallthru
              _
            // Predicated region
            $region29: #{jvp__.51} parent=23 // pred_check
              _
            $region30: #{jvp__.51} parent=23 // pred_check_branch
              %147 = sbr.rel (0) target = $region32
            $region31: #{jvp__.51} parent=23 // pred_region
              %s149 = ssub.s32 16, 1
              loop: start=0, step=1, limit=1
              $region33: #{jvp__.51} parent=31 // loop_pre_header
                _
              $region34: #{jvp__.51} parent=31 // loop_header
                %s151 = sphi 0, %s155
                %p152 = scmp.ge.s32.totalorder %s151, 1
                %s156 = sphi %s141, %s141
                %s157 = sphi %s136, %s136
              $region35: #{jvp__.51} parent=31 // loop_header_branch
                %154 = sbr.rel (%p152) target = $region39
              $region36: #{jvp__.51} parent=31 // loop_body
                %v158 = vld [vmem:[%s156] sm:%s149]
                %159 = vst [vmem:[%s157] sm:%s149] %v158
                %v160 = vld [vmem:[%s156 + $0x14] sm:%s149]
                %161 = vst [vmem:[%s157 + $0x4] sm:%s149] %v160
                %v162 = vld [vmem:[%s156 + $0x28] sm:%s149]
                %163 = vst [vmem:[%s157 + $0x8] sm:%s149] %v162
                %v164 = vld [vmem:[%s156 + $0x3c] sm:%s149]
                %165 = vst [vmem:[%s157 + $0xc] sm:%s149] %v164
                %v166 = vld [vmem:[%s156 + $0x50] sm:%s149]
                %167 = vst [vmem:[%s157 + $0x10] sm:%s149] %v166
                %v168 = vld [vmem:[%s156 + $0x64] sm:%s149]
                %169 = vst [vmem:[%s157 + $0x14] sm:%s149] %v168
                %v170 = vld [vmem:[%s156 + $0x78] sm:%s149]
                %171 = vst [vmem:[%s157 + $0x18] sm:%s149] %v170
                %v172 = vld [vmem:[%s156 + $0x8c] sm:%s149]
                %173 = vst [vmem:[%s157 + $0x1c] sm:%s149] %v172
                %v174 = vld [vmem:[%s156 + $0xa0] sm:%s149]
                %175 = vst [vmem:[%s157 + $0x20] sm:%s149] %v174
                %v176 = vld [vmem:[%s156 + $0xb4] sm:%s149]
                %177 = vst [vmem:[%s157 + $0x24] sm:%s149] %v176
                %v178 = vld [vmem:[%s156 + $0xc8] sm:%s149]
                %179 = vst [vmem:[%s157 + $0x28] sm:%s149] %v178
                %v180 = vld [vmem:[%s156 + $0xdc] sm:%s149]
                %181 = vst [vmem:[%s157 + $0x2c] sm:%s149] %v180
                %v182 = vld [vmem:[%s156 + $0xf0] sm:%s149]
                %183 = vst [vmem:[%s157 + $0x30] sm:%s149] %v182
                %v184 = vld [vmem:[%s156 + $0x104] sm:%s149]
                %185 = vst [vmem:[%s157 + $0x34] sm:%s149] %v184
                %v186 = vld [vmem:[%s156 + $0x118] sm:%s149]
                %187 = vst [vmem:[%s157 + $0x38] sm:%s149] %v186
                %v188 = vld [vmem:[%s156 + $0x12c] sm:%s149]
                %189 = vst [vmem:[%s157 + $0x3c] sm:%s149] %v188
                %v190 = vld [vmem:[%s156 + $0x140] sm:%s149]
                %191 = vst [vmem:[%s157 + $0x40] sm:%s149] %v190
                %v192 = vld [vmem:[%s156 + $0x154] sm:%s149]
                %193 = vst [vmem:[%s157 + $0x44] sm:%s149] %v192
                %v194 = vld [vmem:[%s156 + $0x168] sm:%s149]
                %195 = vst [vmem:[%s157 + $0x48] sm:%s149] %v194
                %v196 = vld [vmem:[%s156 + $0x17c] sm:%s149]
                %197 = vst [vmem:[%s157 + $0x4c] sm:%s149] %v196
                %v198 = vld [vmem:[%s156 + $0x190] sm:%s149]
                %199 = vst [vmem:[%s157 + $0x50] sm:%s149] %v198
                %v200 = vld [vmem:[%s156 + $0x1a4] sm:%s149]
                %201 = vst [vmem:[%s157 + $0x54] sm:%s149] %v200
                %v202 = vld [vmem:[%s156 + $0x1b8] sm:%s149]
                %203 = vst [vmem:[%s157 + $0x58] sm:%s149] %v202
                %v204 = vld [vmem:[%s156 + $0x1cc] sm:%s149]
                %205 = vst [vmem:[%s157 + $0x5c] sm:%s149] %v204
                %v206 = vld [vmem:[%s156 + $0x1e0] sm:%s149]
                %207 = vst [vmem:[%s157 + $0x60] sm:%s149] %v206
                %v208 = vld [vmem:[%s156 + $0x1f4] sm:%s149]
                %209 = vst [vmem:[%s157 + $0x64] sm:%s149] %v208
                %v210 = vld [vmem:[%s156 + $0x208] sm:%s149]
                %211 = vst [vmem:[%s157 + $0x68] sm:%s149] %v210
                %v212 = vld [vmem:[%s156 + $0x21c] sm:%s149]
                %213 = vst [vmem:[%s157 + $0x6c] sm:%s149] %v212
                %v214 = vld [vmem:[%s156 + $0x230] sm:%s149]
                %215 = vst [vmem:[%s157 + $0x70] sm:%s149] %v214
                %v216 = vld [vmem:[%s156 + $0x244] sm:%s149]
                %217 = vst [vmem:[%s157 + $0x74] sm:%s149] %v216
                %v218 = vld [vmem:[%s156 + $0x258] sm:%s149]
                %219 = vst [vmem:[%s157 + $0x78] sm:%s149] %v218
                %v220 = vld [vmem:[%s156 + $0x26c] sm:%s149]
                %221 = vst [vmem:[%s157 + $0x7c] sm:%s149] %v220
              $region37: #{jvp__.51} parent=31 // loop_footer
                %s155 = sadd.s32 1, %s151
              $region38: #{jvp__.51} parent=31 // loop_footer_branch
                %150 = sbr.rel target = $region34
              $region39: #{jvp__.51} parent=31 // loop_exit
                _
            $region32: #{jvp__.51} parent=23 // pred_fallthru
              _
          $region24: #{jvp__.51} parent=19 // pred_fallthru
            _
          %306 = vnop
        $region20: #{jvp__.51} parent=15 // pred_fallthru
          _
        // Predicated region
        $region58: #{jvp__.51} parent=15 // pred_check
          %p307 = pneg %p77
        $region59: #{jvp__.51} parent=15 // pred_check_branch
          %309 = sbr.rel (%p307) target = $region61
        $region60: #{jvp__.51} parent=15 // pred_region
          %s310 = smul.u32 16, %s17
          %p311 = scmp.lt.s32.totalorder %s310, 79
          %s312 = scalar_select %p311, %s310, 79
          %p313 = scmp.lt.s32.totalorder %s16, 0
          %s314 = scalar_select %p313, %s16, 0
          %s315 = sadd.s32 %s314, %s312
          %s316 = smul.addr %s315, 4
          %s317 = scalar_lea.vmem %s1, %s316
          %s318 = smul.u32 16, %s17
        $region61: #{jvp__.51} parent=15 // pred_fallthru
          _
      $region16: #{jvp__.51} parent=5 // pred_fallthru
        _
      %p319 = scmp.le.s32.totalorder 1, %s8
      %p320 = scmp.lt.s32.totalorder %s8, 11
      %p321 = pnand %p319, %p320
      %p322 = pneg %p321
      // Predicated region
      $region62: #{jvp__.51} parent=5 // pred_check
        _
      $region63: #{jvp__.51} parent=5 // pred_check_branch
        %324 = sbr.rel (%p321) target = $region65
      $region64: #{jvp__.51} parent=5 // pred_region
        %s325 = ssub.s32 %s8, 1
        %s326 = sand.u32 %s42, 1
        %s327 = sand.u32 %s42, 1
        %s328 = smul.addr %s327, 128
        %s329 = scalar_lea.vmem [#allocation2], %s328
        // Predicated region
        $region66: #{jvp__.51} parent=64 // pred_check
          %p330 = pneg %p55
        $region67: #{jvp__.51} parent=64 // pred_check_branch
          %332 = sbr.rel (%p330) target = $region69
        $region68: #{jvp__.51} parent=64 // pred_region
          _
        $region69: #{jvp__.51} parent=64 // pred_fallthru
          _
        %s333 = sand.u32 %s42, 1
        %s334 = sand.u32 %s42, 1
        %s335 = smul.addr %s334, 128
        %s336 = scalar_lea.vmem [#allocation2], %s335
        %p337 = pneg %p55
        %p338 = pneg %p52
        %s339 = smul.u32 16, %s20
        %p340 = scmp.lt.s32.totalorder %s339, 79
        %s341 = scalar_select %p340, %s339, 79
        %p342 = scmp.lt.s32.totalorder %s19, 0
        %s343 = scalar_select %p342, %s19, 0
        %s344 = sadd.s32 %s343, %s341
        %s345 = smul.addr %s344, 4
        %s346 = scalar_lea.vmem %s1, %s345
        %p347 = pneg %p83
        %p348 = pneg %p80
        %p349 = pneg %p111
        %p350 = pneg %p108
        %s351 = smul.u32 32, %s18
        %p352 = scmp.lt.s32.totalorder %s351, 63
        %s353 = scalar_select %p352, %s351, 63
        %p354 = scmp.lt.s32.totalorder %s19, 0
        %s355 = scalar_select %p354, %s19, 0
        %s356 = sadd.s32 %s355, %s353
        %s357 = smul.addr %s356, 8
        %s358 = scalar_lea.vmem %s2, %s357
        %s359 = smul.u32 32, %s18
        %s360 = smul.u32 16, %s20
        %p361 = scmp.lt.s32.totalorder %s360, 79
        %s362 = scalar_select %p361, %s360, 79
        %p363 = scmp.lt.s32.totalorder %s19, 0
        %s364 = scalar_select %p363, %s19, 0
        %s365 = sadd.s32 %s364, %s362
        %s366 = smul.addr %s365, 4
        %s367 = scalar_lea.vmem %s1, %s366
        %s368 = smul.u32 16, %s20
        %s369 = smul.u32 32, %s18
        %p370 = scmp.lt.s32.totalorder %s369, 63
        %s371 = scalar_select %p370, %s369, 63
        %p372 = scmp.lt.s32.totalorder %s19, 0
        %s373 = scalar_select %p372, %s19, 0
        %s374 = sadd.s32 %s373, %s371
        %s375 = smul.addr %s374, 8
        %s376 = scalar_lea.vmem %s2, %s375
        %s377 = smul.u32 32, %s18
        %p378 = scmp.eq.s32.totalorder %s20, 0
        // Predicated region
        $region70: #{jvp__.51} parent=64 // pred_check
          %p379 = pneg %p378
        $region71: #{jvp__.51} parent=64 // pred_check_branch
          %381 = sbr.rel (%p379) target = $region73
        $region72: #{jvp__.51} parent=64 // pred_region
          %382 = vst [vmem:[%s376] sm:$0xff] 0.0
          %383 = vst [vmem:[%s376 + $0x8] sm:$0xff] 0.0
          %384 = vst [vmem:[%s376 + $0x10] sm:$0xff] 0.0
          %385 = vst [vmem:[%s376 + $0x18] sm:$0xff] 0.0
          %386 = vst [vmem:[%s376 + $0x20] sm:$0xff] 0.0
          %387 = vst [vmem:[%s376 + $0x28] sm:$0xff] 0.0
          %388 = vst [vmem:[%s376 + $0x30] sm:$0xff] 0.0
          %389 = vst [vmem:[%s376 + $0x38] sm:$0xff] 0.0
          %390 = vst [vmem:[%s376 + $0x40] sm:$0xff] 0.0
          %391 = vst [vmem:[%s376 + $0x48] sm:$0xff] 0.0
          %392 = vst [vmem:[%s376 + $0x50] sm:$0xff] 0.0
          %393 = vst [vmem:[%s376 + $0x58] sm:$0xff] 0.0
          %394 = vst [vmem:[%s376 + $0x60] sm:$0xff] 0.0
          %395 = vst [vmem:[%s376 + $0x68] sm:$0xff] 0.0
          %396 = vst [vmem:[%s376 + $0x70] sm:$0xff] 0.0
          %397 = vst [vmem:[%s376 + $0x78] sm:$0xff] 0.0
          %398 = vst [vmem:[%s376 + $0x80] sm:$0xff] 0.0
          %399 = vst [vmem:[%s376 + $0x88] sm:$0xff] 0.0
          %400 = vst [vmem:[%s376 + $0x90] sm:$0xff] 0.0
          %401 = vst [vmem:[%s376 + $0x98] sm:$0xff] 0.0
          %402 = vst [vmem:[%s376 + $0xa0] sm:$0xff] 0.0
          %403 = vst [vmem:[%s376 + $0xa8] sm:$0xff] 0.0
          %404 = vst [vmem:[%s376 + $0xb0] sm:$0xff] 0.0
          %405 = vst [vmem:[%s376 + $0xb8] sm:$0xff] 0.0
          %406 = vst [vmem:[%s376 + $0xc0] sm:$0xff] 0.0
          %407 = vst [vmem:[%s376 + $0xc8] sm:$0xff] 0.0
          %408 = vst [vmem:[%s376 + $0xd0] sm:$0xff] 0.0
          %409 = vst [vmem:[%s376 + $0xd8] sm:$0xff] 0.0
          %410 = vst [vmem:[%s376 + $0xe0] sm:$0xff] 0.0
          %411 = vst [vmem:[%s376 + $0xe8] sm:$0xff] 0.0
          %412 = vst [vmem:[%s376 + $0xf0] sm:$0xff] 0.0
          %413 = vst [vmem:[%s376 + $0xf8] sm:$0xff] 0.0
        $region73: #{jvp__.51} parent=64 // pred_fallthru
          _
        %v414 = vld [vmem:[%s376] sm:$0xff]
        %v415 = vld [vmem:[%s376 + $0x8] sm:$0xff]
        %v416 = vld [vmem:[%s376 + $0x10] sm:$0xff]
        %v417 = vld [vmem:[%s376 + $0x18] sm:$0xff]
        %v418 = vld [vmem:[%s376 + $0x20] sm:$0xff]
        %v419 = vld [vmem:[%s376 + $0x28] sm:$0xff]
        %v420 = vld [vmem:[%s376 + $0x30] sm:$0xff]
        %v421 = vld [vmem:[%s376 + $0x38] sm:$0xff]
        %v422 = vld [vmem:[%s376 + $0x40] sm:$0xff]
        %v423 = vld [vmem:[%s376 + $0x48] sm:$0xff]
        %v424 = vld [vmem:[%s376 + $0x50] sm:$0xff]
        %v425 = vld [vmem:[%s376 + $0x58] sm:$0xff]
        %v426 = vld [vmem:[%s376 + $0x60] sm:$0xff]
        %v427 = vld [vmem:[%s376 + $0x68] sm:$0xff]
        %v428 = vld [vmem:[%s376 + $0x70] sm:$0xff]
        %v429 = vld [vmem:[%s376 + $0x78] sm:$0xff]
        %v430 = vld [vmem:[%s376 + $0x80] sm:$0xff]
        %v431 = vld [vmem:[%s376 + $0x88] sm:$0xff]
        %v432 = vld [vmem:[%s376 + $0x90] sm:$0xff]
        %v433 = vld [vmem:[%s376 + $0x98] sm:$0xff]
        %v434 = vld [vmem:[%s376 + $0xa0] sm:$0xff]
        %v435 = vld [vmem:[%s376 + $0xa8] sm:$0xff]
        %v436 = vld [vmem:[%s376 + $0xb0] sm:$0xff]
        %v437 = vld [vmem:[%s376 + $0xb8] sm:$0xff]
        %v438 = vld [vmem:[%s376 + $0xc0] sm:$0xff]
        %v439 = vld [vmem:[%s376 + $0xc8] sm:$0xff]
        %v440 = vld [vmem:[%s376 + $0xd0] sm:$0xff]
        %v441 = vld [vmem:[%s376 + $0xd8] sm:$0xff]
        %v442 = vld [vmem:[%s376 + $0xe0] sm:$0xff]
        %v443 = vld [vmem:[%s376 + $0xe8] sm:$0xff]
        %v444 = vld [vmem:[%s376 + $0xf0] sm:$0xff]
        %v445 = vld [vmem:[%s376 + $0xf8] sm:$0xff]
        %v446 = vld [vmem:[%s329] sm:$0xf]
        %v447 = vld [vmem:[%s329 + $0x4] sm:$0xf]
        %v448 = vld [vmem:[%s329 + $0x8] sm:$0xf]
        %v449 = vld [vmem:[%s329 + $0xc] sm:$0xf]
        %v450 = vld [vmem:[%s329 + $0x10] sm:$0xf]
        %v451 = vld [vmem:[%s329 + $0x14] sm:$0xf]
        %v452 = vld [vmem:[%s329 + $0x18] sm:$0xf]
        %v453 = vld [vmem:[%s329 + $0x1c] sm:$0xf]
        %v454 = vld [vmem:[%s329 + $0x20] sm:$0xf]
        %v455 = vld [vmem:[%s329 + $0x24] sm:$0xf]
        %v456 = vld [vmem:[%s329 + $0x28] sm:$0xf]
        %v457 = vld [vmem:[%s329 + $0x2c] sm:$0xf]
        %v458 = vld [vmem:[%s329 + $0x30] sm:$0xf]
        %v459 = vld [vmem:[%s329 + $0x34] sm:$0xf]
        %v460 = vld [vmem:[%s329 + $0x38] sm:$0xf]
        %v461 = vld [vmem:[%s329 + $0x3c] sm:$0xf]
        %v462 = vld [vmem:[%s329 + $0x40] sm:$0xf]
        %v463 = vld [vmem:[%s329 + $0x44] sm:$0xf]
        %v464 = vld [vmem:[%s329 + $0x48] sm:$0xf]
        %v465 = vld [vmem:[%s329 + $0x4c] sm:$0xf]
        %v466 = vld [vmem:[%s329 + $0x50] sm:$0xf]
        %v467 = vld [vmem:[%s329 + $0x54] sm:$0xf]
        %v468 = vld [vmem:[%s329 + $0x58] sm:$0xf]
        %v469 = vld [vmem:[%s329 + $0x5c] sm:$0xf]
        %v470 = vld [vmem:[%s329 + $0x60] sm:$0xf]
        %v471 = vld [vmem:[%s329 + $0x64] sm:$0xf]
        %v472 = vld [vmem:[%s329 + $0x68] sm:$0xf]
        %v473 = vld [vmem:[%s329 + $0x6c] sm:$0xf]
        %v474 = vld [vmem:[%s329 + $0x70] sm:$0xf]
        %v475 = vld [vmem:[%s329 + $0x74] sm:$0xf]
        %v476 = vld [vmem:[%s329 + $0x78] sm:$0xf]
        %v477 = vld [vmem:[%s329 + $0x7c] sm:$0xf]
        %v478 = vld [vmem:[%s367] sm:$0xf]
        %v479 = vld [vmem:[%s367 + $0x4] sm:$0xf]
        %v480 = vld [vmem:[%s367 + $0x8] sm:$0xf]
        %v481 = vld [vmem:[%s367 + $0xc] sm:$0xf]
        %v482 = vld [vmem:[%s367 + $0x10] sm:$0xf]
        %v483 = vld [vmem:[%s367 + $0x14] sm:$0xf]
        %v484 = vld [vmem:[%s367 + $0x18] sm:$0xf]
        %v485 = vld [vmem:[%s367 + $0x1c] sm:$0xf]
        %v486 = vld [vmem:[%s367 + $0x20] sm:$0xf]
        %v487 = vld [vmem:[%s367 + $0x24] sm:$0xf]
        %v488 = vld [vmem:[%s367 + $0x28] sm:$0xf]
        %v489 = vld [vmem:[%s367 + $0x2c] sm:$0xf]
        %v490 = vld [vmem:[%s367 + $0x30] sm:$0xf]
        %v491 = vld [vmem:[%s367 + $0x34] sm:$0xf]
        %v492 = vld [vmem:[%s367 + $0x38] sm:$0xf]
        %v493 = vld [vmem:[%s367 + $0x3c] sm:$0xf]
        %v526 = vunpack.c.l.b16 %v446
        %v527 = vunpack.c.l.b16 %v447
        %v528 = vunpack.c.l.b16 %v448
        %v529 = vunpack.c.l.b16 %v449
        %v530 = vunpack.c.l.b16 %v450
        %v531 = vunpack.c.l.b16 %v451
        %v532 = vunpack.c.l.b16 %v452
        %v533 = vunpack.c.l.b16 %v453
        %v534 = vunpack.c.l.b16 %v454
        %v535 = vunpack.c.l.b16 %v455
        %v536 = vunpack.c.l.b16 %v456
        %v537 = vunpack.c.l.b16 %v457
        %v538 = vunpack.c.l.b16 %v458
        %v539 = vunpack.c.l.b16 %v459
        %v540 = vunpack.c.l.b16 %v460
        %v541 = vunpack.c.l.b16 %v461
        %v542 = vunpack.c.l.b16 %v462
        %v543 = vunpack.c.l.b16 %v463
        %v544 = vunpack.c.l.b16 %v464
        %v545 = vunpack.c.l.b16 %v465
        %v546 = vunpack.c.l.b16 %v466
        %v547 = vunpack.c.l.b16 %v467
        %v548 = vunpack.c.l.b16 %v468
        %v549 = vunpack.c.l.b16 %v469
        %v550 = vunpack.c.l.b16 %v470
        %v551 = vunpack.c.l.b16 %v471
        %v552 = vunpack.c.l.b16 %v472
        %v553 = vunpack.c.l.b16 %v473
        %v554 = vunpack.c.l.b16 %v474
        %v555 = vunpack.c.l.b16 %v475
        %v556 = vunpack.c.l.b16 %v476
        %v557 = vunpack.c.l.b16 %v477
        %v558 = vpack.c.b16 %v527, %v526
        %v559 = vpack.c.b16 %v529, %v528
        %v560 = vpack.c.b16 %v531, %v530
        %v561 = vpack.c.b16 %v533, %v532
        %v562 = vpack.c.b16 %v535, %v534
        %v563 = vpack.c.b16 %v537, %v536
        %v564 = vpack.c.b16 %v539, %v538
        %v565 = vpack.c.b16 %v541, %v540
        %v566 = vpack.c.b16 %v543, %v542
        %v567 = vpack.c.b16 %v545, %v544
        %v568 = vpack.c.b16 %v547, %v546
        %v569 = vpack.c.b16 %v549, %v548
        %v570 = vpack.c.b16 %v551, %v550
        %v571 = vpack.c.b16 %v553, %v552
        %v572 = vpack.c.b16 %v555, %v554
        %v573 = vpack.c.b16 %v557, %v556
        %v606 = vunpack.c.l.b16 %v478
        %v607 = vunpack.c.l.b16 %v479
        %v608 = vunpack.c.l.b16 %v480
        %v609 = vunpack.c.l.b16 %v481
        %v610 = vunpack.c.l.b16 %v482
        %v611 = vunpack.c.l.b16 %v483
        %v612 = vunpack.c.l.b16 %v484
        %v613 = vunpack.c.l.b16 %v485
        %v614 = vunpack.c.l.b16 %v486
        %v615 = vunpack.c.l.b16 %v487
        %v616 = vunpack.c.l.b16 %v488
        %v617 = vunpack.c.l.b16 %v489
        %v618 = vunpack.c.l.b16 %v490
        %v619 = vunpack.c.l.b16 %v491
        %v620 = vunpack.c.l.b16 %v492
        %v621 = vunpack.c.l.b16 %v493
        %v622 = vpack.c.b16 %v607, %v606
        %v623 = vpack.c.b16 %v609, %v608
        %v624 = vpack.c.b16 %v611, %v610
        %v625 = vpack.c.b16 %v613, %v612
        %v626 = vpack.c.b16 %v615, %v614
        %v627 = vpack.c.b16 %v617, %v616
        %v628 = vpack.c.b16 %v619, %v618
        %v629 = vpack.c.b16 %v621, %v620
        %638 = vmatpush.bf16.msra.mxu0 %v629
        %639 = vmatpush.bf16.msra.mxu0 %v628
        %640 = vmatpush.bf16.msra.mxu0 %v627
        %641 = vmatpush.bf16.msra.mxu0 %v626
        %642 = vmatpush.bf16.msra.mxu0 %v625
        %643 = vmatpush.bf16.msra.mxu0 %v624
        %644 = vmatpush.bf16.msra.mxu0 %v623
        %645 = vmatpush.bf16.msra.mxu0 %v622
        %646 = vmatmul.bf16.gmra.mxu0 %v558
        %v647 = vpop.f32.mrf.mxu0
        %v648 = vadd.f32 0.0, %v647
        %v649 = vpop.f32.mrf.mxu0
        %v650 = vadd.f32 0.0, %v649
        %651 = vmatmul.bf16.gmra.mxu0 %v559
        %v652 = vpop.f32.mrf.mxu0
        %v653 = vadd.f32 0.0, %v652
        %v654 = vpop.f32.mrf.mxu0
        %v655 = vadd.f32 0.0, %v654
        %656 = vmatmul.bf16.gmra.mxu0 %v560
        %v657 = vpop.f32.mrf.mxu0
        %v658 = vadd.f32 0.0, %v657
        %v659 = vpop.f32.mrf.mxu0
        %v660 = vadd.f32 0.0, %v659
        %661 = vmatmul.bf16.gmra.mxu0 %v561
        %v662 = vpop.f32.mrf.mxu0
        %v663 = vadd.f32 0.0, %v662
        %v664 = vpop.f32.mrf.mxu0
        %v665 = vadd.f32 0.0, %v664
        %666 = vmatmul.bf16.gmra.mxu0 %v562
        %v667 = vpop.f32.mrf.mxu0
        %v668 = vadd.f32 0.0, %v667
        %v669 = vpop.f32.mrf.mxu0
        %v670 = vadd.f32 0.0, %v669
        %671 = vmatmul.bf16.gmra.mxu0 %v563
        %v672 = vpop.f32.mrf.mxu0
        %v673 = vadd.f32 0.0, %v672
        %v674 = vpop.f32.mrf.mxu0
        %v675 = vadd.f32 0.0, %v674
        %676 = vmatmul.bf16.gmra.mxu0 %v564
        %v677 = vpop.f32.mrf.mxu0
        %v678 = vadd.f32 0.0, %v677
        %v679 = vpop.f32.mrf.mxu0
        %v680 = vadd.f32 0.0, %v679
        %681 = vmatmul.bf16.gmra.mxu0 %v565
        %v682 = vpop.f32.mrf.mxu0
        %v683 = vadd.f32 0.0, %v682
        %v684 = vpop.f32.mrf.mxu0
        %v685 = vadd.f32 0.0, %v684
        %686 = vmatmul.bf16.gmra.mxu0 %v566
        %v687 = vpop.f32.mrf.mxu0
        %v688 = vadd.f32 0.0, %v687
        %v689 = vpop.f32.mrf.mxu0
        %v690 = vadd.f32 0.0, %v689
        %691 = vmatmul.bf16.gmra.mxu0 %v567
        %v692 = vpop.f32.mrf.mxu0
        %v693 = vadd.f32 0.0, %v692
        %v694 = vpop.f32.mrf.mxu0
        %v695 = vadd.f32 0.0, %v694
        %696 = vmatmul.bf16.gmra.mxu0 %v568
        %v697 = vpop.f32.mrf.mxu0
        %v698 = vadd.f32 0.0, %v697
        %v699 = vpop.f32.mrf.mxu0
        %v700 = vadd.f32 0.0, %v699
        %701 = vmatmul.bf16.gmra.mxu0 %v569
        %v702 = vpop.f32.mrf.mxu0
        %v703 = vadd.f32 0.0, %v702
        %v704 = vpop.f32.mrf.mxu0
        %v705 = vadd.f32 0.0, %v704
        %706 = vmatmul.bf16.gmra.mxu0 %v570
        %v707 = vpop.f32.mrf.mxu0
        %v708 = vadd.f32 0.0, %v707
        %v709 = vpop.f32.mrf.mxu0
        %v710 = vadd.f32 0.0, %v709
        %711 = vmatmul.bf16.gmra.mxu0 %v571
        %v712 = vpop.f32.mrf.mxu0
        %v713 = vadd.f32 0.0, %v712
        %v714 = vpop.f32.mrf.mxu0
        %v715 = vadd.f32 0.0, %v714
        %716 = vmatmul.bf16.gmra.mxu0 %v572
        %v717 = vpop.f32.mrf.mxu0
        %v718 = vadd.f32 0.0, %v717
        %v719 = vpop.f32.mrf.mxu0
        %v720 = vadd.f32 0.0, %v719
        %721 = vmatmul.bf16.gmra.mxu0 %v573
        %v722 = vpop.f32.mrf.mxu0
        %v723 = vadd.f32 0.0, %v722
        %v724 = vpop.f32.mrf.mxu0
        %v725 = vadd.f32 0.0, %v724
        %726 = vdwg.mxu0
        %v727 = vadd.f32 %v414, %v648
        %v728 = vadd.f32 %v415, %v650
        %v729 = vadd.f32 %v416, %v653
        %v730 = vadd.f32 %v417, %v655
        %v731 = vadd.f32 %v418, %v658
        %v732 = vadd.f32 %v419, %v660
        %v733 = vadd.f32 %v420, %v663
        %v734 = vadd.f32 %v421, %v665
        %v735 = vadd.f32 %v422, %v668
        %v736 = vadd.f32 %v423, %v670
        %v737 = vadd.f32 %v424, %v673
        %v738 = vadd.f32 %v425, %v675
        %v739 = vadd.f32 %v426, %v678
        %v740 = vadd.f32 %v427, %v680
        %v741 = vadd.f32 %v428, %v683
        %v742 = vadd.f32 %v429, %v685
        %v743 = vadd.f32 %v430, %v688
        %v744 = vadd.f32 %v431, %v690
        %v745 = vadd.f32 %v432, %v693
        %v746 = vadd.f32 %v433, %v695
        %v747 = vadd.f32 %v434, %v698
        %v748 = vadd.f32 %v435, %v700
        %v749 = vadd.f32 %v436, %v703
        %v750 = vadd.f32 %v437, %v705
        %v751 = vadd.f32 %v438, %v708
        %v752 = vadd.f32 %v439, %v710
        %v753 = vadd.f32 %v440, %v713
        %v754 = vadd.f32 %v441, %v715
        %v755 = vadd.f32 %v442, %v718
        %v756 = vadd.f32 %v443, %v720
        %v757 = vadd.f32 %v444, %v723
        %v758 = vadd.f32 %v445, %v725
        %759 = vst [vmem:[%s376] sm:$0xff] %v727
        %760 = vst [vmem:[%s376 + $0x8] sm:$0xff] %v728
        %761 = vst [vmem:[%s376 + $0x10] sm:$0xff] %v729
        %762 = vst [vmem:[%s376 + $0x18] sm:$0xff] %v730
        %763 = vst [vmem:[%s376 + $0x20] sm:$0xff] %v731
        %764 = vst [vmem:[%s376 + $0x28] sm:$0xff] %v732
        %765 = vst [vmem:[%s376 + $0x30] sm:$0xff] %v733
        %766 = vst [vmem:[%s376 + $0x38] sm:$0xff] %v734
        %767 = vst [vmem:[%s376 + $0x40] sm:$0xff] %v735
        %768 = vst [vmem:[%s376 + $0x48] sm:$0xff] %v736
        %769 = vst [vmem:[%s376 + $0x50] sm:$0xff] %v737
        %770 = vst [vmem:[%s376 + $0x58] sm:$0xff] %v738
        %771 = vst [vmem:[%s376 + $0x60] sm:$0xff] %v739
        %772 = vst [vmem:[%s376 + $0x68] sm:$0xff] %v740
        %773 = vst [vmem:[%s376 + $0x70] sm:$0xff] %v741
        %774 = vst [vmem:[%s376 + $0x78] sm:$0xff] %v742
        %775 = vst [vmem:[%s376 + $0x80] sm:$0xff] %v743
        %776 = vst [vmem:[%s376 + $0x88] sm:$0xff] %v744
        %777 = vst [vmem:[%s376 + $0x90] sm:$0xff] %v745
        %778 = vst [vmem:[%s376 + $0x98] sm:$0xff] %v746
        %779 = vst [vmem:[%s376 + $0xa0] sm:$0xff] %v747
        %780 = vst [vmem:[%s376 + $0xa8] sm:$0xff] %v748
        %781 = vst [vmem:[%s376 + $0xb0] sm:$0xff] %v749
        %782 = vst [vmem:[%s376 + $0xb8] sm:$0xff] %v750
        %783 = vst [vmem:[%s376 + $0xc0] sm:$0xff] %v751
        %784 = vst [vmem:[%s376 + $0xc8] sm:$0xff] %v752
        %785 = vst [vmem:[%s376 + $0xd0] sm:$0xff] %v753
        %786 = vst [vmem:[%s376 + $0xd8] sm:$0xff] %v754
        %787 = vst [vmem:[%s376 + $0xe0] sm:$0xff] %v755
        %788 = vst [vmem:[%s376 + $0xe8] sm:$0xff] %v756
        %789 = vst [vmem:[%s376 + $0xf0] sm:$0xff] %v757
        %790 = vst [vmem:[%s376 + $0xf8] sm:$0xff] %v758
        %s791 = smul.u32 32, %s18
        %p792 = scmp.lt.s32.totalorder %s791, 63
        %s793 = scalar_select %p792, %s791, 63
        %p794 = scmp.lt.s32.totalorder %s19, 0
        %s795 = scalar_select %p794, %s19, 0
        %s796 = sadd.s32 %s795, %s793
        %s797 = smul.addr %s796, 8
        %s798 = scalar_lea.vmem %s2, %s797
        // Predicated region
        $region74: #{jvp__.51} parent=64 // pred_check
          %p799 = pneg %p108
        $region75: #{jvp__.51} parent=64 // pred_check_branch
          %801 = sbr.rel (%p799) target = $region77
        $region76: #{jvp__.51} parent=64 // pred_region
          %s802 = smul.u32 32, %s18
        $region77: #{jvp__.51} parent=64 // pred_fallthru
          _
      $region65: #{jvp__.51} parent=5 // pred_fallthru
        _
      %p803 = scmp.le.s32.totalorder 2, %s8
      // Predicated region
      $region78: #{jvp__.51} parent=5 // pred_check
        %p804 = pneg %p803
      $region79: #{jvp__.51} parent=5 // pred_check_branch
        %806 = sbr.rel (%p804) target = $region81
      $region80: #{jvp__.51} parent=5 // pred_region
        %s807 = ssub.s32 %s8, 2
        // Predicated region
        $region82: #{jvp__.51} parent=80 // pred_check
          %p808 = pneg %p114
        $region83: #{jvp__.51} parent=80 // pred_check_branch
          %810 = sbr.rel (%p808) target = $region85
        $region84: #{jvp__.51} parent=80 // pred_region
          %s811 = smul.u32 32, %s21
          %p812 = scmp.lt.s32.totalorder %s811, 63
          %s813 = scalar_select %p812, %s811, 63
          %p814 = scmp.lt.s32.totalorder %s22, 0
          %s815 = scalar_select %p814, %s22, 0
          %s816 = sadd.s32 %s815, %s813
          %s817 = smul.addr %s816, 8
          %s818 = scalar_lea.vmem %s2, %s817
        $region85: #{jvp__.51} parent=80 // pred_fallthru
          _
      $region81: #{jvp__.51} parent=5 // pred_fallthru
        _
    $region6: #{jvp__.51} parent=1 // loop_footer
      %s12 = sadd.s32 1, %s8
    $region7: #{jvp__.51} parent=1 // loop_footer_branch
      %7 = sbr.rel target = $region3
    $region8: #{jvp__.51} parent=1 // loop_exit
      _

// kernel: jvp__.57
$region0: #{jvp__.57}
  #allocation0 [shape = 'u32[]', space=smem, size = 0x4, offset = 0x4, fixed_abs, tag = 'smem constant byte address 0x4 - core index']
  #allocation1 [shape = 'u32[72,128]{1,0:T(1,128)}', space=vmem, size = 0x9000, scoped, tag = 'internal scratch']
  %s0 = inlined_call_operand.vmem [shape: bf16[128,256], index: 0, kind: input, shape index: {}]
  %s1 = inlined_call_operand.vmem [shape: bf16[256,128], index: 1, kind: input, shape index: {}]
  %s2 = inlined_call_operand.vmem [shape: f32[128,128], index: 2, kind: output, shape index: {}]
  %s3 = sld [smem:[#allocation0]]
  $region22: #{jvp__.57} parent=0
    _
  %s5 = ssub.s32 1, %s3
  %s6 = scalar_select 0, %s5, %s3
  // Predicated region
  $region2: #{jvp__.57} parent=0 // pred_check
    _
  $region3: #{jvp__.57} parent=0 // pred_check_branch
    %8 = sbr.rel (0) target = $region5
  $region4: #{jvp__.57} parent=0 // pred_region
    _
  $region5: #{jvp__.57} parent=0 // pred_fallthru
    _
  // Predicated region
  $region6: #{jvp__.57} parent=0 // pred_check
    _
  $region7: #{jvp__.57} parent=0 // pred_check_branch
    %10 = sbr.rel (0) target = $region9
  $region8: #{jvp__.57} parent=0 // pred_region
    _
  $region9: #{jvp__.57} parent=0 // pred_fallthru
    _
  %p11 = scmp.eq.s32.totalorder 0, 0
  // Predicated region
  $region10: #{jvp__.57} parent=0 // pred_check
    %p12 = pneg %p11
  $region11: #{jvp__.57} parent=0 // pred_check_branch
    %14 = sbr.rel (%p12) target = $region13
  $region12: #{jvp__.57} parent=0 // pred_region
    %15 = vst [vmem:[%s2] sm:$0xff] 0.0
    %16 = vst [vmem:[%s2 + $0x8] sm:$0xff] 0.0
    %17 = vst [vmem:[%s2 + $0x10] sm:$0xff] 0.0
    %18 = vst [vmem:[%s2 + $0x18] sm:$0xff] 0.0
    %19 = vst [vmem:[%s2 + $0x20] sm:$0xff] 0.0
    %20 = vst [vmem:[%s2 + $0x28] sm:$0xff] 0.0
    %21 = vst [vmem:[%s2 + $0x30] sm:$0xff] 0.0
    %22 = vst [vmem:[%s2 + $0x38] sm:$0xff] 0.0
    %23 = vst [vmem:[%s2 + $0x40] sm:$0xff] 0.0
    %24 = vst [vmem:[%s2 + $0x48] sm:$0xff] 0.0
    %25 = vst [vmem:[%s2 + $0x50] sm:$0xff] 0.0
    %26 = vst [vmem:[%s2 + $0x58] sm:$0xff] 0.0
    %27 = vst [vmem:[%s2 + $0x60] sm:$0xff] 0.0
    %28 = vst [vmem:[%s2 + $0x68] sm:$0xff] 0.0
    %29 = vst [vmem:[%s2 + $0x70] sm:$0xff] 0.0
    %30 = vst [vmem:[%s2 + $0x78] sm:$0xff] 0.0
  $region13: #{jvp__.57} parent=0 // pred_fallthru
    _
  %v31 = vld [vmem:[%s2] sm:$0xff]
  %v32 = vld [vmem:[%s2 + $0x8] sm:$0xff]
  %v33 = vld [vmem:[%s2 + $0x10] sm:$0xff]
  %v34 = vld [vmem:[%s2 + $0x18] sm:$0xff]
  %v35 = vld [vmem:[%s2 + $0x20] sm:$0xff]
  %v36 = vld [vmem:[%s2 + $0x28] sm:$0xff]
  %v37 = vld [vmem:[%s2 + $0x30] sm:$0xff]
  %v38 = vld [vmem:[%s2 + $0x38] sm:$0xff]
  %v39 = vld [vmem:[%s2 + $0x40] sm:$0xff]
  %v40 = vld [vmem:[%s2 + $0x48] sm:$0xff]
  %v41 = vld [vmem:[%s2 + $0x50] sm:$0xff]
  %v42 = vld [vmem:[%s2 + $0x58] sm:$0xff]
  %v43 = vld [vmem:[%s2 + $0x60] sm:$0xff]
  %v44 = vld [vmem:[%s2 + $0x68] sm:$0xff]
  %v45 = vld [vmem:[%s2 + $0x70] sm:$0xff]
  %v46 = vld [vmem:[%s2 + $0x78] sm:$0xff]
  %v47 = vld [vmem:[%s0] sm:$0xff]
  %v48 = vld [vmem:[%s0 + $0x8] sm:$0xff]
  %v49 = vld [vmem:[%s0 + $0x10] sm:$0xff]
  %v50 = vld [vmem:[%s0 + $0x18] sm:$0xff]
  %v51 = vld [vmem:[%s0 + $0x20] sm:$0xff]
  %v52 = vld [vmem:[%s0 + $0x28] sm:$0xff]
  %v53 = vld [vmem:[%s0 + $0x30] sm:$0xff]
  %v54 = vld [vmem:[%s0 + $0x38] sm:$0xff]
  %v55 = vld [vmem:[%s0 + $0x40] sm:$0xff]
  %v56 = vld [vmem:[%s0 + $0x48] sm:$0xff]
  %v57 = vld [vmem:[%s0 + $0x50] sm:$0xff]
  %v58 = vld [vmem:[%s0 + $0x58] sm:$0xff]
  %v59 = vld [vmem:[%s0 + $0x60] sm:$0xff]
  %v60 = vld [vmem:[%s0 + $0x68] sm:$0xff]
  %v61 = vld [vmem:[%s0 + $0x70] sm:$0xff]
  %v62 = vld [vmem:[%s0 + $0x78] sm:$0xff]
  %v63 = vld [vmem:[%s1] sm:$0xf]
  %v64 = vld [vmem:[%s1 + $0x4] sm:$0xf]
  %v65 = vld [vmem:[%s1 + $0x8] sm:$0xf]
  %v66 = vld [vmem:[%s1 + $0xc] sm:$0xf]
  %v67 = vld [vmem:[%s1 + $0x10] sm:$0xf]
  %v68 = vld [vmem:[%s1 + $0x14] sm:$0xf]
  %v69 = vld [vmem:[%s1 + $0x18] sm:$0xf]
  %v70 = vld [vmem:[%s1 + $0x1c] sm:$0xf]
  %v71 = vld [vmem:[%s1 + $0x20] sm:$0xf]
  %v72 = vld [vmem:[%s1 + $0x24] sm:$0xf]
  %v73 = vld [vmem:[%s1 + $0x28] sm:$0xf]
  %v74 = vld [vmem:[%s1 + $0x2c] sm:$0xf]
  %v75 = vld [vmem:[%s1 + $0x30] sm:$0xf]
  %v76 = vld [vmem:[%s1 + $0x34] sm:$0xf]
  %v77 = vld [vmem:[%s1 + $0x38] sm:$0xf]
  %v78 = vld [vmem:[%s1 + $0x3c] sm:$0xf]
  %v79 = vld [vmem:[%s1 + $0x40] sm:$0xf]
  %v80 = vld [vmem:[%s1 + $0x44] sm:$0xf]
  %v81 = vld [vmem:[%s1 + $0x48] sm:$0xf]
  %v82 = vld [vmem:[%s1 + $0x4c] sm:$0xf]
  %v83 = vld [vmem:[%s1 + $0x50] sm:$0xf]
  %v84 = vld [vmem:[%s1 + $0x54] sm:$0xf]
  %v85 = vld [vmem:[%s1 + $0x58] sm:$0xf]
  %v86 = vld [vmem:[%s1 + $0x5c] sm:$0xf]
  %v87 = vld [vmem:[%s1 + $0x60] sm:$0xf]
  %v88 = vld [vmem:[%s1 + $0x64] sm:$0xf]
  %v89 = vld [vmem:[%s1 + $0x68] sm:$0xf]
  %v90 = vld [vmem:[%s1 + $0x6c] sm:$0xf]
  %v91 = vld [vmem:[%s1 + $0x70] sm:$0xf]
  %v92 = vld [vmem:[%s1 + $0x74] sm:$0xf]
  %v93 = vld [vmem:[%s1 + $0x78] sm:$0xf]
  %v94 = vld [vmem:[%s1 + $0x7c] sm:$0xf]
  %v111 = vunpack.c.l.b16 %v47
  %v112 = vunpack.c.h.b16 %v47
  %v113 = vunpack.c.l.b16 %v48
  %v114 = vunpack.c.h.b16 %v48
  %v115 = vunpack.c.l.b16 %v49
  %v116 = vunpack.c.h.b16 %v49
  %v117 = vunpack.c.l.b16 %v50
  %v118 = vunpack.c.h.b16 %v50
  %v119 = vunpack.c.l.b16 %v51
  %v120 = vunpack.c.h.b16 %v51
  %v121 = vunpack.c.l.b16 %v52
  %v122 = vunpack.c.h.b16 %v52
  %v123 = vunpack.c.l.b16 %v53
  %v124 = vunpack.c.h.b16 %v53
  %v125 = vunpack.c.l.b16 %v54
  %v126 = vunpack.c.h.b16 %v54
  %v127 = vunpack.c.l.b16 %v55
  %v128 = vunpack.c.h.b16 %v55
  %v129 = vunpack.c.l.b16 %v56
  %v130 = vunpack.c.h.b16 %v56
  %v131 = vunpack.c.l.b16 %v57
  %v132 = vunpack.c.h.b16 %v57
  %v133 = vunpack.c.l.b16 %v58
  %v134 = vunpack.c.h.b16 %v58
  %v135 = vunpack.c.l.b16 %v59
  %v136 = vunpack.c.h.b16 %v59
  %v137 = vunpack.c.l.b16 %v60
  %v138 = vunpack.c.h.b16 %v60
  %v139 = vunpack.c.l.b16 %v61
  %v140 = vunpack.c.h.b16 %v61
  %v141 = vunpack.c.l.b16 %v62
  %v142 = vunpack.c.h.b16 %v62
  %v143 = vpack.c.b16 %v113, %v111
  %v144 = vpack.c.b16 %v114, %v112
  %v145 = vpack.c.b16 %v117, %v115
  %v146 = vpack.c.b16 %v118, %v116
  %v147 = vpack.c.b16 %v121, %v119
  %v148 = vpack.c.b16 %v122, %v120
  %v149 = vpack.c.b16 %v125, %v123
  %v150 = vpack.c.b16 %v126, %v124
  %v151 = vpack.c.b16 %v129, %v127
  %v152 = vpack.c.b16 %v130, %v128
  %v153 = vpack.c.b16 %v133, %v131
  %v154 = vpack.c.b16 %v134, %v132
  %v155 = vpack.c.b16 %v137, %v135
  %v156 = vpack.c.b16 %v138, %v136
  %v157 = vpack.c.b16 %v141, %v139
  %v158 = vpack.c.b16 %v142, %v140
  %v207 = vunpack.c.l.b16 %v63
  %v208 = vunpack.c.l.b16 %v64
  %v209 = vunpack.c.l.b16 %v65
  %v210 = vunpack.c.l.b16 %v66
  %v211 = vunpack.c.l.b16 %v67
  %v212 = vunpack.c.l.b16 %v68
  %v213 = vunpack.c.l.b16 %v69
  %v214 = vunpack.c.l.b16 %v70
  %v215 = vunpack.c.l.b16 %v71
  %v216 = vunpack.c.l.b16 %v72
  %v217 = vunpack.c.l.b16 %v73
  %v218 = vunpack.c.l.b16 %v74
  %v219 = vunpack.c.l.b16 %v75
  %v220 = vunpack.c.l.b16 %v76
  %v221 = vunpack.c.l.b16 %v77
  %v222 = vunpack.c.l.b16 %v78
  %v223 = vunpack.c.l.b16 %v79
  %v224 = vunpack.c.l.b16 %v80
  %v225 = vunpack.c.l.b16 %v81
  %v226 = vunpack.c.l.b16 %v82
  %v227 = vunpack.c.l.b16 %v83
  %v228 = vunpack.c.l.b16 %v84
  %v229 = vunpack.c.l.b16 %v85
  %v230 = vunpack.c.l.b16 %v86
  %v231 = vunpack.c.l.b16 %v87
  %v232 = vunpack.c.l.b16 %v88
  %v233 = vunpack.c.l.b16 %v89
  %v234 = vunpack.c.l.b16 %v90
  %v235 = vunpack.c.l.b16 %v91
  %v236 = vunpack.c.l.b16 %v92
  %v237 = vunpack.c.l.b16 %v93
  %v238 = vunpack.c.l.b16 %v94
  %v239 = vpack.c.b16 %v208, %v207
  %v240 = vpack.c.b16 %v210, %v209
  %v241 = vpack.c.b16 %v212, %v211
  %v242 = vpack.c.b16 %v214, %v213
  %v243 = vpack.c.b16 %v216, %v215
  %v244 = vpack.c.b16 %v218, %v217
  %v245 = vpack.c.b16 %v220, %v219
  %v246 = vpack.c.b16 %v222, %v221
  %v247 = vpack.c.b16 %v224, %v223
  %v248 = vpack.c.b16 %v226, %v225
  %v249 = vpack.c.b16 %v228, %v227
  %v250 = vpack.c.b16 %v230, %v229
  %v251 = vpack.c.b16 %v232, %v231
  %v252 = vpack.c.b16 %v234, %v233
  %v253 = vpack.c.b16 %v236, %v235
  %v254 = vpack.c.b16 %v238, %v237
  %271 = vmatpush.bf16.msra.mxu0 %v246
  %272 = vmatpush.bf16.msra.mxu0 %v245
  %273 = vmatpush.bf16.msra.mxu0 %v244
  %274 = vmatpush.bf16.msra.mxu0 %v243
  %275 = vmatpush.bf16.msra.mxu0 %v242
  %276 = vmatpush.bf16.msra.mxu0 %v241
  %277 = vmatpush.bf16.msra.mxu0 %v240
  %278 = vmatpush.bf16.msra.mxu0 %v239
  %279 = vmatmul.bf16.gmra.mxu0 %v143
  %v280 = vpop.f32.mrf.mxu0
  %v281 = vadd.f32 0.0, %v280
  %v282 = vpop.f32.mrf.mxu0
  %v283 = vadd.f32 0.0, %v282
  %284 = vmatmul.bf16.gmra.mxu0 %v145
  %v285 = vpop.f32.mrf.mxu0
  %v286 = vadd.f32 0.0, %v285
  %v287 = vpop.f32.mrf.mxu0
  %v288 = vadd.f32 0.0, %v287
  %289 = vmatmul.bf16.gmra.mxu0 %v147
  %v290 = vpop.f32.mrf.mxu0
  %v291 = vadd.f32 0.0, %v290
  %v292 = vpop.f32.mrf.mxu0
  %v293 = vadd.f32 0.0, %v292
  %294 = vmatmul.bf16.gmra.mxu0 %v149
  %v295 = vpop.f32.mrf.mxu0
  %v296 = vadd.f32 0.0, %v295
  %v297 = vpop.f32.mrf.mxu0
  %v298 = vadd.f32 0.0, %v297
  %299 = vmatmul.bf16.gmra.mxu0 %v151
  %v300 = vpop.f32.mrf.mxu0
  %v301 = vadd.f32 0.0, %v300
  %v302 = vpop.f32.mrf.mxu0
  %v303 = vadd.f32 0.0, %v302
  %304 = vmatmul.bf16.gmra.mxu0 %v153
  %v305 = vpop.f32.mrf.mxu0
  %v306 = vadd.f32 0.0, %v305
  %v307 = vpop.f32.mrf.mxu0
  %v308 = vadd.f32 0.0, %v307
  %309 = vmatmul.bf16.gmra.mxu0 %v155
  %v310 = vpop.f32.mrf.mxu0
  %v311 = vadd.f32 0.0, %v310
  %v312 = vpop.f32.mrf.mxu0
  %v313 = vadd.f32 0.0, %v312
  %314 = vmatmul.bf16.gmra.mxu0 %v157
  %v315 = vpop.f32.mrf.mxu0
  %v316 = vadd.f32 0.0, %v315
  %v317 = vpop.f32.mrf.mxu0
  %v318 = vadd.f32 0.0, %v317
  %319 = vdwg.mxu0
  %320 = vmatpush.bf16.msra.mxu0 %v254
  %321 = vmatpush.bf16.msra.mxu0 %v253
  %322 = vmatpush.bf16.msra.mxu0 %v252
  %323 = vmatpush.bf16.msra.mxu0 %v251
  %324 = vmatpush.bf16.msra.mxu0 %v250
  %325 = vmatpush.bf16.msra.mxu0 %v249
  %326 = vmatpush.bf16.msra.mxu0 %v248
  %327 = vmatpush.bf16.msra.mxu0 %v247
  %328 = vmatmul.bf16.gmra.mxu0 %v144
  %v329 = vpop.f32.mrf.mxu0
  %v330 = vadd.f32 %v281, %v329
  %v331 = vpop.f32.mrf.mxu0
  %v332 = vadd.f32 %v283, %v331
  %333 = vmatmul.bf16.gmra.mxu0 %v146
  %v334 = vpop.f32.mrf.mxu0
  %v335 = vadd.f32 %v286, %v334
  %v336 = vpop.f32.mrf.mxu0
  %v337 = vadd.f32 %v288, %v336
  %338 = vmatmul.bf16.gmra.mxu0 %v148
  %v339 = vpop.f32.mrf.mxu0
  %v340 = vadd.f32 %v291, %v339
  %v341 = vpop.f32.mrf.mxu0
  %v342 = vadd.f32 %v293, %v341
  %343 = vmatmul.bf16.gmra.mxu0 %v150
  %v344 = vpop.f32.mrf.mxu0
  %v345 = vadd.f32 %v296, %v344
  %v346 = vpop.f32.mrf.mxu0
  %v347 = vadd.f32 %v298, %v346
  %348 = vmatmul.bf16.gmra.mxu0 %v152
  %v349 = vpop.f32.mrf.mxu0
  %v350 = vadd.f32 %v301, %v349
  %v351 = vpop.f32.mrf.mxu0
  %v352 = vadd.f32 %v303, %v351
  %353 = vmatmul.bf16.gmra.mxu0 %v154
  %v354 = vpop.f32.mrf.mxu0
  %v355 = vadd.f32 %v306, %v354
  %v356 = vpop.f32.mrf.mxu0
  %v357 = vadd.f32 %v308, %v356
  %358 = vmatmul.bf16.gmra.mxu0 %v156
  %v359 = vpop.f32.mrf.mxu0
  %v360 = vadd.f32 %v311, %v359
  %v361 = vpop.f32.mrf.mxu0
  %v362 = vadd.f32 %v313, %v361
  %363 = vmatmul.bf16.gmra.mxu0 %v158
  %v364 = vpop.f32.mrf.mxu0
  %v365 = vadd.f32 %v316, %v364
  %v366 = vpop.f32.mrf.mxu0
  %v367 = vadd.f32 %v318, %v366
  %368 = vdwg.mxu0
  %v369 = vadd.f32 %v31, %v330
  %v370 = vadd.f32 %v32, %v332
  %v371 = vadd.f32 %v33, %v335
  %v372 = vadd.f32 %v34, %v337
  %v373 = vadd.f32 %v35, %v340
  %v374 = vadd.f32 %v36, %v342
  %v375 = vadd.f32 %v37, %v345
  %v376 = vadd.f32 %v38, %v347
  %v377 = vadd.f32 %v39, %v350
  %v378 = vadd.f32 %v40, %v352
  %v379 = vadd.f32 %v41, %v355
  %v380 = vadd.f32 %v42, %v357
  %v381 = vadd.f32 %v43, %v360
  %v382 = vadd.f32 %v44, %v362
  %v383 = vadd.f32 %v45, %v365
  %v384 = vadd.f32 %v46, %v367
  %385 = vst [vmem:[%s2] sm:$0xff] %v369
  %386 = vst [vmem:[%s2 + $0x8] sm:$0xff] %v370
  %387 = vst [vmem:[%s2 + $0x10] sm:$0xff] %v371
  %388 = vst [vmem:[%s2 + $0x18] sm:$0xff] %v372
  %389 = vst [vmem:[%s2 + $0x20] sm:$0xff] %v373
  %390 = vst [vmem:[%s2 + $0x28] sm:$0xff] %v374
  %391 = vst [vmem:[%s2 + $0x30] sm:$0xff] %v375
  %392 = vst [vmem:[%s2 + $0x38] sm:$0xff] %v376
  %393 = vst [vmem:[%s2 + $0x40] sm:$0xff] %v377
  %394 = vst [vmem:[%s2 + $0x48] sm:$0xff] %v378
  %395 = vst [vmem:[%s2 + $0x50] sm:$0xff] %v379
  %396 = vst [vmem:[%s2 + $0x58] sm:$0xff] %v380
  %397 = vst [vmem:[%s2 + $0x60] sm:$0xff] %v381
  %398 = vst [vmem:[%s2 + $0x68] sm:$0xff] %v382
  %399 = vst [vmem:[%s2 + $0x70] sm:$0xff] %v383
  %400 = vst [vmem:[%s2 + $0x78] sm:$0xff] %v384
  // Predicated region
  $region14: #{jvp__.57} parent=0 // pred_check
    _
  $region15: #{jvp__.57} parent=0 // pred_check_branch
    %402 = sbr.rel (0) target = $region17
  $region16: #{jvp__.57} parent=0 // pred_region
    _
  $region17: #{jvp__.57} parent=0 // pred_fallthru
    _
  // Predicated region
  $region18: #{jvp__.57} parent=0 // pred_check
    _
  $region19: #{jvp__.57} parent=0 // pred_check_branch
    %404 = sbr.rel (0) target = $region21
  $region20: #{jvp__.57} parent=0 // pred_region
    _
  $region21: #{jvp__.57} parent=0 // pred_fallthru
    _

// kernel: jvp__.58
$region0: #{jvp__.58}
  #allocation0 [shape = 'u32[]', space=smem, size = 0x4, offset = 0x4, fixed_abs, tag = 'smem constant byte address 0x4 - core index']
  #allocation1 [shape = 'u32[72,128]{1,0:T(1,128)}', space=vmem, size = 0x9000, scoped, tag = 'internal scratch']
  %s0 = inlined_call_operand.vmem [shape: bf16[128,1152], index: 0, kind: input, shape index: {}]
  %s1 = inlined_call_operand.vmem [shape: bf16[1152,128], index: 1, kind: input, shape index: {}]
  %s2 = inlined_call_operand.vmem [shape: f32[128,128], index: 2, kind: output, shape index: {}]
  %s3 = sld [smem:[#allocation0]]
  $region86: #{jvp__.58} parent=0
    _
  %s5 = ssub.s32 1, %s3
  %s6 = scalar_select 0, %s5, %s3
  $region1: #{jvp__.58} parent=0
    #allocation2 [shape = 'u8[65536]{0}', space=vmem, size = 0x10000, scoped, tag = 'input window, operand 0']
    loop: start=0, step=1, limit=11
    $region2: #{jvp__.58} parent=1 // loop_pre_header
      _
    $region3: #{jvp__.58} parent=1 // loop_header
      %s8 = sphi 0, %s12
      %p9 = scmp.ge.s32.totalorder %s8, 11
      %s15 = sphi 0, %s34
      %s16 = sphi 0, %s30
      %s17 = sphi 0, %s26
      %s18 = sphi 0, %s15
      %s19 = sphi 0, %s16
      %s20 = sphi 0, %s17
      %s21 = sphi 0, %s18
      %s22 = sphi 0, %s19
      %s23 = sphi 0, %s20
      %s39 = sphi 0, %s41
      %s42 = sphi 0, %s39
      %s43 = sphi 0, %s42
      %s59 = sphi 0, %s43
      %s67 = sphi 0, %s69
      %s70 = sphi 0, %s67
      %s71 = sphi 0, %s70
      %s87 = sphi 0, %s71
      %s95 = sphi 0, %s97
      %s98 = sphi 0, %s95
      %s99 = sphi 0, %s98
      %s115 = sphi 0, %s99
    $region4: #{jvp__.58} parent=1 // loop_header_branch
      %11 = sbr.rel (%p9) target = $region8
    $region5: #{jvp__.58} parent=1 // loop_body
      %s13 = ssub.s32 %s8, 1
      %s14 = ssub.s32 %s8, 2
      %s24 = sadd.s32 1, %s17
      %p25 = scmp.ge.s32.totalorder %s24, 9
      %s26 = scalar_select %p25, 0, %s24
      %s27 = sadd.s32 1, %s16
      %s28 = scalar_select %p25, %s27, %s16
      %p29 = scmp.ge.s32.totalorder %s28, 1
      %s30 = scalar_select %p29, 0, %s28
      %s31 = sadd.s32 1, %s15
      %s32 = scalar_select %p29, %s31, %s15
      %p33 = scmp.ge.s32.totalorder %s32, 1
      %s34 = scalar_select %p33, 0, %s32
      %s35 = ssub.s32 %s15, %s34
      %s36 = ssub.s32 %s17, %s26
      %s37 = sor.u32 %s35, %s36
      %p38 = scmp.eq.s32.totalorder %s37, 0
      %s40 = sadd.s32 %s39, 1
      %s41 = scalar_select %p38, %s39, %s40
      %p44 = pneg %p38
      %p45 = scmp.eq.s32.totalorder %s8, 8
      %p46 = por %p44, %p45
      %p47 = scmp.ne.s32.totalorder %s39, %s42
      %p48 = scmp.eq.s32.totalorder %s8, 0
      %p49 = por %p47, %p48
      %p50 = scmp.ne.s32.totalorder %s39, %s42
      %p51 = scmp.eq.s32.totalorder %s13, 8
      %p52 = por %p50, %p51
      %p53 = scmp.ne.s32.totalorder %s42, %s43
      %p54 = scmp.eq.s32.totalorder %s13, 0
      %p55 = por %p53, %p54
      %p56 = scmp.ne.s32.totalorder %s42, %s43
      %p57 = scmp.eq.s32.totalorder %s14, 8
      %p58 = por %p56, %p57
      %p60 = scmp.ne.s32.totalorder %s43, %s59
      %p61 = scmp.eq.s32.totalorder %s14, 0
      %p62 = por %p60, %p61
      %s63 = ssub.s32 %s17, %s26
      %s64 = ssub.s32 %s16, %s30
      %s65 = sor.u32 %s63, %s64
      %p66 = scmp.eq.s32.totalorder %s65, 0
      %s68 = sadd.s32 %s67, 1
      %s69 = scalar_select %p66, %s67, %s68
      %p72 = pneg %p66
      %p73 = scmp.eq.s32.totalorder %s8, 8
      %p74 = por %p72, %p73
      %p75 = scmp.ne.s32.totalorder %s67, %s70
      %p76 = scmp.eq.s32.totalorder %s8, 0
      %p77 = por %p75, %p76
      %p78 = scmp.ne.s32.totalorder %s67, %s70
      %p79 = scmp.eq.s32.totalorder %s13, 8
      %p80 = por %p78, %p79
      %p81 = scmp.ne.s32.totalorder %s70, %s71
      %p82 = scmp.eq.s32.totalorder %s13, 0
      %p83 = por %p81, %p82
      %p84 = scmp.ne.s32.totalorder %s70, %s71
      %p85 = scmp.eq.s32.totalorder %s14, 8
      %p86 = por %p84, %p85
      %p88 = scmp.ne.s32.totalorder %s71, %s87
      %p89 = scmp.eq.s32.totalorder %s14, 0
      %p90 = por %p88, %p89
      %s91 = ssub.s32 %s15, %s34
      %s92 = ssub.s32 %s16, %s30
      %s93 = sor.u32 %s91, %s92
      %p94 = scmp.eq.s32.totalorder %s93, 0
      %s96 = sadd.s32 %s95, 1
      %s97 = scalar_select %p94, %s95, %s96
      %p100 = pneg %p94
      %p101 = scmp.eq.s32.totalorder %s8, 8
      %p102 = por %p100, %p101
      %p103 = scmp.ne.s32.totalorder %s95, %s98
      %p104 = scmp.eq.s32.totalorder %s8, 0
      %p105 = por %p103, %p104
      %p106 = scmp.ne.s32.totalorder %s95, %s98
      %p107 = scmp.eq.s32.totalorder %s13, 8
      %p108 = por %p106, %p107
      %p109 = scmp.ne.s32.totalorder %s98, %s99
      %p110 = scmp.eq.s32.totalorder %s13, 0
      %p111 = por %p109, %p110
      %p112 = scmp.ne.s32.totalorder %s98, %s99
      %p113 = scmp.eq.s32.totalorder %s14, 8
      %p114 = por %p112, %p113
      %p116 = scmp.ne.s32.totalorder %s99, %s115
      %p117 = scmp.eq.s32.totalorder %s14, 0
      %p118 = por %p116, %p117
      %p119 = scmp.le.s32.totalorder 1, %s8
      %p120 = scmp.lt.s32.totalorder %s8, 10
      %p121 = pnand %p119, %p120
      %p122 = pneg %p121
      // Predicated region
      $region9: #{jvp__.58} parent=5 // pred_check
        _
      $region10: #{jvp__.58} parent=5 // pred_check_branch
        %124 = sbr.rel (%p121) target = $region12
      $region11: #{jvp__.58} parent=5 // pred_region
        %s125 = ssub.s32 %s8, 1
      $region12: #{jvp__.58} parent=5 // pred_fallthru
        _
      %p126 = scmp.lt.s32.totalorder %s8, 9
      // Predicated region
      $region13: #{jvp__.58} parent=5 // pred_check
        %p127 = pneg %p126
      $region14: #{jvp__.58} parent=5 // pred_check_branch
        %129 = sbr.rel (%p127) target = $region16
      $region15: #{jvp__.58} parent=5 // pred_region
        // Predicated region
        $region17: #{jvp__.58} parent=15 // pred_check
          %p130 = pneg %p49
        $region18: #{jvp__.58} parent=15 // pred_check_branch
          %132 = sbr.rel (%p130) target = $region20
        $region19: #{jvp__.58} parent=15 // pred_region
          %s133 = sand.u32 %s39, 1
          %s134 = sand.u32 %s39, 1
          %s135 = smul.addr %s134, 64
          %s136 = scalar_lea.vmem [#allocation2], %s135
          %s137 = smul.u32 16, %s15
          %s138 = smul.addr %s137, 9
          %s139 = sadd.s32 %s17, %s138
          %s140 = smul.addr %s139, 4
          %s141 = scalar_lea.vmem %s0, %s140
          // Predicated region
          $region21: #{jvp__.58} parent=19 // pred_check
            _
          $region22: #{jvp__.58} parent=19 // pred_check_branch
            %143 = sbr.rel (0) target = $region24
          $region23: #{jvp__.58} parent=19 // pred_region
            // Predicated region
            $region25: #{jvp__.58} parent=23 // pred_check
              _
            $region26: #{jvp__.58} parent=23 // pred_check_branch
              %145 = sbr.rel target = $region28
            $region27: #{jvp__.58} parent=23 // pred_region
              // Predicated region
              $region40: #{jvp__.58} parent=27 // pred_check
                _
              $region41: #{jvp__.58} parent=27 // pred_check_branch
                %191 = sbr.rel (0) target = $region43
              $region42: #{jvp__.58} parent=27 // pred_region
                loop: start=0, step=1, limit=1
                $region44: #{jvp__.58} parent=42 // loop_pre_header
                  _
                $region45: #{jvp__.58} parent=42 // loop_header
                  %s193 = sphi 0, %s197
                  %p194 = scmp.ge.s32.totalorder %s193, 1
                  %s198 = sphi %s141, %s141
                  %s199 = sphi %s136, %s136
                $region46: #{jvp__.58} parent=42 // loop_header_branch
                  %196 = sbr.rel (%p194) target = $region50
                $region47: #{jvp__.58} parent=42 // loop_body
                  _
                $region48: #{jvp__.58} parent=42 // loop_footer
                  %s197 = sadd.s32 1, %s193
                $region49: #{jvp__.58} parent=42 // loop_footer_branch
                  %192 = sbr.rel target = $region45
                $region50: #{jvp__.58} parent=42 // loop_exit
                  _
                %s201 = ssub.s32 16, 1
                loop: start=0, step=1, limit=1
                $region51: #{jvp__.58} parent=42 // loop_pre_header
                  _
                $region52: #{jvp__.58} parent=42 // loop_header
                  %s203 = sphi 0, %s207
                  %p204 = scmp.ge.s32.totalorder %s203, 1
                  %s208 = sphi %s141, %s141
                  %s209 = sphi %s136, %s136
                $region53: #{jvp__.58} parent=42 // loop_header_branch
                  %206 = sbr.rel (%p204) target = $region57
                $region54: #{jvp__.58} parent=42 // loop_body
                  %v210 = vld [vmem:[%s208] sm:%s201]
                  %211 = vst [vmem:[%s209] sm:%s201] %v210
                  %v212 = vld [vmem:[%s208 + $0x24] sm:%s201]
                  %213 = vst [vmem:[%s209 + $0x4] sm:%s201] %v212
                  %v214 = vld [vmem:[%s208 + $0x48] sm:%s201]
                  %215 = vst [vmem:[%s209 + $0x8] sm:%s201] %v214
                  %v216 = vld [vmem:[%s208 + $0x6c] sm:%s201]
                  %217 = vst [vmem:[%s209 + $0xc] sm:%s201] %v216
                  %v218 = vld [vmem:[%s208 + $0x90] sm:%s201]
                  %219 = vst [vmem:[%s209 + $0x10] sm:%s201] %v218
                  %v220 = vld [vmem:[%s208 + $0xb4] sm:%s201]
                  %221 = vst [vmem:[%s209 + $0x14] sm:%s201] %v220
                  %v222 = vld [vmem:[%s208 + $0xd8] sm:%s201]
                  %223 = vst [vmem:[%s209 + $0x18] sm:%s201] %v222
                  %v224 = vld [vmem:[%s208 + $0xfc] sm:%s201]
                  %225 = vst [vmem:[%s209 + $0x1c] sm:%s201] %v224
                  %v226 = vld [vmem:[%s208 + $0x120] sm:%s201]
                  %227 = vst [vmem:[%s209 + $0x20] sm:%s201] %v226
                  %v228 = vld [vmem:[%s208 + $0x144] sm:%s201]
                  %229 = vst [vmem:[%s209 + $0x24] sm:%s201] %v228
                  %v230 = vld [vmem:[%s208 + $0x168] sm:%s201]
                  %231 = vst [vmem:[%s209 + $0x28] sm:%s201] %v230
                  %v232 = vld [vmem:[%s208 + $0x18c] sm:%s201]
                  %233 = vst [vmem:[%s209 + $0x2c] sm:%s201] %v232
                  %v234 = vld [vmem:[%s208 + $0x1b0] sm:%s201]
                  %235 = vst [vmem:[%s209 + $0x30] sm:%s201] %v234
                  %v236 = vld [vmem:[%s208 + $0x1d4] sm:%s201]
                  %237 = vst [vmem:[%s209 + $0x34] sm:%s201] %v236
                  %v238 = vld [vmem:[%s208 + $0x1f8] sm:%s201]
                  %239 = vst [vmem:[%s209 + $0x38] sm:%s201] %v238
                  %v240 = vld [vmem:[%s208 + $0x21c] sm:%s201]
                  %241 = vst [vmem:[%s209 + $0x3c] sm:%s201] %v240
                $region55: #{jvp__.58} parent=42 // loop_footer
                  %s207 = sadd.s32 1, %s203
                $region56: #{jvp__.58} parent=42 // loop_footer_branch
                  %202 = sbr.rel target = $region52
                $region57: #{jvp__.58} parent=42 // loop_exit
                  _
              $region43: #{jvp__.58} parent=27 // pred_fallthru
                _
            $region28: #{jvp__.58} parent=23 // pred_fallthru
              _
            // Predicated region
            $region29: #{jvp__.58} parent=23 // pred_check
              _
            $region30: #{jvp__.58} parent=23 // pred_check_branch
              %147 = sbr.rel (0) target = $region32
            $region31: #{jvp__.58} parent=23 // pred_region
              %s149 = ssub.s32 16, 1
              loop: start=0, step=1, limit=1
              $region33: #{jvp__.58} parent=31 // loop_pre_header
                _
              $region34: #{jvp__.58} parent=31 // loop_header
                %s151 = sphi 0, %s155
                %p152 = scmp.ge.s32.totalorder %s151, 1
                %s156 = sphi %s141, %s141
                %s157 = sphi %s136, %s136
              $region35: #{jvp__.58} parent=31 // loop_header_branch
                %154 = sbr.rel (%p152) target = $region39
              $region36: #{jvp__.58} parent=31 // loop_body
                %v158 = vld [vmem:[%s156] sm:%s149]
                %159 = vst [vmem:[%s157] sm:%s149] %v158
                %v160 = vld [vmem:[%s156 + $0x24] sm:%s149]
                %161 = vst [vmem:[%s157 + $0x4] sm:%s149] %v160
                %v162 = vld [vmem:[%s156 + $0x48] sm:%s149]
                %163 = vst [vmem:[%s157 + $0x8] sm:%s149] %v162
                %v164 = vld [vmem:[%s156 + $0x6c] sm:%s149]
                %165 = vst [vmem:[%s157 + $0xc] sm:%s149] %v164
                %v166 = vld [vmem:[%s156 + $0x90] sm:%s149]
                %167 = vst [vmem:[%s157 + $0x10] sm:%s149] %v166
                %v168 = vld [vmem:[%s156 + $0xb4] sm:%s149]
                %169 = vst [vmem:[%s157 + $0x14] sm:%s149] %v168
                %v170 = vld [vmem:[%s156 + $0xd8] sm:%s149]
                %171 = vst [vmem:[%s157 + $0x18] sm:%s149] %v170
                %v172 = vld [vmem:[%s156 + $0xfc] sm:%s149]
                %173 = vst [vmem:[%s157 + $0x1c] sm:%s149] %v172
                %v174 = vld [vmem:[%s156 + $0x120] sm:%s149]
                %175 = vst [vmem:[%s157 + $0x20] sm:%s149] %v174
                %v176 = vld [vmem:[%s156 + $0x144] sm:%s149]
                %177 = vst [vmem:[%s157 + $0x24] sm:%s149] %v176
                %v178 = vld [vmem:[%s156 + $0x168] sm:%s149]
                %179 = vst [vmem:[%s157 + $0x28] sm:%s149] %v178
                %v180 = vld [vmem:[%s156 + $0x18c] sm:%s149]
                %181 = vst [vmem:[%s157 + $0x2c] sm:%s149] %v180
                %v182 = vld [vmem:[%s156 + $0x1b0] sm:%s149]
                %183 = vst [vmem:[%s157 + $0x30] sm:%s149] %v182
                %v184 = vld [vmem:[%s156 + $0x1d4] sm:%s149]
                %185 = vst [vmem:[%s157 + $0x34] sm:%s149] %v184
                %v186 = vld [vmem:[%s156 + $0x1f8] sm:%s149]
                %187 = vst [vmem:[%s157 + $0x38] sm:%s149] %v186
                %v188 = vld [vmem:[%s156 + $0x21c] sm:%s149]
                %189 = vst [vmem:[%s157 + $0x3c] sm:%s149] %v188
              $region37: #{jvp__.58} parent=31 // loop_footer
                %s155 = sadd.s32 1, %s151
              $region38: #{jvp__.58} parent=31 // loop_footer_branch
                %150 = sbr.rel target = $region34
              $region39: #{jvp__.58} parent=31 // loop_exit
                _
            $region32: #{jvp__.58} parent=23 // pred_fallthru
              _
          $region24: #{jvp__.58} parent=19 // pred_fallthru
            _
          %242 = vnop
        $region20: #{jvp__.58} parent=15 // pred_fallthru
          _
        // Predicated region
        $region58: #{jvp__.58} parent=15 // pred_check
          %p243 = pneg %p77
        $region59: #{jvp__.58} parent=15 // pred_check_branch
          %245 = sbr.rel (%p243) target = $region61
        $region60: #{jvp__.58} parent=15 // pred_region
          %s246 = smul.u32 16, %s17
          %p247 = scmp.lt.s32.totalorder %s246, 143
          %s248 = scalar_select %p247, %s246, 143
          %p249 = scmp.lt.s32.totalorder %s16, 0
          %s250 = scalar_select %p249, %s16, 0
          %s251 = sadd.s32 %s250, %s248
          %s252 = smul.addr %s251, 4
          %s253 = scalar_lea.vmem %s1, %s252
          %s254 = smul.u32 16, %s17
        $region61: #{jvp__.58} parent=15 // pred_fallthru
          _
      $region16: #{jvp__.58} parent=5 // pred_fallthru
        _
      %p255 = scmp.le.s32.totalorder 1, %s8
      %p256 = scmp.lt.s32.totalorder %s8, 10
      %p257 = pnand %p255, %p256
      %p258 = pneg %p257
      // Predicated region
      $region62: #{jvp__.58} parent=5 // pred_check
        _
      $region63: #{jvp__.58} parent=5 // pred_check_branch
        %260 = sbr.rel (%p257) target = $region65
      $region64: #{jvp__.58} parent=5 // pred_region
        %s261 = ssub.s32 %s8, 1
        %s262 = sand.u32 %s42, 1
        %s263 = sand.u32 %s42, 1
        %s264 = smul.addr %s263, 64
        %s265 = scalar_lea.vmem [#allocation2], %s264
        // Predicated region
        $region66: #{jvp__.58} parent=64 // pred_check
          %p266 = pneg %p55
        $region67: #{jvp__.58} parent=64 // pred_check_branch
          %268 = sbr.rel (%p266) target = $region69
        $region68: #{jvp__.58} parent=64 // pred_region
          _
        $region69: #{jvp__.58} parent=64 // pred_fallthru
          _
        %s269 = sand.u32 %s42, 1
        %s270 = sand.u32 %s42, 1
        %s271 = smul.addr %s270, 64
        %s272 = scalar_lea.vmem [#allocation2], %s271
        %p273 = pneg %p55
        %p274 = pneg %p52
        %s275 = smul.u32 16, %s20
        %p276 = scmp.lt.s32.totalorder %s275, 143
        %s277 = scalar_select %p276, %s275, 143
        %p278 = scmp.lt.s32.totalorder %s19, 0
        %s279 = scalar_select %p278, %s19, 0
        %s280 = sadd.s32 %s279, %s277
        %s281 = smul.addr %s280, 4
        %s282 = scalar_lea.vmem %s1, %s281
        %p283 = pneg %p83
        %p284 = pneg %p80
        %p285 = pneg %p111
        %p286 = pneg %p108
        %s287 = smul.u32 16, %s18
        %p288 = scmp.lt.s32.totalorder %s287, 15
        %s289 = scalar_select %p288, %s287, 15
        %p290 = scmp.lt.s32.totalorder %s19, 0
        %s291 = scalar_select %p290, %s19, 0
        %s292 = sadd.s32 %s291, %s289
        %s293 = smul.addr %s292, 8
        %s294 = scalar_lea.vmem %s2, %s293
        %s295 = smul.u32 16, %s18
        %s296 = smul.u32 16, %s20
        %p297 = scmp.lt.s32.totalorder %s296, 143
        %s298 = scalar_select %p297, %s296, 143
        %p299 = scmp.lt.s32.totalorder %s19, 0
        %s300 = scalar_select %p299, %s19, 0
        %s301 = sadd.s32 %s300, %s298
        %s302 = smul.addr %s301, 4
        %s303 = scalar_lea.vmem %s1, %s302
        %s304 = smul.u32 16, %s20
        %s305 = smul.u32 16, %s18
        %p306 = scmp.lt.s32.totalorder %s305, 15
        %s307 = scalar_select %p306, %s305, 15
        %p308 = scmp.lt.s32.totalorder %s19, 0
        %s309 = scalar_select %p308, %s19, 0
        %s310 = sadd.s32 %s309, %s307
        %s311 = smul.addr %s310, 8
        %s312 = scalar_lea.vmem %s2, %s311
        %s313 = smul.u32 16, %s18
        %p314 = scmp.eq.s32.totalorder %s20, 0
        // Predicated region
        $region70: #{jvp__.58} parent=64 // pred_check
          %p315 = pneg %p314
        $region71: #{jvp__.58} parent=64 // pred_check_branch
          %317 = sbr.rel (%p315) target = $region73
        $region72: #{jvp__.58} parent=64 // pred_region
          %318 = vst [vmem:[%s312] sm:$0xff] 0.0
          %319 = vst [vmem:[%s312 + $0x8] sm:$0xff] 0.0
          %320 = vst [vmem:[%s312 + $0x10] sm:$0xff] 0.0
          %321 = vst [vmem:[%s312 + $0x18] sm:$0xff] 0.0
          %322 = vst [vmem:[%s312 + $0x20] sm:$0xff] 0.0
          %323 = vst [vmem:[%s312 + $0x28] sm:$0xff] 0.0
          %324 = vst [vmem:[%s312 + $0x30] sm:$0xff] 0.0
          %325 = vst [vmem:[%s312 + $0x38] sm:$0xff] 0.0
          %326 = vst [vmem:[%s312 + $0x40] sm:$0xff] 0.0
          %327 = vst [vmem:[%s312 + $0x48] sm:$0xff] 0.0
          %328 = vst [vmem:[%s312 + $0x50] sm:$0xff] 0.0
          %329 = vst [vmem:[%s312 + $0x58] sm:$0xff] 0.0
          %330 = vst [vmem:[%s312 + $0x60] sm:$0xff] 0.0
          %331 = vst [vmem:[%s312 + $0x68] sm:$0xff] 0.0
          %332 = vst [vmem:[%s312 + $0x70] sm:$0xff] 0.0
          %333 = vst [vmem:[%s312 + $0x78] sm:$0xff] 0.0
        $region73: #{jvp__.58} parent=64 // pred_fallthru
          _
        %v334 = vld [vmem:[%s312] sm:$0xff]
        %v335 = vld [vmem:[%s312 + $0x8] sm:$0xff]
        %v336 = vld [vmem:[%s312 + $0x10] sm:$0xff]
        %v337 = vld [vmem:[%s312 + $0x18] sm:$0xff]
        %v338 = vld [vmem:[%s312 + $0x20] sm:$0xff]
        %v339 = vld [vmem:[%s312 + $0x28] sm:$0xff]
        %v340 = vld [vmem:[%s312 + $0x30] sm:$0xff]
        %v341 = vld [vmem:[%s312 + $0x38] sm:$0xff]
        %v342 = vld [vmem:[%s312 + $0x40] sm:$0xff]
        %v343 = vld [vmem:[%s312 + $0x48] sm:$0xff]
        %v344 = vld [vmem:[%s312 + $0x50] sm:$0xff]
        %v345 = vld [vmem:[%s312 + $0x58] sm:$0xff]
        %v346 = vld [vmem:[%s312 + $0x60] sm:$0xff]
        %v347 = vld [vmem:[%s312 + $0x68] sm:$0xff]
        %v348 = vld [vmem:[%s312 + $0x70] sm:$0xff]
        %v349 = vld [vmem:[%s312 + $0x78] sm:$0xff]
        %v350 = vld [vmem:[%s265] sm:$0xf]
        %v351 = vld [vmem:[%s265 + $0x4] sm:$0xf]
        %v352 = vld [vmem:[%s265 + $0x8] sm:$0xf]
        %v353 = vld [vmem:[%s265 + $0xc] sm:$0xf]
        %v354 = vld [vmem:[%s265 + $0x10] sm:$0xf]
        %v355 = vld [vmem:[%s265 + $0x14] sm:$0xf]
        %v356 = vld [vmem:[%s265 + $0x18] sm:$0xf]
        %v357 = vld [vmem:[%s265 + $0x1c] sm:$0xf]
        %v358 = vld [vmem:[%s265 + $0x20] sm:$0xf]
        %v359 = vld [vmem:[%s265 + $0x24] sm:$0xf]
        %v360 = vld [vmem:[%s265 + $0x28] sm:$0xf]
        %v361 = vld [vmem:[%s265 + $0x2c] sm:$0xf]
        %v362 = vld [vmem:[%s265 + $0x30] sm:$0xf]
        %v363 = vld [vmem:[%s265 + $0x34] sm:$0xf]
        %v364 = vld [vmem:[%s265 + $0x38] sm:$0xf]
        %v365 = vld [vmem:[%s265 + $0x3c] sm:$0xf]
        %v366 = vld [vmem:[%s303] sm:$0xf]
        %v367 = vld [vmem:[%s303 + $0x4] sm:$0xf]
        %v368 = vld [vmem:[%s303 + $0x8] sm:$0xf]
        %v369 = vld [vmem:[%s303 + $0xc] sm:$0xf]
        %v370 = vld [vmem:[%s303 + $0x10] sm:$0xf]
        %v371 = vld [vmem:[%s303 + $0x14] sm:$0xf]
        %v372 = vld [vmem:[%s303 + $0x18] sm:$0xf]
        %v373 = vld [vmem:[%s303 + $0x1c] sm:$0xf]
        %v374 = vld [vmem:[%s303 + $0x20] sm:$0xf]
        %v375 = vld [vmem:[%s303 + $0x24] sm:$0xf]
        %v376 = vld [vmem:[%s303 + $0x28] sm:$0xf]
        %v377 = vld [vmem:[%s303 + $0x2c] sm:$0xf]
        %v378 = vld [vmem:[%s303 + $0x30] sm:$0xf]
        %v379 = vld [vmem:[%s303 + $0x34] sm:$0xf]
        %v380 = vld [vmem:[%s303 + $0x38] sm:$0xf]
        %v381 = vld [vmem:[%s303 + $0x3c] sm:$0xf]
        %v398 = vunpack.c.l.b16 %v350
        %v399 = vunpack.c.l.b16 %v351
        %v400 = vunpack.c.l.b16 %v352
        %v401 = vunpack.c.l.b16 %v353
        %v402 = vunpack.c.l.b16 %v354
        %v403 = vunpack.c.l.b16 %v355
        %v404 = vunpack.c.l.b16 %v356
        %v405 = vunpack.c.l.b16 %v357
        %v406 = vunpack.c.l.b16 %v358
        %v407 = vunpack.c.l.b16 %v359
        %v408 = vunpack.c.l.b16 %v360
        %v409 = vunpack.c.l.b16 %v361
        %v410 = vunpack.c.l.b16 %v362
        %v411 = vunpack.c.l.b16 %v363
        %v412 = vunpack.c.l.b16 %v364
        %v413 = vunpack.c.l.b16 %v365
        %v414 = vpack.c.b16 %v399, %v398
        %v415 = vpack.c.b16 %v401, %v400
        %v416 = vpack.c.b16 %v403, %v402
        %v417 = vpack.c.b16 %v405, %v404
        %v418 = vpack.c.b16 %v407, %v406
        %v419 = vpack.c.b16 %v409, %v408
        %v420 = vpack.c.b16 %v411, %v410
        %v421 = vpack.c.b16 %v413, %v412
        %v446 = vunpack.c.l.b16 %v366
        %v447 = vunpack.c.l.b16 %v367
        %v448 = vunpack.c.l.b16 %v368
        %v449 = vunpack.c.l.b16 %v369
        %v450 = vunpack.c.l.b16 %v370
        %v451 = vunpack.c.l.b16 %v371
        %v452 = vunpack.c.l.b16 %v372
        %v453 = vunpack.c.l.b16 %v373
        %v454 = vunpack.c.l.b16 %v374
        %v455 = vunpack.c.l.b16 %v375
        %v456 = vunpack.c.l.b16 %v376
        %v457 = vunpack.c.l.b16 %v377
        %v458 = vunpack.c.l.b16 %v378
        %v459 = vunpack.c.l.b16 %v379
        %v460 = vunpack.c.l.b16 %v380
        %v461 = vunpack.c.l.b16 %v381
        %v462 = vpack.c.b16 %v447, %v446
        %v463 = vpack.c.b16 %v449, %v448
        %v464 = vpack.c.b16 %v451, %v450
        %v465 = vpack.c.b16 %v453, %v452
        %v466 = vpack.c.b16 %v455, %v454
        %v467 = vpack.c.b16 %v457, %v456
        %v468 = vpack.c.b16 %v459, %v458
        %v469 = vpack.c.b16 %v461, %v460
        %478 = vmatpush.bf16.msra.mxu0 %v469
        %479 = vmatpush.bf16.msra.mxu0 %v468
        %480 = vmatpush.bf16.msra.mxu0 %v467
        %481 = vmatpush.bf16.msra.mxu0 %v466
        %482 = vmatpush.bf16.msra.mxu0 %v465
        %483 = vmatpush.bf16.msra.mxu0 %v464
        %484 = vmatpush.bf16.msra.mxu0 %v463
        %485 = vmatpush.bf16.msra.mxu0 %v462
        %486 = vmatmul.bf16.gmra.mxu0 %v414
        %v487 = vpop.f32.mrf.mxu0
        %v488 = vadd.f32 0.0, %v487
        %v489 = vpop.f32.mrf.mxu0
        %v490 = vadd.f32 0.0, %v489
        %491 = vmatmul.bf16.gmra.mxu0 %v415
        %v492 = vpop.f32.mrf.mxu0
        %v493 = vadd.f32 0.0, %v492
        %v494 = vpop.f32.mrf.mxu0
        %v495 = vadd.f32 0.0, %v494
        %496 = vmatmul.bf16.gmra.mxu0 %v416
        %v497 = vpop.f32.mrf.mxu0
        %v498 = vadd.f32 0.0, %v497
        %v499 = vpop.f32.mrf.mxu0
        %v500 = vadd.f32 0.0, %v499
        %501 = vmatmul.bf16.gmra.mxu0 %v417
        %v502 = vpop.f32.mrf.mxu0
        %v503 = vadd.f32 0.0, %v502
        %v504 = vpop.f32.mrf.mxu0
        %v505 = vadd.f32 0.0, %v504
        %506 = vmatmul.bf16.gmra.mxu0 %v418
        %v507 = vpop.f32.mrf.mxu0
        %v508 = vadd.f32 0.0, %v507
        %v509 = vpop.f32.mrf.mxu0
        %v510 = vadd.f32 0.0, %v509
        %511 = vmatmul.bf16.gmra.mxu0 %v419
        %v512 = vpop.f32.mrf.mxu0
        %v513 = vadd.f32 0.0, %v512
        %v514 = vpop.f32.mrf.mxu0
        %v515 = vadd.f32 0.0, %v514
        %516 = vmatmul.bf16.gmra.mxu0 %v420
        %v517 = vpop.f32.mrf.mxu0
        %v518 = vadd.f32 0.0, %v517
        %v519 = vpop.f32.mrf.mxu0
        %v520 = vadd.f32 0.0, %v519
        %521 = vmatmul.bf16.gmra.mxu0 %v421
        %v522 = vpop.f32.mrf.mxu0
        %v523 = vadd.f32 0.0, %v522
        %v524 = vpop.f32.mrf.mxu0
        %v525 = vadd.f32 0.0, %v524
        %526 = vdwg.mxu0
        %v527 = vadd.f32 %v334, %v488
        %v528 = vadd.f32 %v335, %v490
        %v529 = vadd.f32 %v336, %v493
        %v530 = vadd.f32 %v337, %v495
        %v531 = vadd.f32 %v338, %v498
        %v532 = vadd.f32 %v339, %v500
        %v533 = vadd.f32 %v340, %v503
        %v534 = vadd.f32 %v341, %v505
        %v535 = vadd.f32 %v342, %v508
        %v536 = vadd.f32 %v343, %v510
        %v537 = vadd.f32 %v344, %v513
        %v538 = vadd.f32 %v345, %v515
        %v539 = vadd.f32 %v346, %v518
        %v540 = vadd.f32 %v347, %v520
        %v541 = vadd.f32 %v348, %v523
        %v542 = vadd.f32 %v349, %v525
        %543 = vst [vmem:[%s312] sm:$0xff] %v527
        %544 = vst [vmem:[%s312 + $0x8] sm:$0xff] %v528
        %545 = vst [vmem:[%s312 + $0x10] sm:$0xff] %v529
        %546 = vst [vmem:[%s312 + $0x18] sm:$0xff] %v530
        %547 = vst [vmem:[%s312 + $0x20] sm:$0xff] %v531
        %548 = vst [vmem:[%s312 + $0x28] sm:$0xff] %v532
        %549 = vst [vmem:[%s312 + $0x30] sm:$0xff] %v533
        %550 = vst [vmem:[%s312 + $0x38] sm:$0xff] %v534
        %551 = vst [vmem:[%s312 + $0x40] sm:$0xff] %v535
        %552 = vst [vmem:[%s312 + $0x48] sm:$0xff] %v536
        %553 = vst [vmem:[%s312 + $0x50] sm:$0xff] %v537
        %554 = vst [vmem:[%s312 + $0x58] sm:$0xff] %v538
        %555 = vst [vmem:[%s312 + $0x60] sm:$0xff] %v539
        %556 = vst [vmem:[%s312 + $0x68] sm:$0xff] %v540
        %557 = vst [vmem:[%s312 + $0x70] sm:$0xff] %v541
        %558 = vst [vmem:[%s312 + $0x78] sm:$0xff] %v542
        %s559 = smul.u32 16, %s18
        %p560 = scmp.lt.s32.totalorder %s559, 15
        %s561 = scalar_select %p560, %s559, 15
        %p562 = scmp.lt.s32.totalorder %s19, 0
        %s563 = scalar_select %p562, %s19, 0
        %s564 = sadd.s32 %s563, %s561
        %s565 = smul.addr %s564, 8
        %s566 = scalar_lea.vmem %s2, %s565
        // Predicated region
        $region74: #{jvp__.58} parent=64 // pred_check
          %p567 = pneg %p108
        $region75: #{jvp__.58} parent=64 // pred_check_branch
          %569 = sbr.rel (%p567) target = $region77
        $region76: #{jvp__.58} parent=64 // pred_region
          %s570 = smul.u32 16, %s18
        $region77: #{jvp__.58} parent=64 // pred_fallthru
          _
        // Predicated region
        $region78: #{jvp__.58} parent=64 // pred_check
          %p571 = pneg %p108
        $region79: #{jvp__.58} parent=64 // pred_check_branch
          %573 = sbr.rel (%p571) target = $region81
        $region80: #{jvp__.58} parent=64 // pred_region
          %s574 = smul.u32 16, %s18
          %p575 = scmp.lt.s32.totalorder %s574, 15
          %s576 = scalar_select %p575, %s574, 15
          %p577 = scmp.lt.s32.totalorder %s19, 0
          %s578 = scalar_select %p577, %s19, 0
          %s579 = sadd.s32 %s578, %s576
          %s580 = smul.addr %s579, 8
          %s581 = scalar_lea.vmem %s2, %s580
        $region81: #{jvp__.58} parent=64 // pred_fallthru
          _
      $region65: #{jvp__.58} parent=5 // pred_fallthru
        _
      %p582 = scmp.le.s32.totalorder 2, %s8
      // Predicated region
      $region82: #{jvp__.58} parent=5 // pred_check
        %p583 = pneg %p582
      $region83: #{jvp__.58} parent=5 // pred_check_branch
        %585 = sbr.rel (%p583) target = $region85
      $region84: #{jvp__.58} parent=5 // pred_region
        %s586 = ssub.s32 %s8, 2
      $region85: #{jvp__.58} parent=5 // pred_fallthru
        _
    $region6: #{jvp__.58} parent=1 // loop_footer
      %s12 = sadd.s32 1, %s8
    $region7: #{jvp__.58} parent=1 // loop_footer_branch
      %7 = sbr.rel target = $region3
    $region8: #{jvp__.58} parent=1 // loop_exit
      _

// kernel: jvp__.64
$region0: #{jvp__.64}
  #allocation0 [shape = 'u32[]', space=smem, size = 0x4, offset = 0x4, fixed_abs, tag = 'smem constant byte address 0x4 - core index']
  #allocation1 [shape = 'u32[72,128]{1,0:T(1,128)}', space=vmem, size = 0x9000, scoped, tag = 'internal scratch']
  %s0 = inlined_call_operand.vmem [shape: bf16[32,512], index: 0, kind: input, shape index: {}]
  %s1 = inlined_call_operand.vmem [shape: bf16[512,256], index: 1, kind: input, shape index: {}]
  %s2 = inlined_call_operand.vmem [shape: f32[32,256], index: 2, kind: output, shape index: {}]
  %s3 = sld [smem:[#allocation0]]
  $region22: #{jvp__.64} parent=0
    _
  %s5 = ssub.s32 1, %s3
  %s6 = scalar_select 0, %s5, %s3
  // Predicated region
  $region2: #{jvp__.64} parent=0 // pred_check
    _
  $region3: #{jvp__.64} parent=0 // pred_check_branch
    %8 = sbr.rel (0) target = $region5
  $region4: #{jvp__.64} parent=0 // pred_region
    _
  $region5: #{jvp__.64} parent=0 // pred_fallthru
    _
  // Predicated region
  $region6: #{jvp__.64} parent=0 // pred_check
    _
  $region7: #{jvp__.64} parent=0 // pred_check_branch
    %10 = sbr.rel (0) target = $region9
  $region8: #{jvp__.64} parent=0 // pred_region
    _
  $region9: #{jvp__.64} parent=0 // pred_fallthru
    _
  %p11 = scmp.eq.s32.totalorder 0, 0
  // Predicated region
  $region10: #{jvp__.64} parent=0 // pred_check
    %p12 = pneg %p11
  $region11: #{jvp__.64} parent=0 // pred_check_branch
    %14 = sbr.rel (%p12) target = $region13
  $region12: #{jvp__.64} parent=0 // pred_region
    %15 = vst [vmem:[%s2] sm:$0xff] 0.0
    %16 = vst [vmem:[%s2 + $0x8] sm:$0xff] 0.0
    %17 = vst [vmem:[%s2 + $0x10] sm:$0xff] 0.0
    %18 = vst [vmem:[%s2 + $0x18] sm:$0xff] 0.0
    %19 = vst [vmem:[%s2 + $0x20] sm:$0xff] 0.0
    %20 = vst [vmem:[%s2 + $0x28] sm:$0xff] 0.0
    %21 = vst [vmem:[%s2 + $0x30] sm:$0xff] 0.0
    %22 = vst [vmem:[%s2 + $0x38] sm:$0xff] 0.0
  $region13: #{jvp__.64} parent=0 // pred_fallthru
    _
  %v23 = vld [vmem:[%s2] sm:$0xff]
  %v24 = vld [vmem:[%s2 + $0x8] sm:$0xff]
  %v25 = vld [vmem:[%s2 + $0x10] sm:$0xff]
  %v26 = vld [vmem:[%s2 + $0x18] sm:$0xff]
  %v27 = vld [vmem:[%s2 + $0x20] sm:$0xff]
  %v28 = vld [vmem:[%s2 + $0x28] sm:$0xff]
  %v29 = vld [vmem:[%s2 + $0x30] sm:$0xff]
  %v30 = vld [vmem:[%s2 + $0x38] sm:$0xff]
  %v31 = vld [vmem:[%s0] sm:$0xff]
  %v32 = vld [vmem:[%s0 + $0x8] sm:$0xff]
  %v33 = vld [vmem:[%s0 + $0x10] sm:$0xff]
  %v34 = vld [vmem:[%s0 + $0x18] sm:$0xff]
  %v35 = vld [vmem:[%s0 + $0x20] sm:$0xff]
  %v36 = vld [vmem:[%s0 + $0x28] sm:$0xff]
  %v37 = vld [vmem:[%s0 + $0x30] sm:$0xff]
  %v38 = vld [vmem:[%s0 + $0x38] sm:$0xff]
  %v39 = vld [vmem:[%s1] sm:$0xff]
  %v40 = vld [vmem:[%s1 + $0x8] sm:$0xff]
  %v41 = vld [vmem:[%s1 + $0x10] sm:$0xff]
  %v42 = vld [vmem:[%s1 + $0x18] sm:$0xff]
  %v43 = vld [vmem:[%s1 + $0x20] sm:$0xff]
  %v44 = vld [vmem:[%s1 + $0x28] sm:$0xff]
  %v45 = vld [vmem:[%s1 + $0x30] sm:$0xff]
  %v46 = vld [vmem:[%s1 + $0x38] sm:$0xff]
  %v47 = vld [vmem:[%s1 + $0x40] sm:$0xff]
  %v48 = vld [vmem:[%s1 + $0x48] sm:$0xff]
  %v49 = vld [vmem:[%s1 + $0x50] sm:$0xff]
  %v50 = vld [vmem:[%s1 + $0x58] sm:$0xff]
  %v51 = vld [vmem:[%s1 + $0x60] sm:$0xff]
  %v52 = vld [vmem:[%s1 + $0x68] sm:$0xff]
  %v53 = vld [vmem:[%s1 + $0x70] sm:$0xff]
  %v54 = vld [vmem:[%s1 + $0x78] sm:$0xff]
  %v55 = vld [vmem:[%s1 + $0x80] sm:$0xff]
  %v56 = vld [vmem:[%s1 + $0x88] sm:$0xff]
  %v57 = vld [vmem:[%s1 + $0x90] sm:$0xff]
  %v58 = vld [vmem:[%s1 + $0x98] sm:$0xff]
  %v59 = vld [vmem:[%s1 + $0xa0] sm:$0xff]
  %v60 = vld [vmem:[%s1 + $0xa8] sm:$0xff]
  %v61 = vld [vmem:[%s1 + $0xb0] sm:$0xff]
  %v62 = vld [vmem:[%s1 + $0xb8] sm:$0xff]
  %v63 = vld [vmem:[%s1 + $0xc0] sm:$0xff]
  %v64 = vld [vmem:[%s1 + $0xc8] sm:$0xff]
  %v65 = vld [vmem:[%s1 + $0xd0] sm:$0xff]
  %v66 = vld [vmem:[%s1 + $0xd8] sm:$0xff]
  %v67 = vld [vmem:[%s1 + $0xe0] sm:$0xff]
  %v68 = vld [vmem:[%s1 + $0xe8] sm:$0xff]
  %v69 = vld [vmem:[%s1 + $0xf0] sm:$0xff]
  %v70 = vld [vmem:[%s1 + $0xf8] sm:$0xff]
  %v71 = vld [vmem:[%s1 + $0x100] sm:$0xff]
  %v72 = vld [vmem:[%s1 + $0x108] sm:$0xff]
  %v73 = vld [vmem:[%s1 + $0x110] sm:$0xff]
  %v74 = vld [vmem:[%s1 + $0x118] sm:$0xff]
  %v75 = vld [vmem:[%s1 + $0x120] sm:$0xff]
  %v76 = vld [vmem:[%s1 + $0x128] sm:$0xff]
  %v77 = vld [vmem:[%s1 + $0x130] sm:$0xff]
  %v78 = vld [vmem:[%s1 + $0x138] sm:$0xff]
  %v79 = vld [vmem:[%s1 + $0x140] sm:$0xff]
  %v80 = vld [vmem:[%s1 + $0x148] sm:$0xff]
  %v81 = vld [vmem:[%s1 + $0x150] sm:$0xff]
  %v82 = vld [vmem:[%s1 + $0x158] sm:$0xff]
  %v83 = vld [vmem:[%s1 + $0x160] sm:$0xff]
  %v84 = vld [vmem:[%s1 + $0x168] sm:$0xff]
  %v85 = vld [vmem:[%s1 + $0x170] sm:$0xff]
  %v86 = vld [vmem:[%s1 + $0x178] sm:$0xff]
  %v87 = vld [vmem:[%s1 + $0x180] sm:$0xff]
  %v88 = vld [vmem:[%s1 + $0x188] sm:$0xff]
  %v89 = vld [vmem:[%s1 + $0x190] sm:$0xff]
  %v90 = vld [vmem:[%s1 + $0x198] sm:$0xff]
  %v91 = vld [vmem:[%s1 + $0x1a0] sm:$0xff]
  %v92 = vld [vmem:[%s1 + $0x1a8] sm:$0xff]
  %v93 = vld [vmem:[%s1 + $0x1b0] sm:$0xff]
  %v94 = vld [vmem:[%s1 + $0x1b8] sm:$0xff]
  %v95 = vld [vmem:[%s1 + $0x1c0] sm:$0xff]
  %v96 = vld [vmem:[%s1 + $0x1c8] sm:$0xff]
  %v97 = vld [vmem:[%s1 + $0x1d0] sm:$0xff]
  %v98 = vld [vmem:[%s1 + $0x1d8] sm:$0xff]
  %v99 = vld [vmem:[%s1 + $0x1e0] sm:$0xff]
  %v100 = vld [vmem:[%s1 + $0x1e8] sm:$0xff]
  %v101 = vld [vmem:[%s1 + $0x1f0] sm:$0xff]
  %v102 = vld [vmem:[%s1 + $0x1f8] sm:$0xff]
  %v111 = vunpack.c.l.b16 %v31
  %v112 = vunpack.c.h.b16 %v31
  %v113 = vunpack.c.l.b16 %v32
  %v114 = vunpack.c.h.b16 %v32
  %v115 = vunpack.c.l.b16 %v33
  %v116 = vunpack.c.h.b16 %v33
  %v117 = vunpack.c.l.b16 %v34
  %v118 = vunpack.c.h.b16 %v34
  %v119 = vunpack.c.l.b16 %v35
  %v120 = vunpack.c.h.b16 %v35
  %v121 = vunpack.c.l.b16 %v36
  %v122 = vunpack.c.h.b16 %v36
  %v123 = vunpack.c.l.b16 %v37
  %v124 = vunpack.c.h.b16 %v37
  %v125 = vunpack.c.l.b16 %v38
  %v126 = vunpack.c.h.b16 %v38
  %v127 = vpack.c.b16 %v115, %v111
  %v128 = vpack.c.b16 %v116, %v112
  %v129 = vpack.c.b16 %v117, %v113
  %v130 = vpack.c.b16 %v118, %v114
  %v131 = vpack.c.b16 %v123, %v119
  %v132 = vpack.c.b16 %v124, %v120
  %v133 = vpack.c.b16 %v125, %v121
  %v134 = vpack.c.b16 %v126, %v122
  %v207 = vunpack.c.l.b16 %v39
  %v208 = vunpack.c.h.b16 %v39
  %v209 = vunpack.c.l.b16 %v40
  %v210 = vunpack.c.h.b16 %v40
  %v211 = vunpack.c.l.b16 %v41
  %v212 = vunpack.c.h.b16 %v41
  %v213 = vunpack.c.l.b16 %v42
  %v214 = vunpack.c.h.b16 %v42
  %v215 = vunpack.c.l.b16 %v43
  %v216 = vunpack.c.h.b16 %v43
  %v217 = vunpack.c.l.b16 %v44
  %v218 = vunpack.c.h.b16 %v44
  %v219 = vunpack.c.l.b16 %v45
  %v220 = vunpack.c.h.b16 %v45
  %v221 = vunpack.c.l.b16 %v46
  %v222 = vunpack.c.h.b16 %v46
  %v223 = vunpack.c.l.b16 %v47
  %v224 = vunpack.c.h.b16 %v47
  %v225 = vunpack.c.l.b16 %v48
  %v226 = vunpack.c.h.b16 %v48
  %v227 = vunpack.c.l.b16 %v49
  %v228 = vunpack.c.h.b16 %v49
  %v229 = vunpack.c.l.b16 %v50
  %v230 = vunpack.c.h.b16 %v50
  %v231 = vunpack.c.l.b16 %v51
  %v232 = vunpack.c.h.b16 %v51
  %v233 = vunpack.c.l.b16 %v52
  %v234 = vunpack.c.h.b16 %v52
  %v235 = vunpack.c.l.b16 %v53
  %v236 = vunpack.c.h.b16 %v53
  %v237 = vunpack.c.l.b16 %v54
  %v238 = vunpack.c.h.b16 %v54
  %v239 = vunpack.c.l.b16 %v55
  %v240 = vunpack.c.h.b16 %v55
  %v241 = vunpack.c.l.b16 %v56
  %v242 = vunpack.c.h.b16 %v56
  %v243 = vunpack.c.l.b16 %v57
  %v244 = vunpack.c.h.b16 %v57
  %v245 = vunpack.c.l.b16 %v58
  %v246 = vunpack.c.h.b16 %v58
  %v247 = vunpack.c.l.b16 %v59
  %v248 = vunpack.c.h.b16 %v59
  %v249 = vunpack.c.l.b16 %v60
  %v250 = vunpack.c.h.b16 %v60
  %v251 = vunpack.c.l.b16 %v61
  %v252 = vunpack.c.h.b16 %v61
  %v253 = vunpack.c.l.b16 %v62
  %v254 = vunpack.c.h.b16 %v62
  %v255 = vunpack.c.l.b16 %v63
  %v256 = vunpack.c.h.b16 %v63
  %v257 = vunpack.c.l.b16 %v64
  %v258 = vunpack.c.h.b16 %v64
  %v259 = vunpack.c.l.b16 %v65
  %v260 = vunpack.c.h.b16 %v65
  %v261 = vunpack.c.l.b16 %v66
  %v262 = vunpack.c.h.b16 %v66
  %v263 = vunpack.c.l.b16 %v67
  %v264 = vunpack.c.h.b16 %v67
  %v265 = vunpack.c.l.b16 %v68
  %v266 = vunpack.c.h.b16 %v68
  %v267 = vunpack.c.l.b16 %v69
  %v268 = vunpack.c.h.b16 %v69
  %v269 = vunpack.c.l.b16 %v70
  %v270 = vunpack.c.h.b16 %v70
  %v271 = vunpack.c.l.b16 %v71
  %v272 = vunpack.c.h.b16 %v71
  %v273 = vunpack.c.l.b16 %v72
  %v274 = vunpack.c.h.b16 %v72
  %v275 = vunpack.c.l.b16 %v73
  %v276 = vunpack.c.h.b16 %v73
  %v277 = vunpack.c.l.b16 %v74
  %v278 = vunpack.c.h.b16 %v74
  %v279 = vunpack.c.l.b16 %v75
  %v280 = vunpack.c.h.b16 %v75
  %v281 = vunpack.c.l.b16 %v76
  %v282 = vunpack.c.h.b16 %v76
  %v283 = vunpack.c.l.b16 %v77
  %v284 = vunpack.c.h.b16 %v77
  %v285 = vunpack.c.l.b16 %v78
  %v286 = vunpack.c.h.b16 %v78
  %v287 = vunpack.c.l.b16 %v79
  %v288 = vunpack.c.h.b16 %v79
  %v289 = vunpack.c.l.b16 %v80
  %v290 = vunpack.c.h.b16 %v80
  %v291 = vunpack.c.l.b16 %v81
  %v292 = vunpack.c.h.b16 %v81
  %v293 = vunpack.c.l.b16 %v82
  %v294 = vunpack.c.h.b16 %v82
  %v295 = vunpack.c.l.b16 %v83
  %v296 = vunpack.c.h.b16 %v83
  %v297 = vunpack.c.l.b16 %v84
  %v298 = vunpack.c.h.b16 %v84
  %v299 = vunpack.c.l.b16 %v85
  %v300 = vunpack.c.h.b16 %v85
  %v301 = vunpack.c.l.b16 %v86
  %v302 = vunpack.c.h.b16 %v86
  %v303 = vunpack.c.l.b16 %v87
  %v304 = vunpack.c.h.b16 %v87
  %v305 = vunpack.c.l.b16 %v88
  %v306 = vunpack.c.h.b16 %v88
  %v307 = vunpack.c.l.b16 %v89
  %v308 = vunpack.c.h.b16 %v89
  %v309 = vunpack.c.l.b16 %v90
  %v310 = vunpack.c.h.b16 %v90
  %v311 = vunpack.c.l.b16 %v91
  %v312 = vunpack.c.h.b16 %v91
  %v313 = vunpack.c.l.b16 %v92
  %v314 = vunpack.c.h.b16 %v92
  %v315 = vunpack.c.l.b16 %v93
  %v316 = vunpack.c.h.b16 %v93
  %v317 = vunpack.c.l.b16 %v94
  %v318 = vunpack.c.h.b16 %v94
  %v319 = vunpack.c.l.b16 %v95
  %v320 = vunpack.c.h.b16 %v95
  %v321 = vunpack.c.l.b16 %v96
  %v322 = vunpack.c.h.b16 %v96
  %v323 = vunpack.c.l.b16 %v97
  %v324 = vunpack.c.h.b16 %v97
  %v325 = vunpack.c.l.b16 %v98
  %v326 = vunpack.c.h.b16 %v98
  %v327 = vunpack.c.l.b16 %v99
  %v328 = vunpack.c.h.b16 %v99
  %v329 = vunpack.c.l.b16 %v100
  %v330 = vunpack.c.h.b16 %v100
  %v331 = vunpack.c.l.b16 %v101
  %v332 = vunpack.c.h.b16 %v101
  %v333 = vunpack.c.l.b16 %v102
  %v334 = vunpack.c.h.b16 %v102
  %v335 = vpack.c.b16 %v209, %v207
  %v336 = vpack.c.b16 %v210, %v208
  %v337 = vpack.c.b16 %v213, %v211
  %v338 = vpack.c.b16 %v214, %v212
  %v339 = vpack.c.b16 %v217, %v215
  %v340 = vpack.c.b16 %v218, %v216
  %v341 = vpack.c.b16 %v221, %v219
  %v342 = vpack.c.b16 %v222, %v220
  %v343 = vpack.c.b16 %v225, %v223
  %v344 = vpack.c.b16 %v226, %v224
  %v345 = vpack.c.b16 %v229, %v227
  %v346 = vpack.c.b16 %v230, %v228
  %v347 = vpack.c.b16 %v233, %v231
  %v348 = vpack.c.b16 %v234, %v232
  %v349 = vpack.c.b16 %v237, %v235
  %v350 = vpack.c.b16 %v238, %v236
  %v351 = vpack.c.b16 %v241, %v239
  %v352 = vpack.c.b16 %v242, %v240
  %v353 = vpack.c.b16 %v245, %v243
  %v354 = vpack.c.b16 %v246, %v244
  %v355 = vpack.c.b16 %v249, %v247
  %v356 = vpack.c.b16 %v250, %v248
  %v357 = vpack.c.b16 %v253, %v251
  %v358 = vpack.c.b16 %v254, %v252
  %v359 = vpack.c.b16 %v257, %v255
  %v360 = vpack.c.b16 %v258, %v256
  %v361 = vpack.c.b16 %v261, %v259
  %v362 = vpack.c.b16 %v262, %v260
  %v363 = vpack.c.b16 %v265, %v263
  %v364 = vpack.c.b16 %v266, %v264
  %v365 = vpack.c.b16 %v269, %v267
  %v366 = vpack.c.b16 %v270, %v268
  %v367 = vpack.c.b16 %v273, %v271
  %v368 = vpack.c.b16 %v274, %v272
  %v369 = vpack.c.b16 %v277, %v275
  %v370 = vpack.c.b16 %v278, %v276
  %v371 = vpack.c.b16 %v281, %v279
  %v372 = vpack.c.b16 %v282, %v280
  %v373 = vpack.c.b16 %v285, %v283
  %v374 = vpack.c.b16 %v286, %v284
  %v375 = vpack.c.b16 %v289, %v287
  %v376 = vpack.c.b16 %v290, %v288
  %v377 = vpack.c.b16 %v293, %v291
  %v378 = vpack.c.b16 %v294, %v292
  %v379 = vpack.c.b16 %v297, %v295
  %v380 = vpack.c.b16 %v298, %v296
  %v381 = vpack.c.b16 %v301, %v299
  %v382 = vpack.c.b16 %v302, %v300
  %v383 = vpack.c.b16 %v305, %v303
  %v384 = vpack.c.b16 %v306, %v304
  %v385 = vpack.c.b16 %v309, %v307
  %v386 = vpack.c.b16 %v310, %v308
  %v387 = vpack.c.b16 %v313, %v311
  %v388 = vpack.c.b16 %v314, %v312
  %v389 = vpack.c.b16 %v317, %v315
  %v390 = vpack.c.b16 %v318, %v316
  %v391 = vpack.c.b16 %v321, %v319
  %v392 = vpack.c.b16 %v322, %v320
  %v393 = vpack.c.b16 %v325, %v323
  %v394 = vpack.c.b16 %v326, %v324
  %v395 = vpack.c.b16 %v329, %v327
  %v396 = vpack.c.b16 %v330, %v328
  %v397 = vpack.c.b16 %v333, %v331
  %v398 = vpack.c.b16 %v334, %v332
  %463 = vmatpush.bf16.msra.mxu0 %v349
  %464 = vmatpush.bf16.msra.mxu0 %v347
  %465 = vmatpush.bf16.msra.mxu0 %v345
  %466 = vmatpush.bf16.msra.mxu0 %v343
  %467 = vmatpush.bf16.msra.mxu0 %v341
  %468 = vmatpush.bf16.msra.mxu0 %v339
  %469 = vmatpush.bf16.msra.mxu0 %v337
  %470 = vmatpush.bf16.msra.mxu0 %v335
  %471 = vmatmul.bf16.gmra.mxu0 %v127
  %v472 = vpop.f32.mrf.mxu0
  %v473 = vadd.f32 0.0, %v472
  %v474 = vpop.f32.mrf.mxu0
  %v475 = vadd.f32 0.0, %v474
  %476 = vmatmul.bf16.gmra.mxu0 %v131
  %v477 = vpop.f32.mrf.mxu0
  %v478 = vadd.f32 0.0, %v477
  %v479 = vpop.f32.mrf.mxu0
  %v480 = vadd.f32 0.0, %v479
  %481 = vdwg.mxu0
  %482 = vmatpush.bf16.msra.mxu0 %v365
  %483 = vmatpush.bf16.msra.mxu0 %v363
  %484 = vmatpush.bf16.msra.mxu0 %v361
  %485 = vmatpush.bf16.msra.mxu0 %v359
  %486 = vmatpush.bf16.msra.mxu0 %v357
  %487 = vmatpush.bf16.msra.mxu0 %v355
  %488 = vmatpush.bf16.msra.mxu0 %v353
  %489 = vmatpush.bf16.msra.mxu0 %v351
  %490 = vmatmul.bf16.gmra.mxu0 %v128
  %v491 = vpop.f32.mrf.mxu0
  %v492 = vadd.f32 %v473, %v491
  %v493 = vpop.f32.mrf.mxu0
  %v494 = vadd.f32 %v475, %v493
  %495 = vmatmul.bf16.gmra.mxu0 %v132
  %v496 = vpop.f32.mrf.mxu0
  %v497 = vadd.f32 %v478, %v496
  %v498 = vpop.f32.mrf.mxu0
  %v499 = vadd.f32 %v480, %v498
  %500 = vdwg.mxu0
  %501 = vmatpush.bf16.msra.mxu0 %v381
  %502 = vmatpush.bf16.msra.mxu0 %v379
  %503 = vmatpush.bf16.msra.mxu0 %v377
  %504 = vmatpush.bf16.msra.mxu0 %v375
  %505 = vmatpush.bf16.msra.mxu0 %v373
  %506 = vmatpush.bf16.msra.mxu0 %v371
  %507 = vmatpush.bf16.msra.mxu0 %v369
  %508 = vmatpush.bf16.msra.mxu0 %v367
  %509 = vmatmul.bf16.gmra.mxu0 %v129
  %v510 = vpop.f32.mrf.mxu0
  %v511 = vadd.f32 %v492, %v510
  %v512 = vpop.f32.mrf.mxu0
  %v513 = vadd.f32 %v494, %v512
  %514 = vmatmul.bf16.gmra.mxu0 %v133
  %v515 = vpop.f32.mrf.mxu0
  %v516 = vadd.f32 %v497, %v515
  %v517 = vpop.f32.mrf.mxu0
  %v518 = vadd.f32 %v499, %v517
  %519 = vdwg.mxu0
  %520 = vmatpush.bf16.msra.mxu0 %v397
  %521 = vmatpush.bf16.msra.mxu0 %v395
  %522 = vmatpush.bf16.msra.mxu0 %v393
  %523 = vmatpush.bf16.msra.mxu0 %v391
  %524 = vmatpush.bf16.msra.mxu0 %v389
  %525 = vmatpush.bf16.msra.mxu0 %v387
  %526 = vmatpush.bf16.msra.mxu0 %v385
  %527 = vmatpush.bf16.msra.mxu0 %v383
  %528 = vmatmul.bf16.gmra.mxu0 %v130
  %v529 = vpop.f32.mrf.mxu0
  %v530 = vadd.f32 %v511, %v529
  %v531 = vpop.f32.mrf.mxu0
  %v532 = vadd.f32 %v513, %v531
  %533 = vmatmul.bf16.gmra.mxu0 %v134
  %v534 = vpop.f32.mrf.mxu0
  %v535 = vadd.f32 %v516, %v534
  %v536 = vpop.f32.mrf.mxu0
  %v537 = vadd.f32 %v518, %v536
  %538 = vdwg.mxu0
  %539 = vmatpush.bf16.msra.mxu0 %v350
  %540 = vmatpush.bf16.msra.mxu0 %v348
  %541 = vmatpush.bf16.msra.mxu0 %v346
  %542 = vmatpush.bf16.msra.mxu0 %v344
  %543 = vmatpush.bf16.msra.mxu0 %v342
  %544 = vmatpush.bf16.msra.mxu0 %v340
  %545 = vmatpush.bf16.msra.mxu0 %v338
  %546 = vmatpush.bf16.msra.mxu0 %v336
  %547 = vmatmul.bf16.gmra.mxu0 %v127
  %v548 = vpop.f32.mrf.mxu0
  %v549 = vadd.f32 0.0, %v548
  %v550 = vpop.f32.mrf.mxu0
  %v551 = vadd.f32 0.0, %v550
  %552 = vmatmul.bf16.gmra.mxu0 %v131
  %v553 = vpop.f32.mrf.mxu0
  %v554 = vadd.f32 0.0, %v553
  %v555 = vpop.f32.mrf.mxu0
  %v556 = vadd.f32 0.0, %v555
  %557 = vdwg.mxu0
  %558 = vmatpush.bf16.msra.mxu0 %v366
  %559 = vmatpush.bf16.msra.mxu0 %v364
  %560 = vmatpush.bf16.msra.mxu0 %v362
  %561 = vmatpush.bf16.msra.mxu0 %v360
  %562 = vmatpush.bf16.msra.mxu0 %v358
  %563 = vmatpush.bf16.msra.mxu0 %v356
  %564 = vmatpush.bf16.msra.mxu0 %v354
  %565 = vmatpush.bf16.msra.mxu0 %v352
  %566 = vmatmul.bf16.gmra.mxu0 %v128
  %v567 = vpop.f32.mrf.mxu0
  %v568 = vadd.f32 %v549, %v567
  %v569 = vpop.f32.mrf.mxu0
  %v570 = vadd.f32 %v551, %v569
  %571 = vmatmul.bf16.gmra.mxu0 %v132
  %v572 = vpop.f32.mrf.mxu0
  %v573 = vadd.f32 %v554, %v572
  %v574 = vpop.f32.mrf.mxu0
  %v575 = vadd.f32 %v556, %v574
  %576 = vdwg.mxu0
  %577 = vmatpush.bf16.msra.mxu0 %v382
  %578 = vmatpush.bf16.msra.mxu0 %v380
  %579 = vmatpush.bf16.msra.mxu0 %v378
  %580 = vmatpush.bf16.msra.mxu0 %v376
  %581 = vmatpush.bf16.msra.mxu0 %v374
  %582 = vmatpush.bf16.msra.mxu0 %v372
  %583 = vmatpush.bf16.msra.mxu0 %v370
  %584 = vmatpush.bf16.msra.mxu0 %v368
  %585 = vmatmul.bf16.gmra.mxu0 %v129
  %v586 = vpop.f32.mrf.mxu0
  %v587 = vadd.f32 %v568, %v586
  %v588 = vpop.f32.mrf.mxu0
  %v589 = vadd.f32 %v570, %v588
  %590 = vmatmul.bf16.gmra.mxu0 %v133
  %v591 = vpop.f32.mrf.mxu0
  %v592 = vadd.f32 %v573, %v591
  %v593 = vpop.f32.mrf.mxu0
  %v594 = vadd.f32 %v575, %v593
  %595 = vdwg.mxu0
  %596 = vmatpush.bf16.msra.mxu0 %v398
  %597 = vmatpush.bf16.msra.mxu0 %v396
  %598 = vmatpush.bf16.msra.mxu0 %v394
  %599 = vmatpush.bf16.msra.mxu0 %v392
  %600 = vmatpush.bf16.msra.mxu0 %v390
  %601 = vmatpush.bf16.msra.mxu0 %v388
  %602 = vmatpush.bf16.msra.mxu0 %v386
  %603 = vmatpush.bf16.msra.mxu0 %v384
  %604 = vmatmul.bf16.gmra.mxu0 %v130
  %v605 = vpop.f32.mrf.mxu0
  %v606 = vadd.f32 %v587, %v605
  %v607 = vpop.f32.mrf.mxu0
  %v608 = vadd.f32 %v589, %v607
  %609 = vmatmul.bf16.gmra.mxu0 %v134
  %v610 = vpop.f32.mrf.mxu0
  %v611 = vadd.f32 %v592, %v610
  %v612 = vpop.f32.mrf.mxu0
  %v613 = vadd.f32 %v594, %v612
  %614 = vdwg.mxu0
  %v615 = vadd.f32 %v23, %v530
  %v616 = vadd.f32 %v24, %v606
  %v617 = vadd.f32 %v25, %v532
  %v618 = vadd.f32 %v26, %v608
  %v619 = vadd.f32 %v27, %v535
  %v620 = vadd.f32 %v28, %v611
  %v621 = vadd.f32 %v29, %v537
  %v622 = vadd.f32 %v30, %v613
  %623 = vst [vmem:[%s2] sm:$0xff] %v615
  %624 = vst [vmem:[%s2 + $0x8] sm:$0xff] %v616
  %625 = vst [vmem:[%s2 + $0x10] sm:$0xff] %v617
  %626 = vst [vmem:[%s2 + $0x18] sm:$0xff] %v618
  %627 = vst [vmem:[%s2 + $0x20] sm:$0xff] %v619
  %628 = vst [vmem:[%s2 + $0x28] sm:$0xff] %v620
  %629 = vst [vmem:[%s2 + $0x30] sm:$0xff] %v621
  %630 = vst [vmem:[%s2 + $0x38] sm:$0xff] %v622
  // Predicated region
  $region14: #{jvp__.64} parent=0 // pred_check
    _
  $region15: #{jvp__.64} parent=0 // pred_check_branch
    %632 = sbr.rel (0) target = $region17
  $region16: #{jvp__.64} parent=0 // pred_region
    _
  $region17: #{jvp__.64} parent=0 // pred_fallthru
    _
  // Predicated region
  $region18: #{jvp__.64} parent=0 // pred_check
    _
  $region19: #{jvp__.64} parent=0 // pred_check_branch
    %634 = sbr.rel (0) target = $region21
  $region20: #{jvp__.64} parent=0 // pred_region
    _
  $region21: #{jvp__.64} parent=0 // pred_fallthru
    _

// kernel: jvp__.65
$region0: #{jvp__.65}
  #allocation0 [shape = 'u32[]', space=smem, size = 0x4, offset = 0x4, fixed_abs, tag = 'smem constant byte address 0x4 - core index']
  #allocation1 [shape = 'u32[72,128]{1,0:T(1,128)}', space=vmem, size = 0x9000, scoped, tag = 'internal scratch']
  %s0 = inlined_call_operand.vmem [shape: bf16[32,2304], index: 0, kind: input, shape index: {}]
  %s1 = inlined_call_operand.vmem [shape: bf16[2304,256], index: 1, kind: input, shape index: {}]
  %s2 = inlined_call_operand.vmem [shape: f32[32,256], index: 2, kind: output, shape index: {}]
  %s3 = sld [smem:[#allocation0]]
  $region83: #{jvp__.65} parent=0
    _
  %s5 = ssub.s32 1, %s3
  %s6 = scalar_select 0, %s5, %s3
  $region1: #{jvp__.65} parent=0
    #allocation2 [shape = 'u8[32768]{0}', space=vmem, size = 0x8000, scoped, tag = 'input window, operand 0']
    loop: start=0, step=1, limit=11
    $region2: #{jvp__.65} parent=1 // loop_pre_header
      _
    $region3: #{jvp__.65} parent=1 // loop_header
      %s8 = sphi 0, %s12
      %p9 = scmp.ge.s32.totalorder %s8, 11
      %s15 = sphi 0, %s34
      %s16 = sphi 0, %s30
      %s17 = sphi 0, %s26
      %s18 = sphi 0, %s15
      %s19 = sphi 0, %s16
      %s20 = sphi 0, %s17
      %s21 = sphi 0, %s18
      %s22 = sphi 0, %s19
      %s23 = sphi 0, %s20
      %s39 = sphi 0, %s41
      %s42 = sphi 0, %s39
      %s43 = sphi 0, %s42
      %s59 = sphi 0, %s43
      %s67 = sphi 0, %s69
      %s70 = sphi 0, %s67
      %s71 = sphi 0, %s70
      %s87 = sphi 0, %s71
      %s95 = sphi 0, %s97
      %s98 = sphi 0, %s95
      %s99 = sphi 0, %s98
      %s115 = sphi 0, %s99
    $region4: #{jvp__.65} parent=1 // loop_header_branch
      %11 = sbr.rel (%p9) target = $region8
    $region5: #{jvp__.65} parent=1 // loop_body
      %s13 = ssub.s32 %s8, 1
      %s14 = ssub.s32 %s8, 2
      %s24 = sadd.s32 1, %s17
      %p25 = scmp.ge.s32.totalorder %s24, 9
      %s26 = scalar_select %p25, 0, %s24
      %s27 = sadd.s32 1, %s16
      %s28 = scalar_select %p25, %s27, %s16
      %p29 = scmp.ge.s32.totalorder %s28, 1
      %s30 = scalar_select %p29, 0, %s28
      %s31 = sadd.s32 1, %s15
      %s32 = scalar_select %p29, %s31, %s15
      %p33 = scmp.ge.s32.totalorder %s32, 1
      %s34 = scalar_select %p33, 0, %s32
      %s35 = ssub.s32 %s15, %s34
      %s36 = ssub.s32 %s17, %s26
      %s37 = sor.u32 %s35, %s36
      %p38 = scmp.eq.s32.totalorder %s37, 0
      %s40 = sadd.s32 %s39, 1
      %s41 = scalar_select %p38, %s39, %s40
      %p44 = pneg %p38
      %p45 = scmp.eq.s32.totalorder %s8, 8
      %p46 = por %p44, %p45
      %p47 = scmp.ne.s32.totalorder %s39, %s42
      %p48 = scmp.eq.s32.totalorder %s8, 0
      %p49 = por %p47, %p48
      %p50 = scmp.ne.s32.totalorder %s39, %s42
      %p51 = scmp.eq.s32.totalorder %s13, 8
      %p52 = por %p50, %p51
      %p53 = scmp.ne.s32.totalorder %s42, %s43
      %p54 = scmp.eq.s32.totalorder %s13, 0
      %p55 = por %p53, %p54
      %p56 = scmp.ne.s32.totalorder %s42, %s43
      %p57 = scmp.eq.s32.totalorder %s14, 8
      %p58 = por %p56, %p57
      %p60 = scmp.ne.s32.totalorder %s43, %s59
      %p61 = scmp.eq.s32.totalorder %s14, 0
      %p62 = por %p60, %p61
      %s63 = ssub.s32 %s17, %s26
      %s64 = ssub.s32 %s16, %s30
      %s65 = sor.u32 %s63, %s64
      %p66 = scmp.eq.s32.totalorder %s65, 0
      %s68 = sadd.s32 %s67, 1
      %s69 = scalar_select %p66, %s67, %s68
      %p72 = pneg %p66
      %p73 = scmp.eq.s32.totalorder %s8, 8
      %p74 = por %p72, %p73
      %p75 = scmp.ne.s32.totalorder %s67, %s70
      %p76 = scmp.eq.s32.totalorder %s8, 0
      %p77 = por %p75, %p76
      %p78 = scmp.ne.s32.totalorder %s67, %s70
      %p79 = scmp.eq.s32.totalorder %s13, 8
      %p80 = por %p78, %p79
      %p81 = scmp.ne.s32.totalorder %s70, %s71
      %p82 = scmp.eq.s32.totalorder %s13, 0
      %p83 = por %p81, %p82
      %p84 = scmp.ne.s32.totalorder %s70, %s71
      %p85 = scmp.eq.s32.totalorder %s14, 8
      %p86 = por %p84, %p85
      %p88 = scmp.ne.s32.totalorder %s71, %s87
      %p89 = scmp.eq.s32.totalorder %s14, 0
      %p90 = por %p88, %p89
      %s91 = ssub.s32 %s15, %s34
      %s92 = ssub.s32 %s16, %s30
      %s93 = sor.u32 %s91, %s92
      %p94 = scmp.eq.s32.totalorder %s93, 0
      %s96 = sadd.s32 %s95, 1
      %s97 = scalar_select %p94, %s95, %s96
      %p100 = pneg %p94
      %p101 = scmp.eq.s32.totalorder %s8, 8
      %p102 = por %p100, %p101
      %p103 = scmp.ne.s32.totalorder %s95, %s98
      %p104 = scmp.eq.s32.totalorder %s8, 0
      %p105 = por %p103, %p104
      %p106 = scmp.ne.s32.totalorder %s95, %s98
      %p107 = scmp.eq.s32.totalorder %s13, 8
      %p108 = por %p106, %p107
      %p109 = scmp.ne.s32.totalorder %s98, %s99
      %p110 = scmp.eq.s32.totalorder %s13, 0
      %p111 = por %p109, %p110
      %p112 = scmp.ne.s32.totalorder %s98, %s99
      %p113 = scmp.eq.s32.totalorder %s14, 8
      %p114 = por %p112, %p113
      %p116 = scmp.ne.s32.totalorder %s99, %s115
      %p117 = scmp.eq.s32.totalorder %s14, 0
      %p118 = por %p116, %p117
      %p119 = scmp.le.s32.totalorder 1, %s8
      %p120 = scmp.lt.s32.totalorder %s8, 10
      %p121 = pnand %p119, %p120
      %p122 = pneg %p121
      // Predicated region
      $region9: #{jvp__.65} parent=5 // pred_check
        _
      $region10: #{jvp__.65} parent=5 // pred_check_branch
        %124 = sbr.rel (%p121) target = $region12
      $region11: #{jvp__.65} parent=5 // pred_region
        %s125 = ssub.s32 %s8, 1
      $region12: #{jvp__.65} parent=5 // pred_fallthru
        _
      %p126 = scmp.lt.s32.totalorder %s8, 9
      // Predicated region
      $region13: #{jvp__.65} parent=5 // pred_check
        %p127 = pneg %p126
      $region14: #{jvp__.65} parent=5 // pred_check_branch
        %129 = sbr.rel (%p127) target = $region16
      $region15: #{jvp__.65} parent=5 // pred_region
        // Predicated region
        $region17: #{jvp__.65} parent=15 // pred_check
          %p130 = pneg %p49
        $region18: #{jvp__.65} parent=15 // pred_check_branch
          %132 = sbr.rel (%p130) target = $region20
        $region19: #{jvp__.65} parent=15 // pred_region
          %s133 = sand.u32 %s39, 1
          %s134 = sand.u32 %s39, 1
          %s135 = smul.addr %s134, 32
          %s136 = scalar_lea.vmem [#allocation2], %s135
          %s137 = smul.u32 4, %s15
          %s138 = smul.u32 2, %s17
          %s139 = smul.addr %s137, 18
          %s140 = sadd.s32 %s138, %s139
          %s141 = smul.addr %s140, 4
          %s142 = scalar_lea.vmem %s0, %s141
          // Predicated region
          $region21: #{jvp__.65} parent=19 // pred_check
            _
          $region22: #{jvp__.65} parent=19 // pred_check_branch
            %144 = sbr.rel (0) target = $region24
          $region23: #{jvp__.65} parent=19 // pred_region
            // Predicated region
            $region25: #{jvp__.65} parent=23 // pred_check
              _
            $region26: #{jvp__.65} parent=23 // pred_check_branch
              %146 = sbr.rel (0) target = $region28
            $region27: #{jvp__.65} parent=23 // pred_region
              // Predicated region
              $region40: #{jvp__.65} parent=27 // pred_check
                _
              $region41: #{jvp__.65} parent=27 // pred_check_branch
                %168 = sbr.rel (0) target = $region43
              $region42: #{jvp__.65} parent=27 // pred_region
                loop: start=0, step=1, limit=1
                $region44: #{jvp__.65} parent=42 // loop_pre_header
                  _
                $region45: #{jvp__.65} parent=42 // loop_header
                  %s170 = sphi 0, %s174
                  %p171 = scmp.ge.s32.totalorder %s170, 1
                  %s175 = sphi %s142, %s142
                  %s176 = sphi %s136, %s136
                $region46: #{jvp__.65} parent=42 // loop_header_branch
                  %173 = sbr.rel (%p171) target = $region50
                $region47: #{jvp__.65} parent=42 // loop_body
                  %v177 = vld [vmem:[%s175] sm:$0xff]
                  %178 = vst [vmem:[%s176] sm:$0xff] %v177
                  %v179 = vld [vmem:[%s175 + $0x48] sm:$0xff]
                  %180 = vst [vmem:[%s176 + $0x8] sm:$0xff] %v179
                  %v181 = vld [vmem:[%s175 + $0x90] sm:$0xff]
                  %182 = vst [vmem:[%s176 + $0x10] sm:$0xff] %v181
                  %v183 = vld [vmem:[%s175 + $0xd8] sm:$0xff]
                  %184 = vst [vmem:[%s176 + $0x18] sm:$0xff] %v183
                $region48: #{jvp__.65} parent=42 // loop_footer
                  %s174 = sadd.s32 1, %s170
                $region49: #{jvp__.65} parent=42 // loop_footer_branch
                  %169 = sbr.rel target = $region45
                $region50: #{jvp__.65} parent=42 // loop_exit
                  _
              $region43: #{jvp__.65} parent=27 // pred_fallthru
                _
              // Predicated region
              $region51: #{jvp__.65} parent=27 // pred_check
                _
              $region52: #{jvp__.65} parent=27 // pred_check_branch
                %186 = sbr.rel target = $region54
              $region53: #{jvp__.65} parent=27 // pred_region
                _
              $region54: #{jvp__.65} parent=27 // pred_fallthru
                _
            $region28: #{jvp__.65} parent=23 // pred_fallthru
              _
            // Predicated region
            $region29: #{jvp__.65} parent=23 // pred_check
              _
            $region30: #{jvp__.65} parent=23 // pred_check_branch
              %148 = sbr.rel target = $region32
            $region31: #{jvp__.65} parent=23 // pred_region
              %s150 = ssub.s32 256, 1
              loop: start=0, step=1, limit=1
              $region33: #{jvp__.65} parent=31 // loop_pre_header
                _
              $region34: #{jvp__.65} parent=31 // loop_header
                %s152 = sphi 0, %s156
                %p153 = scmp.ge.s32.totalorder %s152, 1
                %s157 = sphi %s142, %s142
                %s158 = sphi %s136, %s136
              $region35: #{jvp__.65} parent=31 // loop_header_branch
                %155 = sbr.rel (%p153) target = $region39
              $region36: #{jvp__.65} parent=31 // loop_body
                %v159 = vld [vmem:[%s157] sm:%s150]
                %160 = vst [vmem:[%s158] sm:%s150] %v159
                %v161 = vld [vmem:[%s157 + $0x48] sm:%s150]
                %162 = vst [vmem:[%s158 + $0x8] sm:%s150] %v161
                %v163 = vld [vmem:[%s157 + $0x90] sm:%s150]
                %164 = vst [vmem:[%s158 + $0x10] sm:%s150] %v163
                %v165 = vld [vmem:[%s157 + $0xd8] sm:%s150]
                %166 = vst [vmem:[%s158 + $0x18] sm:%s150] %v165
              $region37: #{jvp__.65} parent=31 // loop_footer
                %s156 = sadd.s32 1, %s152
              $region38: #{jvp__.65} parent=31 // loop_footer_branch
                %151 = sbr.rel target = $region34
              $region39: #{jvp__.65} parent=31 // loop_exit
                _
            $region32: #{jvp__.65} parent=23 // pred_fallthru
              _
          $region24: #{jvp__.65} parent=19 // pred_fallthru
            _
          %187 = vnop
        $region20: #{jvp__.65} parent=15 // pred_fallthru
          _
        // Predicated region
        $region55: #{jvp__.65} parent=15 // pred_check
          %p188 = pneg %p77
        $region56: #{jvp__.65} parent=15 // pred_check_branch
          %190 = sbr.rel (%p188) target = $region58
        $region57: #{jvp__.65} parent=15 // pred_region
          %s191 = smul.u32 32, %s17
          %s192 = smul.u32 2, %s16
          %p193 = scmp.lt.s32.totalorder %s191, 287
          %s194 = scalar_select %p193, %s191, 287
          %p195 = scmp.lt.s32.totalorder %s192, 1
          %s196 = scalar_select %p195, %s192, 1
          %s197 = smul.addr %s194, 2
          %s198 = sadd.s32 %s196, %s197
          %s199 = smul.addr %s198, 4
          %s200 = scalar_lea.vmem %s1, %s199
          %s201 = smul.u32 32, %s17
          %s202 = smul.u32 2, %s16
        $region58: #{jvp__.65} parent=15 // pred_fallthru
          _
      $region16: #{jvp__.65} parent=5 // pred_fallthru
        _
      %p203 = scmp.le.s32.totalorder 1, %s8
      %p204 = scmp.lt.s32.totalorder %s8, 10
      %p205 = pnand %p203, %p204
      %p206 = pneg %p205
      // Predicated region
      $region59: #{jvp__.65} parent=5 // pred_check
        _
      $region60: #{jvp__.65} parent=5 // pred_check_branch
        %208 = sbr.rel (%p205) target = $region62
      $region61: #{jvp__.65} parent=5 // pred_region
        %s209 = ssub.s32 %s8, 1
        %s210 = sand.u32 %s42, 1
        %s211 = sand.u32 %s42, 1
        %s212 = smul.addr %s211, 32
        %s213 = scalar_lea.vmem [#allocation2], %s212
        // Predicated region
        $region63: #{jvp__.65} parent=61 // pred_check
          %p214 = pneg %p55
        $region64: #{jvp__.65} parent=61 // pred_check_branch
          %216 = sbr.rel (%p214) target = $region66
        $region65: #{jvp__.65} parent=61 // pred_region
          _
        $region66: #{jvp__.65} parent=61 // pred_fallthru
          _
        %s217 = sand.u32 %s42, 1
        %s218 = sand.u32 %s42, 1
        %s219 = smul.addr %s218, 32
        %s220 = scalar_lea.vmem [#allocation2], %s219
        %p221 = pneg %p55
        %p222 = pneg %p52
        %s223 = smul.u32 32, %s20
        %s224 = smul.u32 2, %s19
        %p225 = scmp.lt.s32.totalorder %s223, 287
        %s226 = scalar_select %p225, %s223, 287
        %p227 = scmp.lt.s32.totalorder %s224, 1
        %s228 = scalar_select %p227, %s224, 1
        %s229 = smul.addr %s226, 2
        %s230 = sadd.s32 %s228, %s229
        %s231 = smul.addr %s230, 4
        %s232 = scalar_lea.vmem %s1, %s231
        %p233 = pneg %p83
        %p234 = pneg %p80
        %p235 = pneg %p111
        %p236 = pneg %p108
        %s237 = smul.u32 4, %s18
        %s238 = smul.u32 2, %s19
        %p239 = scmp.lt.s32.totalorder %s237, 3
        %s240 = scalar_select %p239, %s237, 3
        %p241 = scmp.lt.s32.totalorder %s238, 1
        %s242 = scalar_select %p241, %s238, 1
        %s243 = smul.addr %s240, 2
        %s244 = sadd.s32 %s242, %s243
        %s245 = smul.addr %s244, 8
        %s246 = scalar_lea.vmem %s2, %s245
        %s247 = smul.u32 4, %s18
        %s248 = smul.u32 2, %s20
        %s249 = smul.u32 32, %s20
        %s250 = smul.u32 2, %s19
        %p251 = scmp.lt.s32.totalorder %s249, 287
        %s252 = scalar_select %p251, %s249, 287
        %p253 = scmp.lt.s32.totalorder %s250, 1
        %s254 = scalar_select %p253, %s250, 1
        %s255 = smul.addr %s252, 2
        %s256 = sadd.s32 %s254, %s255
        %s257 = smul.addr %s256, 4
        %s258 = scalar_lea.vmem %s1, %s257
        %s259 = smul.u32 32, %s20
        %s260 = smul.u32 2, %s19
        %s261 = smul.u32 4, %s18
        %s262 = smul.u32 2, %s19
        %p263 = scmp.lt.s32.totalorder %s261, 3
        %s264 = scalar_select %p263, %s261, 3
        %p265 = scmp.lt.s32.totalorder %s262, 1
        %s266 = scalar_select %p265, %s262, 1
        %s267 = smul.addr %s264, 2
        %s268 = sadd.s32 %s266, %s267
        %s269 = smul.addr %s268, 8
        %s270 = scalar_lea.vmem %s2, %s269
        %s271 = smul.u32 4, %s18
        %s272 = smul.u32 2, %s19
        %p273 = scmp.eq.s32.totalorder %s20, 0
        // Predicated region
        $region67: #{jvp__.65} parent=61 // pred_check
          %p274 = pneg %p273
        $region68: #{jvp__.65} parent=61 // pred_check_branch
          %276 = sbr.rel (%p274) target = $region70
        $region69: #{jvp__.65} parent=61 // pred_region
          %277 = vst [vmem:[%s270] sm:$0xff] 0.0
          %278 = vst [vmem:[%s270 + $0x8] sm:$0xff] 0.0
          %279 = vst [vmem:[%s270 + $0x10] sm:$0xff] 0.0
          %280 = vst [vmem:[%s270 + $0x18] sm:$0xff] 0.0
          %281 = vst [vmem:[%s270 + $0x20] sm:$0xff] 0.0
          %282 = vst [vmem:[%s270 + $0x28] sm:$0xff] 0.0
          %283 = vst [vmem:[%s270 + $0x30] sm:$0xff] 0.0
          %284 = vst [vmem:[%s270 + $0x38] sm:$0xff] 0.0
        $region70: #{jvp__.65} parent=61 // pred_fallthru
          _
        %v285 = vld [vmem:[%s270] sm:$0xff]
        %v286 = vld [vmem:[%s270 + $0x8] sm:$0xff]
        %v287 = vld [vmem:[%s270 + $0x10] sm:$0xff]
        %v288 = vld [vmem:[%s270 + $0x18] sm:$0xff]
        %v289 = vld [vmem:[%s270 + $0x20] sm:$0xff]
        %v290 = vld [vmem:[%s270 + $0x28] sm:$0xff]
        %v291 = vld [vmem:[%s270 + $0x30] sm:$0xff]
        %v292 = vld [vmem:[%s270 + $0x38] sm:$0xff]
        %v293 = vld [vmem:[%s213] sm:$0xff]
        %v294 = vld [vmem:[%s213 + $0x8] sm:$0xff]
        %v295 = vld [vmem:[%s213 + $0x10] sm:$0xff]
        %v296 = vld [vmem:[%s213 + $0x18] sm:$0xff]
        %v297 = vld [vmem:[%s258] sm:$0xff]
        %v298 = vld [vmem:[%s258 + $0x8] sm:$0xff]
        %v299 = vld [vmem:[%s258 + $0x10] sm:$0xff]
        %v300 = vld [vmem:[%s258 + $0x18] sm:$0xff]
        %v301 = vld [vmem:[%s258 + $0x20] sm:$0xff]
        %v302 = vld [vmem:[%s258 + $0x28] sm:$0xff]
        %v303 = vld [vmem:[%s258 + $0x30] sm:$0xff]
        %v304 = vld [vmem:[%s258 + $0x38] sm:$0xff]
        %v305 = vld [vmem:[%s258 + $0x40] sm:$0xff]
        %v306 = vld [vmem:[%s258 + $0x48] sm:$0xff]
        %v307 = vld [vmem:[%s258 + $0x50] sm:$0xff]
        %v308 = vld [vmem:[%s258 + $0x58] sm:$0xff]
        %v309 = vld [vmem:[%s258 + $0x60] sm:$0xff]
        %v310 = vld [vmem:[%s258 + $0x68] sm:$0xff]
        %v311 = vld [vmem:[%s258 + $0x70] sm:$0xff]
        %v312 = vld [vmem:[%s258 + $0x78] sm:$0xff]
        %v313 = vld [vmem:[%s258 + $0x80] sm:$0xff]
        %v314 = vld [vmem:[%s258 + $0x88] sm:$0xff]
        %v315 = vld [vmem:[%s258 + $0x90] sm:$0xff]
        %v316 = vld [vmem:[%s258 + $0x98] sm:$0xff]
        %v317 = vld [vmem:[%s258 + $0xa0] sm:$0xff]
        %v318 = vld [vmem:[%s258 + $0xa8] sm:$0xff]
        %v319 = vld [vmem:[%s258 + $0xb0] sm:$0xff]
        %v320 = vld [vmem:[%s258 + $0xb8] sm:$0xff]
        %v321 = vld [vmem:[%s258 + $0xc0] sm:$0xff]
        %v322 = vld [vmem:[%s258 + $0xc8] sm:$0xff]
        %v323 = vld [vmem:[%s258 + $0xd0] sm:$0xff]
        %v324 = vld [vmem:[%s258 + $0xd8] sm:$0xff]
        %v325 = vld [vmem:[%s258 + $0xe0] sm:$0xff]
        %v326 = vld [vmem:[%s258 + $0xe8] sm:$0xff]
        %v327 = vld [vmem:[%s258 + $0xf0] sm:$0xff]
        %v328 = vld [vmem:[%s258 + $0xf8] sm:$0xff]
        %v333 = vunpack.c.l.b16 %v293
        %v334 = vunpack.c.h.b16 %v293
        %v335 = vunpack.c.l.b16 %v294
        %v336 = vunpack.c.h.b16 %v294
        %v337 = vunpack.c.l.b16 %v295
        %v338 = vunpack.c.h.b16 %v295
        %v339 = vunpack.c.l.b16 %v296
        %v340 = vunpack.c.h.b16 %v296
        %v341 = vpack.c.b16 %v335, %v333
        %v342 = vpack.c.b16 %v336, %v334
        %v343 = vpack.c.b16 %v339, %v337
        %v344 = vpack.c.b16 %v340, %v338
        %v381 = vunpack.c.l.b16 %v297
        %v382 = vunpack.c.h.b16 %v297
        %v383 = vunpack.c.l.b16 %v298
        %v384 = vunpack.c.h.b16 %v298
        %v385 = vunpack.c.l.b16 %v299
        %v386 = vunpack.c.h.b16 %v299
        %v387 = vunpack.c.l.b16 %v300
        %v388 = vunpack.c.h.b16 %v300
        %v389 = vunpack.c.l.b16 %v301
        %v390 = vunpack.c.h.b16 %v301
        %v391 = vunpack.c.l.b16 %v302
        %v392 = vunpack.c.h.b16 %v302
        %v393 = vunpack.c.l.b16 %v303
        %v394 = vunpack.c.h.b16 %v303
        %v395 = vunpack.c.l.b16 %v304
        %v396 = vunpack.c.h.b16 %v304
        %v397 = vunpack.c.l.b16 %v305
        %v398 = vunpack.c.h.b16 %v305
        %v399 = vunpack.c.l.b16 %v306
        %v400 = vunpack.c.h.b16 %v306
        %v401 = vunpack.c.l.b16 %v307
        %v402 = vunpack.c.h.b16 %v307
        %v403 = vunpack.c.l.b16 %v308
        %v404 = vunpack.c.h.b16 %v308
        %v405 = vunpack.c.l.b16 %v309
        %v406 = vunpack.c.h.b16 %v309
        %v407 = vunpack.c.l.b16 %v310
        %v408 = vunpack.c.h.b16 %v310
        %v409 = vunpack.c.l.b16 %v311
        %v410 = vunpack.c.h.b16 %v311
        %v411 = vunpack.c.l.b16 %v312
        %v412 = vunpack.c.h.b16 %v312
        %v413 = vunpack.c.l.b16 %v313
        %v414 = vunpack.c.h.b16 %v313
        %v415 = vunpack.c.l.b16 %v314
        %v416 = vunpack.c.h.b16 %v314
        %v417 = vunpack.c.l.b16 %v315
        %v418 = vunpack.c.h.b16 %v315
        %v419 = vunpack.c.l.b16 %v316
        %v420 = vunpack.c.h.b16 %v316
        %v421 = vunpack.c.l.b16 %v317
        %v422 = vunpack.c.h.b16 %v317
        %v423 = vunpack.c.l.b16 %v318
        %v424 = vunpack.c.h.b16 %v318
        %v425 = vunpack.c.l.b16 %v319
        %v426 = vunpack.c.h.b16 %v319
        %v427 = vunpack.c.l.b16 %v320
        %v428 = vunpack.c.h.b16 %v320
        %v429 = vunpack.c.l.b16 %v321
        %v430 = vunpack.c.h.b16 %v321
        %v431 = vunpack.c.l.b16 %v322
        %v432 = vunpack.c.h.b16 %v322
        %v433 = vunpack.c.l.b16 %v323
        %v434 = vunpack.c.h.b16 %v323
        %v435 = vunpack.c.l.b16 %v324
        %v436 = vunpack.c.h.b16 %v324
        %v437 = vunpack.c.l.b16 %v325
        %v438 = vunpack.c.h.b16 %v325
        %v439 = vunpack.c.l.b16 %v326
        %v440 = vunpack.c.h.b16 %v326
        %v441 = vunpack.c.l.b16 %v327
        %v442 = vunpack.c.h.b16 %v327
        %v443 = vunpack.c.l.b16 %v328
        %v444 = vunpack.c.h.b16 %v328
        %v445 = vpack.c.b16 %v383, %v381
        %v446 = vpack.c.b16 %v384, %v382
        %v447 = vpack.c.b16 %v387, %v385
        %v448 = vpack.c.b16 %v388, %v386
        %v449 = vpack.c.b16 %v391, %v389
        %v450 = vpack.c.b16 %v392, %v390
        %v451 = vpack.c.b16 %v395, %v393
        %v452 = vpack.c.b16 %v396, %v394
        %v453 = vpack.c.b16 %v399, %v397
        %v454 = vpack.c.b16 %v400, %v398
        %v455 = vpack.c.b16 %v403, %v401
        %v456 = vpack.c.b16 %v404, %v402
        %v457 = vpack.c.b16 %v407, %v405
        %v458 = vpack.c.b16 %v408, %v406
        %v459 = vpack.c.b16 %v411, %v409
        %v460 = vpack.c.b16 %v412, %v410
        %v461 = vpack.c.b16 %v415, %v413
        %v462 = vpack.c.b16 %v416, %v414
        %v463 = vpack.c.b16 %v419, %v417
        %v464 = vpack.c.b16 %v420, %v418
        %v465 = vpack.c.b16 %v423, %v421
        %v466 = vpack.c.b16 %v424, %v422
        %v467 = vpack.c.b16 %v427, %v425
        %v468 = vpack.c.b16 %v428, %v426
        %v469 = vpack.c.b16 %v431, %v429
        %v470 = vpack.c.b16 %v432, %v430
        %v471 = vpack.c.b16 %v435, %v433
        %v472 = vpack.c.b16 %v436, %v434
        %v473 = vpack.c.b16 %v439, %v437
        %v474 = vpack.c.b16 %v440, %v438
        %v475 = vpack.c.b16 %v443, %v441
        %v476 = vpack.c.b16 %v444, %v442
        %509 = vmatpush.bf16.msra.mxu0 %v459
        %510 = vmatpush.bf16.msra.mxu0 %v457
        %511 = vmatpush.bf16.msra.mxu0 %v455
        %512 = vmatpush.bf16.msra.mxu0 %v453
        %513 = vmatpush.bf16.msra.mxu0 %v451
        %514 = vmatpush.bf16.msra.mxu0 %v449
        %515 = vmatpush.bf16.msra.mxu0 %v447
        %516 = vmatpush.bf16.msra.mxu0 %v445
        %517 = vmatmul.bf16.gmra.mxu0 %v341
        %v518 = vpop.f32.mrf.mxu0
        %v519 = vadd.f32 0.0, %v518
        %v520 = vpop.f32.mrf.mxu0
        %v521 = vadd.f32 0.0, %v520
        %522 = vmatmul.bf16.gmra.mxu0 %v343
        %v523 = vpop.f32.mrf.mxu0
        %v524 = vadd.f32 0.0, %v523
        %v525 = vpop.f32.mrf.mxu0
        %v526 = vadd.f32 0.0, %v525
        %527 = vdwg.mxu0
        %528 = vmatpush.bf16.msra.mxu0 %v475
        %529 = vmatpush.bf16.msra.mxu0 %v473
        %530 = vmatpush.bf16.msra.mxu0 %v471
        %531 = vmatpush.bf16.msra.mxu0 %v469
        %532 = vmatpush.bf16.msra.mxu0 %v467
        %533 = vmatpush.bf16.msra.mxu0 %v465
        %534 = vmatpush.bf16.msra.mxu0 %v463
        %535 = vmatpush.bf16.msra.mxu0 %v461
        %536 = vmatmul.bf16.gmra.mxu0 %v342
        %v537 = vpop.f32.mrf.mxu0
        %v538 = vadd.f32 %v519, %v537
        %v539 = vpop.f32.mrf.mxu0
        %v540 = vadd.f32 %v521, %v539
        %541 = vmatmul.bf16.gmra.mxu0 %v344
        %v542 = vpop.f32.mrf.mxu0
        %v543 = vadd.f32 %v524, %v542
        %v544 = vpop.f32.mrf.mxu0
        %v545 = vadd.f32 %v526, %v544
        %546 = vdwg.mxu0
        %547 = vmatpush.bf16.msra.mxu0 %v460
        %548 = vmatpush.bf16.msra.mxu0 %v458
        %549 = vmatpush.bf16.msra.mxu0 %v456
        %550 = vmatpush.bf16.msra.mxu0 %v454
        %551 = vmatpush.bf16.msra.mxu0 %v452
        %552 = vmatpush.bf16.msra.mxu0 %v450
        %553 = vmatpush.bf16.msra.mxu0 %v448
        %554 = vmatpush.bf16.msra.mxu0 %v446
        %555 = vmatmul.bf16.gmra.mxu0 %v341
        %v556 = vpop.f32.mrf.mxu0
        %v557 = vadd.f32 0.0, %v556
        %v558 = vpop.f32.mrf.mxu0
        %v559 = vadd.f32 0.0, %v558
        %560 = vmatmul.bf16.gmra.mxu0 %v343
        %v561 = vpop.f32.mrf.mxu0
        %v562 = vadd.f32 0.0, %v561
        %v563 = vpop.f32.mrf.mxu0
        %v564 = vadd.f32 0.0, %v563
        %565 = vdwg.mxu0
        %566 = vmatpush.bf16.msra.mxu0 %v476
        %567 = vmatpush.bf16.msra.mxu0 %v474
        %568 = vmatpush.bf16.msra.mxu0 %v472
        %569 = vmatpush.bf16.msra.mxu0 %v470
        %570 = vmatpush.bf16.msra.mxu0 %v468
        %571 = vmatpush.bf16.msra.mxu0 %v466
        %572 = vmatpush.bf16.msra.mxu0 %v464
        %573 = vmatpush.bf16.msra.mxu0 %v462
        %574 = vmatmul.bf16.gmra.mxu0 %v342
        %v575 = vpop.f32.mrf.mxu0
        %v576 = vadd.f32 %v557, %v575
        %v577 = vpop.f32.mrf.mxu0
        %v578 = vadd.f32 %v559, %v577
        %579 = vmatmul.bf16.gmra.mxu0 %v344
        %v580 = vpop.f32.mrf.mxu0
        %v581 = vadd.f32 %v562, %v580
        %v582 = vpop.f32.mrf.mxu0
        %v583 = vadd.f32 %v564, %v582
        %584 = vdwg.mxu0
        %v585 = vadd.f32 %v285, %v538
        %v586 = vadd.f32 %v286, %v576
        %v587 = vadd.f32 %v287, %v540
        %v588 = vadd.f32 %v288, %v578
        %v589 = vadd.f32 %v289, %v543
        %v590 = vadd.f32 %v290, %v581
        %v591 = vadd.f32 %v291, %v545
        %v592 = vadd.f32 %v292, %v583
        %593 = vst [vmem:[%s270] sm:$0xff] %v585
        %594 = vst [vmem:[%s270 + $0x8] sm:$0xff] %v586
        %595 = vst [vmem:[%s270 + $0x10] sm:$0xff] %v587
        %596 = vst [vmem:[%s270 + $0x18] sm:$0xff] %v588
        %597 = vst [vmem:[%s270 + $0x20] sm:$0xff] %v589
        %598 = vst [vmem:[%s270 + $0x28] sm:$0xff] %v590
        %599 = vst [vmem:[%s270 + $0x30] sm:$0xff] %v591
        %600 = vst [vmem:[%s270 + $0x38] sm:$0xff] %v592
        %s601 = smul.u32 4, %s18
        %s602 = smul.u32 2, %s19
        %p603 = scmp.lt.s32.totalorder %s601, 3
        %s604 = scalar_select %p603, %s601, 3
        %p605 = scmp.lt.s32.totalorder %s602, 1
        %s606 = scalar_select %p605, %s602, 1
        %s607 = smul.addr %s604, 2
        %s608 = sadd.s32 %s606, %s607
        %s609 = smul.addr %s608, 8
        %s610 = scalar_lea.vmem %s2, %s609
        // Predicated region
        $region71: #{jvp__.65} parent=61 // pred_check
          %p611 = pneg %p108
        $region72: #{jvp__.65} parent=61 // pred_check_branch
          %613 = sbr.rel (%p611) target = $region74
        $region73: #{jvp__.65} parent=61 // pred_region
          %s614 = smul.u32 4, %s18
          %s615 = smul.u32 2, %s19
        $region74: #{jvp__.65} parent=61 // pred_fallthru
          _
        // Predicated region
        $region75: #{jvp__.65} parent=61 // pred_check
          %p616 = pneg %p108
        $region76: #{jvp__.65} parent=61 // pred_check_branch
          %618 = sbr.rel (%p616) target = $region78
        $region77: #{jvp__.65} parent=61 // pred_region
          %s619 = smul.u32 4, %s18
          %s620 = smul.u32 2, %s19
          %p621 = scmp.lt.s32.totalorder %s619, 3
          %s622 = scalar_select %p621, %s619, 3
          %p623 = scmp.lt.s32.totalorder %s620, 1
          %s624 = scalar_select %p623, %s620, 1
          %s625 = smul.addr %s622, 2
          %s626 = sadd.s32 %s624, %s625
          %s627 = smul.addr %s626, 8
          %s628 = scalar_lea.vmem %s2, %s627
        $region78: #{jvp__.65} parent=61 // pred_fallthru
          _
      $region62: #{jvp__.65} parent=5 // pred_fallthru
        _
      %p629 = scmp.le.s32.totalorder 2, %s8
      // Predicated region
      $region79: #{jvp__.65} parent=5 // pred_check
        %p630 = pneg %p629
      $region80: #{jvp__.65} parent=5 // pred_check_branch
        %632 = sbr.rel (%p630) target = $region82
      $region81: #{jvp__.65} parent=5 // pred_region
        %s633 = ssub.s32 %s8, 2
      $region82: #{jvp__.65} parent=5 // pred_fallthru
        _
    $region6: #{jvp__.65} parent=1 // loop_footer
      %s12 = sadd.s32 1, %s8
    $region7: #{jvp__.65} parent=1 // loop_footer_branch
      %7 = sbr.rel target = $region3
    $region8: #{jvp__.65} parent=1 // loop_exit
      _

// kernel: jvp__.71
$region0: #{jvp__.71}
  #allocation0 [shape = 'u32[]', space=smem, size = 0x4, offset = 0x4, fixed_abs, tag = 'smem constant byte address 0x4 - core index']
  #allocation1 [shape = 'u32[72,128]{1,0:T(1,128)}', space=vmem, size = 0x9000, scoped, tag = 'internal scratch']
  %s0 = inlined_call_operand.vmem [shape: bf16[16,1024], index: 0, kind: input, shape index: {}]
  %s1 = inlined_call_operand.vmem [shape: bf16[1024,512], index: 1, kind: input, shape index: {}]
  %s2 = inlined_call_operand.vmem [shape: f32[16,512], index: 2, kind: output, shape index: {}]
  %s3 = sld [smem:[#allocation0]]
  $region125: #{jvp__.71} parent=0
    _
  %s5 = ssub.s32 1, %s3
  %s6 = scalar_select 0, %s5, %s3
  $region1: #{jvp__.71} parent=0
    #allocation2 [shape = 'u8[32768]{0}', space=vmem, size = 0x8000, scoped, tag = 'input window, operand 0']
    #allocation3 [shape = 'u8[524288]{0}', space=vmem, size = 0x80000, scoped, tag = 'input window, operand 1']
    #allocation4 [shape = 'u8[32768]{0}', space=vmem, size = 0x8000, scoped, tag = 'output window, operand 0']
    loop: start=0, step=1, limit=6
    $region2: #{jvp__.71} parent=1 // loop_pre_header
      _
    $region3: #{jvp__.71} parent=1 // loop_header
      %s8 = sphi 0, %s12
      %p9 = scmp.ge.s32.totalorder %s8, 6
      %s15 = sphi 0, %s34
      %s16 = sphi 0, %s30
      %s17 = sphi 0, %s26
      %s18 = sphi 0, %s15
      %s19 = sphi 0, %s16
      %s20 = sphi 0, %s17
      %s21 = sphi 0, %s18
      %s22 = sphi 0, %s19
      %s23 = sphi 0, %s20
      %s39 = sphi 0, %s41
      %s42 = sphi 0, %s39
      %s43 = sphi 0, %s42
      %s59 = sphi 0, %s43
      %s67 = sphi 0, %s69
      %s70 = sphi 0, %s67
      %s71 = sphi 0, %s70
      %s87 = sphi 0, %s71
      %s95 = sphi 0, %s97
      %s98 = sphi 0, %s95
      %s99 = sphi 0, %s98
      %s115 = sphi 0, %s99
    $region4: #{jvp__.71} parent=1 // loop_header_branch
      %11 = sbr.rel (%p9) target = $region8
    $region5: #{jvp__.71} parent=1 // loop_body
      %s13 = ssub.s32 %s8, 1
      %s14 = ssub.s32 %s8, 2
      %s24 = sadd.s32 1, %s17
      %p25 = scmp.ge.s32.totalorder %s24, 2
      %s26 = scalar_select %p25, 0, %s24
      %s27 = sadd.s32 1, %s16
      %s28 = scalar_select %p25, %s27, %s16
      %p29 = scmp.ge.s32.totalorder %s28, 2
      %s30 = scalar_select %p29, 0, %s28
      %s31 = sadd.s32 1, %s15
      %s32 = scalar_select %p29, %s31, %s15
      %p33 = scmp.ge.s32.totalorder %s32, 1
      %s34 = scalar_select %p33, 0, %s32
      %s35 = ssub.s32 %s15, %s34
      %s36 = ssub.s32 %s17, %s26
      %s37 = sor.u32 %s35, %s36
      %p38 = scmp.eq.s32.totalorder %s37, 0
      %s40 = sadd.s32 %s39, 1
      %s41 = scalar_select %p38, %s39, %s40
      %p44 = pneg %p38
      %p45 = scmp.eq.s32.totalorder %s8, 3
      %p46 = por %p44, %p45
      %p47 = scmp.ne.s32.totalorder %s39, %s42
      %p48 = scmp.eq.s32.totalorder %s8, 0
      %p49 = por %p47, %p48
      %p50 = scmp.ne.s32.totalorder %s39, %s42
      %p51 = scmp.eq.s32.totalorder %s13, 3
      %p52 = por %p50, %p51
      %p53 = scmp.ne.s32.totalorder %s42, %s43
      %p54 = scmp.eq.s32.totalorder %s13, 0
      %p55 = por %p53, %p54
      %p56 = scmp.ne.s32.totalorder %s42, %s43
      %p57 = scmp.eq.s32.totalorder %s14, 3
      %p58 = por %p56, %p57
      %p60 = scmp.ne.s32.totalorder %s43, %s59
      %p61 = scmp.eq.s32.totalorder %s14, 0
      %p62 = por %p60, %p61
      %s63 = ssub.s32 %s17, %s26
      %s64 = ssub.s32 %s16, %s30
      %s65 = sor.u32 %s63, %s64
      %p66 = scmp.eq.s32.totalorder %s65, 0
      %s68 = sadd.s32 %s67, 1
      %s69 = scalar_select %p66, %s67, %s68
      %p72 = pneg %p66
      %p73 = scmp.eq.s32.totalorder %s8, 3
      %p74 = por %p72, %p73
      %p75 = scmp.ne.s32.totalorder %s67, %s70
      %p76 = scmp.eq.s32.totalorder %s8, 0
      %p77 = por %p75, %p76
      %p78 = scmp.ne.s32.totalorder %s67, %s70
      %p79 = scmp.eq.s32.totalorder %s13, 3
      %p80 = por %p78, %p79
      %p81 = scmp.ne.s32.totalorder %s70, %s71
      %p82 = scmp.eq.s32.totalorder %s13, 0
      %p83 = por %p81, %p82
      %p84 = scmp.ne.s32.totalorder %s70, %s71
      %p85 = scmp.eq.s32.totalorder %s14, 3
      %p86 = por %p84, %p85
      %p88 = scmp.ne.s32.totalorder %s71, %s87
      %p89 = scmp.eq.s32.totalorder %s14, 0
      %p90 = por %p88, %p89
      %s91 = ssub.s32 %s15, %s34
      %s92 = ssub.s32 %s16, %s30
      %s93 = sor.u32 %s91, %s92
      %p94 = scmp.eq.s32.totalorder %s93, 0
      %s96 = sadd.s32 %s95, 1
      %s97 = scalar_select %p94, %s95, %s96
      %p100 = pneg %p94
      %p101 = scmp.eq.s32.totalorder %s8, 3
      %p102 = por %p100, %p101
      %p103 = scmp.ne.s32.totalorder %s95, %s98
      %p104 = scmp.eq.s32.totalorder %s8, 0
      %p105 = por %p103, %p104
      %p106 = scmp.ne.s32.totalorder %s95, %s98
      %p107 = scmp.eq.s32.totalorder %s13, 3
      %p108 = por %p106, %p107
      %p109 = scmp.ne.s32.totalorder %s98, %s99
      %p110 = scmp.eq.s32.totalorder %s13, 0
      %p111 = por %p109, %p110
      %p112 = scmp.ne.s32.totalorder %s98, %s99
      %p113 = scmp.eq.s32.totalorder %s14, 3
      %p114 = por %p112, %p113
      %p116 = scmp.ne.s32.totalorder %s99, %s115
      %p117 = scmp.eq.s32.totalorder %s14, 0
      %p118 = por %p116, %p117
      %p119 = scmp.le.s32.totalorder 1, %s8
      %p120 = scmp.lt.s32.totalorder %s8, 5
      %p121 = pnand %p119, %p120
      %p122 = pneg %p121
      // Predicated region
      $region9: #{jvp__.71} parent=5 // pred_check
        _
      $region10: #{jvp__.71} parent=5 // pred_check_branch
        %124 = sbr.rel (%p121) target = $region12
      $region11: #{jvp__.71} parent=5 // pred_region
        %s125 = ssub.s32 %s8, 1
      $region12: #{jvp__.71} parent=5 // pred_fallthru
        _
      %p126 = scmp.lt.s32.totalorder %s8, 4
      // Predicated region
      $region13: #{jvp__.71} parent=5 // pred_check
        %p127 = pneg %p126
      $region14: #{jvp__.71} parent=5 // pred_check_branch
        %129 = sbr.rel (%p127) target = $region16
      $region15: #{jvp__.71} parent=5 // pred_region
        // Predicated region
        $region17: #{jvp__.71} parent=15 // pred_check
          %p130 = pneg %p49
        $region18: #{jvp__.71} parent=15 // pred_check_branch
          %132 = sbr.rel (%p130) target = $region20
        $region19: #{jvp__.71} parent=15 // pred_region
          %s133 = sand.u32 %s39, 1
          %s134 = sand.u32 %s39, 1
          %s135 = smul.addr %s134, 32
          %s136 = scalar_lea.vmem [#allocation2], %s135
          %s137 = smul.u32 2, %s15
          %s138 = smul.u32 4, %s17
          %s139 = smul.addr %s137, 8
          %s140 = sadd.s32 %s138, %s139
          %s141 = smul.addr %s140, 4
          %s142 = scalar_lea.vmem %s0, %s141
          // Predicated region
          $region21: #{jvp__.71} parent=19 // pred_check
            _
          $region22: #{jvp__.71} parent=19 // pred_check_branch
            %144 = sbr.rel (0) target = $region24
          $region23: #{jvp__.71} parent=19 // pred_region
            // Predicated region
            $region25: #{jvp__.71} parent=23 // pred_check
              _
            $region26: #{jvp__.71} parent=23 // pred_check_branch
              %146 = sbr.rel (0) target = $region28
            $region27: #{jvp__.71} parent=23 // pred_region
              loop: start=0, step=1, limit=1
              $region29: #{jvp__.71} parent=27 // loop_pre_header
                _
              $region30: #{jvp__.71} parent=27 // loop_header
                %s148 = sphi 0, %s152
                %p149 = scmp.ge.s32.totalorder %s148, 1
                %s153 = sphi %s142, %s142
                %s154 = sphi %s136, %s136
              $region31: #{jvp__.71} parent=27 // loop_header_branch
                %151 = sbr.rel (%p149) target = $region35
              $region32: #{jvp__.71} parent=27 // loop_body
                %v155 = vld [vmem:[%s153] sm:$0xff]
                %156 = vst [vmem:[%s154] sm:$0xff] %v155
                %v157 = vld [vmem:[%s153 + $0x8] sm:$0xff]
                %158 = vst [vmem:[%s154 + $0x8] sm:$0xff] %v157
                %v159 = vld [vmem:[%s153 + $0x20] sm:$0xff]
                %160 = vst [vmem:[%s154 + $0x10] sm:$0xff] %v159
                %v161 = vld [vmem:[%s153 + $0x28] sm:$0xff]
                %162 = vst [vmem:[%s154 + $0x18] sm:$0xff] %v161
              $region33: #{jvp__.71} parent=27 // loop_footer
                %s152 = sadd.s32 1, %s148
              $region34: #{jvp__.71} parent=27 // loop_footer_branch
                %147 = sbr.rel target = $region30
              $region35: #{jvp__.71} parent=27 // loop_exit
                _
            $region28: #{jvp__.71} parent=23 // pred_fallthru
              _
            // Predicated region
            $region36: #{jvp__.71} parent=23 // pred_check
              _
            $region37: #{jvp__.71} parent=23 // pred_check_branch
              %164 = sbr.rel target = $region39
            $region38: #{jvp__.71} parent=23 // pred_region
              _
            $region39: #{jvp__.71} parent=23 // pred_fallthru
              _
          $region24: #{jvp__.71} parent=19 // pred_fallthru
            _
          %165 = vnop
        $region20: #{jvp__.71} parent=15 // pred_fallthru
          _
        // Predicated region
        $region40: #{jvp__.71} parent=15 // pred_check
          %p166 = pneg %p77
        $region41: #{jvp__.71} parent=15 // pred_check_branch
          %168 = sbr.rel (%p166) target = $region43
        $region42: #{jvp__.71} parent=15 // pred_region
          %s169 = sand.u32 %s67, 1
          %s170 = sand.u32 %s67, 1
          %s171 = smul.addr %s170, 512
          %s172 = scalar_lea.vmem [#allocation3], %s171
          %s173 = smul.u32 64, %s17
          %s174 = smul.u32 2, %s16
          %s175 = smul.addr %s173, 4
          %s176 = sadd.s32 %s174, %s175
          %s177 = smul.addr %s176, 4
          %s178 = scalar_lea.vmem %s1, %s177
          // Predicated region
          $region44: #{jvp__.71} parent=42 // pred_check
            _
          $region45: #{jvp__.71} parent=42 // pred_check_branch
            %180 = sbr.rel (0) target = $region47
          $region46: #{jvp__.71} parent=42 // pred_region
            // Predicated region
            $region48: #{jvp__.71} parent=46 // pred_check
              _
            $region49: #{jvp__.71} parent=46 // pred_check_branch
              %182 = sbr.rel (0) target = $region51
            $region50: #{jvp__.71} parent=46 // pred_region
              // Predicated region
              $region63: #{jvp__.71} parent=50 // pred_check
                _
              $region64: #{jvp__.71} parent=50 // pred_check_branch
                %324 = sbr.rel (0) target = $region66
              $region65: #{jvp__.71} parent=50 // pred_region
                loop: start=0, step=1, limit=1
                $region67: #{jvp__.71} parent=65 // loop_pre_header
                  _
                $region68: #{jvp__.71} parent=65 // loop_header
                  %s326 = sphi 0, %s330
                  %p327 = scmp.ge.s32.totalorder %s326, 1
                  %s331 = sphi %s178, %s178
                  %s332 = sphi %s172, %s172
                $region69: #{jvp__.71} parent=65 // loop_header_branch
                  %329 = sbr.rel (%p327) target = $region73
                $region70: #{jvp__.71} parent=65 // loop_body
                  %v333 = vld [vmem:[%s331] sm:$0xff]
                  %334 = vst [vmem:[%s332] sm:$0xff] %v333
                  %v335 = vld [vmem:[%s331 + $0x10] sm:$0xff]
                  %336 = vst [vmem:[%s332 + $0x8] sm:$0xff] %v335
                  %v337 = vld [vmem:[%s331 + $0x20] sm:$0xff]
                  %338 = vst [vmem:[%s332 + $0x10] sm:$0xff] %v337
                  %v339 = vld [vmem:[%s331 + $0x30] sm:$0xff]
                  %340 = vst [vmem:[%s332 + $0x18] sm:$0xff] %v339
                  %v341 = vld [vmem:[%s331 + $0x40] sm:$0xff]
                  %342 = vst [vmem:[%s332 + $0x20] sm:$0xff] %v341
                  %v343 = vld [vmem:[%s331 + $0x50] sm:$0xff]
                  %344 = vst [vmem:[%s332 + $0x28] sm:$0xff] %v343
                  %v345 = vld [vmem:[%s331 + $0x60] sm:$0xff]
                  %346 = vst [vmem:[%s332 + $0x30] sm:$0xff] %v345
                  %v347 = vld [vmem:[%s331 + $0x70] sm:$0xff]
                  %348 = vst [vmem:[%s332 + $0x38] sm:$0xff] %v347
                  %v349 = vld [vmem:[%s331 + $0x80] sm:$0xff]
                  %350 = vst [vmem:[%s332 + $0x40] sm:$0xff] %v349
                  %v351 = vld [vmem:[%s331 + $0x90] sm:$0xff]
                  %352 = vst [vmem:[%s332 + $0x48] sm:$0xff] %v351
                  %v353 = vld [vmem:[%s331 + $0xa0] sm:$0xff]
                  %354 = vst [vmem:[%s332 + $0x50] sm:$0xff] %v353
                  %v355 = vld [vmem:[%s331 + $0xb0] sm:$0xff]
                  %356 = vst [vmem:[%s332 + $0x58] sm:$0xff] %v355
                  %v357 = vld [vmem:[%s331 + $0xc0] sm:$0xff]
                  %358 = vst [vmem:[%s332 + $0x60] sm:$0xff] %v357
                  %v359 = vld [vmem:[%s331 + $0xd0] sm:$0xff]
                  %360 = vst [vmem:[%s332 + $0x68] sm:$0xff] %v359
                  %v361 = vld [vmem:[%s331 + $0xe0] sm:$0xff]
                  %362 = vst [vmem:[%s332 + $0x70] sm:$0xff] %v361
                  %v363 = vld [vmem:[%s331 + $0xf0] sm:$0xff]
                  %364 = vst [vmem:[%s332 + $0x78] sm:$0xff] %v363
                  %v365 = vld [vmem:[%s331 + $0x100] sm:$0xff]
                  %366 = vst [vmem:[%s332 + $0x80] sm:$0xff] %v365
                  %v367 = vld [vmem:[%s331 + $0x110] sm:$0xff]
                  %368 = vst [vmem:[%s332 + $0x88] sm:$0xff] %v367
                  %v369 = vld [vmem:[%s331 + $0x120] sm:$0xff]
                  %370 = vst [vmem:[%s332 + $0x90] sm:$0xff] %v369
                  %v371 = vld [vmem:[%s331 + $0x130] sm:$0xff]
                  %372 = vst [vmem:[%s332 + $0x98] sm:$0xff] %v371
                  %v373 = vld [vmem:[%s331 + $0x140] sm:$0xff]
                  %374 = vst [vmem:[%s332 + $0xa0] sm:$0xff] %v373
                  %v375 = vld [vmem:[%s331 + $0x150] sm:$0xff]
                  %376 = vst [vmem:[%s332 + $0xa8] sm:$0xff] %v375
                  %v377 = vld [vmem:[%s331 + $0x160] sm:$0xff]
                  %378 = vst [vmem:[%s332 + $0xb0] sm:$0xff] %v377
                  %v379 = vld [vmem:[%s331 + $0x170] sm:$0xff]
                  %380 = vst [vmem:[%s332 + $0xb8] sm:$0xff] %v379
                  %v381 = vld [vmem:[%s331 + $0x180] sm:$0xff]
                  %382 = vst [vmem:[%s332 + $0xc0] sm:$0xff] %v381
                  %v383 = vld [vmem:[%s331 + $0x190] sm:$0xff]
                  %384 = vst [vmem:[%s332 + $0xc8] sm:$0xff] %v383
                  %v385 = vld [vmem:[%s331 + $0x1a0] sm:$0xff]
                  %386 = vst [vmem:[%s332 + $0xd0] sm:$0xff] %v385
                  %v387 = vld [vmem:[%s331 + $0x1b0] sm:$0xff]
                  %388 = vst [vmem:[%s332 + $0xd8] sm:$0xff] %v387
                  %v389 = vld [vmem:[%s331 + $0x1c0] sm:$0xff]
                  %390 = vst [vmem:[%s332 + $0xe0] sm:$0xff] %v389
                  %v391 = vld [vmem:[%s331 + $0x1d0] sm:$0xff]
                  %392 = vst [vmem:[%s332 + $0xe8] sm:$0xff] %v391
                  %v393 = vld [vmem:[%s331 + $0x1e0] sm:$0xff]
                  %394 = vst [vmem:[%s332 + $0xf0] sm:$0xff] %v393
                  %v395 = vld [vmem:[%s331 + $0x1f0] sm:$0xff]
                  %396 = vst [vmem:[%s332 + $0xf8] sm:$0xff] %v395
                  %v397 = vld [vmem:[%s331 + $0x200] sm:$0xff]
                  %398 = vst [vmem:[%s332 + $0x100] sm:$0xff] %v397
                  %v399 = vld [vmem:[%s331 + $0x210] sm:$0xff]
                  %400 = vst [vmem:[%s332 + $0x108] sm:$0xff] %v399
                  %v401 = vld [vmem:[%s331 + $0x220] sm:$0xff]
                  %402 = vst [vmem:[%s332 + $0x110] sm:$0xff] %v401
                  %v403 = vld [vmem:[%s331 + $0x230] sm:$0xff]
                  %404 = vst [vmem:[%s332 + $0x118] sm:$0xff] %v403
                  %v405 = vld [vmem:[%s331 + $0x240] sm:$0xff]
                  %406 = vst [vmem:[%s332 + $0x120] sm:$0xff] %v405
                  %v407 = vld [vmem:[%s331 + $0x250] sm:$0xff]
                  %408 = vst [vmem:[%s332 + $0x128] sm:$0xff] %v407
                  %v409 = vld [vmem:[%s331 + $0x260] sm:$0xff]
                  %410 = vst [vmem:[%s332 + $0x130] sm:$0xff] %v409
                  %v411 = vld [vmem:[%s331 + $0x270] sm:$0xff]
                  %412 = vst [vmem:[%s332 + $0x138] sm:$0xff] %v411
                  %v413 = vld [vmem:[%s331 + $0x280] sm:$0xff]
                  %414 = vst [vmem:[%s332 + $0x140] sm:$0xff] %v413
                  %v415 = vld [vmem:[%s331 + $0x290] sm:$0xff]
                  %416 = vst [vmem:[%s332 + $0x148] sm:$0xff] %v415
                  %v417 = vld [vmem:[%s331 + $0x2a0] sm:$0xff]
                  %418 = vst [vmem:[%s332 + $0x150] sm:$0xff] %v417
                  %v419 = vld [vmem:[%s331 + $0x2b0] sm:$0xff]
                  %420 = vst [vmem:[%s332 + $0x158] sm:$0xff] %v419
                  %v421 = vld [vmem:[%s331 + $0x2c0] sm:$0xff]
                  %422 = vst [vmem:[%s332 + $0x160] sm:$0xff] %v421
                  %v423 = vld [vmem:[%s331 + $0x2d0] sm:$0xff]
                  %424 = vst [vmem:[%s332 + $0x168] sm:$0xff] %v423
                  %v425 = vld [vmem:[%s331 + $0x2e0] sm:$0xff]
                  %426 = vst [vmem:[%s332 + $0x170] sm:$0xff] %v425
                  %v427 = vld [vmem:[%s331 + $0x2f0] sm:$0xff]
                  %428 = vst [vmem:[%s332 + $0x178] sm:$0xff] %v427
                  %v429 = vld [vmem:[%s331 + $0x300] sm:$0xff]
                  %430 = vst [vmem:[%s332 + $0x180] sm:$0xff] %v429
                  %v431 = vld [vmem:[%s331 + $0x310] sm:$0xff]
                  %432 = vst [vmem:[%s332 + $0x188] sm:$0xff] %v431
                  %v433 = vld [vmem:[%s331 + $0x320] sm:$0xff]
                  %434 = vst [vmem:[%s332 + $0x190] sm:$0xff] %v433
                  %v435 = vld [vmem:[%s331 + $0x330] sm:$0xff]
                  %436 = vst [vmem:[%s332 + $0x198] sm:$0xff] %v435
                  %v437 = vld [vmem:[%s331 + $0x340] sm:$0xff]
                  %438 = vst [vmem:[%s332 + $0x1a0] sm:$0xff] %v437
                  %v439 = vld [vmem:[%s331 + $0x350] sm:$0xff]
                  %440 = vst [vmem:[%s332 + $0x1a8] sm:$0xff] %v439
                  %v441 = vld [vmem:[%s331 + $0x360] sm:$0xff]
                  %442 = vst [vmem:[%s332 + $0x1b0] sm:$0xff] %v441
                  %v443 = vld [vmem:[%s331 + $0x370] sm:$0xff]
                  %444 = vst [vmem:[%s332 + $0x1b8] sm:$0xff] %v443
                  %v445 = vld [vmem:[%s331 + $0x380] sm:$0xff]
                  %446 = vst [vmem:[%s332 + $0x1c0] sm:$0xff] %v445
                  %v447 = vld [vmem:[%s331 + $0x390] sm:$0xff]
                  %448 = vst [vmem:[%s332 + $0x1c8] sm:$0xff] %v447
                  %v449 = vld [vmem:[%s331 + $0x3a0] sm:$0xff]
                  %450 = vst [vmem:[%s332 + $0x1d0] sm:$0xff] %v449
                  %v451 = vld [vmem:[%s331 + $0x3b0] sm:$0xff]
                  %452 = vst [vmem:[%s332 + $0x1d8] sm:$0xff] %v451
                  %v453 = vld [vmem:[%s331 + $0x3c0] sm:$0xff]
                  %454 = vst [vmem:[%s332 + $0x1e0] sm:$0xff] %v453
                  %v455 = vld [vmem:[%s331 + $0x3d0] sm:$0xff]
                  %456 = vst [vmem:[%s332 + $0x1e8] sm:$0xff] %v455
                  %v457 = vld [vmem:[%s331 + $0x3e0] sm:$0xff]
                  %458 = vst [vmem:[%s332 + $0x1f0] sm:$0xff] %v457
                  %v459 = vld [vmem:[%s331 + $0x3f0] sm:$0xff]
                  %460 = vst [vmem:[%s332 + $0x1f8] sm:$0xff] %v459
                $region71: #{jvp__.71} parent=65 // loop_footer
                  %s330 = sadd.s32 1, %s326
                $region72: #{jvp__.71} parent=65 // loop_footer_branch
                  %325 = sbr.rel target = $region68
                $region73: #{jvp__.71} parent=65 // loop_exit
                  _
              $region66: #{jvp__.71} parent=50 // pred_fallthru
                _
              // Predicated region
              $region74: #{jvp__.71} parent=50 // pred_check
                _
              $region75: #{jvp__.71} parent=50 // pred_check_branch
                %462 = sbr.rel target = $region77
              $region76: #{jvp__.71} parent=50 // pred_region
                _
              $region77: #{jvp__.71} parent=50 // pred_fallthru
                _
            $region51: #{jvp__.71} parent=46 // pred_fallthru
              _
            // Predicated region
            $region52: #{jvp__.71} parent=46 // pred_check
              _
            $region53: #{jvp__.71} parent=46 // pred_check_branch
              %184 = sbr.rel target = $region55
            $region54: #{jvp__.71} parent=46 // pred_region
              %s186 = ssub.s32 256, 1
              loop: start=0, step=1, limit=1
              $region56: #{jvp__.71} parent=54 // loop_pre_header
                _
              $region57: #{jvp__.71} parent=54 // loop_header
                %s188 = sphi 0, %s192
                %p189 = scmp.ge.s32.totalorder %s188, 1
                %s193 = sphi %s178, %s178
                %s194 = sphi %s172, %s172
              $region58: #{jvp__.71} parent=54 // loop_header_branch
                %191 = sbr.rel (%p189) target = $region62
              $region59: #{jvp__.71} parent=54 // loop_body
                %v195 = vld [vmem:[%s193] sm:%s186]
                %196 = vst [vmem:[%s194] sm:%s186] %v195
                %v197 = vld [vmem:[%s193 + $0x10] sm:%s186]
                %198 = vst [vmem:[%s194 + $0x8] sm:%s186] %v197
                %v199 = vld [vmem:[%s193 + $0x20] sm:%s186]
                %200 = vst [vmem:[%s194 + $0x10] sm:%s186] %v199
                %v201 = vld [vmem:[%s193 + $0x30] sm:%s186]
                %202 = vst [vmem:[%s194 + $0x18] sm:%s186] %v201
                %v203 = vld [vmem:[%s193 + $0x40] sm:%s186]
                %204 = vst [vmem:[%s194 + $0x20] sm:%s186] %v203
                %v205 = vld [vmem:[%s193 + $0x50] sm:%s186]
                %206 = vst [vmem:[%s194 + $0x28] sm:%s186] %v205
                %v207 = vld [vmem:[%s193 + $0x60] sm:%s186]
                %208 = vst [vmem:[%s194 + $0x30] sm:%s186] %v207
                %v209 = vld [vmem:[%s193 + $0x70] sm:%s186]
                %210 = vst [vmem:[%s194 + $0x38] sm:%s186] %v209
                %v211 = vld [vmem:[%s193 + $0x80] sm:%s186]
                %212 = vst [vmem:[%s194 + $0x40] sm:%s186] %v211
                %v213 = vld [vmem:[%s193 + $0x90] sm:%s186]
                %214 = vst [vmem:[%s194 + $0x48] sm:%s186] %v213
                %v215 = vld [vmem:[%s193 + $0xa0] sm:%s186]
                %216 = vst [vmem:[%s194 + $0x50] sm:%s186] %v215
                %v217 = vld [vmem:[%s193 + $0xb0] sm:%s186]
                %218 = vst [vmem:[%s194 + $0x58] sm:%s186] %v217
                %v219 = vld [vmem:[%s193 + $0xc0] sm:%s186]
                %220 = vst [vmem:[%s194 + $0x60] sm:%s186] %v219
                %v221 = vld [vmem:[%s193 + $0xd0] sm:%s186]
                %222 = vst [vmem:[%s194 + $0x68] sm:%s186] %v221
                %v223 = vld [vmem:[%s193 + $0xe0] sm:%s186]
                %224 = vst [vmem:[%s194 + $0x70] sm:%s186] %v223
                %v225 = vld [vmem:[%s193 + $0xf0] sm:%s186]
                %226 = vst [vmem:[%s194 + $0x78] sm:%s186] %v225
                %v227 = vld [vmem:[%s193 + $0x100] sm:%s186]
                %228 = vst [vmem:[%s194 + $0x80] sm:%s186] %v227
                %v229 = vld [vmem:[%s193 + $0x110] sm:%s186]
                %230 = vst [vmem:[%s194 + $0x88] sm:%s186] %v229
                %v231 = vld [vmem:[%s193 + $0x120] sm:%s186]
                %232 = vst [vmem:[%s194 + $0x90] sm:%s186] %v231
                %v233 = vld [vmem:[%s193 + $0x130] sm:%s186]
                %234 = vst [vmem:[%s194 + $0x98] sm:%s186] %v233
                %v235 = vld [vmem:[%s193 + $0x140] sm:%s186]
                %236 = vst [vmem:[%s194 + $0xa0] sm:%s186] %v235
                %v237 = vld [vmem:[%s193 + $0x150] sm:%s186]
                %238 = vst [vmem:[%s194 + $0xa8] sm:%s186] %v237
                %v239 = vld [vmem:[%s193 + $0x160] sm:%s186]
                %240 = vst [vmem:[%s194 + $0xb0] sm:%s186] %v239
                %v241 = vld [vmem:[%s193 + $0x170] sm:%s186]
                %242 = vst [vmem:[%s194 + $0xb8] sm:%s186] %v241
                %v243 = vld [vmem:[%s193 + $0x180] sm:%s186]
                %244 = vst [vmem:[%s194 + $0xc0] sm:%s186] %v243
                %v245 = vld [vmem:[%s193 + $0x190] sm:%s186]
                %246 = vst [vmem:[%s194 + $0xc8] sm:%s186] %v245
                %v247 = vld [vmem:[%s193 + $0x1a0] sm:%s186]
                %248 = vst [vmem:[%s194 + $0xd0] sm:%s186] %v247
                %v249 = vld [vmem:[%s193 + $0x1b0] sm:%s186]
                %250 = vst [vmem:[%s194 + $0xd8] sm:%s186] %v249
                %v251 = vld [vmem:[%s193 + $0x1c0] sm:%s186]
                %252 = vst [vmem:[%s194 + $0xe0] sm:%s186] %v251
                %v253 = vld [vmem:[%s193 + $0x1d0] sm:%s186]
                %254 = vst [vmem:[%s194 + $0xe8] sm:%s186] %v253
                %v255 = vld [vmem:[%s193 + $0x1e0] sm:%s186]
                %256 = vst [vmem:[%s194 + $0xf0] sm:%s186] %v255
                %v257 = vld [vmem:[%s193 + $0x1f0] sm:%s186]
                %258 = vst [vmem:[%s194 + $0xf8] sm:%s186] %v257
                %v259 = vld [vmem:[%s193 + $0x200] sm:%s186]
                %260 = vst [vmem:[%s194 + $0x100] sm:%s186] %v259
                %v261 = vld [vmem:[%s193 + $0x210] sm:%s186]
                %262 = vst [vmem:[%s194 + $0x108] sm:%s186] %v261
                %v263 = vld [vmem:[%s193 + $0x220] sm:%s186]
                %264 = vst [vmem:[%s194 + $0x110] sm:%s186] %v263
                %v265 = vld [vmem:[%s193 + $0x230] sm:%s186]
                %266 = vst [vmem:[%s194 + $0x118] sm:%s186] %v265
                %v267 = vld [vmem:[%s193 + $0x240] sm:%s186]
                %268 = vst [vmem:[%s194 + $0x120] sm:%s186] %v267
                %v269 = vld [vmem:[%s193 + $0x250] sm:%s186]
                %270 = vst [vmem:[%s194 + $0x128] sm:%s186] %v269
                %v271 = vld [vmem:[%s193 + $0x260] sm:%s186]
                %272 = vst [vmem:[%s194 + $0x130] sm:%s186] %v271
                %v273 = vld [vmem:[%s193 + $0x270] sm:%s186]
                %274 = vst [vmem:[%s194 + $0x138] sm:%s186] %v273
                %v275 = vld [vmem:[%s193 + $0x280] sm:%s186]
                %276 = vst [vmem:[%s194 + $0x140] sm:%s186] %v275
                %v277 = vld [vmem:[%s193 + $0x290] sm:%s186]
                %278 = vst [vmem:[%s194 + $0x148] sm:%s186] %v277
                %v279 = vld [vmem:[%s193 + $0x2a0] sm:%s186]
                %280 = vst [vmem:[%s194 + $0x150] sm:%s186] %v279
                %v281 = vld [vmem:[%s193 + $0x2b0] sm:%s186]
                %282 = vst [vmem:[%s194 + $0x158] sm:%s186] %v281
                %v283 = vld [vmem:[%s193 + $0x2c0] sm:%s186]
                %284 = vst [vmem:[%s194 + $0x160] sm:%s186] %v283
                %v285 = vld [vmem:[%s193 + $0x2d0] sm:%s186]
                %286 = vst [vmem:[%s194 + $0x168] sm:%s186] %v285
                %v287 = vld [vmem:[%s193 + $0x2e0] sm:%s186]
                %288 = vst [vmem:[%s194 + $0x170] sm:%s186] %v287
                %v289 = vld [vmem:[%s193 + $0x2f0] sm:%s186]
                %290 = vst [vmem:[%s194 + $0x178] sm:%s186] %v289
                %v291 = vld [vmem:[%s193 + $0x300] sm:%s186]
                %292 = vst [vmem:[%s194 + $0x180] sm:%s186] %v291
                %v293 = vld [vmem:[%s193 + $0x310] sm:%s186]
                %294 = vst [vmem:[%s194 + $0x188] sm:%s186] %v293
                %v295 = vld [vmem:[%s193 + $0x320] sm:%s186]
                %296 = vst [vmem:[%s194 + $0x190] sm:%s186] %v295
                %v297 = vld [vmem:[%s193 + $0x330] sm:%s186]
                %298 = vst [vmem:[%s194 + $0x198] sm:%s186] %v297
                %v299 = vld [vmem:[%s193 + $0x340] sm:%s186]
                %300 = vst [vmem:[%s194 + $0x1a0] sm:%s186] %v299
                %v301 = vld [vmem:[%s193 + $0x350] sm:%s186]
                %302 = vst [vmem:[%s194 + $0x1a8] sm:%s186] %v301
                %v303 = vld [vmem:[%s193 + $0x360] sm:%s186]
                %304 = vst [vmem:[%s194 + $0x1b0] sm:%s186] %v303
                %v305 = vld [vmem:[%s193 + $0x370] sm:%s186]
                %306 = vst [vmem:[%s194 + $0x1b8] sm:%s186] %v305
                %v307 = vld [vmem:[%s193 + $0x380] sm:%s186]
                %308 = vst [vmem:[%s194 + $0x1c0] sm:%s186] %v307
                %v309 = vld [vmem:[%s193 + $0x390] sm:%s186]
                %310 = vst [vmem:[%s194 + $0x1c8] sm:%s186] %v309
                %v311 = vld [vmem:[%s193 + $0x3a0] sm:%s186]
                %312 = vst [vmem:[%s194 + $0x1d0] sm:%s186] %v311
                %v313 = vld [vmem:[%s193 + $0x3b0] sm:%s186]
                %314 = vst [vmem:[%s194 + $0x1d8] sm:%s186] %v313
                %v315 = vld [vmem:[%s193 + $0x3c0] sm:%s186]
                %316 = vst [vmem:[%s194 + $0x1e0] sm:%s186] %v315
                %v317 = vld [vmem:[%s193 + $0x3d0] sm:%s186]
                %318 = vst [vmem:[%s194 + $0x1e8] sm:%s186] %v317
                %v319 = vld [vmem:[%s193 + $0x3e0] sm:%s186]
                %320 = vst [vmem:[%s194 + $0x1f0] sm:%s186] %v319
                %v321 = vld [vmem:[%s193 + $0x3f0] sm:%s186]
                %322 = vst [vmem:[%s194 + $0x1f8] sm:%s186] %v321
              $region60: #{jvp__.71} parent=54 // loop_footer
                %s192 = sadd.s32 1, %s188
              $region61: #{jvp__.71} parent=54 // loop_footer_branch
                %187 = sbr.rel target = $region57
              $region62: #{jvp__.71} parent=54 // loop_exit
                _
            $region55: #{jvp__.71} parent=46 // pred_fallthru
              _
          $region47: #{jvp__.71} parent=42 // pred_fallthru
            _
          %463 = vnop
        $region43: #{jvp__.71} parent=15 // pred_fallthru
          _
      $region16: #{jvp__.71} parent=5 // pred_fallthru
        _
      %p464 = scmp.le.s32.totalorder 1, %s8
      %p465 = scmp.lt.s32.totalorder %s8, 5
      %p466 = pnand %p464, %p465
      %p467 = pneg %p466
      // Predicated region
      $region78: #{jvp__.71} parent=5 // pred_check
        _
      $region79: #{jvp__.71} parent=5 // pred_check_branch
        %469 = sbr.rel (%p466) target = $region81
      $region80: #{jvp__.71} parent=5 // pred_region
        %s470 = ssub.s32 %s8, 1
        %s471 = sand.u32 %s42, 1
        %s472 = sand.u32 %s42, 1
        %s473 = smul.addr %s472, 32
        %s474 = scalar_lea.vmem [#allocation2], %s473
        // Predicated region
        $region82: #{jvp__.71} parent=80 // pred_check
          %p475 = pneg %p55
        $region83: #{jvp__.71} parent=80 // pred_check_branch
          %477 = sbr.rel (%p475) target = $region85
        $region84: #{jvp__.71} parent=80 // pred_region
          _
        $region85: #{jvp__.71} parent=80 // pred_fallthru
          _
        %s478 = sand.u32 %s70, 1
        %s479 = sand.u32 %s70, 1
        %s480 = smul.addr %s479, 512
        %s481 = scalar_lea.vmem [#allocation3], %s480
        // Predicated region
        $region86: #{jvp__.71} parent=80 // pred_check
          %p482 = pneg %p83
        $region87: #{jvp__.71} parent=80 // pred_check_branch
          %484 = sbr.rel (%p482) target = $region89
        $region88: #{jvp__.71} parent=80 // pred_region
          _
        $region89: #{jvp__.71} parent=80 // pred_fallthru
          _
        %s485 = sand.u32 %s42, 1
        %s486 = sand.u32 %s42, 1
        %s487 = smul.addr %s486, 32
        %s488 = scalar_lea.vmem [#allocation2], %s487
        %p489 = pneg %p55
        %p490 = pneg %p52
        %s491 = sand.u32 %s70, 1
        %s492 = sand.u32 %s70, 1
        %s493 = smul.addr %s492, 512
        %s494 = scalar_lea.vmem [#allocation3], %s493
        %p495 = pneg %p83
        %p496 = pneg %p80
        %p497 = pneg %p111
        %p498 = pneg %p108
        %s499 = sand.u32 %s98, 1
        %s500 = sand.u32 %s98, 1
        %s501 = smul.addr %s500, 32
        %s502 = scalar_lea.vmem [#allocation4], %s501
        %s503 = smul.u32 2, %s18
        %s504 = smul.u32 4, %s20
        %s505 = smul.u32 64, %s20
        %s506 = smul.u32 2, %s19
        %s507 = smul.u32 2, %s18
        %s508 = smul.u32 2, %s19
        %p509 = scmp.eq.s32.totalorder %s20, 0
        // Predicated region
        $region90: #{jvp__.71} parent=80 // pred_check
          %p510 = pneg %p509
        $region91: #{jvp__.71} parent=80 // pred_check_branch
          %512 = sbr.rel (%p510) target = $region93
        $region92: #{jvp__.71} parent=80 // pred_region
          %513 = vst [vmem:[%s502] sm:$0xff] 0.0
          %514 = vst [vmem:[%s502 + $0x8] sm:$0xff] 0.0
          %515 = vst [vmem:[%s502 + $0x10] sm:$0xff] 0.0
          %516 = vst [vmem:[%s502 + $0x18] sm:$0xff] 0.0
        $region93: #{jvp__.71} parent=80 // pred_fallthru
          _
        %v517 = vld [vmem:[%s502] sm:$0xff]
        %v518 = vld [vmem:[%s502 + $0x8] sm:$0xff]
        %v519 = vld [vmem:[%s502 + $0x10] sm:$0xff]
        %v520 = vld [vmem:[%s502 + $0x18] sm:$0xff]
        %v521 = vld [vmem:[%s474] sm:$0xff]
        %v522 = vld [vmem:[%s474 + $0x8] sm:$0xff]
        %v523 = vld [vmem:[%s474 + $0x10] sm:$0xff]
        %v524 = vld [vmem:[%s474 + $0x18] sm:$0xff]
        %v525 = vld [vmem:[%s481] sm:$0xff]
        %v526 = vld [vmem:[%s481 + $0x8] sm:$0xff]
        %v527 = vld [vmem:[%s481 + $0x10] sm:$0xff]
        %v528 = vld [vmem:[%s481 + $0x18] sm:$0xff]
        %v529 = vld [vmem:[%s481 + $0x20] sm:$0xff]
        %v530 = vld [vmem:[%s481 + $0x28] sm:$0xff]
        %v531 = vld [vmem:[%s481 + $0x30] sm:$0xff]
        %v532 = vld [vmem:[%s481 + $0x38] sm:$0xff]
        %v533 = vld [vmem:[%s481 + $0x40] sm:$0xff]
        %v534 = vld [vmem:[%s481 + $0x48] sm:$0xff]
        %v535 = vld [vmem:[%s481 + $0x50] sm:$0xff]
        %v536 = vld [vmem:[%s481 + $0x58] sm:$0xff]
        %v537 = vld [vmem:[%s481 + $0x60] sm:$0xff]
        %v538 = vld [vmem:[%s481 + $0x68] sm:$0xff]
        %v539 = vld [vmem:[%s481 + $0x70] sm:$0xff]
        %v540 = vld [vmem:[%s481 + $0x78] sm:$0xff]
        %v541 = vld [vmem:[%s481 + $0x80] sm:$0xff]
        %v542 = vld [vmem:[%s481 + $0x88] sm:$0xff]
        %v543 = vld [vmem:[%s481 + $0x90] sm:$0xff]
        %v544 = vld [vmem:[%s481 + $0x98] sm:$0xff]
        %v545 = vld [vmem:[%s481 + $0xa0] sm:$0xff]
        %v546 = vld [vmem:[%s481 + $0xa8] sm:$0xff]
        %v547 = vld [vmem:[%s481 + $0xb0] sm:$0xff]
        %v548 = vld [vmem:[%s481 + $0xb8] sm:$0xff]
        %v549 = vld [vmem:[%s481 + $0xc0] sm:$0xff]
        %v550 = vld [vmem:[%s481 + $0xc8] sm:$0xff]
        %v551 = vld [vmem:[%s481 + $0xd0] sm:$0xff]
        %v552 = vld [vmem:[%s481 + $0xd8] sm:$0xff]
        %v553 = vld [vmem:[%s481 + $0xe0] sm:$0xff]
        %v554 = vld [vmem:[%s481 + $0xe8] sm:$0xff]
        %v555 = vld [vmem:[%s481 + $0xf0] sm:$0xff]
        %v556 = vld [vmem:[%s481 + $0xf8] sm:$0xff]
        %v557 = vld [vmem:[%s481 + $0x100] sm:$0xff]
        %v558 = vld [vmem:[%s481 + $0x108] sm:$0xff]
        %v559 = vld [vmem:[%s481 + $0x110] sm:$0xff]
        %v560 = vld [vmem:[%s481 + $0x118] sm:$0xff]
        %v561 = vld [vmem:[%s481 + $0x120] sm:$0xff]
        %v562 = vld [vmem:[%s481 + $0x128] sm:$0xff]
        %v563 = vld [vmem:[%s481 + $0x130] sm:$0xff]
        %v564 = vld [vmem:[%s481 + $0x138] sm:$0xff]
        %v565 = vld [vmem:[%s481 + $0x140] sm:$0xff]
        %v566 = vld [vmem:[%s481 + $0x148] sm:$0xff]
        %v567 = vld [vmem:[%s481 + $0x150] sm:$0xff]
        %v568 = vld [vmem:[%s481 + $0x158] sm:$0xff]
        %v569 = vld [vmem:[%s481 + $0x160] sm:$0xff]
        %v570 = vld [vmem:[%s481 + $0x168] sm:$0xff]
        %v571 = vld [vmem:[%s481 + $0x170] sm:$0xff]
        %v572 = vld [vmem:[%s481 + $0x178] sm:$0xff]
        %v573 = vld [vmem:[%s481 + $0x180] sm:$0xff]
        %v574 = vld [vmem:[%s481 + $0x188] sm:$0xff]
        %v575 = vld [vmem:[%s481 + $0x190] sm:$0xff]
        %v576 = vld [vmem:[%s481 + $0x198] sm:$0xff]
        %v577 = vld [vmem:[%s481 + $0x1a0] sm:$0xff]
        %v578 = vld [vmem:[%s481 + $0x1a8] sm:$0xff]
        %v579 = vld [vmem:[%s481 + $0x1b0] sm:$0xff]
        %v580 = vld [vmem:[%s481 + $0x1b8] sm:$0xff]
        %v581 = vld [vmem:[%s481 + $0x1c0] sm:$0xff]
        %v582 = vld [vmem:[%s481 + $0x1c8] sm:$0xff]
        %v583 = vld [vmem:[%s481 + $0x1d0] sm:$0xff]
        %v584 = vld [vmem:[%s481 + $0x1d8] sm:$0xff]
        %v585 = vld [vmem:[%s481 + $0x1e0] sm:$0xff]
        %v586 = vld [vmem:[%s481 + $0x1e8] sm:$0xff]
        %v587 = vld [vmem:[%s481 + $0x1f0] sm:$0xff]
        %v588 = vld [vmem:[%s481 + $0x1f8] sm:$0xff]
        %v593 = vunpack.c.l.b16 %v521
        %v594 = vunpack.c.h.b16 %v521
        %v595 = vunpack.c.l.b16 %v522
        %v596 = vunpack.c.h.b16 %v522
        %v597 = vunpack.c.l.b16 %v523
        %v598 = vunpack.c.h.b16 %v523
        %v599 = vunpack.c.l.b16 %v524
        %v600 = vunpack.c.h.b16 %v524
        %v601 = vpack.c.b16 %v597, %v593
        %v602 = vpack.c.b16 %v598, %v594
        %v603 = vpack.c.b16 %v599, %v595
        %v604 = vpack.c.b16 %v600, %v596
        %v673 = vunpack.c.l.b16 %v525
        %v674 = vunpack.c.h.b16 %v525
        %v675 = vunpack.c.l.b16 %v526
        %v676 = vunpack.c.h.b16 %v526
        %v677 = vunpack.c.l.b16 %v527
        %v678 = vunpack.c.h.b16 %v527
        %v679 = vunpack.c.l.b16 %v528
        %v680 = vunpack.c.h.b16 %v528
        %v681 = vunpack.c.l.b16 %v529
        %v682 = vunpack.c.h.b16 %v529
        %v683 = vunpack.c.l.b16 %v530
        %v684 = vunpack.c.h.b16 %v530
        %v685 = vunpack.c.l.b16 %v531
        %v686 = vunpack.c.h.b16 %v531
        %v687 = vunpack.c.l.b16 %v532
        %v688 = vunpack.c.h.b16 %v532
        %v689 = vunpack.c.l.b16 %v533
        %v690 = vunpack.c.h.b16 %v533
        %v691 = vunpack.c.l.b16 %v534
        %v692 = vunpack.c.h.b16 %v534
        %v693 = vunpack.c.l.b16 %v535
        %v694 = vunpack.c.h.b16 %v535
        %v695 = vunpack.c.l.b16 %v536
        %v696 = vunpack.c.h.b16 %v536
        %v697 = vunpack.c.l.b16 %v537
        %v698 = vunpack.c.h.b16 %v537
        %v699 = vunpack.c.l.b16 %v538
        %v700 = vunpack.c.h.b16 %v538
        %v701 = vunpack.c.l.b16 %v539
        %v702 = vunpack.c.h.b16 %v539
        %v703 = vunpack.c.l.b16 %v540
        %v704 = vunpack.c.h.b16 %v540
        %v705 = vunpack.c.l.b16 %v541
        %v706 = vunpack.c.h.b16 %v541
        %v707 = vunpack.c.l.b16 %v542
        %v708 = vunpack.c.h.b16 %v542
        %v709 = vunpack.c.l.b16 %v543
        %v710 = vunpack.c.h.b16 %v543
        %v711 = vunpack.c.l.b16 %v544
        %v712 = vunpack.c.h.b16 %v544
        %v713 = vunpack.c.l.b16 %v545
        %v714 = vunpack.c.h.b16 %v545
        %v715 = vunpack.c.l.b16 %v546
        %v716 = vunpack.c.h.b16 %v546
        %v717 = vunpack.c.l.b16 %v547
        %v718 = vunpack.c.h.b16 %v547
        %v719 = vunpack.c.l.b16 %v548
        %v720 = vunpack.c.h.b16 %v548
        %v721 = vunpack.c.l.b16 %v549
        %v722 = vunpack.c.h.b16 %v549
        %v723 = vunpack.c.l.b16 %v550
        %v724 = vunpack.c.h.b16 %v550
        %v725 = vunpack.c.l.b16 %v551
        %v726 = vunpack.c.h.b16 %v551
        %v727 = vunpack.c.l.b16 %v552
        %v728 = vunpack.c.h.b16 %v552
        %v729 = vunpack.c.l.b16 %v553
        %v730 = vunpack.c.h.b16 %v553
        %v731 = vunpack.c.l.b16 %v554
        %v732 = vunpack.c.h.b16 %v554
        %v733 = vunpack.c.l.b16 %v555
        %v734 = vunpack.c.h.b16 %v555
        %v735 = vunpack.c.l.b16 %v556
        %v736 = vunpack.c.h.b16 %v556
        %v737 = vunpack.c.l.b16 %v557
        %v738 = vunpack.c.h.b16 %v557
        %v739 = vunpack.c.l.b16 %v558
        %v740 = vunpack.c.h.b16 %v558
        %v741 = vunpack.c.l.b16 %v559
        %v742 = vunpack.c.h.b16 %v559
        %v743 = vunpack.c.l.b16 %v560
        %v744 = vunpack.c.h.b16 %v560
        %v745 = vunpack.c.l.b16 %v561
        %v746 = vunpack.c.h.b16 %v561
        %v747 = vunpack.c.l.b16 %v562
        %v748 = vunpack.c.h.b16 %v562
        %v749 = vunpack.c.l.b16 %v563
        %v750 = vunpack.c.h.b16 %v563
        %v751 = vunpack.c.l.b16 %v564
        %v752 = vunpack.c.h.b16 %v564
        %v753 = vunpack.c.l.b16 %v565
        %v754 = vunpack.c.h.b16 %v565
        %v755 = vunpack.c.l.b16 %v566
        %v756 = vunpack.c.h.b16 %v566
        %v757 = vunpack.c.l.b16 %v567
        %v758 = vunpack.c.h.b16 %v567
        %v759 = vunpack.c.l.b16 %v568
        %v760 = vunpack.c.h.b16 %v568
        %v761 = vunpack.c.l.b16 %v569
        %v762 = vunpack.c.h.b16 %v569
        %v763 = vunpack.c.l.b16 %v570
        %v764 = vunpack.c.h.b16 %v570
        %v765 = vunpack.c.l.b16 %v571
        %v766 = vunpack.c.h.b16 %v571
        %v767 = vunpack.c.l.b16 %v572
        %v768 = vunpack.c.h.b16 %v572
        %v769 = vunpack.c.l.b16 %v573
        %v770 = vunpack.c.h.b16 %v573
        %v771 = vunpack.c.l.b16 %v574
        %v772 = vunpack.c.h.b16 %v574
        %v773 = vunpack.c.l.b16 %v575
        %v774 = vunpack.c.h.b16 %v575
        %v775 = vunpack.c.l.b16 %v576
        %v776 = vunpack.c.h.b16 %v576
        %v777 = vunpack.c.l.b16 %v577
        %v778 = vunpack.c.h.b16 %v577
        %v779 = vunpack.c.l.b16 %v578
        %v780 = vunpack.c.h.b16 %v578
        %v781 = vunpack.c.l.b16 %v579
        %v782 = vunpack.c.h.b16 %v579
        %v783 = vunpack.c.l.b16 %v580
        %v784 = vunpack.c.h.b16 %v580
        %v785 = vunpack.c.l.b16 %v581
        %v786 = vunpack.c.h.b16 %v581
        %v787 = vunpack.c.l.b16 %v582
        %v788 = vunpack.c.h.b16 %v582
        %v789 = vunpack.c.l.b16 %v583
        %v790 = vunpack.c.h.b16 %v583
        %v791 = vunpack.c.l.b16 %v584
        %v792 = vunpack.c.h.b16 %v584
        %v793 = vunpack.c.l.b16 %v585
        %v794 = vunpack.c.h.b16 %v585
        %v795 = vunpack.c.l.b16 %v586
        %v796 = vunpack.c.h.b16 %v586
        %v797 = vunpack.c.l.b16 %v587
        %v798 = vunpack.c.h.b16 %v587
        %v799 = vunpack.c.l.b16 %v588
        %v800 = vunpack.c.h.b16 %v588
        %v801 = vpack.c.b16 %v675, %v673
        %v802 = vpack.c.b16 %v676, %v674
        %v803 = vpack.c.b16 %v679, %v677
        %v804 = vpack.c.b16 %v680, %v678
        %v805 = vpack.c.b16 %v683, %v681
        %v806 = vpack.c.b16 %v684, %v682
        %v807 = vpack.c.b16 %v687, %v685
        %v808 = vpack.c.b16 %v688, %v686
        %v809 = vpack.c.b16 %v691, %v689
        %v810 = vpack.c.b16 %v692, %v690
        %v811 = vpack.c.b16 %v695, %v693
        %v812 = vpack.c.b16 %v696, %v694
        %v813 = vpack.c.b16 %v699, %v697
        %v814 = vpack.c.b16 %v700, %v698
        %v815 = vpack.c.b16 %v703, %v701
        %v816 = vpack.c.b16 %v704, %v702
        %v817 = vpack.c.b16 %v707, %v705
        %v818 = vpack.c.b16 %v708, %v706
        %v819 = vpack.c.b16 %v711, %v709
        %v820 = vpack.c.b16 %v712, %v710
        %v821 = vpack.c.b16 %v715, %v713
        %v822 = vpack.c.b16 %v716, %v714
        %v823 = vpack.c.b16 %v719, %v717
        %v824 = vpack.c.b16 %v720, %v718
        %v825 = vpack.c.b16 %v723, %v721
        %v826 = vpack.c.b16 %v724, %v722
        %v827 = vpack.c.b16 %v727, %v725
        %v828 = vpack.c.b16 %v728, %v726
        %v829 = vpack.c.b16 %v731, %v729
        %v830 = vpack.c.b16 %v732, %v730
        %v831 = vpack.c.b16 %v735, %v733
        %v832 = vpack.c.b16 %v736, %v734
        %v833 = vpack.c.b16 %v739, %v737
        %v834 = vpack.c.b16 %v740, %v738
        %v835 = vpack.c.b16 %v743, %v741
        %v836 = vpack.c.b16 %v744, %v742
        %v837 = vpack.c.b16 %v747, %v745
        %v838 = vpack.c.b16 %v748, %v746
        %v839 = vpack.c.b16 %v751, %v749
        %v840 = vpack.c.b16 %v752, %v750
        %v841 = vpack.c.b16 %v755, %v753
        %v842 = vpack.c.b16 %v756, %v754
        %v843 = vpack.c.b16 %v759, %v757
        %v844 = vpack.c.b16 %v760, %v758
        %v845 = vpack.c.b16 %v763, %v761
        %v846 = vpack.c.b16 %v764, %v762
        %v847 = vpack.c.b16 %v767, %v765
        %v848 = vpack.c.b16 %v768, %v766
        %v849 = vpack.c.b16 %v771, %v769
        %v850 = vpack.c.b16 %v772, %v770
        %v851 = vpack.c.b16 %v775, %v773
        %v852 = vpack.c.b16 %v776, %v774
        %v853 = vpack.c.b16 %v779, %v777
        %v854 = vpack.c.b16 %v780, %v778
        %v855 = vpack.c.b16 %v783, %v781
        %v856 = vpack.c.b16 %v784, %v782
        %v857 = vpack.c.b16 %v787, %v785
        %v858 = vpack.c.b16 %v788, %v786
        %v859 = vpack.c.b16 %v791, %v789
        %v860 = vpack.c.b16 %v792, %v790
        %v861 = vpack.c.b16 %v795, %v793
        %v862 = vpack.c.b16 %v796, %v794
        %v863 = vpack.c.b16 %v799, %v797
        %v864 = vpack.c.b16 %v800, %v798
        %929 = vmatpush.bf16.msra.mxu0 %v815
        %930 = vmatpush.bf16.msra.mxu0 %v813
        %931 = vmatpush.bf16.msra.mxu0 %v811
        %932 = vmatpush.bf16.msra.mxu0 %v809
        %933 = vmatpush.bf16.msra.mxu0 %v807
        %934 = vmatpush.bf16.msra.mxu0 %v805
        %935 = vmatpush.bf16.msra.mxu0 %v803
        %936 = vmatpush.bf16.msra.mxu0 %v801
        %937 = vmatmul.bf16.gmra.mxu0 %v601
        %v938 = vpop.f32.mrf.mxu0
        %v939 = vadd.f32 0.0, %v938
        %v940 = vpop.f32.mrf.mxu0
        %v941 = vadd.f32 0.0, %v940
        %942 = vdwg.mxu0
        %943 = vmatpush.bf16.msra.mxu0 %v831
        %944 = vmatpush.bf16.msra.mxu0 %v829
        %945 = vmatpush.bf16.msra.mxu0 %v827
        %946 = vmatpush.bf16.msra.mxu0 %v825
        %947 = vmatpush.bf16.msra.mxu0 %v823
        %948 = vmatpush.bf16.msra.mxu0 %v821
        %949 = vmatpush.bf16.msra.mxu0 %v819
        %950 = vmatpush.bf16.msra.mxu0 %v817
        %951 = vmatmul.bf16.gmra.mxu0 %v602
        %v952 = vpop.f32.mrf.mxu0
        %v953 = vadd.f32 %v939, %v952
        %v954 = vpop.f32.mrf.mxu0
        %v955 = vadd.f32 %v941, %v954
        %956 = vdwg.mxu0
        %957 = vmatpush.bf16.msra.mxu0 %v847
        %958 = vmatpush.bf16.msra.mxu0 %v845
        %959 = vmatpush.bf16.msra.mxu0 %v843
        %960 = vmatpush.bf16.msra.mxu0 %v841
        %961 = vmatpush.bf16.msra.mxu0 %v839
        %962 = vmatpush.bf16.msra.mxu0 %v837
        %963 = vmatpush.bf16.msra.mxu0 %v835
        %964 = vmatpush.bf16.msra.mxu0 %v833
        %965 = vmatmul.bf16.gmra.mxu0 %v603
        %v966 = vpop.f32.mrf.mxu0
        %v967 = vadd.f32 %v953, %v966
        %v968 = vpop.f32.mrf.mxu0
        %v969 = vadd.f32 %v955, %v968
        %970 = vdwg.mxu0
        %971 = vmatpush.bf16.msra.mxu0 %v863
        %972 = vmatpush.bf16.msra.mxu0 %v861
        %973 = vmatpush.bf16.msra.mxu0 %v859
        %974 = vmatpush.bf16.msra.mxu0 %v857
        %975 = vmatpush.bf16.msra.mxu0 %v855
        %976 = vmatpush.bf16.msra.mxu0 %v853
        %977 = vmatpush.bf16.msra.mxu0 %v851
        %978 = vmatpush.bf16.msra.mxu0 %v849
        %979 = vmatmul.bf16.gmra.mxu0 %v604
        %v980 = vpop.f32.mrf.mxu0
        %v981 = vadd.f32 %v967, %v980
        %v982 = vpop.f32.mrf.mxu0
        %v983 = vadd.f32 %v969, %v982
        %984 = vdwg.mxu0
        %985 = vmatpush.bf16.msra.mxu0 %v816
        %986 = vmatpush.bf16.msra.mxu0 %v814
        %987 = vmatpush.bf16.msra.mxu0 %v812
        %988 = vmatpush.bf16.msra.mxu0 %v810
        %989 = vmatpush.bf16.msra.mxu0 %v808
        %990 = vmatpush.bf16.msra.mxu0 %v806
        %991 = vmatpush.bf16.msra.mxu0 %v804
        %992 = vmatpush.bf16.msra.mxu0 %v802
        %993 = vmatmul.bf16.gmra.mxu0 %v601
        %v994 = vpop.f32.mrf.mxu0
        %v995 = vadd.f32 0.0, %v994
        %v996 = vpop.f32.mrf.mxu0
        %v997 = vadd.f32 0.0, %v996
        %998 = vdwg.mxu0
        %999 = vmatpush.bf16.msra.mxu0 %v832
        %1000 = vmatpush.bf16.msra.mxu0 %v830
        %1001 = vmatpush.bf16.msra.mxu0 %v828
        %1002 = vmatpush.bf16.msra.mxu0 %v826
        %1003 = vmatpush.bf16.msra.mxu0 %v824
        %1004 = vmatpush.bf16.msra.mxu0 %v822
        %1005 = vmatpush.bf16.msra.mxu0 %v820
        %1006 = vmatpush.bf16.msra.mxu0 %v818
        %1007 = vmatmul.bf16.gmra.mxu0 %v602
        %v1008 = vpop.f32.mrf.mxu0
        %v1009 = vadd.f32 %v995, %v1008
        %v1010 = vpop.f32.mrf.mxu0
        %v1011 = vadd.f32 %v997, %v1010
        %1012 = vdwg.mxu0
        %1013 = vmatpush.bf16.msra.mxu0 %v848
        %1014 = vmatpush.bf16.msra.mxu0 %v846
        %1015 = vmatpush.bf16.msra.mxu0 %v844
        %1016 = vmatpush.bf16.msra.mxu0 %v842
        %1017 = vmatpush.bf16.msra.mxu0 %v840
        %1018 = vmatpush.bf16.msra.mxu0 %v838
        %1019 = vmatpush.bf16.msra.mxu0 %v836
        %1020 = vmatpush.bf16.msra.mxu0 %v834
        %1021 = vmatmul.bf16.gmra.mxu0 %v603
        %v1022 = vpop.f32.mrf.mxu0
        %v1023 = vadd.f32 %v1009, %v1022
        %v1024 = vpop.f32.mrf.mxu0
        %v1025 = vadd.f32 %v1011, %v1024
        %1026 = vdwg.mxu0
        %1027 = vmatpush.bf16.msra.mxu0 %v864
        %1028 = vmatpush.bf16.msra.mxu0 %v862
        %1029 = vmatpush.bf16.msra.mxu0 %v860
        %1030 = vmatpush.bf16.msra.mxu0 %v858
        %1031 = vmatpush.bf16.msra.mxu0 %v856
        %1032 = vmatpush.bf16.msra.mxu0 %v854
        %1033 = vmatpush.bf16.msra.mxu0 %v852
        %1034 = vmatpush.bf16.msra.mxu0 %v850
        %1035 = vmatmul.bf16.gmra.mxu0 %v604
        %v1036 = vpop.f32.mrf.mxu0
        %v1037 = vadd.f32 %v1023, %v1036
        %v1038 = vpop.f32.mrf.mxu0
        %v1039 = vadd.f32 %v1025, %v1038
        %1040 = vdwg.mxu0
        %v1041 = vadd.f32 %v517, %v981
        %v1042 = vadd.f32 %v518, %v1037
        %v1043 = vadd.f32 %v519, %v983
        %v1044 = vadd.f32 %v520, %v1039
        %1045 = vst [vmem:[%s502] sm:$0xff] %v1041
        %1046 = vst [vmem:[%s502 + $0x8] sm:$0xff] %v1042
        %1047 = vst [vmem:[%s502 + $0x10] sm:$0xff] %v1043
        %1048 = vst [vmem:[%s502 + $0x18] sm:$0xff] %v1044
        %s1049 = sand.u32 %s98, 1
        %s1050 = sand.u32 %s98, 1
        %s1051 = smul.addr %s1050, 32
        %s1052 = scalar_lea.vmem [#allocation4], %s1051
        // Predicated region
        $region94: #{jvp__.71} parent=80 // pred_check
          %p1053 = pneg %p108
        $region95: #{jvp__.71} parent=80 // pred_check_branch
          %1055 = sbr.rel (%p1053) target = $region97
        $region96: #{jvp__.71} parent=80 // pred_region
          %s1056 = smul.u32 2, %s18
          %s1057 = smul.u32 2, %s19
          %s1058 = smul.addr %s1056, 4
          %s1059 = sadd.s32 %s1057, %s1058
          %s1060 = smul.addr %s1059, 8
          %s1061 = scalar_lea.vmem %s2, %s1060
          // Predicated region
          $region98: #{jvp__.71} parent=96 // pred_check
            _
          $region99: #{jvp__.71} parent=96 // pred_check_branch
            %1063 = sbr.rel (0) target = $region101
          $region100: #{jvp__.71} parent=96 // pred_region
            // Predicated region
            $region102: #{jvp__.71} parent=100 // pred_check
              _
            $region103: #{jvp__.71} parent=100 // pred_check_branch
              %1065 = sbr.rel (0) target = $region105
            $region104: #{jvp__.71} parent=100 // pred_region
              loop: start=0, step=1, limit=1
              $region106: #{jvp__.71} parent=104 // loop_pre_header
                _
              $region107: #{jvp__.71} parent=104 // loop_header
                %s1067 = sphi 0, %s1071
                %p1068 = scmp.ge.s32.totalorder %s1067, 1
                %s1072 = sphi %s1052, %s1052
                %s1073 = sphi %s1061, %s1061
              $region108: #{jvp__.71} parent=104 // loop_header_branch
                %1070 = sbr.rel (%p1068) target = $region112
              $region109: #{jvp__.71} parent=104 // loop_body
                %v1074 = vld [vmem:[%s1072] sm:$0xff]
                %1075 = vst [vmem:[%s1073] sm:$0xff] %v1074
                %v1076 = vld [vmem:[%s1072 + $0x8] sm:$0xff]
                %1077 = vst [vmem:[%s1073 + $0x8] sm:$0xff] %v1076
                %v1078 = vld [vmem:[%s1072 + $0x10] sm:$0xff]
                %1079 = vst [vmem:[%s1073 + $0x20] sm:$0xff] %v1078
                %v1080 = vld [vmem:[%s1072 + $0x18] sm:$0xff]
                %1081 = vst [vmem:[%s1073 + $0x28] sm:$0xff] %v1080
              $region110: #{jvp__.71} parent=104 // loop_footer
                %s1071 = sadd.s32 1, %s1067
              $region111: #{jvp__.71} parent=104 // loop_footer_branch
                %1066 = sbr.rel target = $region107
              $region112: #{jvp__.71} parent=104 // loop_exit
                _
            $region105: #{jvp__.71} parent=100 // pred_fallthru
              _
            // Predicated region
            $region113: #{jvp__.71} parent=100 // pred_check
              _
            $region114: #{jvp__.71} parent=100 // pred_check_branch
              %1083 = sbr.rel target = $region116
            $region115: #{jvp__.71} parent=100 // pred_region
              _
            $region116: #{jvp__.71} parent=100 // pred_fallthru
              _
          $region101: #{jvp__.71} parent=96 // pred_fallthru
            _
          %1084 = vnop
        $region97: #{jvp__.71} parent=80 // pred_fallthru
          _
      $region81: #{jvp__.71} parent=5 // pred_fallthru
        _
      %p1085 = scmp.le.s32.totalorder 2, %s8
      // Predicated region
      $region117: #{jvp__.71} parent=5 // pred_check
        %p1086 = pneg %p1085
      $region118: #{jvp__.71} parent=5 // pred_check_branch
        %1088 = sbr.rel (%p1086) target = $region120
      $region119: #{jvp__.71} parent=5 // pred_region
        %s1089 = ssub.s32 %s8, 2
        // Predicated region
        $region121: #{jvp__.71} parent=119 // pred_check
          %p1090 = pneg %p114
        $region122: #{jvp__.71} parent=119 // pred_check_branch
          %1092 = sbr.rel (%p1090) target = $region124
        $region123: #{jvp__.71} parent=119 // pred_region
          %s1093 = sand.u32 %s99, 1
          %s1094 = sand.u32 %s99, 1
          %s1095 = smul.addr %s1094, 32
          %s1096 = scalar_lea.vmem [#allocation4], %s1095
        $region124: #{jvp__.71} parent=119 // pred_fallthru
          _
      $region120: #{jvp__.71} parent=5 // pred_fallthru
        _
    $region6: #{jvp__.71} parent=1 // loop_footer
      %s12 = sadd.s32 1, %s8
    $region7: #{jvp__.71} parent=1 // loop_footer_branch
      %7 = sbr.rel target = $region3
    $region8: #{jvp__.71} parent=1 // loop_exit
      _

// kernel: jvp__.72
$region0: #{jvp__.72}
  #allocation0 [shape = 'u32[]', space=smem, size = 0x4, offset = 0x4, fixed_abs, tag = 'smem constant byte address 0x4 - core index']
  #allocation1 [shape = 'u32[72,128]{1,0:T(1,128)}', space=vmem, size = 0x9000, scoped, tag = 'internal scratch']
  %s0 = inlined_call_operand.vmem [shape: bf16[16,4608], index: 0, kind: input, shape index: {}]
  %s1 = inlined_call_operand.vmem [shape: bf16[4608,512], index: 1, kind: input, shape index: {}]
  %s2 = inlined_call_operand.vmem [shape: f32[16,512], index: 2, kind: output, shape index: {}]
  %s3 = sld [smem:[#allocation0]]
  $region125: #{jvp__.72} parent=0
    _
  %s5 = ssub.s32 1, %s3
  %s6 = scalar_select 0, %s5, %s3
  $region1: #{jvp__.72} parent=0
    #allocation2 [shape = 'u8[32768]{0}', space=vmem, size = 0x8000, scoped, tag = 'input window, operand 0']
    #allocation3 [shape = 'u8[524288]{0}', space=vmem, size = 0x80000, scoped, tag = 'input window, operand 1']
    #allocation4 [shape = 'u8[32768]{0}', space=vmem, size = 0x8000, scoped, tag = 'output window, operand 0']
    loop: start=0, step=1, limit=20
    $region2: #{jvp__.72} parent=1 // loop_pre_header
      _
    $region3: #{jvp__.72} parent=1 // loop_header
      %s8 = sphi 0, %s12
      %p9 = scmp.ge.s32.totalorder %s8, 20
      %s15 = sphi 0, %s34
      %s16 = sphi 0, %s30
      %s17 = sphi 0, %s26
      %s18 = sphi 0, %s15
      %s19 = sphi 0, %s16
      %s20 = sphi 0, %s17
      %s21 = sphi 0, %s18
      %s22 = sphi 0, %s19
      %s23 = sphi 0, %s20
      %s39 = sphi 0, %s41
      %s42 = sphi 0, %s39
      %s43 = sphi 0, %s42
      %s59 = sphi 0, %s43
      %s67 = sphi 0, %s69
      %s70 = sphi 0, %s67
      %s71 = sphi 0, %s70
      %s87 = sphi 0, %s71
      %s95 = sphi 0, %s97
      %s98 = sphi 0, %s95
      %s99 = sphi 0, %s98
      %s115 = sphi 0, %s99
    $region4: #{jvp__.72} parent=1 // loop_header_branch
      %11 = sbr.rel (%p9) target = $region8
    $region5: #{jvp__.72} parent=1 // loop_body
      %s13 = ssub.s32 %s8, 1
      %s14 = ssub.s32 %s8, 2
      %s24 = sadd.s32 1, %s17
      %p25 = scmp.ge.s32.totalorder %s24, 9
      %s26 = scalar_select %p25, 0, %s24
      %s27 = sadd.s32 1, %s16
      %s28 = scalar_select %p25, %s27, %s16
      %p29 = scmp.ge.s32.totalorder %s28, 2
      %s30 = scalar_select %p29, 0, %s28
      %s31 = sadd.s32 1, %s15
      %s32 = scalar_select %p29, %s31, %s15
      %p33 = scmp.ge.s32.totalorder %s32, 1
      %s34 = scalar_select %p33, 0, %s32
      %s35 = ssub.s32 %s15, %s34
      %s36 = ssub.s32 %s17, %s26
      %s37 = sor.u32 %s35, %s36
      %p38 = scmp.eq.s32.totalorder %s37, 0
      %s40 = sadd.s32 %s39, 1
      %s41 = scalar_select %p38, %s39, %s40
      %p44 = pneg %p38
      %p45 = scmp.eq.s32.totalorder %s8, 17
      %p46 = por %p44, %p45
      %p47 = scmp.ne.s32.totalorder %s39, %s42
      %p48 = scmp.eq.s32.totalorder %s8, 0
      %p49 = por %p47, %p48
      %p50 = scmp.ne.s32.totalorder %s39, %s42
      %p51 = scmp.eq.s32.totalorder %s13, 17
      %p52 = por %p50, %p51
      %p53 = scmp.ne.s32.totalorder %s42, %s43
      %p54 = scmp.eq.s32.totalorder %s13, 0
      %p55 = por %p53, %p54
      %p56 = scmp.ne.s32.totalorder %s42, %s43
      %p57 = scmp.eq.s32.totalorder %s14, 17
      %p58 = por %p56, %p57
      %p60 = scmp.ne.s32.totalorder %s43, %s59
      %p61 = scmp.eq.s32.totalorder %s14, 0
      %p62 = por %p60, %p61
      %s63 = ssub.s32 %s17, %s26
      %s64 = ssub.s32 %s16, %s30
      %s65 = sor.u32 %s63, %s64
      %p66 = scmp.eq.s32.totalorder %s65, 0
      %s68 = sadd.s32 %s67, 1
      %s69 = scalar_select %p66, %s67, %s68
      %p72 = pneg %p66
      %p73 = scmp.eq.s32.totalorder %s8, 17
      %p74 = por %p72, %p73
      %p75 = scmp.ne.s32.totalorder %s67, %s70
      %p76 = scmp.eq.s32.totalorder %s8, 0
      %p77 = por %p75, %p76
      %p78 = scmp.ne.s32.totalorder %s67, %s70
      %p79 = scmp.eq.s32.totalorder %s13, 17
      %p80 = por %p78, %p79
      %p81 = scmp.ne.s32.totalorder %s70, %s71
      %p82 = scmp.eq.s32.totalorder %s13, 0
      %p83 = por %p81, %p82
      %p84 = scmp.ne.s32.totalorder %s70, %s71
      %p85 = scmp.eq.s32.totalorder %s14, 17
      %p86 = por %p84, %p85
      %p88 = scmp.ne.s32.totalorder %s71, %s87
      %p89 = scmp.eq.s32.totalorder %s14, 0
      %p90 = por %p88, %p89
      %s91 = ssub.s32 %s15, %s34
      %s92 = ssub.s32 %s16, %s30
      %s93 = sor.u32 %s91, %s92
      %p94 = scmp.eq.s32.totalorder %s93, 0
      %s96 = sadd.s32 %s95, 1
      %s97 = scalar_select %p94, %s95, %s96
      %p100 = pneg %p94
      %p101 = scmp.eq.s32.totalorder %s8, 17
      %p102 = por %p100, %p101
      %p103 = scmp.ne.s32.totalorder %s95, %s98
      %p104 = scmp.eq.s32.totalorder %s8, 0
      %p105 = por %p103, %p104
      %p106 = scmp.ne.s32.totalorder %s95, %s98
      %p107 = scmp.eq.s32.totalorder %s13, 17
      %p108 = por %p106, %p107
      %p109 = scmp.ne.s32.totalorder %s98, %s99
      %p110 = scmp.eq.s32.totalorder %s13, 0
      %p111 = por %p109, %p110
      %p112 = scmp.ne.s32.totalorder %s98, %s99
      %p113 = scmp.eq.s32.totalorder %s14, 17
      %p114 = por %p112, %p113
      %p116 = scmp.ne.s32.totalorder %s99, %s115
      %p117 = scmp.eq.s32.totalorder %s14, 0
      %p118 = por %p116, %p117
      %p119 = scmp.le.s32.totalorder 1, %s8
      %p120 = scmp.lt.s32.totalorder %s8, 19
      %p121 = pnand %p119, %p120
      %p122 = pneg %p121
      // Predicated region
      $region9: #{jvp__.72} parent=5 // pred_check
        _
      $region10: #{jvp__.72} parent=5 // pred_check_branch
        %124 = sbr.rel (%p121) target = $region12
      $region11: #{jvp__.72} parent=5 // pred_region
        %s125 = ssub.s32 %s8, 1
      $region12: #{jvp__.72} parent=5 // pred_fallthru
        _
      %p126 = scmp.lt.s32.totalorder %s8, 18
      // Predicated region
      $region13: #{jvp__.72} parent=5 // pred_check
        %p127 = pneg %p126
      $region14: #{jvp__.72} parent=5 // pred_check_branch
        %129 = sbr.rel (%p127) target = $region16
      $region15: #{jvp__.72} parent=5 // pred_region
        // Predicated region
        $region17: #{jvp__.72} parent=15 // pred_check
          %p130 = pneg %p49
        $region18: #{jvp__.72} parent=15 // pred_check_branch
          %132 = sbr.rel (%p130) target = $region20
        $region19: #{jvp__.72} parent=15 // pred_region
          %s133 = sand.u32 %s39, 1
          %s134 = sand.u32 %s39, 1
          %s135 = smul.addr %s134, 32
          %s136 = scalar_lea.vmem [#allocation2], %s135
          %s137 = smul.u32 2, %s15
          %s138 = smul.u32 4, %s17
          %s139 = smul.addr %s137, 36
          %s140 = sadd.s32 %s138, %s139
          %s141 = smul.addr %s140, 4
          %s142 = scalar_lea.vmem %s0, %s141
          // Predicated region
          $region21: #{jvp__.72} parent=19 // pred_check
            _
          $region22: #{jvp__.72} parent=19 // pred_check_branch
            %144 = sbr.rel (0) target = $region24
          $region23: #{jvp__.72} parent=19 // pred_region
            // Predicated region
            $region25: #{jvp__.72} parent=23 // pred_check
              _
            $region26: #{jvp__.72} parent=23 // pred_check_branch
              %146 = sbr.rel (0) target = $region28
            $region27: #{jvp__.72} parent=23 // pred_region
              loop: start=0, step=1, limit=1
              $region29: #{jvp__.72} parent=27 // loop_pre_header
                _
              $region30: #{jvp__.72} parent=27 // loop_header
                %s148 = sphi 0, %s152
                %p149 = scmp.ge.s32.totalorder %s148, 1
                %s153 = sphi %s142, %s142
                %s154 = sphi %s136, %s136
              $region31: #{jvp__.72} parent=27 // loop_header_branch
                %151 = sbr.rel (%p149) target = $region35
              $region32: #{jvp__.72} parent=27 // loop_body
                %v155 = vld [vmem:[%s153] sm:$0xff]
                %156 = vst [vmem:[%s154] sm:$0xff] %v155
                %v157 = vld [vmem:[%s153 + $0x8] sm:$0xff]
                %158 = vst [vmem:[%s154 + $0x8] sm:$0xff] %v157
                %v159 = vld [vmem:[%s153 + $0x90] sm:$0xff]
                %160 = vst [vmem:[%s154 + $0x10] sm:$0xff] %v159
                %v161 = vld [vmem:[%s153 + $0x98] sm:$0xff]
                %162 = vst [vmem:[%s154 + $0x18] sm:$0xff] %v161
              $region33: #{jvp__.72} parent=27 // loop_footer
                %s152 = sadd.s32 1, %s148
              $region34: #{jvp__.72} parent=27 // loop_footer_branch
                %147 = sbr.rel target = $region30
              $region35: #{jvp__.72} parent=27 // loop_exit
                _
            $region28: #{jvp__.72} parent=23 // pred_fallthru
              _
            // Predicated region
            $region36: #{jvp__.72} parent=23 // pred_check
              _
            $region37: #{jvp__.72} parent=23 // pred_check_branch
              %164 = sbr.rel target = $region39
            $region38: #{jvp__.72} parent=23 // pred_region
              _
            $region39: #{jvp__.72} parent=23 // pred_fallthru
              _
          $region24: #{jvp__.72} parent=19 // pred_fallthru
            _
          %165 = vnop
        $region20: #{jvp__.72} parent=15 // pred_fallthru
          _
        // Predicated region
        $region40: #{jvp__.72} parent=15 // pred_check
          %p166 = pneg %p77
        $region41: #{jvp__.72} parent=15 // pred_check_branch
          %168 = sbr.rel (%p166) target = $region43
        $region42: #{jvp__.72} parent=15 // pred_region
          %s169 = sand.u32 %s67, 1
          %s170 = sand.u32 %s67, 1
          %s171 = smul.addr %s170, 512
          %s172 = scalar_lea.vmem [#allocation3], %s171
          %s173 = smul.u32 64, %s17
          %s174 = smul.u32 2, %s16
          %s175 = smul.addr %s173, 4
          %s176 = sadd.s32 %s174, %s175
          %s177 = smul.addr %s176, 4
          %s178 = scalar_lea.vmem %s1, %s177
          // Predicated region
          $region44: #{jvp__.72} parent=42 // pred_check
            _
          $region45: #{jvp__.72} parent=42 // pred_check_branch
            %180 = sbr.rel (0) target = $region47
          $region46: #{jvp__.72} parent=42 // pred_region
            // Predicated region
            $region48: #{jvp__.72} parent=46 // pred_check
              _
            $region49: #{jvp__.72} parent=46 // pred_check_branch
              %182 = sbr.rel (0) target = $region51
            $region50: #{jvp__.72} parent=46 // pred_region
              // Predicated region
              $region63: #{jvp__.72} parent=50 // pred_check
                _
              $region64: #{jvp__.72} parent=50 // pred_check_branch
                %324 = sbr.rel (0) target = $region66
              $region65: #{jvp__.72} parent=50 // pred_region
                loop: start=0, step=1, limit=1
                $region67: #{jvp__.72} parent=65 // loop_pre_header
                  _
                $region68: #{jvp__.72} parent=65 // loop_header
                  %s326 = sphi 0, %s330
                  %p327 = scmp.ge.s32.totalorder %s326, 1
                  %s331 = sphi %s178, %s178
                  %s332 = sphi %s172, %s172
                $region69: #{jvp__.72} parent=65 // loop_header_branch
                  %329 = sbr.rel (%p327) target = $region73
                $region70: #{jvp__.72} parent=65 // loop_body
                  %v333 = vld [vmem:[%s331] sm:$0xff]
                  %334 = vst [vmem:[%s332] sm:$0xff] %v333
                  %v335 = vld [vmem:[%s331 + $0x10] sm:$0xff]
                  %336 = vst [vmem:[%s332 + $0x8] sm:$0xff] %v335
                  %v337 = vld [vmem:[%s331 + $0x20] sm:$0xff]
                  %338 = vst [vmem:[%s332 + $0x10] sm:$0xff] %v337
                  %v339 = vld [vmem:[%s331 + $0x30] sm:$0xff]
                  %340 = vst [vmem:[%s332 + $0x18] sm:$0xff] %v339
                  %v341 = vld [vmem:[%s331 + $0x40] sm:$0xff]
                  %342 = vst [vmem:[%s332 + $0x20] sm:$0xff] %v341
                  %v343 = vld [vmem:[%s331 + $0x50] sm:$0xff]
                  %344 = vst [vmem:[%s332 + $0x28] sm:$0xff] %v343
                  %v345 = vld [vmem:[%s331 + $0x60] sm:$0xff]
                  %346 = vst [vmem:[%s332 + $0x30] sm:$0xff] %v345
                  %v347 = vld [vmem:[%s331 + $0x70] sm:$0xff]
                  %348 = vst [vmem:[%s332 + $0x38] sm:$0xff] %v347
                  %v349 = vld [vmem:[%s331 + $0x80] sm:$0xff]
                  %350 = vst [vmem:[%s332 + $0x40] sm:$0xff] %v349
                  %v351 = vld [vmem:[%s331 + $0x90] sm:$0xff]
                  %352 = vst [vmem:[%s332 + $0x48] sm:$0xff] %v351
                  %v353 = vld [vmem:[%s331 + $0xa0] sm:$0xff]
                  %354 = vst [vmem:[%s332 + $0x50] sm:$0xff] %v353
                  %v355 = vld [vmem:[%s331 + $0xb0] sm:$0xff]
                  %356 = vst [vmem:[%s332 + $0x58] sm:$0xff] %v355
                  %v357 = vld [vmem:[%s331 + $0xc0] sm:$0xff]
                  %358 = vst [vmem:[%s332 + $0x60] sm:$0xff] %v357
                  %v359 = vld [vmem:[%s331 + $0xd0] sm:$0xff]
                  %360 = vst [vmem:[%s332 + $0x68] sm:$0xff] %v359
                  %v361 = vld [vmem:[%s331 + $0xe0] sm:$0xff]
                  %362 = vst [vmem:[%s332 + $0x70] sm:$0xff] %v361
                  %v363 = vld [vmem:[%s331 + $0xf0] sm:$0xff]
                  %364 = vst [vmem:[%s332 + $0x78] sm:$0xff] %v363
                  %v365 = vld [vmem:[%s331 + $0x100] sm:$0xff]
                  %366 = vst [vmem:[%s332 + $0x80] sm:$0xff] %v365
                  %v367 = vld [vmem:[%s331 + $0x110] sm:$0xff]
                  %368 = vst [vmem:[%s332 + $0x88] sm:$0xff] %v367
                  %v369 = vld [vmem:[%s331 + $0x120] sm:$0xff]
                  %370 = vst [vmem:[%s332 + $0x90] sm:$0xff] %v369
                  %v371 = vld [vmem:[%s331 + $0x130] sm:$0xff]
                  %372 = vst [vmem:[%s332 + $0x98] sm:$0xff] %v371
                  %v373 = vld [vmem:[%s331 + $0x140] sm:$0xff]
                  %374 = vst [vmem:[%s332 + $0xa0] sm:$0xff] %v373
                  %v375 = vld [vmem:[%s331 + $0x150] sm:$0xff]
                  %376 = vst [vmem:[%s332 + $0xa8] sm:$0xff] %v375
                  %v377 = vld [vmem:[%s331 + $0x160] sm:$0xff]
                  %378 = vst [vmem:[%s332 + $0xb0] sm:$0xff] %v377
                  %v379 = vld [vmem:[%s331 + $0x170] sm:$0xff]
                  %380 = vst [vmem:[%s332 + $0xb8] sm:$0xff] %v379
                  %v381 = vld [vmem:[%s331 + $0x180] sm:$0xff]
                  %382 = vst [vmem:[%s332 + $0xc0] sm:$0xff] %v381
                  %v383 = vld [vmem:[%s331 + $0x190] sm:$0xff]
                  %384 = vst [vmem:[%s332 + $0xc8] sm:$0xff] %v383
                  %v385 = vld [vmem:[%s331 + $0x1a0] sm:$0xff]
                  %386 = vst [vmem:[%s332 + $0xd0] sm:$0xff] %v385
                  %v387 = vld [vmem:[%s331 + $0x1b0] sm:$0xff]
                  %388 = vst [vmem:[%s332 + $0xd8] sm:$0xff] %v387
                  %v389 = vld [vmem:[%s331 + $0x1c0] sm:$0xff]
                  %390 = vst [vmem:[%s332 + $0xe0] sm:$0xff] %v389
                  %v391 = vld [vmem:[%s331 + $0x1d0] sm:$0xff]
                  %392 = vst [vmem:[%s332 + $0xe8] sm:$0xff] %v391
                  %v393 = vld [vmem:[%s331 + $0x1e0] sm:$0xff]
                  %394 = vst [vmem:[%s332 + $0xf0] sm:$0xff] %v393
                  %v395 = vld [vmem:[%s331 + $0x1f0] sm:$0xff]
                  %396 = vst [vmem:[%s332 + $0xf8] sm:$0xff] %v395
                  %v397 = vld [vmem:[%s331 + $0x200] sm:$0xff]
                  %398 = vst [vmem:[%s332 + $0x100] sm:$0xff] %v397
                  %v399 = vld [vmem:[%s331 + $0x210] sm:$0xff]
                  %400 = vst [vmem:[%s332 + $0x108] sm:$0xff] %v399
                  %v401 = vld [vmem:[%s331 + $0x220] sm:$0xff]
                  %402 = vst [vmem:[%s332 + $0x110] sm:$0xff] %v401
                  %v403 = vld [vmem:[%s331 + $0x230] sm:$0xff]
                  %404 = vst [vmem:[%s332 + $0x118] sm:$0xff] %v403
                  %v405 = vld [vmem:[%s331 + $0x240] sm:$0xff]
                  %406 = vst [vmem:[%s332 + $0x120] sm:$0xff] %v405
                  %v407 = vld [vmem:[%s331 + $0x250] sm:$0xff]
                  %408 = vst [vmem:[%s332 + $0x128] sm:$0xff] %v407
                  %v409 = vld [vmem:[%s331 + $0x260] sm:$0xff]
                  %410 = vst [vmem:[%s332 + $0x130] sm:$0xff] %v409
                  %v411 = vld [vmem:[%s331 + $0x270] sm:$0xff]
                  %412 = vst [vmem:[%s332 + $0x138] sm:$0xff] %v411
                  %v413 = vld [vmem:[%s331 + $0x280] sm:$0xff]
                  %414 = vst [vmem:[%s332 + $0x140] sm:$0xff] %v413
                  %v415 = vld [vmem:[%s331 + $0x290] sm:$0xff]
                  %416 = vst [vmem:[%s332 + $0x148] sm:$0xff] %v415
                  %v417 = vld [vmem:[%s331 + $0x2a0] sm:$0xff]
                  %418 = vst [vmem:[%s332 + $0x150] sm:$0xff] %v417
                  %v419 = vld [vmem:[%s331 + $0x2b0] sm:$0xff]
                  %420 = vst [vmem:[%s332 + $0x158] sm:$0xff] %v419
                  %v421 = vld [vmem:[%s331 + $0x2c0] sm:$0xff]
                  %422 = vst [vmem:[%s332 + $0x160] sm:$0xff] %v421
                  %v423 = vld [vmem:[%s331 + $0x2d0] sm:$0xff]
                  %424 = vst [vmem:[%s332 + $0x168] sm:$0xff] %v423
                  %v425 = vld [vmem:[%s331 + $0x2e0] sm:$0xff]
                  %426 = vst [vmem:[%s332 + $0x170] sm:$0xff] %v425
                  %v427 = vld [vmem:[%s331 + $0x2f0] sm:$0xff]
                  %428 = vst [vmem:[%s332 + $0x178] sm:$0xff] %v427
                  %v429 = vld [vmem:[%s331 + $0x300] sm:$0xff]
                  %430 = vst [vmem:[%s332 + $0x180] sm:$0xff] %v429
                  %v431 = vld [vmem:[%s331 + $0x310] sm:$0xff]
                  %432 = vst [vmem:[%s332 + $0x188] sm:$0xff] %v431
                  %v433 = vld [vmem:[%s331 + $0x320] sm:$0xff]
                  %434 = vst [vmem:[%s332 + $0x190] sm:$0xff] %v433
                  %v435 = vld [vmem:[%s331 + $0x330] sm:$0xff]
                  %436 = vst [vmem:[%s332 + $0x198] sm:$0xff] %v435
                  %v437 = vld [vmem:[%s331 + $0x340] sm:$0xff]
                  %438 = vst [vmem:[%s332 + $0x1a0] sm:$0xff] %v437
                  %v439 = vld [vmem:[%s331 + $0x350] sm:$0xff]
                  %440 = vst [vmem:[%s332 + $0x1a8] sm:$0xff] %v439
                  %v441 = vld [vmem:[%s331 + $0x360] sm:$0xff]
                  %442 = vst [vmem:[%s332 + $0x1b0] sm:$0xff] %v441
                  %v443 = vld [vmem:[%s331 + $0x370] sm:$0xff]
                  %444 = vst [vmem:[%s332 + $0x1b8] sm:$0xff] %v443
                  %v445 = vld [vmem:[%s331 + $0x380] sm:$0xff]
                  %446 = vst [vmem:[%s332 + $0x1c0] sm:$0xff] %v445
                  %v447 = vld [vmem:[%s331 + $0x390] sm:$0xff]
                  %448 = vst [vmem:[%s332 + $0x1c8] sm:$0xff] %v447
                  %v449 = vld [vmem:[%s331 + $0x3a0] sm:$0xff]
                  %450 = vst [vmem:[%s332 + $0x1d0] sm:$0xff] %v449
                  %v451 = vld [vmem:[%s331 + $0x3b0] sm:$0xff]
                  %452 = vst [vmem:[%s332 + $0x1d8] sm:$0xff] %v451
                  %v453 = vld [vmem:[%s331 + $0x3c0] sm:$0xff]
                  %454 = vst [vmem:[%s332 + $0x1e0] sm:$0xff] %v453
                  %v455 = vld [vmem:[%s331 + $0x3d0] sm:$0xff]
                  %456 = vst [vmem:[%s332 + $0x1e8] sm:$0xff] %v455
                  %v457 = vld [vmem:[%s331 + $0x3e0] sm:$0xff]
                  %458 = vst [vmem:[%s332 + $0x1f0] sm:$0xff] %v457
                  %v459 = vld [vmem:[%s331 + $0x3f0] sm:$0xff]
                  %460 = vst [vmem:[%s332 + $0x1f8] sm:$0xff] %v459
                $region71: #{jvp__.72} parent=65 // loop_footer
                  %s330 = sadd.s32 1, %s326
                $region72: #{jvp__.72} parent=65 // loop_footer_branch
                  %325 = sbr.rel target = $region68
                $region73: #{jvp__.72} parent=65 // loop_exit
                  _
              $region66: #{jvp__.72} parent=50 // pred_fallthru
                _
              // Predicated region
              $region74: #{jvp__.72} parent=50 // pred_check
                _
              $region75: #{jvp__.72} parent=50 // pred_check_branch
                %462 = sbr.rel target = $region77
              $region76: #{jvp__.72} parent=50 // pred_region
                _
              $region77: #{jvp__.72} parent=50 // pred_fallthru
                _
            $region51: #{jvp__.72} parent=46 // pred_fallthru
              _
            // Predicated region
            $region52: #{jvp__.72} parent=46 // pred_check
              _
            $region53: #{jvp__.72} parent=46 // pred_check_branch
              %184 = sbr.rel target = $region55
            $region54: #{jvp__.72} parent=46 // pred_region
              %s186 = ssub.s32 256, 1
              loop: start=0, step=1, limit=1
              $region56: #{jvp__.72} parent=54 // loop_pre_header
                _
              $region57: #{jvp__.72} parent=54 // loop_header
                %s188 = sphi 0, %s192
                %p189 = scmp.ge.s32.totalorder %s188, 1
                %s193 = sphi %s178, %s178
                %s194 = sphi %s172, %s172
              $region58: #{jvp__.72} parent=54 // loop_header_branch
                %191 = sbr.rel (%p189) target = $region62
              $region59: #{jvp__.72} parent=54 // loop_body
                %v195 = vld [vmem:[%s193] sm:%s186]
                %196 = vst [vmem:[%s194] sm:%s186] %v195
                %v197 = vld [vmem:[%s193 + $0x10] sm:%s186]
                %198 = vst [vmem:[%s194 + $0x8] sm:%s186] %v197
                %v199 = vld [vmem:[%s193 + $0x20] sm:%s186]
                %200 = vst [vmem:[%s194 + $0x10] sm:%s186] %v199
                %v201 = vld [vmem:[%s193 + $0x30] sm:%s186]
                %202 = vst [vmem:[%s194 + $0x18] sm:%s186] %v201
                %v203 = vld [vmem:[%s193 + $0x40] sm:%s186]
                %204 = vst [vmem:[%s194 + $0x20] sm:%s186] %v203
                %v205 = vld [vmem:[%s193 + $0x50] sm:%s186]
                %206 = vst [vmem:[%s194 + $0x28] sm:%s186] %v205
                %v207 = vld [vmem:[%s193 + $0x60] sm:%s186]
                %208 = vst [vmem:[%s194 + $0x30] sm:%s186] %v207
                %v209 = vld [vmem:[%s193 + $0x70] sm:%s186]
                %210 = vst [vmem:[%s194 + $0x38] sm:%s186] %v209
                %v211 = vld [vmem:[%s193 + $0x80] sm:%s186]
                %212 = vst [vmem:[%s194 + $0x40] sm:%s186] %v211
                %v213 = vld [vmem:[%s193 + $0x90] sm:%s186]
                %214 = vst [vmem:[%s194 + $0x48] sm:%s186] %v213
                %v215 = vld [vmem:[%s193 + $0xa0] sm:%s186]
                %216 = vst [vmem:[%s194 + $0x50] sm:%s186] %v215
                %v217 = vld [vmem:[%s193 + $0xb0] sm:%s186]
                %218 = vst [vmem:[%s194 + $0x58] sm:%s186] %v217
                %v219 = vld [vmem:[%s193 + $0xc0] sm:%s186]
                %220 = vst [vmem:[%s194 + $0x60] sm:%s186] %v219
                %v221 = vld [vmem:[%s193 + $0xd0] sm:%s186]
                %222 = vst [vmem:[%s194 + $0x68] sm:%s186] %v221
                %v223 = vld [vmem:[%s193 + $0xe0] sm:%s186]
                %224 = vst [vmem:[%s194 + $0x70] sm:%s186] %v223
                %v225 = vld [vmem:[%s193 + $0xf0] sm:%s186]
                %226 = vst [vmem:[%s194 + $0x78] sm:%s186] %v225
                %v227 = vld [vmem:[%s193 + $0x100] sm:%s186]
                %228 = vst [vmem:[%s194 + $0x80] sm:%s186] %v227
                %v229 = vld [vmem:[%s193 + $0x110] sm:%s186]
                %230 = vst [vmem:[%s194 + $0x88] sm:%s186] %v229
                %v231 = vld [vmem:[%s193 + $0x120] sm:%s186]
                %232 = vst [vmem:[%s194 + $0x90] sm:%s186] %v231
                %v233 = vld [vmem:[%s193 + $0x130] sm:%s186]
                %234 = vst [vmem:[%s194 + $0x98] sm:%s186] %v233
                %v235 = vld [vmem:[%s193 + $0x140] sm:%s186]
                %236 = vst [vmem:[%s194 + $0xa0] sm:%s186] %v235
                %v237 = vld [vmem:[%s193 + $0x150] sm:%s186]
                %238 = vst [vmem:[%s194 + $0xa8] sm:%s186] %v237
                %v239 = vld [vmem:[%s193 + $0x160] sm:%s186]
                %240 = vst [vmem:[%s194 + $0xb0] sm:%s186] %v239
                %v241 = vld [vmem:[%s193 + $0x170] sm:%s186]
                %242 = vst [vmem:[%s194 + $0xb8] sm:%s186] %v241
                %v243 = vld [vmem:[%s193 + $0x180] sm:%s186]
                %244 = vst [vmem:[%s194 + $0xc0] sm:%s186] %v243
                %v245 = vld [vmem:[%s193 + $0x190] sm:%s186]
                %246 = vst [vmem:[%s194 + $0xc8] sm:%s186] %v245
                %v247 = vld [vmem:[%s193 + $0x1a0] sm:%s186]
                %248 = vst [vmem:[%s194 + $0xd0] sm:%s186] %v247
                %v249 = vld [vmem:[%s193 + $0x1b0] sm:%s186]
                %250 = vst [vmem:[%s194 + $0xd8] sm:%s186] %v249
                %v251 = vld [vmem:[%s193 + $0x1c0] sm:%s186]
                %252 = vst [vmem:[%s194 + $0xe0] sm:%s186] %v251
                %v253 = vld [vmem:[%s193 + $0x1d0] sm:%s186]
                %254 = vst [vmem:[%s194 + $0xe8] sm:%s186] %v253
                %v255 = vld [vmem:[%s193 + $0x1e0] sm:%s186]
                %256 = vst [vmem:[%s194 + $0xf0] sm:%s186] %v255
                %v257 = vld [vmem:[%s193 + $0x1f0] sm:%s186]
                %258 = vst [vmem:[%s194 + $0xf8] sm:%s186] %v257
                %v259 = vld [vmem:[%s193 + $0x200] sm:%s186]
                %260 = vst [vmem:[%s194 + $0x100] sm:%s186] %v259
                %v261 = vld [vmem:[%s193 + $0x210] sm:%s186]
                %262 = vst [vmem:[%s194 + $0x108] sm:%s186] %v261
                %v263 = vld [vmem:[%s193 + $0x220] sm:%s186]
                %264 = vst [vmem:[%s194 + $0x110] sm:%s186] %v263
                %v265 = vld [vmem:[%s193 + $0x230] sm:%s186]
                %266 = vst [vmem:[%s194 + $0x118] sm:%s186] %v265
                %v267 = vld [vmem:[%s193 + $0x240] sm:%s186]
                %268 = vst [vmem:[%s194 + $0x120] sm:%s186] %v267
                %v269 = vld [vmem:[%s193 + $0x250] sm:%s186]
                %270 = vst [vmem:[%s194 + $0x128] sm:%s186] %v269
                %v271 = vld [vmem:[%s193 + $0x260] sm:%s186]
                %272 = vst [vmem:[%s194 + $0x130] sm:%s186] %v271
                %v273 = vld [vmem:[%s193 + $0x270] sm:%s186]
                %274 = vst [vmem:[%s194 + $0x138] sm:%s186] %v273
                %v275 = vld [vmem:[%s193 + $0x280] sm:%s186]
                %276 = vst [vmem:[%s194 + $0x140] sm:%s186] %v275
                %v277 = vld [vmem:[%s193 + $0x290] sm:%s186]
                %278 = vst [vmem:[%s194 + $0x148] sm:%s186] %v277
                %v279 = vld [vmem:[%s193 + $0x2a0] sm:%s186]
                %280 = vst [vmem:[%s194 + $0x150] sm:%s186] %v279
                %v281 = vld [vmem:[%s193 + $0x2b0] sm:%s186]
                %282 = vst [vmem:[%s194 + $0x158] sm:%s186] %v281
                %v283 = vld [vmem:[%s193 + $0x2c0] sm:%s186]
                %284 = vst [vmem:[%s194 + $0x160] sm:%s186] %v283
                %v285 = vld [vmem:[%s193 + $0x2d0] sm:%s186]
                %286 = vst [vmem:[%s194 + $0x168] sm:%s186] %v285
                %v287 = vld [vmem:[%s193 + $0x2e0] sm:%s186]
                %288 = vst [vmem:[%s194 + $0x170] sm:%s186] %v287
                %v289 = vld [vmem:[%s193 + $0x2f0] sm:%s186]
                %290 = vst [vmem:[%s194 + $0x178] sm:%s186] %v289
                %v291 = vld [vmem:[%s193 + $0x300] sm:%s186]
                %292 = vst [vmem:[%s194 + $0x180] sm:%s186] %v291
                %v293 = vld [vmem:[%s193 + $0x310] sm:%s186]
                %294 = vst [vmem:[%s194 + $0x188] sm:%s186] %v293
                %v295 = vld [vmem:[%s193 + $0x320] sm:%s186]
                %296 = vst [vmem:[%s194 + $0x190] sm:%s186] %v295
                %v297 = vld [vmem:[%s193 + $0x330] sm:%s186]
                %298 = vst [vmem:[%s194 + $0x198] sm:%s186] %v297
                %v299 = vld [vmem:[%s193 + $0x340] sm:%s186]
                %300 = vst [vmem:[%s194 + $0x1a0] sm:%s186] %v299
                %v301 = vld [vmem:[%s193 + $0x350] sm:%s186]
                %302 = vst [vmem:[%s194 + $0x1a8] sm:%s186] %v301
                %v303 = vld [vmem:[%s193 + $0x360] sm:%s186]
                %304 = vst [vmem:[%s194 + $0x1b0] sm:%s186] %v303
                %v305 = vld [vmem:[%s193 + $0x370] sm:%s186]
                %306 = vst [vmem:[%s194 + $0x1b8] sm:%s186] %v305
                %v307 = vld [vmem:[%s193 + $0x380] sm:%s186]
                %308 = vst [vmem:[%s194 + $0x1c0] sm:%s186] %v307
                %v309 = vld [vmem:[%s193 + $0x390] sm:%s186]
                %310 = vst [vmem:[%s194 + $0x1c8] sm:%s186] %v309
                %v311 = vld [vmem:[%s193 + $0x3a0] sm:%s186]
                %312 = vst [vmem:[%s194 + $0x1d0] sm:%s186] %v311
                %v313 = vld [vmem:[%s193 + $0x3b0] sm:%s186]
                %314 = vst [vmem:[%s194 + $0x1d8] sm:%s186] %v313
                %v315 = vld [vmem:[%s193 + $0x3c0] sm:%s186]
                %316 = vst [vmem:[%s194 + $0x1e0] sm:%s186] %v315
                %v317 = vld [vmem:[%s193 + $0x3d0] sm:%s186]
                %318 = vst [vmem:[%s194 + $0x1e8] sm:%s186] %v317
                %v319 = vld [vmem:[%s193 + $0x3e0] sm:%s186]
                %320 = vst [vmem:[%s194 + $0x1f0] sm:%s186] %v319
                %v321 = vld [vmem:[%s193 + $0x3f0] sm:%s186]
                %322 = vst [vmem:[%s194 + $0x1f8] sm:%s186] %v321
              $region60: #{jvp__.72} parent=54 // loop_footer
                %s192 = sadd.s32 1, %s188
              $region61: #{jvp__.72} parent=54 // loop_footer_branch
                %187 = sbr.rel target = $region57
              $region62: #{jvp__.72} parent=54 // loop_exit
                _
            $region55: #{jvp__.72} parent=46 // pred_fallthru
              _
          $region47: #{jvp__.72} parent=42 // pred_fallthru
            _
          %463 = vnop
        $region43: #{jvp__.72} parent=15 // pred_fallthru
          _
      $region16: #{jvp__.72} parent=5 // pred_fallthru
        _
      %p464 = scmp.le.s32.totalorder 1, %s8
      %p465 = scmp.lt.s32.totalorder %s8, 19
      %p466 = pnand %p464, %p465
      %p467 = pneg %p466
      // Predicated region
      $region78: #{jvp__.72} parent=5 // pred_check
        _
      $region79: #{jvp__.72} parent=5 // pred_check_branch
        %469 = sbr.rel (%p466) target = $region81
      $region80: #{jvp__.72} parent=5 // pred_region
        %s470 = ssub.s32 %s8, 1
        %s471 = sand.u32 %s42, 1
        %s472 = sand.u32 %s42, 1
        %s473 = smul.addr %s472, 32
        %s474 = scalar_lea.vmem [#allocation2], %s473
        // Predicated region
        $region82: #{jvp__.72} parent=80 // pred_check
          %p475 = pneg %p55
        $region83: #{jvp__.72} parent=80 // pred_check_branch
          %477 = sbr.rel (%p475) target = $region85
        $region84: #{jvp__.72} parent=80 // pred_region
          _
        $region85: #{jvp__.72} parent=80 // pred_fallthru
          _
        %s478 = sand.u32 %s70, 1
        %s479 = sand.u32 %s70, 1
        %s480 = smul.addr %s479, 512
        %s481 = scalar_lea.vmem [#allocation3], %s480
        // Predicated region
        $region86: #{jvp__.72} parent=80 // pred_check
          %p482 = pneg %p83
        $region87: #{jvp__.72} parent=80 // pred_check_branch
          %484 = sbr.rel (%p482) target = $region89
        $region88: #{jvp__.72} parent=80 // pred_region
          _
        $region89: #{jvp__.72} parent=80 // pred_fallthru
          _
        %s485 = sand.u32 %s42, 1
        %s486 = sand.u32 %s42, 1
        %s487 = smul.addr %s486, 32
        %s488 = scalar_lea.vmem [#allocation2], %s487
        %p489 = pneg %p55
        %p490 = pneg %p52
        %s491 = sand.u32 %s70, 1
        %s492 = sand.u32 %s70, 1
        %s493 = smul.addr %s492, 512
        %s494 = scalar_lea.vmem [#allocation3], %s493
        %p495 = pneg %p83
        %p496 = pneg %p80
        %p497 = pneg %p111
        %p498 = pneg %p108
        %s499 = sand.u32 %s98, 1
        %s500 = sand.u32 %s98, 1
        %s501 = smul.addr %s500, 32
        %s502 = scalar_lea.vmem [#allocation4], %s501
        %s503 = smul.u32 2, %s18
        %s504 = smul.u32 4, %s20
        %s505 = smul.u32 64, %s20
        %s506 = smul.u32 2, %s19
        %s507 = smul.u32 2, %s18
        %s508 = smul.u32 2, %s19
        %p509 = scmp.eq.s32.totalorder %s20, 0
        // Predicated region
        $region90: #{jvp__.72} parent=80 // pred_check
          %p510 = pneg %p509
        $region91: #{jvp__.72} parent=80 // pred_check_branch
          %512 = sbr.rel (%p510) target = $region93
        $region92: #{jvp__.72} parent=80 // pred_region
          %513 = vst [vmem:[%s502] sm:$0xff] 0.0
          %514 = vst [vmem:[%s502 + $0x8] sm:$0xff] 0.0
          %515 = vst [vmem:[%s502 + $0x10] sm:$0xff] 0.0
          %516 = vst [vmem:[%s502 + $0x18] sm:$0xff] 0.0
        $region93: #{jvp__.72} parent=80 // pred_fallthru
          _
        %v517 = vld [vmem:[%s502] sm:$0xff]
        %v518 = vld [vmem:[%s502 + $0x8] sm:$0xff]
        %v519 = vld [vmem:[%s502 + $0x10] sm:$0xff]
        %v520 = vld [vmem:[%s502 + $0x18] sm:$0xff]
        %v521 = vld [vmem:[%s474] sm:$0xff]
        %v522 = vld [vmem:[%s474 + $0x8] sm:$0xff]
        %v523 = vld [vmem:[%s474 + $0x10] sm:$0xff]
        %v524 = vld [vmem:[%s474 + $0x18] sm:$0xff]
        %v525 = vld [vmem:[%s481] sm:$0xff]
        %v526 = vld [vmem:[%s481 + $0x8] sm:$0xff]
        %v527 = vld [vmem:[%s481 + $0x10] sm:$0xff]
        %v528 = vld [vmem:[%s481 + $0x18] sm:$0xff]
        %v529 = vld [vmem:[%s481 + $0x20] sm:$0xff]
        %v530 = vld [vmem:[%s481 + $0x28] sm:$0xff]
        %v531 = vld [vmem:[%s481 + $0x30] sm:$0xff]
        %v532 = vld [vmem:[%s481 + $0x38] sm:$0xff]
        %v533 = vld [vmem:[%s481 + $0x40] sm:$0xff]
        %v534 = vld [vmem:[%s481 + $0x48] sm:$0xff]
        %v535 = vld [vmem:[%s481 + $0x50] sm:$0xff]
        %v536 = vld [vmem:[%s481 + $0x58] sm:$0xff]
        %v537 = vld [vmem:[%s481 + $0x60] sm:$0xff]
        %v538 = vld [vmem:[%s481 + $0x68] sm:$0xff]
        %v539 = vld [vmem:[%s481 + $0x70] sm:$0xff]
        %v540 = vld [vmem:[%s481 + $0x78] sm:$0xff]
        %v541 = vld [vmem:[%s481 + $0x80] sm:$0xff]
        %v542 = vld [vmem:[%s481 + $0x88] sm:$0xff]
        %v543 = vld [vmem:[%s481 + $0x90] sm:$0xff]
        %v544 = vld [vmem:[%s481 + $0x98] sm:$0xff]
        %v545 = vld [vmem:[%s481 + $0xa0] sm:$0xff]
        %v546 = vld [vmem:[%s481 + $0xa8] sm:$0xff]
        %v547 = vld [vmem:[%s481 + $0xb0] sm:$0xff]
        %v548 = vld [vmem:[%s481 + $0xb8] sm:$0xff]
        %v549 = vld [vmem:[%s481 + $0xc0] sm:$0xff]
        %v550 = vld [vmem:[%s481 + $0xc8] sm:$0xff]
        %v551 = vld [vmem:[%s481 + $0xd0] sm:$0xff]
        %v552 = vld [vmem:[%s481 + $0xd8] sm:$0xff]
        %v553 = vld [vmem:[%s481 + $0xe0] sm:$0xff]
        %v554 = vld [vmem:[%s481 + $0xe8] sm:$0xff]
        %v555 = vld [vmem:[%s481 + $0xf0] sm:$0xff]
        %v556 = vld [vmem:[%s481 + $0xf8] sm:$0xff]
        %v557 = vld [vmem:[%s481 + $0x100] sm:$0xff]
        %v558 = vld [vmem:[%s481 + $0x108] sm:$0xff]
        %v559 = vld [vmem:[%s481 + $0x110] sm:$0xff]
        %v560 = vld [vmem:[%s481 + $0x118] sm:$0xff]
        %v561 = vld [vmem:[%s481 + $0x120] sm:$0xff]
        %v562 = vld [vmem:[%s481 + $0x128] sm:$0xff]
        %v563 = vld [vmem:[%s481 + $0x130] sm:$0xff]
        %v564 = vld [vmem:[%s481 + $0x138] sm:$0xff]
        %v565 = vld [vmem:[%s481 + $0x140] sm:$0xff]
        %v566 = vld [vmem:[%s481 + $0x148] sm:$0xff]
        %v567 = vld [vmem:[%s481 + $0x150] sm:$0xff]
        %v568 = vld [vmem:[%s481 + $0x158] sm:$0xff]
        %v569 = vld [vmem:[%s481 + $0x160] sm:$0xff]
        %v570 = vld [vmem:[%s481 + $0x168] sm:$0xff]
        %v571 = vld [vmem:[%s481 + $0x170] sm:$0xff]
        %v572 = vld [vmem:[%s481 + $0x178] sm:$0xff]
        %v573 = vld [vmem:[%s481 + $0x180] sm:$0xff]
        %v574 = vld [vmem:[%s481 + $0x188] sm:$0xff]
        %v575 = vld [vmem:[%s481 + $0x190] sm:$0xff]
        %v576 = vld [vmem:[%s481 + $0x198] sm:$0xff]
        %v577 = vld [vmem:[%s481 + $0x1a0] sm:$0xff]
        %v578 = vld [vmem:[%s481 + $0x1a8] sm:$0xff]
        %v579 = vld [vmem:[%s481 + $0x1b0] sm:$0xff]
        %v580 = vld [vmem:[%s481 + $0x1b8] sm:$0xff]
        %v581 = vld [vmem:[%s481 + $0x1c0] sm:$0xff]
        %v582 = vld [vmem:[%s481 + $0x1c8] sm:$0xff]
        %v583 = vld [vmem:[%s481 + $0x1d0] sm:$0xff]
        %v584 = vld [vmem:[%s481 + $0x1d8] sm:$0xff]
        %v585 = vld [vmem:[%s481 + $0x1e0] sm:$0xff]
        %v586 = vld [vmem:[%s481 + $0x1e8] sm:$0xff]
        %v587 = vld [vmem:[%s481 + $0x1f0] sm:$0xff]
        %v588 = vld [vmem:[%s481 + $0x1f8] sm:$0xff]
        %v593 = vunpack.c.l.b16 %v521
        %v594 = vunpack.c.h.b16 %v521
        %v595 = vunpack.c.l.b16 %v522
        %v596 = vunpack.c.h.b16 %v522
        %v597 = vunpack.c.l.b16 %v523
        %v598 = vunpack.c.h.b16 %v523
        %v599 = vunpack.c.l.b16 %v524
        %v600 = vunpack.c.h.b16 %v524
        %v601 = vpack.c.b16 %v597, %v593
        %v602 = vpack.c.b16 %v598, %v594
        %v603 = vpack.c.b16 %v599, %v595
        %v604 = vpack.c.b16 %v600, %v596
        %v673 = vunpack.c.l.b16 %v525
        %v674 = vunpack.c.h.b16 %v525
        %v675 = vunpack.c.l.b16 %v526
        %v676 = vunpack.c.h.b16 %v526
        %v677 = vunpack.c.l.b16 %v527
        %v678 = vunpack.c.h.b16 %v527
        %v679 = vunpack.c.l.b16 %v528
        %v680 = vunpack.c.h.b16 %v528
        %v681 = vunpack.c.l.b16 %v529
        %v682 = vunpack.c.h.b16 %v529
        %v683 = vunpack.c.l.b16 %v530
        %v684 = vunpack.c.h.b16 %v530
        %v685 = vunpack.c.l.b16 %v531
        %v686 = vunpack.c.h.b16 %v531
        %v687 = vunpack.c.l.b16 %v532
        %v688 = vunpack.c.h.b16 %v532
        %v689 = vunpack.c.l.b16 %v533
        %v690 = vunpack.c.h.b16 %v533
        %v691 = vunpack.c.l.b16 %v534
        %v692 = vunpack.c.h.b16 %v534
        %v693 = vunpack.c.l.b16 %v535
        %v694 = vunpack.c.h.b16 %v535
        %v695 = vunpack.c.l.b16 %v536
        %v696 = vunpack.c.h.b16 %v536
        %v697 = vunpack.c.l.b16 %v537
        %v698 = vunpack.c.h.b16 %v537
        %v699 = vunpack.c.l.b16 %v538
        %v700 = vunpack.c.h.b16 %v538
        %v701 = vunpack.c.l.b16 %v539
        %v702 = vunpack.c.h.b16 %v539
        %v703 = vunpack.c.l.b16 %v540
        %v704 = vunpack.c.h.b16 %v540
        %v705 = vunpack.c.l.b16 %v541
        %v706 = vunpack.c.h.b16 %v541
        %v707 = vunpack.c.l.b16 %v542
        %v708 = vunpack.c.h.b16 %v542
        %v709 = vunpack.c.l.b16 %v543
        %v710 = vunpack.c.h.b16 %v543
        %v711 = vunpack.c.l.b16 %v544
        %v712 = vunpack.c.h.b16 %v544
        %v713 = vunpack.c.l.b16 %v545
        %v714 = vunpack.c.h.b16 %v545
        %v715 = vunpack.c.l.b16 %v546
        %v716 = vunpack.c.h.b16 %v546
        %v717 = vunpack.c.l.b16 %v547
        %v718 = vunpack.c.h.b16 %v547
        %v719 = vunpack.c.l.b16 %v548
        %v720 = vunpack.c.h.b16 %v548
        %v721 = vunpack.c.l.b16 %v549
        %v722 = vunpack.c.h.b16 %v549
        %v723 = vunpack.c.l.b16 %v550
        %v724 = vunpack.c.h.b16 %v550
        %v725 = vunpack.c.l.b16 %v551
        %v726 = vunpack.c.h.b16 %v551
        %v727 = vunpack.c.l.b16 %v552
        %v728 = vunpack.c.h.b16 %v552
        %v729 = vunpack.c.l.b16 %v553
        %v730 = vunpack.c.h.b16 %v553
        %v731 = vunpack.c.l.b16 %v554
        %v732 = vunpack.c.h.b16 %v554
        %v733 = vunpack.c.l.b16 %v555
        %v734 = vunpack.c.h.b16 %v555
        %v735 = vunpack.c.l.b16 %v556
        %v736 = vunpack.c.h.b16 %v556
        %v737 = vunpack.c.l.b16 %v557
        %v738 = vunpack.c.h.b16 %v557
        %v739 = vunpack.c.l.b16 %v558
        %v740 = vunpack.c.h.b16 %v558
        %v741 = vunpack.c.l.b16 %v559
        %v742 = vunpack.c.h.b16 %v559
        %v743 = vunpack.c.l.b16 %v560
        %v744 = vunpack.c.h.b16 %v560
        %v745 = vunpack.c.l.b16 %v561
        %v746 = vunpack.c.h.b16 %v561
        %v747 = vunpack.c.l.b16 %v562
        %v748 = vunpack.c.h.b16 %v562
        %v749 = vunpack.c.l.b16 %v563
        %v750 = vunpack.c.h.b16 %v563
        %v751 = vunpack.c.l.b16 %v564
        %v752 = vunpack.c.h.b16 %v564
        %v753 = vunpack.c.l.b16 %v565
        %v754 = vunpack.c.h.b16 %v565
        %v755 = vunpack.c.l.b16 %v566
        %v756 = vunpack.c.h.b16 %v566
        %v757 = vunpack.c.l.b16 %v567
        %v758 = vunpack.c.h.b16 %v567
        %v759 = vunpack.c.l.b16 %v568
        %v760 = vunpack.c.h.b16 %v568
        %v761 = vunpack.c.l.b16 %v569
        %v762 = vunpack.c.h.b16 %v569
        %v763 = vunpack.c.l.b16 %v570
        %v764 = vunpack.c.h.b16 %v570
        %v765 = vunpack.c.l.b16 %v571
        %v766 = vunpack.c.h.b16 %v571
        %v767 = vunpack.c.l.b16 %v572
        %v768 = vunpack.c.h.b16 %v572
        %v769 = vunpack.c.l.b16 %v573
        %v770 = vunpack.c.h.b16 %v573
        %v771 = vunpack.c.l.b16 %v574
        %v772 = vunpack.c.h.b16 %v574
        %v773 = vunpack.c.l.b16 %v575
        %v774 = vunpack.c.h.b16 %v575
        %v775 = vunpack.c.l.b16 %v576
        %v776 = vunpack.c.h.b16 %v576
        %v777 = vunpack.c.l.b16 %v577
        %v778 = vunpack.c.h.b16 %v577
        %v779 = vunpack.c.l.b16 %v578
        %v780 = vunpack.c.h.b16 %v578
        %v781 = vunpack.c.l.b16 %v579
        %v782 = vunpack.c.h.b16 %v579
        %v783 = vunpack.c.l.b16 %v580
        %v784 = vunpack.c.h.b16 %v580
        %v785 = vunpack.c.l.b16 %v581
        %v786 = vunpack.c.h.b16 %v581
        %v787 = vunpack.c.l.b16 %v582
        %v788 = vunpack.c.h.b16 %v582
        %v789 = vunpack.c.l.b16 %v583
        %v790 = vunpack.c.h.b16 %v583
        %v791 = vunpack.c.l.b16 %v584
        %v792 = vunpack.c.h.b16 %v584
        %v793 = vunpack.c.l.b16 %v585
        %v794 = vunpack.c.h.b16 %v585
        %v795 = vunpack.c.l.b16 %v586
        %v796 = vunpack.c.h.b16 %v586
        %v797 = vunpack.c.l.b16 %v587
        %v798 = vunpack.c.h.b16 %v587
        %v799 = vunpack.c.l.b16 %v588
        %v800 = vunpack.c.h.b16 %v588
        %v801 = vpack.c.b16 %v675, %v673
        %v802 = vpack.c.b16 %v676, %v674
        %v803 = vpack.c.b16 %v679, %v677
        %v804 = vpack.c.b16 %v680, %v678
        %v805 = vpack.c.b16 %v683, %v681
        %v806 = vpack.c.b16 %v684, %v682
        %v807 = vpack.c.b16 %v687, %v685
        %v808 = vpack.c.b16 %v688, %v686
        %v809 = vpack.c.b16 %v691, %v689
        %v810 = vpack.c.b16 %v692, %v690
        %v811 = vpack.c.b16 %v695, %v693
        %v812 = vpack.c.b16 %v696, %v694
        %v813 = vpack.c.b16 %v699, %v697
        %v814 = vpack.c.b16 %v700, %v698
        %v815 = vpack.c.b16 %v703, %v701
        %v816 = vpack.c.b16 %v704, %v702
        %v817 = vpack.c.b16 %v707, %v705
        %v818 = vpack.c.b16 %v708, %v706
        %v819 = vpack.c.b16 %v711, %v709
        %v820 = vpack.c.b16 %v712, %v710
        %v821 = vpack.c.b16 %v715, %v713
        %v822 = vpack.c.b16 %v716, %v714
        %v823 = vpack.c.b16 %v719, %v717
        %v824 = vpack.c.b16 %v720, %v718
        %v825 = vpack.c.b16 %v723, %v721
        %v826 = vpack.c.b16 %v724, %v722
        %v827 = vpack.c.b16 %v727, %v725
        %v828 = vpack.c.b16 %v728, %v726
        %v829 = vpack.c.b16 %v731, %v729
        %v830 = vpack.c.b16 %v732, %v730
        %v831 = vpack.c.b16 %v735, %v733
        %v832 = vpack.c.b16 %v736, %v734
        %v833 = vpack.c.b16 %v739, %v737
        %v834 = vpack.c.b16 %v740, %v738
        %v835 = vpack.c.b16 %v743, %v741
        %v836 = vpack.c.b16 %v744, %v742
        %v837 = vpack.c.b16 %v747, %v745
        %v838 = vpack.c.b16 %v748, %v746
        %v839 = vpack.c.b16 %v751, %v749
        %v840 = vpack.c.b16 %v752, %v750
        %v841 = vpack.c.b16 %v755, %v753
        %v842 = vpack.c.b16 %v756, %v754
        %v843 = vpack.c.b16 %v759, %v757
        %v844 = vpack.c.b16 %v760, %v758
        %v845 = vpack.c.b16 %v763, %v761
        %v846 = vpack.c.b16 %v764, %v762
        %v847 = vpack.c.b16 %v767, %v765
        %v848 = vpack.c.b16 %v768, %v766
        %v849 = vpack.c.b16 %v771, %v769
        %v850 = vpack.c.b16 %v772, %v770
        %v851 = vpack.c.b16 %v775, %v773
        %v852 = vpack.c.b16 %v776, %v774
        %v853 = vpack.c.b16 %v779, %v777
        %v854 = vpack.c.b16 %v780, %v778
        %v855 = vpack.c.b16 %v783, %v781
        %v856 = vpack.c.b16 %v784, %v782
        %v857 = vpack.c.b16 %v787, %v785
        %v858 = vpack.c.b16 %v788, %v786
        %v859 = vpack.c.b16 %v791, %v789
        %v860 = vpack.c.b16 %v792, %v790
        %v861 = vpack.c.b16 %v795, %v793
        %v862 = vpack.c.b16 %v796, %v794
        %v863 = vpack.c.b16 %v799, %v797
        %v864 = vpack.c.b16 %v800, %v798
        %929 = vmatpush.bf16.msra.mxu0 %v815
        %930 = vmatpush.bf16.msra.mxu0 %v813
        %931 = vmatpush.bf16.msra.mxu0 %v811
        %932 = vmatpush.bf16.msra.mxu0 %v809
        %933 = vmatpush.bf16.msra.mxu0 %v807
        %934 = vmatpush.bf16.msra.mxu0 %v805
        %935 = vmatpush.bf16.msra.mxu0 %v803
        %936 = vmatpush.bf16.msra.mxu0 %v801
        %937 = vmatmul.bf16.gmra.mxu0 %v601
        %v938 = vpop.f32.mrf.mxu0
        %v939 = vadd.f32 0.0, %v938
        %v940 = vpop.f32.mrf.mxu0
        %v941 = vadd.f32 0.0, %v940
        %942 = vdwg.mxu0
        %943 = vmatpush.bf16.msra.mxu0 %v831
        %944 = vmatpush.bf16.msra.mxu0 %v829
        %945 = vmatpush.bf16.msra.mxu0 %v827
        %946 = vmatpush.bf16.msra.mxu0 %v825
        %947 = vmatpush.bf16.msra.mxu0 %v823
        %948 = vmatpush.bf16.msra.mxu0 %v821
        %949 = vmatpush.bf16.msra.mxu0 %v819
        %950 = vmatpush.bf16.msra.mxu0 %v817
        %951 = vmatmul.bf16.gmra.mxu0 %v602
        %v952 = vpop.f32.mrf.mxu0
        %v953 = vadd.f32 %v939, %v952
        %v954 = vpop.f32.mrf.mxu0
        %v955 = vadd.f32 %v941, %v954
        %956 = vdwg.mxu0
        %957 = vmatpush.bf16.msra.mxu0 %v847
        %958 = vmatpush.bf16.msra.mxu0 %v845
        %959 = vmatpush.bf16.msra.mxu0 %v843
        %960 = vmatpush.bf16.msra.mxu0 %v841
        %961 = vmatpush.bf16.msra.mxu0 %v839
        %962 = vmatpush.bf16.msra.mxu0 %v837
        %963 = vmatpush.bf16.msra.mxu0 %v835
        %964 = vmatpush.bf16.msra.mxu0 %v833
        %965 = vmatmul.bf16.gmra.mxu0 %v603
        %v966 = vpop.f32.mrf.mxu0
        %v967 = vadd.f32 %v953, %v966
        %v968 = vpop.f32.mrf.mxu0
        %v969 = vadd.f32 %v955, %v968
        %970 = vdwg.mxu0
        %971 = vmatpush.bf16.msra.mxu0 %v863
        %972 = vmatpush.bf16.msra.mxu0 %v861
        %973 = vmatpush.bf16.msra.mxu0 %v859
        %974 = vmatpush.bf16.msra.mxu0 %v857
        %975 = vmatpush.bf16.msra.mxu0 %v855
        %976 = vmatpush.bf16.msra.mxu0 %v853
        %977 = vmatpush.bf16.msra.mxu0 %v851
        %978 = vmatpush.bf16.msra.mxu0 %v849
        %979 = vmatmul.bf16.gmra.mxu0 %v604
        %v980 = vpop.f32.mrf.mxu0
        %v981 = vadd.f32 %v967, %v980
        %v982 = vpop.f32.mrf.mxu0
        %v983 = vadd.f32 %v969, %v982
        %984 = vdwg.mxu0
        %985 = vmatpush.bf16.msra.mxu0 %v816
        %986 = vmatpush.bf16.msra.mxu0 %v814
        %987 = vmatpush.bf16.msra.mxu0 %v812
        %988 = vmatpush.bf16.msra.mxu0 %v810
        %989 = vmatpush.bf16.msra.mxu0 %v808
        %990 = vmatpush.bf16.msra.mxu0 %v806
        %991 = vmatpush.bf16.msra.mxu0 %v804
        %992 = vmatpush.bf16.msra.mxu0 %v802
        %993 = vmatmul.bf16.gmra.mxu0 %v601
        %v994 = vpop.f32.mrf.mxu0
        %v995 = vadd.f32 0.0, %v994
        %v996 = vpop.f32.mrf.mxu0
        %v997 = vadd.f32 0.0, %v996
        %998 = vdwg.mxu0
        %999 = vmatpush.bf16.msra.mxu0 %v832
        %1000 = vmatpush.bf16.msra.mxu0 %v830
        %1001 = vmatpush.bf16.msra.mxu0 %v828
        %1002 = vmatpush.bf16.msra.mxu0 %v826
        %1003 = vmatpush.bf16.msra.mxu0 %v824
        %1004 = vmatpush.bf16.msra.mxu0 %v822
        %1005 = vmatpush.bf16.msra.mxu0 %v820
        %1006 = vmatpush.bf16.msra.mxu0 %v818
        %1007 = vmatmul.bf16.gmra.mxu0 %v602
        %v1008 = vpop.f32.mrf.mxu0
        %v1009 = vadd.f32 %v995, %v1008
        %v1010 = vpop.f32.mrf.mxu0
        %v1011 = vadd.f32 %v997, %v1010
        %1012 = vdwg.mxu0
        %1013 = vmatpush.bf16.msra.mxu0 %v848
        %1014 = vmatpush.bf16.msra.mxu0 %v846
        %1015 = vmatpush.bf16.msra.mxu0 %v844
        %1016 = vmatpush.bf16.msra.mxu0 %v842
        %1017 = vmatpush.bf16.msra.mxu0 %v840
        %1018 = vmatpush.bf16.msra.mxu0 %v838
        %1019 = vmatpush.bf16.msra.mxu0 %v836
        %1020 = vmatpush.bf16.msra.mxu0 %v834
        %1021 = vmatmul.bf16.gmra.mxu0 %v603
        %v1022 = vpop.f32.mrf.mxu0
        %v1023 = vadd.f32 %v1009, %v1022
        %v1024 = vpop.f32.mrf.mxu0
        %v1025 = vadd.f32 %v1011, %v1024
        %1026 = vdwg.mxu0
        %1027 = vmatpush.bf16.msra.mxu0 %v864
        %1028 = vmatpush.bf16.msra.mxu0 %v862
        %1029 = vmatpush.bf16.msra.mxu0 %v860
        %1030 = vmatpush.bf16.msra.mxu0 %v858
        %1031 = vmatpush.bf16.msra.mxu0 %v856
        %1032 = vmatpush.bf16.msra.mxu0 %v854
        %1033 = vmatpush.bf16.msra.mxu0 %v852
        %1034 = vmatpush.bf16.msra.mxu0 %v850
        %1035 = vmatmul.bf16.gmra.mxu0 %v604
        %v1036 = vpop.f32.mrf.mxu0
        %v1037 = vadd.f32 %v1023, %v1036
        %v1038 = vpop.f32.mrf.mxu0
        %v1039 = vadd.f32 %v1025, %v1038
        %1040 = vdwg.mxu0
        %v1041 = vadd.f32 %v517, %v981
        %v1042 = vadd.f32 %v518, %v1037
        %v1043 = vadd.f32 %v519, %v983
        %v1044 = vadd.f32 %v520, %v1039
        %1045 = vst [vmem:[%s502] sm:$0xff] %v1041
        %1046 = vst [vmem:[%s502 + $0x8] sm:$0xff] %v1042
        %1047 = vst [vmem:[%s502 + $0x10] sm:$0xff] %v1043
        %1048 = vst [vmem:[%s502 + $0x18] sm:$0xff] %v1044
        %s1049 = sand.u32 %s98, 1
        %s1050 = sand.u32 %s98, 1
        %s1051 = smul.addr %s1050, 32
        %s1052 = scalar_lea.vmem [#allocation4], %s1051
        // Predicated region
        $region94: #{jvp__.72} parent=80 // pred_check
          %p1053 = pneg %p108
        $region95: #{jvp__.72} parent=80 // pred_check_branch
          %1055 = sbr.rel (%p1053) target = $region97
        $region96: #{jvp__.72} parent=80 // pred_region
          %s1056 = smul.u32 2, %s18
          %s1057 = smul.u32 2, %s19
          %s1058 = smul.addr %s1056, 4
          %s1059 = sadd.s32 %s1057, %s1058
          %s1060 = smul.addr %s1059, 8
          %s1061 = scalar_lea.vmem %s2, %s1060
          // Predicated region
          $region98: #{jvp__.72} parent=96 // pred_check
            _
          $region99: #{jvp__.72} parent=96 // pred_check_branch
            %1063 = sbr.rel (0) target = $region101
          $region100: #{jvp__.72} parent=96 // pred_region
            // Predicated region
            $region102: #{jvp__.72} parent=100 // pred_check
              _
            $region103: #{jvp__.72} parent=100 // pred_check_branch
              %1065 = sbr.rel (0) target = $region105
            $region104: #{jvp__.72} parent=100 // pred_region
              loop: start=0, step=1, limit=1
              $region106: #{jvp__.72} parent=104 // loop_pre_header
                _
              $region107: #{jvp__.72} parent=104 // loop_header
                %s1067 = sphi 0, %s1071
                %p1068 = scmp.ge.s32.totalorder %s1067, 1
                %s1072 = sphi %s1052, %s1052
                %s1073 = sphi %s1061, %s1061
              $region108: #{jvp__.72} parent=104 // loop_header_branch
                %1070 = sbr.rel (%p1068) target = $region112
              $region109: #{jvp__.72} parent=104 // loop_body
                %v1074 = vld [vmem:[%s1072] sm:$0xff]
                %1075 = vst [vmem:[%s1073] sm:$0xff] %v1074
                %v1076 = vld [vmem:[%s1072 + $0x8] sm:$0xff]
                %1077 = vst [vmem:[%s1073 + $0x8] sm:$0xff] %v1076
                %v1078 = vld [vmem:[%s1072 + $0x10] sm:$0xff]
                %1079 = vst [vmem:[%s1073 + $0x20] sm:$0xff] %v1078
                %v1080 = vld [vmem:[%s1072 + $0x18] sm:$0xff]
                %1081 = vst [vmem:[%s1073 + $0x28] sm:$0xff] %v1080
              $region110: #{jvp__.72} parent=104 // loop_footer
                %s1071 = sadd.s32 1, %s1067
              $region111: #{jvp__.72} parent=104 // loop_footer_branch
                %1066 = sbr.rel target = $region107
              $region112: #{jvp__.72} parent=104 // loop_exit
                _
            $region105: #{jvp__.72} parent=100 // pred_fallthru
              _
            // Predicated region
            $region113: #{jvp__.72} parent=100 // pred_check
              _
            $region114: #{jvp__.72} parent=100 // pred_check_branch
              %1083 = sbr.rel target = $region116
            $region115: #{jvp__.72} parent=100 // pred_region
              _
            $region116: #{jvp__.72} parent=100 // pred_fallthru
              _
          $region101: #{jvp__.72} parent=96 // pred_fallthru
            _
          %1084 = vnop
        $region97: #{jvp__.72} parent=80 // pred_fallthru
          _
      $region81: #{jvp__.72} parent=5 // pred_fallthru
        _
      %p1085 = scmp.le.s32.totalorder 2, %s8
      // Predicated region
      $region117: #{jvp__.72} parent=5 // pred_check
        %p1086 = pneg %p1085
      $region118: #{jvp__.72} parent=5 // pred_check_branch
        %1088 = sbr.rel (%p1086) target = $region120
      $region119: #{jvp__.72} parent=5 // pred_region
        %s1089 = ssub.s32 %s8, 2
        // Predicated region
        $region121: #{jvp__.72} parent=119 // pred_check
          %p1090 = pneg %p114
        $region122: #{jvp__.72} parent=119 // pred_check_branch
          %1092 = sbr.rel (%p1090) target = $region124
        $region123: #{jvp__.72} parent=119 // pred_region
          %s1093 = sand.u32 %s99, 1
          %s1094 = sand.u32 %s99, 1
          %s1095 = smul.addr %s1094, 32
          %s1096 = scalar_lea.vmem [#allocation4], %s1095
        $region124: #{jvp__.72} parent=119 // pred_fallthru
          _
      $region120: #{jvp__.72} parent=5 // pred_fallthru
        _
    $region6: #{jvp__.72} parent=1 // loop_footer
      %s12 = sadd.s32 1, %s8
    $region7: #{jvp__.72} parent=1 // loop_footer_branch
      %7 = sbr.rel target = $region3
    $region8: #{jvp__.72} parent=1 // loop_exit
      _

// kernel: jvp__.78
$region0: #{jvp__.78}
  #allocation0 [shape = 'u32[]', space=smem, size = 0x4, offset = 0x4, fixed_abs, tag = 'smem constant byte address 0x4 - core index']
  #allocation1 [shape = 'u32[72,128]{1,0:T(1,128)}', space=vmem, size = 0x9000, scoped, tag = 'internal scratch']
  %s0 = inlined_call_operand.vmem [shape: bf16[16,512], index: 0, kind: input, shape index: {}]
  %s1 = inlined_call_operand.vmem [shape: bf16[512,1024], index: 1, kind: input, shape index: {}]
  %s2 = inlined_call_operand.vmem [shape: f32[16,1024], index: 2, kind: output, shape index: {}]
  %s3 = sld [smem:[#allocation0]]
  $region102: #{jvp__.78} parent=0
    _
  %s5 = ssub.s32 1, %s3
  %s6 = scalar_select 0, %s5, %s3
  $region1: #{jvp__.78} parent=0
    #allocation2 [shape = 'u8[524288]{0}', space=vmem, size = 0x80000, scoped, tag = 'input window, operand 1']
    #allocation3 [shape = 'u8[32768]{0}', space=vmem, size = 0x8000, scoped, tag = 'output window, operand 0']
    loop: start=0, step=1, limit=6
    $region2: #{jvp__.78} parent=1 // loop_pre_header
      _
    $region3: #{jvp__.78} parent=1 // loop_header
      %s8 = sphi 0, %s12
      %p9 = scmp.ge.s32.totalorder %s8, 6
      %s15 = sphi 0, %s34
      %s16 = sphi 0, %s30
      %s17 = sphi 0, %s26
      %s18 = sphi 0, %s15
      %s19 = sphi 0, %s16
      %s20 = sphi 0, %s17
      %s21 = sphi 0, %s18
      %s22 = sphi 0, %s19
      %s23 = sphi 0, %s20
      %s39 = sphi 0, %s41
      %s42 = sphi 0, %s39
      %s43 = sphi 0, %s42
      %s59 = sphi 0, %s43
      %s67 = sphi 0, %s69
      %s70 = sphi 0, %s67
      %s71 = sphi 0, %s70
      %s87 = sphi 0, %s71
      %s95 = sphi 0, %s97
      %s98 = sphi 0, %s95
      %s99 = sphi 0, %s98
      %s115 = sphi 0, %s99
    $region4: #{jvp__.78} parent=1 // loop_header_branch
      %11 = sbr.rel (%p9) target = $region8
    $region5: #{jvp__.78} parent=1 // loop_body
      %s13 = ssub.s32 %s8, 1
      %s14 = ssub.s32 %s8, 2
      %s24 = sadd.s32 1, %s17
      %p25 = scmp.ge.s32.totalorder %s24, 1
      %s26 = scalar_select %p25, 0, %s24
      %s27 = sadd.s32 1, %s16
      %s28 = scalar_select %p25, %s27, %s16
      %p29 = scmp.ge.s32.totalorder %s28, 4
      %s30 = scalar_select %p29, 0, %s28
      %s31 = sadd.s32 1, %s15
      %s32 = scalar_select %p29, %s31, %s15
      %p33 = scmp.ge.s32.totalorder %s32, 1
      %s34 = scalar_select %p33, 0, %s32
      %s35 = ssub.s32 %s15, %s34
      %s36 = ssub.s32 %s17, %s26
      %s37 = sor.u32 %s35, %s36
      %p38 = scmp.eq.s32.totalorder %s37, 0
      %s40 = sadd.s32 %s39, 1
      %s41 = scalar_select %p38, %s39, %s40
      %p44 = pneg %p38
      %p45 = scmp.eq.s32.totalorder %s8, 3
      %p46 = por %p44, %p45
      %p47 = scmp.ne.s32.totalorder %s39, %s42
      %p48 = scmp.eq.s32.totalorder %s8, 0
      %p49 = por %p47, %p48
      %p50 = scmp.ne.s32.totalorder %s39, %s42
      %p51 = scmp.eq.s32.totalorder %s13, 3
      %p52 = por %p50, %p51
      %p53 = scmp.ne.s32.totalorder %s42, %s43
      %p54 = scmp.eq.s32.totalorder %s13, 0
      %p55 = por %p53, %p54
      %p56 = scmp.ne.s32.totalorder %s42, %s43
      %p57 = scmp.eq.s32.totalorder %s14, 3
      %p58 = por %p56, %p57
      %p60 = scmp.ne.s32.totalorder %s43, %s59
      %p61 = scmp.eq.s32.totalorder %s14, 0
      %p62 = por %p60, %p61
      %s63 = ssub.s32 %s17, %s26
      %s64 = ssub.s32 %s16, %s30
      %s65 = sor.u32 %s63, %s64
      %p66 = scmp.eq.s32.totalorder %s65, 0
      %s68 = sadd.s32 %s67, 1
      %s69 = scalar_select %p66, %s67, %s68
      %p72 = pneg %p66
      %p73 = scmp.eq.s32.totalorder %s8, 3
      %p74 = por %p72, %p73
      %p75 = scmp.ne.s32.totalorder %s67, %s70
      %p76 = scmp.eq.s32.totalorder %s8, 0
      %p77 = por %p75, %p76
      %p78 = scmp.ne.s32.totalorder %s67, %s70
      %p79 = scmp.eq.s32.totalorder %s13, 3
      %p80 = por %p78, %p79
      %p81 = scmp.ne.s32.totalorder %s70, %s71
      %p82 = scmp.eq.s32.totalorder %s13, 0
      %p83 = por %p81, %p82
      %p84 = scmp.ne.s32.totalorder %s70, %s71
      %p85 = scmp.eq.s32.totalorder %s14, 3
      %p86 = por %p84, %p85
      %p88 = scmp.ne.s32.totalorder %s71, %s87
      %p89 = scmp.eq.s32.totalorder %s14, 0
      %p90 = por %p88, %p89
      %s91 = ssub.s32 %s15, %s34
      %s92 = ssub.s32 %s16, %s30
      %s93 = sor.u32 %s91, %s92
      %p94 = scmp.eq.s32.totalorder %s93, 0
      %s96 = sadd.s32 %s95, 1
      %s97 = scalar_select %p94, %s95, %s96
      %p100 = pneg %p94
      %p101 = scmp.eq.s32.totalorder %s8, 3
      %p102 = por %p100, %p101
      %p103 = scmp.ne.s32.totalorder %s95, %s98
      %p104 = scmp.eq.s32.totalorder %s8, 0
      %p105 = por %p103, %p104
      %p106 = scmp.ne.s32.totalorder %s95, %s98
      %p107 = scmp.eq.s32.totalorder %s13, 3
      %p108 = por %p106, %p107
      %p109 = scmp.ne.s32.totalorder %s98, %s99
      %p110 = scmp.eq.s32.totalorder %s13, 0
      %p111 = por %p109, %p110
      %p112 = scmp.ne.s32.totalorder %s98, %s99
      %p113 = scmp.eq.s32.totalorder %s14, 3
      %p114 = por %p112, %p113
      %p116 = scmp.ne.s32.totalorder %s99, %s115
      %p117 = scmp.eq.s32.totalorder %s14, 0
      %p118 = por %p116, %p117
      %p119 = scmp.le.s32.totalorder 1, %s8
      %p120 = scmp.lt.s32.totalorder %s8, 5
      %p121 = pnand %p119, %p120
      %p122 = pneg %p121
      // Predicated region
      $region9: #{jvp__.78} parent=5 // pred_check
        _
      $region10: #{jvp__.78} parent=5 // pred_check_branch
        %124 = sbr.rel (%p121) target = $region12
      $region11: #{jvp__.78} parent=5 // pred_region
        %s125 = ssub.s32 %s8, 1
        // Predicated region
        $region13: #{jvp__.78} parent=11 // pred_check
          %p126 = pneg %p55
        $region14: #{jvp__.78} parent=11 // pred_check_branch
          %128 = sbr.rel (%p126) target = $region16
        $region15: #{jvp__.78} parent=11 // pred_region
          %s129 = smul.u32 2, %s18
          %s130 = smul.u32 4, %s20
          %p131 = scmp.lt.s32.totalorder %s129, 1
          %s132 = scalar_select %p131, %s129, 1
          %p133 = scmp.lt.s32.totalorder %s130, 3
          %s134 = scalar_select %p133, %s130, 3
          %s135 = smul.addr %s132, 4
          %s136 = sadd.s32 %s134, %s135
          %s137 = smul.addr %s136, 4
          %s138 = scalar_lea.vmem %s0, %s137
          %s139 = smul.u32 2, %s18
          %s140 = smul.u32 4, %s20
        $region16: #{jvp__.78} parent=11 // pred_fallthru
          _
      $region12: #{jvp__.78} parent=5 // pred_fallthru
        _
      %p141 = scmp.lt.s32.totalorder %s8, 4
      // Predicated region
      $region17: #{jvp__.78} parent=5 // pred_check
        %p142 = pneg %p141
      $region18: #{jvp__.78} parent=5 // pred_check_branch
        %144 = sbr.rel (%p142) target = $region20
      $region19: #{jvp__.78} parent=5 // pred_region
        // Predicated region
        $region21: #{jvp__.78} parent=19 // pred_check
          %p145 = pneg %p77
        $region22: #{jvp__.78} parent=19 // pred_check_branch
          %147 = sbr.rel (%p145) target = $region24
        $region23: #{jvp__.78} parent=19 // pred_region
          %s148 = sand.u32 %s67, 1
          %s149 = sand.u32 %s67, 1
          %s150 = smul.addr %s149, 512
          %s151 = scalar_lea.vmem [#allocation2], %s150
          %s152 = smul.u32 64, %s17
          %s153 = smul.u32 2, %s16
          %s154 = smul.addr %s152, 8
          %s155 = sadd.s32 %s153, %s154
          %s156 = smul.addr %s155, 4
          %s157 = scalar_lea.vmem %s1, %s156
          // Predicated region
          $region25: #{jvp__.78} parent=23 // pred_check
            _
          $region26: #{jvp__.78} parent=23 // pred_check_branch
            %159 = sbr.rel (0) target = $region28
          $region27: #{jvp__.78} parent=23 // pred_region
            // Predicated region
            $region29: #{jvp__.78} parent=27 // pred_check
              _
            $region30: #{jvp__.78} parent=27 // pred_check_branch
              %161 = sbr.rel (0) target = $region32
            $region31: #{jvp__.78} parent=27 // pred_region
              // Predicated region
              $region44: #{jvp__.78} parent=31 // pred_check
                _
              $region45: #{jvp__.78} parent=31 // pred_check_branch
                %303 = sbr.rel (0) target = $region47
              $region46: #{jvp__.78} parent=31 // pred_region
                loop: start=0, step=1, limit=1
                $region48: #{jvp__.78} parent=46 // loop_pre_header
                  _
                $region49: #{jvp__.78} parent=46 // loop_header
                  %s305 = sphi 0, %s309
                  %p306 = scmp.ge.s32.totalorder %s305, 1
                  %s310 = sphi %s157, %s157
                  %s311 = sphi %s151, %s151
                $region50: #{jvp__.78} parent=46 // loop_header_branch
                  %308 = sbr.rel (%p306) target = $region54
                $region51: #{jvp__.78} parent=46 // loop_body
                  %v312 = vld [vmem:[%s310] sm:$0xff]
                  %313 = vst [vmem:[%s311] sm:$0xff] %v312
                  %v314 = vld [vmem:[%s310 + $0x20] sm:$0xff]
                  %315 = vst [vmem:[%s311 + $0x8] sm:$0xff] %v314
                  %v316 = vld [vmem:[%s310 + $0x40] sm:$0xff]
                  %317 = vst [vmem:[%s311 + $0x10] sm:$0xff] %v316
                  %v318 = vld [vmem:[%s310 + $0x60] sm:$0xff]
                  %319 = vst [vmem:[%s311 + $0x18] sm:$0xff] %v318
                  %v320 = vld [vmem:[%s310 + $0x80] sm:$0xff]
                  %321 = vst [vmem:[%s311 + $0x20] sm:$0xff] %v320
                  %v322 = vld [vmem:[%s310 + $0xa0] sm:$0xff]
                  %323 = vst [vmem:[%s311 + $0x28] sm:$0xff] %v322
                  %v324 = vld [vmem:[%s310 + $0xc0] sm:$0xff]
                  %325 = vst [vmem:[%s311 + $0x30] sm:$0xff] %v324
                  %v326 = vld [vmem:[%s310 + $0xe0] sm:$0xff]
                  %327 = vst [vmem:[%s311 + $0x38] sm:$0xff] %v326
                  %v328 = vld [vmem:[%s310 + $0x100] sm:$0xff]
                  %329 = vst [vmem:[%s311 + $0x40] sm:$0xff] %v328
                  %v330 = vld [vmem:[%s310 + $0x120] sm:$0xff]
                  %331 = vst [vmem:[%s311 + $0x48] sm:$0xff] %v330
                  %v332 = vld [vmem:[%s310 + $0x140] sm:$0xff]
                  %333 = vst [vmem:[%s311 + $0x50] sm:$0xff] %v332
                  %v334 = vld [vmem:[%s310 + $0x160] sm:$0xff]
                  %335 = vst [vmem:[%s311 + $0x58] sm:$0xff] %v334
                  %v336 = vld [vmem:[%s310 + $0x180] sm:$0xff]
                  %337 = vst [vmem:[%s311 + $0x60] sm:$0xff] %v336
                  %v338 = vld [vmem:[%s310 + $0x1a0] sm:$0xff]
                  %339 = vst [vmem:[%s311 + $0x68] sm:$0xff] %v338
                  %v340 = vld [vmem:[%s310 + $0x1c0] sm:$0xff]
                  %341 = vst [vmem:[%s311 + $0x70] sm:$0xff] %v340
                  %v342 = vld [vmem:[%s310 + $0x1e0] sm:$0xff]
                  %343 = vst [vmem:[%s311 + $0x78] sm:$0xff] %v342
                  %v344 = vld [vmem:[%s310 + $0x200] sm:$0xff]
                  %345 = vst [vmem:[%s311 + $0x80] sm:$0xff] %v344
                  %v346 = vld [vmem:[%s310 + $0x220] sm:$0xff]
                  %347 = vst [vmem:[%s311 + $0x88] sm:$0xff] %v346
                  %v348 = vld [vmem:[%s310 + $0x240] sm:$0xff]
                  %349 = vst [vmem:[%s311 + $0x90] sm:$0xff] %v348
                  %v350 = vld [vmem:[%s310 + $0x260] sm:$0xff]
                  %351 = vst [vmem:[%s311 + $0x98] sm:$0xff] %v350
                  %v352 = vld [vmem:[%s310 + $0x280] sm:$0xff]
                  %353 = vst [vmem:[%s311 + $0xa0] sm:$0xff] %v352
                  %v354 = vld [vmem:[%s310 + $0x2a0] sm:$0xff]
                  %355 = vst [vmem:[%s311 + $0xa8] sm:$0xff] %v354
                  %v356 = vld [vmem:[%s310 + $0x2c0] sm:$0xff]
                  %357 = vst [vmem:[%s311 + $0xb0] sm:$0xff] %v356
                  %v358 = vld [vmem:[%s310 + $0x2e0] sm:$0xff]
                  %359 = vst [vmem:[%s311 + $0xb8] sm:$0xff] %v358
                  %v360 = vld [vmem:[%s310 + $0x300] sm:$0xff]
                  %361 = vst [vmem:[%s311 + $0xc0] sm:$0xff] %v360
                  %v362 = vld [vmem:[%s310 + $0x320] sm:$0xff]
                  %363 = vst [vmem:[%s311 + $0xc8] sm:$0xff] %v362
                  %v364 = vld [vmem:[%s310 + $0x340] sm:$0xff]
                  %365 = vst [vmem:[%s311 + $0xd0] sm:$0xff] %v364
                  %v366 = vld [vmem:[%s310 + $0x360] sm:$0xff]
                  %367 = vst [vmem:[%s311 + $0xd8] sm:$0xff] %v366
                  %v368 = vld [vmem:[%s310 + $0x380] sm:$0xff]
                  %369 = vst [vmem:[%s311 + $0xe0] sm:$0xff] %v368
                  %v370 = vld [vmem:[%s310 + $0x3a0] sm:$0xff]
                  %371 = vst [vmem:[%s311 + $0xe8] sm:$0xff] %v370
                  %v372 = vld [vmem:[%s310 + $0x3c0] sm:$0xff]
                  %373 = vst [vmem:[%s311 + $0xf0] sm:$0xff] %v372
                  %v374 = vld [vmem:[%s310 + $0x3e0] sm:$0xff]
                  %375 = vst [vmem:[%s311 + $0xf8] sm:$0xff] %v374
                  %v376 = vld [vmem:[%s310 + $0x400] sm:$0xff]
                  %377 = vst [vmem:[%s311 + $0x100] sm:$0xff] %v376
                  %v378 = vld [vmem:[%s310 + $0x420] sm:$0xff]
                  %379 = vst [vmem:[%s311 + $0x108] sm:$0xff] %v378
                  %v380 = vld [vmem:[%s310 + $0x440] sm:$0xff]
                  %381 = vst [vmem:[%s311 + $0x110] sm:$0xff] %v380
                  %v382 = vld [vmem:[%s310 + $0x460] sm:$0xff]
                  %383 = vst [vmem:[%s311 + $0x118] sm:$0xff] %v382
                  %v384 = vld [vmem:[%s310 + $0x480] sm:$0xff]
                  %385 = vst [vmem:[%s311 + $0x120] sm:$0xff] %v384
                  %v386 = vld [vmem:[%s310 + $0x4a0] sm:$0xff]
                  %387 = vst [vmem:[%s311 + $0x128] sm:$0xff] %v386
                  %v388 = vld [vmem:[%s310 + $0x4c0] sm:$0xff]
                  %389 = vst [vmem:[%s311 + $0x130] sm:$0xff] %v388
                  %v390 = vld [vmem:[%s310 + $0x4e0] sm:$0xff]
                  %391 = vst [vmem:[%s311 + $0x138] sm:$0xff] %v390
                  %v392 = vld [vmem:[%s310 + $0x500] sm:$0xff]
                  %393 = vst [vmem:[%s311 + $0x140] sm:$0xff] %v392
                  %v394 = vld [vmem:[%s310 + $0x520] sm:$0xff]
                  %395 = vst [vmem:[%s311 + $0x148] sm:$0xff] %v394
                  %v396 = vld [vmem:[%s310 + $0x540] sm:$0xff]
                  %397 = vst [vmem:[%s311 + $0x150] sm:$0xff] %v396
                  %v398 = vld [vmem:[%s310 + $0x560] sm:$0xff]
                  %399 = vst [vmem:[%s311 + $0x158] sm:$0xff] %v398
                  %v400 = vld [vmem:[%s310 + $0x580] sm:$0xff]
                  %401 = vst [vmem:[%s311 + $0x160] sm:$0xff] %v400
                  %v402 = vld [vmem:[%s310 + $0x5a0] sm:$0xff]
                  %403 = vst [vmem:[%s311 + $0x168] sm:$0xff] %v402
                  %v404 = vld [vmem:[%s310 + $0x5c0] sm:$0xff]
                  %405 = vst [vmem:[%s311 + $0x170] sm:$0xff] %v404
                  %v406 = vld [vmem:[%s310 + $0x5e0] sm:$0xff]
                  %407 = vst [vmem:[%s311 + $0x178] sm:$0xff] %v406
                  %v408 = vld [vmem:[%s310 + $0x600] sm:$0xff]
                  %409 = vst [vmem:[%s311 + $0x180] sm:$0xff] %v408
                  %v410 = vld [vmem:[%s310 + $0x620] sm:$0xff]
                  %411 = vst [vmem:[%s311 + $0x188] sm:$0xff] %v410
                  %v412 = vld [vmem:[%s310 + $0x640] sm:$0xff]
                  %413 = vst [vmem:[%s311 + $0x190] sm:$0xff] %v412
                  %v414 = vld [vmem:[%s310 + $0x660] sm:$0xff]
                  %415 = vst [vmem:[%s311 + $0x198] sm:$0xff] %v414
                  %v416 = vld [vmem:[%s310 + $0x680] sm:$0xff]
                  %417 = vst [vmem:[%s311 + $0x1a0] sm:$0xff] %v416
                  %v418 = vld [vmem:[%s310 + $0x6a0] sm:$0xff]
                  %419 = vst [vmem:[%s311 + $0x1a8] sm:$0xff] %v418
                  %v420 = vld [vmem:[%s310 + $0x6c0] sm:$0xff]
                  %421 = vst [vmem:[%s311 + $0x1b0] sm:$0xff] %v420
                  %v422 = vld [vmem:[%s310 + $0x6e0] sm:$0xff]
                  %423 = vst [vmem:[%s311 + $0x1b8] sm:$0xff] %v422
                  %v424 = vld [vmem:[%s310 + $0x700] sm:$0xff]
                  %425 = vst [vmem:[%s311 + $0x1c0] sm:$0xff] %v424
                  %v426 = vld [vmem:[%s310 + $0x720] sm:$0xff]
                  %427 = vst [vmem:[%s311 + $0x1c8] sm:$0xff] %v426
                  %v428 = vld [vmem:[%s310 + $0x740] sm:$0xff]
                  %429 = vst [vmem:[%s311 + $0x1d0] sm:$0xff] %v428
                  %v430 = vld [vmem:[%s310 + $0x760] sm:$0xff]
                  %431 = vst [vmem:[%s311 + $0x1d8] sm:$0xff] %v430
                  %v432 = vld [vmem:[%s310 + $0x780] sm:$0xff]
                  %433 = vst [vmem:[%s311 + $0x1e0] sm:$0xff] %v432
                  %v434 = vld [vmem:[%s310 + $0x7a0] sm:$0xff]
                  %435 = vst [vmem:[%s311 + $0x1e8] sm:$0xff] %v434
                  %v436 = vld [vmem:[%s310 + $0x7c0] sm:$0xff]
                  %437 = vst [vmem:[%s311 + $0x1f0] sm:$0xff] %v436
                  %v438 = vld [vmem:[%s310 + $0x7e0] sm:$0xff]
                  %439 = vst [vmem:[%s311 + $0x1f8] sm:$0xff] %v438
                $region52: #{jvp__.78} parent=46 // loop_footer
                  %s309 = sadd.s32 1, %s305
                $region53: #{jvp__.78} parent=46 // loop_footer_branch
                  %304 = sbr.rel target = $region49
                $region54: #{jvp__.78} parent=46 // loop_exit
                  _
              $region47: #{jvp__.78} parent=31 // pred_fallthru
                _
              // Predicated region
              $region55: #{jvp__.78} parent=31 // pred_check
                _
              $region56: #{jvp__.78} parent=31 // pred_check_branch
                %441 = sbr.rel target = $region58
              $region57: #{jvp__.78} parent=31 // pred_region
                _
              $region58: #{jvp__.78} parent=31 // pred_fallthru
                _
            $region32: #{jvp__.78} parent=27 // pred_fallthru
              _
            // Predicated region
            $region33: #{jvp__.78} parent=27 // pred_check
              _
            $region34: #{jvp__.78} parent=27 // pred_check_branch
              %163 = sbr.rel target = $region36
            $region35: #{jvp__.78} parent=27 // pred_region
              %s165 = ssub.s32 256, 1
              loop: start=0, step=1, limit=1
              $region37: #{jvp__.78} parent=35 // loop_pre_header
                _
              $region38: #{jvp__.78} parent=35 // loop_header
                %s167 = sphi 0, %s171
                %p168 = scmp.ge.s32.totalorder %s167, 1
                %s172 = sphi %s157, %s157
                %s173 = sphi %s151, %s151
              $region39: #{jvp__.78} parent=35 // loop_header_branch
                %170 = sbr.rel (%p168) target = $region43
              $region40: #{jvp__.78} parent=35 // loop_body
                %v174 = vld [vmem:[%s172] sm:%s165]
                %175 = vst [vmem:[%s173] sm:%s165] %v174
                %v176 = vld [vmem:[%s172 + $0x20] sm:%s165]
                %177 = vst [vmem:[%s173 + $0x8] sm:%s165] %v176
                %v178 = vld [vmem:[%s172 + $0x40] sm:%s165]
                %179 = vst [vmem:[%s173 + $0x10] sm:%s165] %v178
                %v180 = vld [vmem:[%s172 + $0x60] sm:%s165]
                %181 = vst [vmem:[%s173 + $0x18] sm:%s165] %v180
                %v182 = vld [vmem:[%s172 + $0x80] sm:%s165]
                %183 = vst [vmem:[%s173 + $0x20] sm:%s165] %v182
                %v184 = vld [vmem:[%s172 + $0xa0] sm:%s165]
                %185 = vst [vmem:[%s173 + $0x28] sm:%s165] %v184
                %v186 = vld [vmem:[%s172 + $0xc0] sm:%s165]
                %187 = vst [vmem:[%s173 + $0x30] sm:%s165] %v186
                %v188 = vld [vmem:[%s172 + $0xe0] sm:%s165]
                %189 = vst [vmem:[%s173 + $0x38] sm:%s165] %v188
                %v190 = vld [vmem:[%s172 + $0x100] sm:%s165]
                %191 = vst [vmem:[%s173 + $0x40] sm:%s165] %v190
                %v192 = vld [vmem:[%s172 + $0x120] sm:%s165]
                %193 = vst [vmem:[%s173 + $0x48] sm:%s165] %v192
                %v194 = vld [vmem:[%s172 + $0x140] sm:%s165]
                %195 = vst [vmem:[%s173 + $0x50] sm:%s165] %v194
                %v196 = vld [vmem:[%s172 + $0x160] sm:%s165]
                %197 = vst [vmem:[%s173 + $0x58] sm:%s165] %v196
                %v198 = vld [vmem:[%s172 + $0x180] sm:%s165]
                %199 = vst [vmem:[%s173 + $0x60] sm:%s165] %v198
                %v200 = vld [vmem:[%s172 + $0x1a0] sm:%s165]
                %201 = vst [vmem:[%s173 + $0x68] sm:%s165] %v200
                %v202 = vld [vmem:[%s172 + $0x1c0] sm:%s165]
                %203 = vst [vmem:[%s173 + $0x70] sm:%s165] %v202
                %v204 = vld [vmem:[%s172 + $0x1e0] sm:%s165]
                %205 = vst [vmem:[%s173 + $0x78] sm:%s165] %v204
                %v206 = vld [vmem:[%s172 + $0x200] sm:%s165]
                %207 = vst [vmem:[%s173 + $0x80] sm:%s165] %v206
                %v208 = vld [vmem:[%s172 + $0x220] sm:%s165]
                %209 = vst [vmem:[%s173 + $0x88] sm:%s165] %v208
                %v210 = vld [vmem:[%s172 + $0x240] sm:%s165]
                %211 = vst [vmem:[%s173 + $0x90] sm:%s165] %v210
                %v212 = vld [vmem:[%s172 + $0x260] sm:%s165]
                %213 = vst [vmem:[%s173 + $0x98] sm:%s165] %v212
                %v214 = vld [vmem:[%s172 + $0x280] sm:%s165]
                %215 = vst [vmem:[%s173 + $0xa0] sm:%s165] %v214
                %v216 = vld [vmem:[%s172 + $0x2a0] sm:%s165]
                %217 = vst [vmem:[%s173 + $0xa8] sm:%s165] %v216
                %v218 = vld [vmem:[%s172 + $0x2c0] sm:%s165]
                %219 = vst [vmem:[%s173 + $0xb0] sm:%s165] %v218
                %v220 = vld [vmem:[%s172 + $0x2e0] sm:%s165]
                %221 = vst [vmem:[%s173 + $0xb8] sm:%s165] %v220
                %v222 = vld [vmem:[%s172 + $0x300] sm:%s165]
                %223 = vst [vmem:[%s173 + $0xc0] sm:%s165] %v222
                %v224 = vld [vmem:[%s172 + $0x320] sm:%s165]
                %225 = vst [vmem:[%s173 + $0xc8] sm:%s165] %v224
                %v226 = vld [vmem:[%s172 + $0x340] sm:%s165]
                %227 = vst [vmem:[%s173 + $0xd0] sm:%s165] %v226
                %v228 = vld [vmem:[%s172 + $0x360] sm:%s165]
                %229 = vst [vmem:[%s173 + $0xd8] sm:%s165] %v228
                %v230 = vld [vmem:[%s172 + $0x380] sm:%s165]
                %231 = vst [vmem:[%s173 + $0xe0] sm:%s165] %v230
                %v232 = vld [vmem:[%s172 + $0x3a0] sm:%s165]
                %233 = vst [vmem:[%s173 + $0xe8] sm:%s165] %v232
                %v234 = vld [vmem:[%s172 + $0x3c0] sm:%s165]
                %235 = vst [vmem:[%s173 + $0xf0] sm:%s165] %v234
                %v236 = vld [vmem:[%s172 + $0x3e0] sm:%s165]
                %237 = vst [vmem:[%s173 + $0xf8] sm:%s165] %v236
                %v238 = vld [vmem:[%s172 + $0x400] sm:%s165]
                %239 = vst [vmem:[%s173 + $0x100] sm:%s165] %v238
                %v240 = vld [vmem:[%s172 + $0x420] sm:%s165]
                %241 = vst [vmem:[%s173 + $0x108] sm:%s165] %v240
                %v242 = vld [vmem:[%s172 + $0x440] sm:%s165]
                %243 = vst [vmem:[%s173 + $0x110] sm:%s165] %v242
                %v244 = vld [vmem:[%s172 + $0x460] sm:%s165]
                %245 = vst [vmem:[%s173 + $0x118] sm:%s165] %v244
                %v246 = vld [vmem:[%s172 + $0x480] sm:%s165]
                %247 = vst [vmem:[%s173 + $0x120] sm:%s165] %v246
                %v248 = vld [vmem:[%s172 + $0x4a0] sm:%s165]
                %249 = vst [vmem:[%s173 + $0x128] sm:%s165] %v248
                %v250 = vld [vmem:[%s172 + $0x4c0] sm:%s165]
                %251 = vst [vmem:[%s173 + $0x130] sm:%s165] %v250
                %v252 = vld [vmem:[%s172 + $0x4e0] sm:%s165]
                %253 = vst [vmem:[%s173 + $0x138] sm:%s165] %v252
                %v254 = vld [vmem:[%s172 + $0x500] sm:%s165]
                %255 = vst [vmem:[%s173 + $0x140] sm:%s165] %v254
                %v256 = vld [vmem:[%s172 + $0x520] sm:%s165]
                %257 = vst [vmem:[%s173 + $0x148] sm:%s165] %v256
                %v258 = vld [vmem:[%s172 + $0x540] sm:%s165]
                %259 = vst [vmem:[%s173 + $0x150] sm:%s165] %v258
                %v260 = vld [vmem:[%s172 + $0x560] sm:%s165]
                %261 = vst [vmem:[%s173 + $0x158] sm:%s165] %v260
                %v262 = vld [vmem:[%s172 + $0x580] sm:%s165]
                %263 = vst [vmem:[%s173 + $0x160] sm:%s165] %v262
                %v264 = vld [vmem:[%s172 + $0x5a0] sm:%s165]
                %265 = vst [vmem:[%s173 + $0x168] sm:%s165] %v264
                %v266 = vld [vmem:[%s172 + $0x5c0] sm:%s165]
                %267 = vst [vmem:[%s173 + $0x170] sm:%s165] %v266
                %v268 = vld [vmem:[%s172 + $0x5e0] sm:%s165]
                %269 = vst [vmem:[%s173 + $0x178] sm:%s165] %v268
                %v270 = vld [vmem:[%s172 + $0x600] sm:%s165]
                %271 = vst [vmem:[%s173 + $0x180] sm:%s165] %v270
                %v272 = vld [vmem:[%s172 + $0x620] sm:%s165]
                %273 = vst [vmem:[%s173 + $0x188] sm:%s165] %v272
                %v274 = vld [vmem:[%s172 + $0x640] sm:%s165]
                %275 = vst [vmem:[%s173 + $0x190] sm:%s165] %v274
                %v276 = vld [vmem:[%s172 + $0x660] sm:%s165]
                %277 = vst [vmem:[%s173 + $0x198] sm:%s165] %v276
                %v278 = vld [vmem:[%s172 + $0x680] sm:%s165]
                %279 = vst [vmem:[%s173 + $0x1a0] sm:%s165] %v278
                %v280 = vld [vmem:[%s172 + $0x6a0] sm:%s165]
                %281 = vst [vmem:[%s173 + $0x1a8] sm:%s165] %v280
                %v282 = vld [vmem:[%s172 + $0x6c0] sm:%s165]
                %283 = vst [vmem:[%s173 + $0x1b0] sm:%s165] %v282
                %v284 = vld [vmem:[%s172 + $0x6e0] sm:%s165]
                %285 = vst [vmem:[%s173 + $0x1b8] sm:%s165] %v284
                %v286 = vld [vmem:[%s172 + $0x700] sm:%s165]
                %287 = vst [vmem:[%s173 + $0x1c0] sm:%s165] %v286
                %v288 = vld [vmem:[%s172 + $0x720] sm:%s165]
                %289 = vst [vmem:[%s173 + $0x1c8] sm:%s165] %v288
                %v290 = vld [vmem:[%s172 + $0x740] sm:%s165]
                %291 = vst [vmem:[%s173 + $0x1d0] sm:%s165] %v290
                %v292 = vld [vmem:[%s172 + $0x760] sm:%s165]
                %293 = vst [vmem:[%s173 + $0x1d8] sm:%s165] %v292
                %v294 = vld [vmem:[%s172 + $0x780] sm:%s165]
                %295 = vst [vmem:[%s173 + $0x1e0] sm:%s165] %v294
                %v296 = vld [vmem:[%s172 + $0x7a0] sm:%s165]
                %297 = vst [vmem:[%s173 + $0x1e8] sm:%s165] %v296
                %v298 = vld [vmem:[%s172 + $0x7c0] sm:%s165]
                %299 = vst [vmem:[%s173 + $0x1f0] sm:%s165] %v298
                %v300 = vld [vmem:[%s172 + $0x7e0] sm:%s165]
                %301 = vst [vmem:[%s173 + $0x1f8] sm:%s165] %v300
              $region41: #{jvp__.78} parent=35 // loop_footer
                %s171 = sadd.s32 1, %s167
              $region42: #{jvp__.78} parent=35 // loop_footer_branch
                %166 = sbr.rel target = $region38
              $region43: #{jvp__.78} parent=35 // loop_exit
                _
            $region36: #{jvp__.78} parent=27 // pred_fallthru
              _
          $region28: #{jvp__.78} parent=23 // pred_fallthru
            _
          %442 = vnop
        $region24: #{jvp__.78} parent=19 // pred_fallthru
          _
      $region20: #{jvp__.78} parent=5 // pred_fallthru
        _
      %p443 = scmp.le.s32.totalorder 1, %s8
      %p444 = scmp.lt.s32.totalorder %s8, 5
      %p445 = pnand %p443, %p444
      %p446 = pneg %p445
      // Predicated region
      $region59: #{jvp__.78} parent=5 // pred_check
        _
      $region60: #{jvp__.78} parent=5 // pred_check_branch
        %448 = sbr.rel (%p445) target = $region62
      $region61: #{jvp__.78} parent=5 // pred_region
        %s449 = ssub.s32 %s8, 1
        %s450 = sand.u32 %s70, 1
        %s451 = sand.u32 %s70, 1
        %s452 = smul.addr %s451, 512
        %s453 = scalar_lea.vmem [#allocation2], %s452
        // Predicated region
        $region63: #{jvp__.78} parent=61 // pred_check
          %p454 = pneg %p83
        $region64: #{jvp__.78} parent=61 // pred_check_branch
          %456 = sbr.rel (%p454) target = $region66
        $region65: #{jvp__.78} parent=61 // pred_region
          _
        $region66: #{jvp__.78} parent=61 // pred_fallthru
          _
        %s457 = smul.u32 2, %s18
        %s458 = smul.u32 4, %s20
        %p459 = scmp.lt.s32.totalorder %s457, 1
        %s460 = scalar_select %p459, %s457, 1
        %p461 = scmp.lt.s32.totalorder %s458, 3
        %s462 = scalar_select %p461, %s458, 3
        %s463 = smul.addr %s460, 4
        %s464 = sadd.s32 %s462, %s463
        %s465 = smul.addr %s464, 4
        %s466 = scalar_lea.vmem %s0, %s465
        %p467 = pneg %p55
        %p468 = pneg %p52
        %s469 = sand.u32 %s70, 1
        %s470 = sand.u32 %s70, 1
        %s471 = smul.addr %s470, 512
        %s472 = scalar_lea.vmem [#allocation2], %s471
        %p473 = pneg %p83
        %p474 = pneg %p80
        %p475 = pneg %p111
        %p476 = pneg %p108
        %s477 = sand.u32 %s98, 1
        %s478 = sand.u32 %s98, 1
        %s479 = smul.addr %s478, 32
        %s480 = scalar_lea.vmem [#allocation3], %s479
        %s481 = smul.u32 2, %s18
        %s482 = smul.u32 4, %s20
        %p483 = scmp.lt.s32.totalorder %s481, 1
        %s484 = scalar_select %p483, %s481, 1
        %p485 = scmp.lt.s32.totalorder %s482, 3
        %s486 = scalar_select %p485, %s482, 3
        %s487 = smul.addr %s484, 4
        %s488 = sadd.s32 %s486, %s487
        %s489 = smul.addr %s488, 4
        %s490 = scalar_lea.vmem %s0, %s489
        %s491 = smul.u32 2, %s18
        %s492 = smul.u32 4, %s20
        %s493 = smul.u32 64, %s20
        %s494 = smul.u32 2, %s19
        %s495 = smul.u32 2, %s18
        %s496 = smul.u32 2, %s19
        %p497 = scmp.eq.s32.totalorder %s20, 0
        // Predicated region
        $region67: #{jvp__.78} parent=61 // pred_check
          %p498 = pneg %p497
        $region68: #{jvp__.78} parent=61 // pred_check_branch
          %500 = sbr.rel (%p498) target = $region70
        $region69: #{jvp__.78} parent=61 // pred_region
          %501 = vst [vmem:[%s480] sm:$0xff] 0.0
          %502 = vst [vmem:[%s480 + $0x8] sm:$0xff] 0.0
          %503 = vst [vmem:[%s480 + $0x10] sm:$0xff] 0.0
          %504 = vst [vmem:[%s480 + $0x18] sm:$0xff] 0.0
        $region70: #{jvp__.78} parent=61 // pred_fallthru
          _
        %v505 = vld [vmem:[%s480] sm:$0xff]
        %v506 = vld [vmem:[%s480 + $0x8] sm:$0xff]
        %v507 = vld [vmem:[%s480 + $0x10] sm:$0xff]
        %v508 = vld [vmem:[%s480 + $0x18] sm:$0xff]
        %v509 = vld [vmem:[%s490] sm:$0xff]
        %v510 = vld [vmem:[%s490 + $0x8] sm:$0xff]
        %v511 = vld [vmem:[%s490 + $0x10] sm:$0xff]
        %v512 = vld [vmem:[%s490 + $0x18] sm:$0xff]
        %v513 = vld [vmem:[%s453] sm:$0xff]
        %v514 = vld [vmem:[%s453 + $0x8] sm:$0xff]
        %v515 = vld [vmem:[%s453 + $0x10] sm:$0xff]
        %v516 = vld [vmem:[%s453 + $0x18] sm:$0xff]
        %v517 = vld [vmem:[%s453 + $0x20] sm:$0xff]
        %v518 = vld [vmem:[%s453 + $0x28] sm:$0xff]
        %v519 = vld [vmem:[%s453 + $0x30] sm:$0xff]
        %v520 = vld [vmem:[%s453 + $0x38] sm:$0xff]
        %v521 = vld [vmem:[%s453 + $0x40] sm:$0xff]
        %v522 = vld [vmem:[%s453 + $0x48] sm:$0xff]
        %v523 = vld [vmem:[%s453 + $0x50] sm:$0xff]
        %v524 = vld [vmem:[%s453 + $0x58] sm:$0xff]
        %v525 = vld [vmem:[%s453 + $0x60] sm:$0xff]
        %v526 = vld [vmem:[%s453 + $0x68] sm:$0xff]
        %v527 = vld [vmem:[%s453 + $0x70] sm:$0xff]
        %v528 = vld [vmem:[%s453 + $0x78] sm:$0xff]
        %v529 = vld [vmem:[%s453 + $0x80] sm:$0xff]
        %v530 = vld [vmem:[%s453 + $0x88] sm:$0xff]
        %v531 = vld [vmem:[%s453 + $0x90] sm:$0xff]
        %v532 = vld [vmem:[%s453 + $0x98] sm:$0xff]
        %v533 = vld [vmem:[%s453 + $0xa0] sm:$0xff]
        %v534 = vld [vmem:[%s453 + $0xa8] sm:$0xff]
        %v535 = vld [vmem:[%s453 + $0xb0] sm:$0xff]
        %v536 = vld [vmem:[%s453 + $0xb8] sm:$0xff]
        %v537 = vld [vmem:[%s453 + $0xc0] sm:$0xff]
        %v538 = vld [vmem:[%s453 + $0xc8] sm:$0xff]
        %v539 = vld [vmem:[%s453 + $0xd0] sm:$0xff]
        %v540 = vld [vmem:[%s453 + $0xd8] sm:$0xff]
        %v541 = vld [vmem:[%s453 + $0xe0] sm:$0xff]
        %v542 = vld [vmem:[%s453 + $0xe8] sm:$0xff]
        %v543 = vld [vmem:[%s453 + $0xf0] sm:$0xff]
        %v544 = vld [vmem:[%s453 + $0xf8] sm:$0xff]
        %v545 = vld [vmem:[%s453 + $0x100] sm:$0xff]
        %v546 = vld [vmem:[%s453 + $0x108] sm:$0xff]
        %v547 = vld [vmem:[%s453 + $0x110] sm:$0xff]
        %v548 = vld [vmem:[%s453 + $0x118] sm:$0xff]
        %v549 = vld [vmem:[%s453 + $0x120] sm:$0xff]
        %v550 = vld [vmem:[%s453 + $0x128] sm:$0xff]
        %v551 = vld [vmem:[%s453 + $0x130] sm:$0xff]
        %v552 = vld [vmem:[%s453 + $0x138] sm:$0xff]
        %v553 = vld [vmem:[%s453 + $0x140] sm:$0xff]
        %v554 = vld [vmem:[%s453 + $0x148] sm:$0xff]
        %v555 = vld [vmem:[%s453 + $0x150] sm:$0xff]
        %v556 = vld [vmem:[%s453 + $0x158] sm:$0xff]
        %v557 = vld [vmem:[%s453 + $0x160] sm:$0xff]
        %v558 = vld [vmem:[%s453 + $0x168] sm:$0xff]
        %v559 = vld [vmem:[%s453 + $0x170] sm:$0xff]
        %v560 = vld [vmem:[%s453 + $0x178] sm:$0xff]
        %v561 = vld [vmem:[%s453 + $0x180] sm:$0xff]
        %v562 = vld [vmem:[%s453 + $0x188] sm:$0xff]
        %v563 = vld [vmem:[%s453 + $0x190] sm:$0xff]
        %v564 = vld [vmem:[%s453 + $0x198] sm:$0xff]
        %v565 = vld [vmem:[%s453 + $0x1a0] sm:$0xff]
        %v566 = vld [vmem:[%s453 + $0x1a8] sm:$0xff]
        %v567 = vld [vmem:[%s453 + $0x1b0] sm:$0xff]
        %v568 = vld [vmem:[%s453 + $0x1b8] sm:$0xff]
        %v569 = vld [vmem:[%s453 + $0x1c0] sm:$0xff]
        %v570 = vld [vmem:[%s453 + $0x1c8] sm:$0xff]
        %v571 = vld [vmem:[%s453 + $0x1d0] sm:$0xff]
        %v572 = vld [vmem:[%s453 + $0x1d8] sm:$0xff]
        %v573 = vld [vmem:[%s453 + $0x1e0] sm:$0xff]
        %v574 = vld [vmem:[%s453 + $0x1e8] sm:$0xff]
        %v575 = vld [vmem:[%s453 + $0x1f0] sm:$0xff]
        %v576 = vld [vmem:[%s453 + $0x1f8] sm:$0xff]
        %v581 = vunpack.c.l.b16 %v509
        %v582 = vunpack.c.h.b16 %v509
        %v583 = vunpack.c.l.b16 %v510
        %v584 = vunpack.c.h.b16 %v510
        %v585 = vunpack.c.l.b16 %v511
        %v586 = vunpack.c.h.b16 %v511
        %v587 = vunpack.c.l.b16 %v512
        %v588 = vunpack.c.h.b16 %v512
        %v589 = vpack.c.b16 %v585, %v581
        %v590 = vpack.c.b16 %v586, %v582
        %v591 = vpack.c.b16 %v587, %v583
        %v592 = vpack.c.b16 %v588, %v584
        %v661 = vunpack.c.l.b16 %v513
        %v662 = vunpack.c.h.b16 %v513
        %v663 = vunpack.c.l.b16 %v514
        %v664 = vunpack.c.h.b16 %v514
        %v665 = vunpack.c.l.b16 %v515
        %v666 = vunpack.c.h.b16 %v515
        %v667 = vunpack.c.l.b16 %v516
        %v668 = vunpack.c.h.b16 %v516
        %v669 = vunpack.c.l.b16 %v517
        %v670 = vunpack.c.h.b16 %v517
        %v671 = vunpack.c.l.b16 %v518
        %v672 = vunpack.c.h.b16 %v518
        %v673 = vunpack.c.l.b16 %v519
        %v674 = vunpack.c.h.b16 %v519
        %v675 = vunpack.c.l.b16 %v520
        %v676 = vunpack.c.h.b16 %v520
        %v677 = vunpack.c.l.b16 %v521
        %v678 = vunpack.c.h.b16 %v521
        %v679 = vunpack.c.l.b16 %v522
        %v680 = vunpack.c.h.b16 %v522
        %v681 = vunpack.c.l.b16 %v523
        %v682 = vunpack.c.h.b16 %v523
        %v683 = vunpack.c.l.b16 %v524
        %v684 = vunpack.c.h.b16 %v524
        %v685 = vunpack.c.l.b16 %v525
        %v686 = vunpack.c.h.b16 %v525
        %v687 = vunpack.c.l.b16 %v526
        %v688 = vunpack.c.h.b16 %v526
        %v689 = vunpack.c.l.b16 %v527
        %v690 = vunpack.c.h.b16 %v527
        %v691 = vunpack.c.l.b16 %v528
        %v692 = vunpack.c.h.b16 %v528
        %v693 = vunpack.c.l.b16 %v529
        %v694 = vunpack.c.h.b16 %v529
        %v695 = vunpack.c.l.b16 %v530
        %v696 = vunpack.c.h.b16 %v530
        %v697 = vunpack.c.l.b16 %v531
        %v698 = vunpack.c.h.b16 %v531
        %v699 = vunpack.c.l.b16 %v532
        %v700 = vunpack.c.h.b16 %v532
        %v701 = vunpack.c.l.b16 %v533
        %v702 = vunpack.c.h.b16 %v533
        %v703 = vunpack.c.l.b16 %v534
        %v704 = vunpack.c.h.b16 %v534
        %v705 = vunpack.c.l.b16 %v535
        %v706 = vunpack.c.h.b16 %v535
        %v707 = vunpack.c.l.b16 %v536
        %v708 = vunpack.c.h.b16 %v536
        %v709 = vunpack.c.l.b16 %v537
        %v710 = vunpack.c.h.b16 %v537
        %v711 = vunpack.c.l.b16 %v538
        %v712 = vunpack.c.h.b16 %v538
        %v713 = vunpack.c.l.b16 %v539
        %v714 = vunpack.c.h.b16 %v539
        %v715 = vunpack.c.l.b16 %v540
        %v716 = vunpack.c.h.b16 %v540
        %v717 = vunpack.c.l.b16 %v541
        %v718 = vunpack.c.h.b16 %v541
        %v719 = vunpack.c.l.b16 %v542
        %v720 = vunpack.c.h.b16 %v542
        %v721 = vunpack.c.l.b16 %v543
        %v722 = vunpack.c.h.b16 %v543
        %v723 = vunpack.c.l.b16 %v544
        %v724 = vunpack.c.h.b16 %v544
        %v725 = vunpack.c.l.b16 %v545
        %v726 = vunpack.c.h.b16 %v545
        %v727 = vunpack.c.l.b16 %v546
        %v728 = vunpack.c.h.b16 %v546
        %v729 = vunpack.c.l.b16 %v547
        %v730 = vunpack.c.h.b16 %v547
        %v731 = vunpack.c.l.b16 %v548
        %v732 = vunpack.c.h.b16 %v548
        %v733 = vunpack.c.l.b16 %v549
        %v734 = vunpack.c.h.b16 %v549
        %v735 = vunpack.c.l.b16 %v550
        %v736 = vunpack.c.h.b16 %v550
        %v737 = vunpack.c.l.b16 %v551
        %v738 = vunpack.c.h.b16 %v551
        %v739 = vunpack.c.l.b16 %v552
        %v740 = vunpack.c.h.b16 %v552
        %v741 = vunpack.c.l.b16 %v553
        %v742 = vunpack.c.h.b16 %v553
        %v743 = vunpack.c.l.b16 %v554
        %v744 = vunpack.c.h.b16 %v554
        %v745 = vunpack.c.l.b16 %v555
        %v746 = vunpack.c.h.b16 %v555
        %v747 = vunpack.c.l.b16 %v556
        %v748 = vunpack.c.h.b16 %v556
        %v749 = vunpack.c.l.b16 %v557
        %v750 = vunpack.c.h.b16 %v557
        %v751 = vunpack.c.l.b16 %v558
        %v752 = vunpack.c.h.b16 %v558
        %v753 = vunpack.c.l.b16 %v559
        %v754 = vunpack.c.h.b16 %v559
        %v755 = vunpack.c.l.b16 %v560
        %v756 = vunpack.c.h.b16 %v560
        %v757 = vunpack.c.l.b16 %v561
        %v758 = vunpack.c.h.b16 %v561
        %v759 = vunpack.c.l.b16 %v562
        %v760 = vunpack.c.h.b16 %v562
        %v761 = vunpack.c.l.b16 %v563
        %v762 = vunpack.c.h.b16 %v563
        %v763 = vunpack.c.l.b16 %v564
        %v764 = vunpack.c.h.b16 %v564
        %v765 = vunpack.c.l.b16 %v565
        %v766 = vunpack.c.h.b16 %v565
        %v767 = vunpack.c.l.b16 %v566
        %v768 = vunpack.c.h.b16 %v566
        %v769 = vunpack.c.l.b16 %v567
        %v770 = vunpack.c.h.b16 %v567
        %v771 = vunpack.c.l.b16 %v568
        %v772 = vunpack.c.h.b16 %v568
        %v773 = vunpack.c.l.b16 %v569
        %v774 = vunpack.c.h.b16 %v569
        %v775 = vunpack.c.l.b16 %v570
        %v776 = vunpack.c.h.b16 %v570
        %v777 = vunpack.c.l.b16 %v571
        %v778 = vunpack.c.h.b16 %v571
        %v779 = vunpack.c.l.b16 %v572
        %v780 = vunpack.c.h.b16 %v572
        %v781 = vunpack.c.l.b16 %v573
        %v782 = vunpack.c.h.b16 %v573
        %v783 = vunpack.c.l.b16 %v574
        %v784 = vunpack.c.h.b16 %v574
        %v785 = vunpack.c.l.b16 %v575
        %v786 = vunpack.c.h.b16 %v575
        %v787 = vunpack.c.l.b16 %v576
        %v788 = vunpack.c.h.b16 %v576
        %v789 = vpack.c.b16 %v663, %v661
        %v790 = vpack.c.b16 %v664, %v662
        %v791 = vpack.c.b16 %v667, %v665
        %v792 = vpack.c.b16 %v668, %v666
        %v793 = vpack.c.b16 %v671, %v669
        %v794 = vpack.c.b16 %v672, %v670
        %v795 = vpack.c.b16 %v675, %v673
        %v796 = vpack.c.b16 %v676, %v674
        %v797 = vpack.c.b16 %v679, %v677
        %v798 = vpack.c.b16 %v680, %v678
        %v799 = vpack.c.b16 %v683, %v681
        %v800 = vpack.c.b16 %v684, %v682
        %v801 = vpack.c.b16 %v687, %v685
        %v802 = vpack.c.b16 %v688, %v686
        %v803 = vpack.c.b16 %v691, %v689
        %v804 = vpack.c.b16 %v692, %v690
        %v805 = vpack.c.b16 %v695, %v693
        %v806 = vpack.c.b16 %v696, %v694
        %v807 = vpack.c.b16 %v699, %v697
        %v808 = vpack.c.b16 %v700, %v698
        %v809 = vpack.c.b16 %v703, %v701
        %v810 = vpack.c.b16 %v704, %v702
        %v811 = vpack.c.b16 %v707, %v705
        %v812 = vpack.c.b16 %v708, %v706
        %v813 = vpack.c.b16 %v711, %v709
        %v814 = vpack.c.b16 %v712, %v710
        %v815 = vpack.c.b16 %v715, %v713
        %v816 = vpack.c.b16 %v716, %v714
        %v817 = vpack.c.b16 %v719, %v717
        %v818 = vpack.c.b16 %v720, %v718
        %v819 = vpack.c.b16 %v723, %v721
        %v820 = vpack.c.b16 %v724, %v722
        %v821 = vpack.c.b16 %v727, %v725
        %v822 = vpack.c.b16 %v728, %v726
        %v823 = vpack.c.b16 %v731, %v729
        %v824 = vpack.c.b16 %v732, %v730
        %v825 = vpack.c.b16 %v735, %v733
        %v826 = vpack.c.b16 %v736, %v734
        %v827 = vpack.c.b16 %v739, %v737
        %v828 = vpack.c.b16 %v740, %v738
        %v829 = vpack.c.b16 %v743, %v741
        %v830 = vpack.c.b16 %v744, %v742
        %v831 = vpack.c.b16 %v747, %v745
        %v832 = vpack.c.b16 %v748, %v746
        %v833 = vpack.c.b16 %v751, %v749
        %v834 = vpack.c.b16 %v752, %v750
        %v835 = vpack.c.b16 %v755, %v753
        %v836 = vpack.c.b16 %v756, %v754
        %v837 = vpack.c.b16 %v759, %v757
        %v838 = vpack.c.b16 %v760, %v758
        %v839 = vpack.c.b16 %v763, %v761
        %v840 = vpack.c.b16 %v764, %v762
        %v841 = vpack.c.b16 %v767, %v765
        %v842 = vpack.c.b16 %v768, %v766
        %v843 = vpack.c.b16 %v771, %v769
        %v844 = vpack.c.b16 %v772, %v770
        %v845 = vpack.c.b16 %v775, %v773
        %v846 = vpack.c.b16 %v776, %v774
        %v847 = vpack.c.b16 %v779, %v777
        %v848 = vpack.c.b16 %v780, %v778
        %v849 = vpack.c.b16 %v783, %v781
        %v850 = vpack.c.b16 %v784, %v782
        %v851 = vpack.c.b16 %v787, %v785
        %v852 = vpack.c.b16 %v788, %v786
        %917 = vmatpush.bf16.msra.mxu0 %v803
        %918 = vmatpush.bf16.msra.mxu0 %v801
        %919 = vmatpush.bf16.msra.mxu0 %v799
        %920 = vmatpush.bf16.msra.mxu0 %v797
        %921 = vmatpush.bf16.msra.mxu0 %v795
        %922 = vmatpush.bf16.msra.mxu0 %v793
        %923 = vmatpush.bf16.msra.mxu0 %v791
        %924 = vmatpush.bf16.msra.mxu0 %v789
        %925 = vmatmul.bf16.gmra.mxu0 %v589
        %v926 = vpop.f32.mrf.mxu0
        %v927 = vadd.f32 0.0, %v926
        %v928 = vpop.f32.mrf.mxu0
        %v929 = vadd.f32 0.0, %v928
        %930 = vdwg.mxu0
        %931 = vmatpush.bf16.msra.mxu0 %v819
        %932 = vmatpush.bf16.msra.mxu0 %v817
        %933 = vmatpush.bf16.msra.mxu0 %v815
        %934 = vmatpush.bf16.msra.mxu0 %v813
        %935 = vmatpush.bf16.msra.mxu0 %v811
        %936 = vmatpush.bf16.msra.mxu0 %v809
        %937 = vmatpush.bf16.msra.mxu0 %v807
        %938 = vmatpush.bf16.msra.mxu0 %v805
        %939 = vmatmul.bf16.gmra.mxu0 %v590
        %v940 = vpop.f32.mrf.mxu0
        %v941 = vadd.f32 %v927, %v940
        %v942 = vpop.f32.mrf.mxu0
        %v943 = vadd.f32 %v929, %v942
        %944 = vdwg.mxu0
        %945 = vmatpush.bf16.msra.mxu0 %v835
        %946 = vmatpush.bf16.msra.mxu0 %v833
        %947 = vmatpush.bf16.msra.mxu0 %v831
        %948 = vmatpush.bf16.msra.mxu0 %v829
        %949 = vmatpush.bf16.msra.mxu0 %v827
        %950 = vmatpush.bf16.msra.mxu0 %v825
        %951 = vmatpush.bf16.msra.mxu0 %v823
        %952 = vmatpush.bf16.msra.mxu0 %v821
        %953 = vmatmul.bf16.gmra.mxu0 %v591
        %v954 = vpop.f32.mrf.mxu0
        %v955 = vadd.f32 %v941, %v954
        %v956 = vpop.f32.mrf.mxu0
        %v957 = vadd.f32 %v943, %v956
        %958 = vdwg.mxu0
        %959 = vmatpush.bf16.msra.mxu0 %v851
        %960 = vmatpush.bf16.msra.mxu0 %v849
        %961 = vmatpush.bf16.msra.mxu0 %v847
        %962 = vmatpush.bf16.msra.mxu0 %v845
        %963 = vmatpush.bf16.msra.mxu0 %v843
        %964 = vmatpush.bf16.msra.mxu0 %v841
        %965 = vmatpush.bf16.msra.mxu0 %v839
        %966 = vmatpush.bf16.msra.mxu0 %v837
        %967 = vmatmul.bf16.gmra.mxu0 %v592
        %v968 = vpop.f32.mrf.mxu0
        %v969 = vadd.f32 %v955, %v968
        %v970 = vpop.f32.mrf.mxu0
        %v971 = vadd.f32 %v957, %v970
        %972 = vdwg.mxu0
        %973 = vmatpush.bf16.msra.mxu0 %v804
        %974 = vmatpush.bf16.msra.mxu0 %v802
        %975 = vmatpush.bf16.msra.mxu0 %v800
        %976 = vmatpush.bf16.msra.mxu0 %v798
        %977 = vmatpush.bf16.msra.mxu0 %v796
        %978 = vmatpush.bf16.msra.mxu0 %v794
        %979 = vmatpush.bf16.msra.mxu0 %v792
        %980 = vmatpush.bf16.msra.mxu0 %v790
        %981 = vmatmul.bf16.gmra.mxu0 %v589
        %v982 = vpop.f32.mrf.mxu0
        %v983 = vadd.f32 0.0, %v982
        %v984 = vpop.f32.mrf.mxu0
        %v985 = vadd.f32 0.0, %v984
        %986 = vdwg.mxu0
        %987 = vmatpush.bf16.msra.mxu0 %v820
        %988 = vmatpush.bf16.msra.mxu0 %v818
        %989 = vmatpush.bf16.msra.mxu0 %v816
        %990 = vmatpush.bf16.msra.mxu0 %v814
        %991 = vmatpush.bf16.msra.mxu0 %v812
        %992 = vmatpush.bf16.msra.mxu0 %v810
        %993 = vmatpush.bf16.msra.mxu0 %v808
        %994 = vmatpush.bf16.msra.mxu0 %v806
        %995 = vmatmul.bf16.gmra.mxu0 %v590
        %v996 = vpop.f32.mrf.mxu0
        %v997 = vadd.f32 %v983, %v996
        %v998 = vpop.f32.mrf.mxu0
        %v999 = vadd.f32 %v985, %v998
        %1000 = vdwg.mxu0
        %1001 = vmatpush.bf16.msra.mxu0 %v836
        %1002 = vmatpush.bf16.msra.mxu0 %v834
        %1003 = vmatpush.bf16.msra.mxu0 %v832
        %1004 = vmatpush.bf16.msra.mxu0 %v830
        %1005 = vmatpush.bf16.msra.mxu0 %v828
        %1006 = vmatpush.bf16.msra.mxu0 %v826
        %1007 = vmatpush.bf16.msra.mxu0 %v824
        %1008 = vmatpush.bf16.msra.mxu0 %v822
        %1009 = vmatmul.bf16.gmra.mxu0 %v591
        %v1010 = vpop.f32.mrf.mxu0
        %v1011 = vadd.f32 %v997, %v1010
        %v1012 = vpop.f32.mrf.mxu0
        %v1013 = vadd.f32 %v999, %v1012
        %1014 = vdwg.mxu0
        %1015 = vmatpush.bf16.msra.mxu0 %v852
        %1016 = vmatpush.bf16.msra.mxu0 %v850
        %1017 = vmatpush.bf16.msra.mxu0 %v848
        %1018 = vmatpush.bf16.msra.mxu0 %v846
        %1019 = vmatpush.bf16.msra.mxu0 %v844
        %1020 = vmatpush.bf16.msra.mxu0 %v842
        %1021 = vmatpush.bf16.msra.mxu0 %v840
        %1022 = vmatpush.bf16.msra.mxu0 %v838
        %1023 = vmatmul.bf16.gmra.mxu0 %v592
        %v1024 = vpop.f32.mrf.mxu0
        %v1025 = vadd.f32 %v1011, %v1024
        %v1026 = vpop.f32.mrf.mxu0
        %v1027 = vadd.f32 %v1013, %v1026
        %1028 = vdwg.mxu0
        %v1029 = vadd.f32 %v505, %v969
        %v1030 = vadd.f32 %v506, %v1025
        %v1031 = vadd.f32 %v507, %v971
        %v1032 = vadd.f32 %v508, %v1027
        %1033 = vst [vmem:[%s480] sm:$0xff] %v1029
        %1034 = vst [vmem:[%s480 + $0x8] sm:$0xff] %v1030
        %1035 = vst [vmem:[%s480 + $0x10] sm:$0xff] %v1031
        %1036 = vst [vmem:[%s480 + $0x18] sm:$0xff] %v1032
        %s1037 = sand.u32 %s98, 1
        %s1038 = sand.u32 %s98, 1
        %s1039 = smul.addr %s1038, 32
        %s1040 = scalar_lea.vmem [#allocation3], %s1039
        // Predicated region
        $region71: #{jvp__.78} parent=61 // pred_check
          %p1041 = pneg %p108
        $region72: #{jvp__.78} parent=61 // pred_check_branch
          %1043 = sbr.rel (%p1041) target = $region74
        $region73: #{jvp__.78} parent=61 // pred_region
          %s1044 = smul.u32 2, %s18
          %s1045 = smul.u32 2, %s19
          %s1046 = smul.addr %s1044, 8
          %s1047 = sadd.s32 %s1045, %s1046
          %s1048 = smul.addr %s1047, 8
          %s1049 = scalar_lea.vmem %s2, %s1048
          // Predicated region
          $region75: #{jvp__.78} parent=73 // pred_check
            _
          $region76: #{jvp__.78} parent=73 // pred_check_branch
            %1051 = sbr.rel (0) target = $region78
          $region77: #{jvp__.78} parent=73 // pred_region
            // Predicated region
            $region79: #{jvp__.78} parent=77 // pred_check
              _
            $region80: #{jvp__.78} parent=77 // pred_check_branch
              %1053 = sbr.rel (0) target = $region82
            $region81: #{jvp__.78} parent=77 // pred_region
              loop: start=0, step=1, limit=1
              $region83: #{jvp__.78} parent=81 // loop_pre_header
                _
              $region84: #{jvp__.78} parent=81 // loop_header
                %s1055 = sphi 0, %s1059
                %p1056 = scmp.ge.s32.totalorder %s1055, 1
                %s1060 = sphi %s1040, %s1040
                %s1061 = sphi %s1049, %s1049
              $region85: #{jvp__.78} parent=81 // loop_header_branch
                %1058 = sbr.rel (%p1056) target = $region89
              $region86: #{jvp__.78} parent=81 // loop_body
                %v1062 = vld [vmem:[%s1060] sm:$0xff]
                %1063 = vst [vmem:[%s1061] sm:$0xff] %v1062
                %v1064 = vld [vmem:[%s1060 + $0x8] sm:$0xff]
                %1065 = vst [vmem:[%s1061 + $0x8] sm:$0xff] %v1064
                %v1066 = vld [vmem:[%s1060 + $0x10] sm:$0xff]
                %1067 = vst [vmem:[%s1061 + $0x40] sm:$0xff] %v1066
                %v1068 = vld [vmem:[%s1060 + $0x18] sm:$0xff]
                %1069 = vst [vmem:[%s1061 + $0x48] sm:$0xff] %v1068
              $region87: #{jvp__.78} parent=81 // loop_footer
                %s1059 = sadd.s32 1, %s1055
              $region88: #{jvp__.78} parent=81 // loop_footer_branch
                %1054 = sbr.rel target = $region84
              $region89: #{jvp__.78} parent=81 // loop_exit
                _
            $region82: #{jvp__.78} parent=77 // pred_fallthru
              _
            // Predicated region
            $region90: #{jvp__.78} parent=77 // pred_check
              _
            $region91: #{jvp__.78} parent=77 // pred_check_branch
              %1071 = sbr.rel target = $region93
            $region92: #{jvp__.78} parent=77 // pred_region
              _
            $region93: #{jvp__.78} parent=77 // pred_fallthru
              _
          $region78: #{jvp__.78} parent=73 // pred_fallthru
            _
          %1072 = vnop
        $region74: #{jvp__.78} parent=61 // pred_fallthru
          _
      $region62: #{jvp__.78} parent=5 // pred_fallthru
        _
      %p1073 = scmp.le.s32.totalorder 2, %s8
      // Predicated region
      $region94: #{jvp__.78} parent=5 // pred_check
        %p1074 = pneg %p1073
      $region95: #{jvp__.78} parent=5 // pred_check_branch
        %1076 = sbr.rel (%p1074) target = $region97
      $region96: #{jvp__.78} parent=5 // pred_region
        %s1077 = ssub.s32 %s8, 2
        // Predicated region
        $region98: #{jvp__.78} parent=96 // pred_check
          %p1078 = pneg %p114
        $region99: #{jvp__.78} parent=96 // pred_check_branch
          %1080 = sbr.rel (%p1078) target = $region101
        $region100: #{jvp__.78} parent=96 // pred_region
          %s1081 = sand.u32 %s99, 1
          %s1082 = sand.u32 %s99, 1
          %s1083 = smul.addr %s1082, 32
          %s1084 = scalar_lea.vmem [#allocation3], %s1083
        $region101: #{jvp__.78} parent=96 // pred_fallthru
          _
      $region97: #{jvp__.78} parent=5 // pred_fallthru
        _
    $region6: #{jvp__.78} parent=1 // loop_footer
      %s12 = sadd.s32 1, %s8
    $region7: #{jvp__.78} parent=1 // loop_footer_branch
      %7 = sbr.rel target = $region3
    $region8: #{jvp__.78} parent=1 // loop_exit
      _

// kernel: jvp__.85
$region0: #{jvp__.85}
  #allocation0 [shape = 'u32[]', space=smem, size = 0x4, offset = 0x4, fixed_abs, tag = 'smem constant byte address 0x4 - core index']
  #allocation1 [shape = 'u32[72,128]{1,0:T(1,128)}', space=vmem, size = 0x9000, scoped, tag = 'internal scratch']
  %s0 = inlined_call_operand.vmem [shape: bf16[32,256], index: 0, kind: input, shape index: {}]
  %s1 = inlined_call_operand.vmem [shape: bf16[256,512], index: 1, kind: input, shape index: {}]
  %s2 = inlined_call_operand.vmem [shape: f32[32,512], index: 2, kind: output, shape index: {}]
  %s3 = sld [smem:[#allocation0]]
  $region102: #{jvp__.85} parent=0
    _
  %s5 = ssub.s32 1, %s3
  %s6 = scalar_select 0, %s5, %s3
  $region1: #{jvp__.85} parent=0
    #allocation2 [shape = 'u8[262144]{0}', space=vmem, size = 0x40000, scoped, tag = 'input window, operand 1']
    #allocation3 [shape = 'u8[65536]{0}', space=vmem, size = 0x10000, scoped, tag = 'output window, operand 0']
    loop: start=0, step=1, limit=4
    $region2: #{jvp__.85} parent=1 // loop_pre_header
      _
    $region3: #{jvp__.85} parent=1 // loop_header
      %s8 = sphi 0, %s12
      %p9 = scmp.ge.s32.totalorder %s8, 4
      %s15 = sphi 0, %s34
      %s16 = sphi 0, %s30
      %s17 = sphi 0, %s26
      %s18 = sphi 0, %s15
      %s19 = sphi 0, %s16
      %s20 = sphi 0, %s17
      %s21 = sphi 0, %s18
      %s22 = sphi 0, %s19
      %s23 = sphi 0, %s20
      %s39 = sphi 0, %s41
      %s42 = sphi 0, %s39
      %s43 = sphi 0, %s42
      %s59 = sphi 0, %s43
      %s67 = sphi 0, %s69
      %s70 = sphi 0, %s67
      %s71 = sphi 0, %s70
      %s87 = sphi 0, %s71
      %s95 = sphi 0, %s97
      %s98 = sphi 0, %s95
      %s99 = sphi 0, %s98
      %s115 = sphi 0, %s99
    $region4: #{jvp__.85} parent=1 // loop_header_branch
      %11 = sbr.rel (%p9) target = $region8
    $region5: #{jvp__.85} parent=1 // loop_body
      %s13 = ssub.s32 %s8, 1
      %s14 = ssub.s32 %s8, 2
      %s24 = sadd.s32 1, %s17
      %p25 = scmp.ge.s32.totalorder %s24, 1
      %s26 = scalar_select %p25, 0, %s24
      %s27 = sadd.s32 1, %s16
      %s28 = scalar_select %p25, %s27, %s16
      %p29 = scmp.ge.s32.totalorder %s28, 2
      %s30 = scalar_select %p29, 0, %s28
      %s31 = sadd.s32 1, %s15
      %s32 = scalar_select %p29, %s31, %s15
      %p33 = scmp.ge.s32.totalorder %s32, 1
      %s34 = scalar_select %p33, 0, %s32
      %s35 = ssub.s32 %s15, %s34
      %s36 = ssub.s32 %s17, %s26
      %s37 = sor.u32 %s35, %s36
      %p38 = scmp.eq.s32.totalorder %s37, 0
      %s40 = sadd.s32 %s39, 1
      %s41 = scalar_select %p38, %s39, %s40
      %p44 = pneg %p38
      %p45 = scmp.eq.s32.totalorder %s8, 1
      %p46 = por %p44, %p45
      %p47 = scmp.ne.s32.totalorder %s39, %s42
      %p48 = scmp.eq.s32.totalorder %s8, 0
      %p49 = por %p47, %p48
      %p50 = scmp.ne.s32.totalorder %s39, %s42
      %p51 = scmp.eq.s32.totalorder %s13, 1
      %p52 = por %p50, %p51
      %p53 = scmp.ne.s32.totalorder %s42, %s43
      %p54 = scmp.eq.s32.totalorder %s13, 0
      %p55 = por %p53, %p54
      %p56 = scmp.ne.s32.totalorder %s42, %s43
      %p57 = scmp.eq.s32.totalorder %s14, 1
      %p58 = por %p56, %p57
      %p60 = scmp.ne.s32.totalorder %s43, %s59
      %p61 = scmp.eq.s32.totalorder %s14, 0
      %p62 = por %p60, %p61
      %s63 = ssub.s32 %s17, %s26
      %s64 = ssub.s32 %s16, %s30
      %s65 = sor.u32 %s63, %s64
      %p66 = scmp.eq.s32.totalorder %s65, 0
      %s68 = sadd.s32 %s67, 1
      %s69 = scalar_select %p66, %s67, %s68
      %p72 = pneg %p66
      %p73 = scmp.eq.s32.totalorder %s8, 1
      %p74 = por %p72, %p73
      %p75 = scmp.ne.s32.totalorder %s67, %s70
      %p76 = scmp.eq.s32.totalorder %s8, 0
      %p77 = por %p75, %p76
      %p78 = scmp.ne.s32.totalorder %s67, %s70
      %p79 = scmp.eq.s32.totalorder %s13, 1
      %p80 = por %p78, %p79
      %p81 = scmp.ne.s32.totalorder %s70, %s71
      %p82 = scmp.eq.s32.totalorder %s13, 0
      %p83 = por %p81, %p82
      %p84 = scmp.ne.s32.totalorder %s70, %s71
      %p85 = scmp.eq.s32.totalorder %s14, 1
      %p86 = por %p84, %p85
      %p88 = scmp.ne.s32.totalorder %s71, %s87
      %p89 = scmp.eq.s32.totalorder %s14, 0
      %p90 = por %p88, %p89
      %s91 = ssub.s32 %s15, %s34
      %s92 = ssub.s32 %s16, %s30
      %s93 = sor.u32 %s91, %s92
      %p94 = scmp.eq.s32.totalorder %s93, 0
      %s96 = sadd.s32 %s95, 1
      %s97 = scalar_select %p94, %s95, %s96
      %p100 = pneg %p94
      %p101 = scmp.eq.s32.totalorder %s8, 1
      %p102 = por %p100, %p101
      %p103 = scmp.ne.s32.totalorder %s95, %s98
      %p104 = scmp.eq.s32.totalorder %s8, 0
      %p105 = por %p103, %p104
      %p106 = scmp.ne.s32.totalorder %s95, %s98
      %p107 = scmp.eq.s32.totalorder %s13, 1
      %p108 = por %p106, %p107
      %p109 = scmp.ne.s32.totalorder %s98, %s99
      %p110 = scmp.eq.s32.totalorder %s13, 0
      %p111 = por %p109, %p110
      %p112 = scmp.ne.s32.totalorder %s98, %s99
      %p113 = scmp.eq.s32.totalorder %s14, 1
      %p114 = por %p112, %p113
      %p116 = scmp.ne.s32.totalorder %s99, %s115
      %p117 = scmp.eq.s32.totalorder %s14, 0
      %p118 = por %p116, %p117
      %p119 = scmp.le.s32.totalorder 1, %s8
      %p120 = scmp.lt.s32.totalorder %s8, 3
      %p121 = pnand %p119, %p120
      %p122 = pneg %p121
      // Predicated region
      $region9: #{jvp__.85} parent=5 // pred_check
        _
      $region10: #{jvp__.85} parent=5 // pred_check_branch
        %124 = sbr.rel (%p121) target = $region12
      $region11: #{jvp__.85} parent=5 // pred_region
        %s125 = ssub.s32 %s8, 1
        // Predicated region
        $region13: #{jvp__.85} parent=11 // pred_check
          %p126 = pneg %p55
        $region14: #{jvp__.85} parent=11 // pred_check_branch
          %128 = sbr.rel (%p126) target = $region16
        $region15: #{jvp__.85} parent=11 // pred_region
          %s129 = smul.u32 4, %s18
          %s130 = smul.u32 2, %s20
          %p131 = scmp.lt.s32.totalorder %s129, 3
          %s132 = scalar_select %p131, %s129, 3
          %p133 = scmp.lt.s32.totalorder %s130, 1
          %s134 = scalar_select %p133, %s130, 1
          %s135 = smul.addr %s132, 2
          %s136 = sadd.s32 %s134, %s135
          %s137 = smul.addr %s136, 4
          %s138 = scalar_lea.vmem %s0, %s137
          %s139 = smul.u32 4, %s18
          %s140 = smul.u32 2, %s20
        $region16: #{jvp__.85} parent=11 // pred_fallthru
          _
      $region12: #{jvp__.85} parent=5 // pred_fallthru
        _
      %p141 = scmp.lt.s32.totalorder %s8, 2
      // Predicated region
      $region17: #{jvp__.85} parent=5 // pred_check
        %p142 = pneg %p141
      $region18: #{jvp__.85} parent=5 // pred_check_branch
        %144 = sbr.rel (%p142) target = $region20
      $region19: #{jvp__.85} parent=5 // pred_region
        // Predicated region
        $region21: #{jvp__.85} parent=19 // pred_check
          %p145 = pneg %p77
        $region22: #{jvp__.85} parent=19 // pred_check_branch
          %147 = sbr.rel (%p145) target = $region24
        $region23: #{jvp__.85} parent=19 // pred_region
          %s148 = sand.u32 %s67, 1
          %s149 = sand.u32 %s67, 1
          %s150 = smul.addr %s149, 256
          %s151 = scalar_lea.vmem [#allocation2], %s150
          %s152 = smul.u32 32, %s17
          %s153 = smul.u32 2, %s16
          %s154 = smul.addr %s152, 4
          %s155 = sadd.s32 %s153, %s154
          %s156 = smul.addr %s155, 4
          %s157 = scalar_lea.vmem %s1, %s156
          // Predicated region
          $region25: #{jvp__.85} parent=23 // pred_check
            _
          $region26: #{jvp__.85} parent=23 // pred_check_branch
            %159 = sbr.rel (0) target = $region28
          $region27: #{jvp__.85} parent=23 // pred_region
            // Predicated region
            $region29: #{jvp__.85} parent=27 // pred_check
              _
            $region30: #{jvp__.85} parent=27 // pred_check_branch
              %161 = sbr.rel (0) target = $region32
            $region31: #{jvp__.85} parent=27 // pred_region
              // Predicated region
              $region44: #{jvp__.85} parent=31 // pred_check
                _
              $region45: #{jvp__.85} parent=31 // pred_check_branch
                %239 = sbr.rel (0) target = $region47
              $region46: #{jvp__.85} parent=31 // pred_region
                loop: start=0, step=1, limit=1
                $region48: #{jvp__.85} parent=46 // loop_pre_header
                  _
                $region49: #{jvp__.85} parent=46 // loop_header
                  %s241 = sphi 0, %s245
                  %p242 = scmp.ge.s32.totalorder %s241, 1
                  %s246 = sphi %s157, %s157
                  %s247 = sphi %s151, %s151
                $region50: #{jvp__.85} parent=46 // loop_header_branch
                  %244 = sbr.rel (%p242) target = $region54
                $region51: #{jvp__.85} parent=46 // loop_body
                  %v248 = vld [vmem:[%s246] sm:$0xff]
                  %249 = vst [vmem:[%s247] sm:$0xff] %v248
                  %v250 = vld [vmem:[%s246 + $0x10] sm:$0xff]
                  %251 = vst [vmem:[%s247 + $0x8] sm:$0xff] %v250
                  %v252 = vld [vmem:[%s246 + $0x20] sm:$0xff]
                  %253 = vst [vmem:[%s247 + $0x10] sm:$0xff] %v252
                  %v254 = vld [vmem:[%s246 + $0x30] sm:$0xff]
                  %255 = vst [vmem:[%s247 + $0x18] sm:$0xff] %v254
                  %v256 = vld [vmem:[%s246 + $0x40] sm:$0xff]
                  %257 = vst [vmem:[%s247 + $0x20] sm:$0xff] %v256
                  %v258 = vld [vmem:[%s246 + $0x50] sm:$0xff]
                  %259 = vst [vmem:[%s247 + $0x28] sm:$0xff] %v258
                  %v260 = vld [vmem:[%s246 + $0x60] sm:$0xff]
                  %261 = vst [vmem:[%s247 + $0x30] sm:$0xff] %v260
                  %v262 = vld [vmem:[%s246 + $0x70] sm:$0xff]
                  %263 = vst [vmem:[%s247 + $0x38] sm:$0xff] %v262
                  %v264 = vld [vmem:[%s246 + $0x80] sm:$0xff]
                  %265 = vst [vmem:[%s247 + $0x40] sm:$0xff] %v264
                  %v266 = vld [vmem:[%s246 + $0x90] sm:$0xff]
                  %267 = vst [vmem:[%s247 + $0x48] sm:$0xff] %v266
                  %v268 = vld [vmem:[%s246 + $0xa0] sm:$0xff]
                  %269 = vst [vmem:[%s247 + $0x50] sm:$0xff] %v268
                  %v270 = vld [vmem:[%s246 + $0xb0] sm:$0xff]
                  %271 = vst [vmem:[%s247 + $0x58] sm:$0xff] %v270
                  %v272 = vld [vmem:[%s246 + $0xc0] sm:$0xff]
                  %273 = vst [vmem:[%s247 + $0x60] sm:$0xff] %v272
                  %v274 = vld [vmem:[%s246 + $0xd0] sm:$0xff]
                  %275 = vst [vmem:[%s247 + $0x68] sm:$0xff] %v274
                  %v276 = vld [vmem:[%s246 + $0xe0] sm:$0xff]
                  %277 = vst [vmem:[%s247 + $0x70] sm:$0xff] %v276
                  %v278 = vld [vmem:[%s246 + $0xf0] sm:$0xff]
                  %279 = vst [vmem:[%s247 + $0x78] sm:$0xff] %v278
                  %v280 = vld [vmem:[%s246 + $0x100] sm:$0xff]
                  %281 = vst [vmem:[%s247 + $0x80] sm:$0xff] %v280
                  %v282 = vld [vmem:[%s246 + $0x110] sm:$0xff]
                  %283 = vst [vmem:[%s247 + $0x88] sm:$0xff] %v282
                  %v284 = vld [vmem:[%s246 + $0x120] sm:$0xff]
                  %285 = vst [vmem:[%s247 + $0x90] sm:$0xff] %v284
                  %v286 = vld [vmem:[%s246 + $0x130] sm:$0xff]
                  %287 = vst [vmem:[%s247 + $0x98] sm:$0xff] %v286
                  %v288 = vld [vmem:[%s246 + $0x140] sm:$0xff]
                  %289 = vst [vmem:[%s247 + $0xa0] sm:$0xff] %v288
                  %v290 = vld [vmem:[%s246 + $0x150] sm:$0xff]
                  %291 = vst [vmem:[%s247 + $0xa8] sm:$0xff] %v290
                  %v292 = vld [vmem:[%s246 + $0x160] sm:$0xff]
                  %293 = vst [vmem:[%s247 + $0xb0] sm:$0xff] %v292
                  %v294 = vld [vmem:[%s246 + $0x170] sm:$0xff]
                  %295 = vst [vmem:[%s247 + $0xb8] sm:$0xff] %v294
                  %v296 = vld [vmem:[%s246 + $0x180] sm:$0xff]
                  %297 = vst [vmem:[%s247 + $0xc0] sm:$0xff] %v296
                  %v298 = vld [vmem:[%s246 + $0x190] sm:$0xff]
                  %299 = vst [vmem:[%s247 + $0xc8] sm:$0xff] %v298
                  %v300 = vld [vmem:[%s246 + $0x1a0] sm:$0xff]
                  %301 = vst [vmem:[%s247 + $0xd0] sm:$0xff] %v300
                  %v302 = vld [vmem:[%s246 + $0x1b0] sm:$0xff]
                  %303 = vst [vmem:[%s247 + $0xd8] sm:$0xff] %v302
                  %v304 = vld [vmem:[%s246 + $0x1c0] sm:$0xff]
                  %305 = vst [vmem:[%s247 + $0xe0] sm:$0xff] %v304
                  %v306 = vld [vmem:[%s246 + $0x1d0] sm:$0xff]
                  %307 = vst [vmem:[%s247 + $0xe8] sm:$0xff] %v306
                  %v308 = vld [vmem:[%s246 + $0x1e0] sm:$0xff]
                  %309 = vst [vmem:[%s247 + $0xf0] sm:$0xff] %v308
                  %v310 = vld [vmem:[%s246 + $0x1f0] sm:$0xff]
                  %311 = vst [vmem:[%s247 + $0xf8] sm:$0xff] %v310
                $region52: #{jvp__.85} parent=46 // loop_footer
                  %s245 = sadd.s32 1, %s241
                $region53: #{jvp__.85} parent=46 // loop_footer_branch
                  %240 = sbr.rel target = $region49
                $region54: #{jvp__.85} parent=46 // loop_exit
                  _
              $region47: #{jvp__.85} parent=31 // pred_fallthru
                _
              // Predicated region
              $region55: #{jvp__.85} parent=31 // pred_check
                _
              $region56: #{jvp__.85} parent=31 // pred_check_branch
                %313 = sbr.rel target = $region58
              $region57: #{jvp__.85} parent=31 // pred_region
                _
              $region58: #{jvp__.85} parent=31 // pred_fallthru
                _
            $region32: #{jvp__.85} parent=27 // pred_fallthru
              _
            // Predicated region
            $region33: #{jvp__.85} parent=27 // pred_check
              _
            $region34: #{jvp__.85} parent=27 // pred_check_branch
              %163 = sbr.rel target = $region36
            $region35: #{jvp__.85} parent=27 // pred_region
              %s165 = ssub.s32 256, 1
              loop: start=0, step=1, limit=1
              $region37: #{jvp__.85} parent=35 // loop_pre_header
                _
              $region38: #{jvp__.85} parent=35 // loop_header
                %s167 = sphi 0, %s171
                %p168 = scmp.ge.s32.totalorder %s167, 1
                %s172 = sphi %s157, %s157
                %s173 = sphi %s151, %s151
              $region39: #{jvp__.85} parent=35 // loop_header_branch
                %170 = sbr.rel (%p168) target = $region43
              $region40: #{jvp__.85} parent=35 // loop_body
                %v174 = vld [vmem:[%s172] sm:%s165]
                %175 = vst [vmem:[%s173] sm:%s165] %v174
                %v176 = vld [vmem:[%s172 + $0x10] sm:%s165]
                %177 = vst [vmem:[%s173 + $0x8] sm:%s165] %v176
                %v178 = vld [vmem:[%s172 + $0x20] sm:%s165]
                %179 = vst [vmem:[%s173 + $0x10] sm:%s165] %v178
                %v180 = vld [vmem:[%s172 + $0x30] sm:%s165]
                %181 = vst [vmem:[%s173 + $0x18] sm:%s165] %v180
                %v182 = vld [vmem:[%s172 + $0x40] sm:%s165]
                %183 = vst [vmem:[%s173 + $0x20] sm:%s165] %v182
                %v184 = vld [vmem:[%s172 + $0x50] sm:%s165]
                %185 = vst [vmem:[%s173 + $0x28] sm:%s165] %v184
                %v186 = vld [vmem:[%s172 + $0x60] sm:%s165]
                %187 = vst [vmem:[%s173 + $0x30] sm:%s165] %v186
                %v188 = vld [vmem:[%s172 + $0x70] sm:%s165]
                %189 = vst [vmem:[%s173 + $0x38] sm:%s165] %v188
                %v190 = vld [vmem:[%s172 + $0x80] sm:%s165]
                %191 = vst [vmem:[%s173 + $0x40] sm:%s165] %v190
                %v192 = vld [vmem:[%s172 + $0x90] sm:%s165]
                %193 = vst [vmem:[%s173 + $0x48] sm:%s165] %v192
                %v194 = vld [vmem:[%s172 + $0xa0] sm:%s165]
                %195 = vst [vmem:[%s173 + $0x50] sm:%s165] %v194
                %v196 = vld [vmem:[%s172 + $0xb0] sm:%s165]
                %197 = vst [vmem:[%s173 + $0x58] sm:%s165] %v196
                %v198 = vld [vmem:[%s172 + $0xc0] sm:%s165]
                %199 = vst [vmem:[%s173 + $0x60] sm:%s165] %v198
                %v200 = vld [vmem:[%s172 + $0xd0] sm:%s165]
                %201 = vst [vmem:[%s173 + $0x68] sm:%s165] %v200
                %v202 = vld [vmem:[%s172 + $0xe0] sm:%s165]
                %203 = vst [vmem:[%s173 + $0x70] sm:%s165] %v202
                %v204 = vld [vmem:[%s172 + $0xf0] sm:%s165]
                %205 = vst [vmem:[%s173 + $0x78] sm:%s165] %v204
                %v206 = vld [vmem:[%s172 + $0x100] sm:%s165]
                %207 = vst [vmem:[%s173 + $0x80] sm:%s165] %v206
                %v208 = vld [vmem:[%s172 + $0x110] sm:%s165]
                %209 = vst [vmem:[%s173 + $0x88] sm:%s165] %v208
                %v210 = vld [vmem:[%s172 + $0x120] sm:%s165]
                %211 = vst [vmem:[%s173 + $0x90] sm:%s165] %v210
                %v212 = vld [vmem:[%s172 + $0x130] sm:%s165]
                %213 = vst [vmem:[%s173 + $0x98] sm:%s165] %v212
                %v214 = vld [vmem:[%s172 + $0x140] sm:%s165]
                %215 = vst [vmem:[%s173 + $0xa0] sm:%s165] %v214
                %v216 = vld [vmem:[%s172 + $0x150] sm:%s165]
                %217 = vst [vmem:[%s173 + $0xa8] sm:%s165] %v216
                %v218 = vld [vmem:[%s172 + $0x160] sm:%s165]
                %219 = vst [vmem:[%s173 + $0xb0] sm:%s165] %v218
                %v220 = vld [vmem:[%s172 + $0x170] sm:%s165]
                %221 = vst [vmem:[%s173 + $0xb8] sm:%s165] %v220
                %v222 = vld [vmem:[%s172 + $0x180] sm:%s165]
                %223 = vst [vmem:[%s173 + $0xc0] sm:%s165] %v222
                %v224 = vld [vmem:[%s172 + $0x190] sm:%s165]
                %225 = vst [vmem:[%s173 + $0xc8] sm:%s165] %v224
                %v226 = vld [vmem:[%s172 + $0x1a0] sm:%s165]
                %227 = vst [vmem:[%s173 + $0xd0] sm:%s165] %v226
                %v228 = vld [vmem:[%s172 + $0x1b0] sm:%s165]
                %229 = vst [vmem:[%s173 + $0xd8] sm:%s165] %v228
                %v230 = vld [vmem:[%s172 + $0x1c0] sm:%s165]
                %231 = vst [vmem:[%s173 + $0xe0] sm:%s165] %v230
                %v232 = vld [vmem:[%s172 + $0x1d0] sm:%s165]
                %233 = vst [vmem:[%s173 + $0xe8] sm:%s165] %v232
                %v234 = vld [vmem:[%s172 + $0x1e0] sm:%s165]
                %235 = vst [vmem:[%s173 + $0xf0] sm:%s165] %v234
                %v236 = vld [vmem:[%s172 + $0x1f0] sm:%s165]
                %237 = vst [vmem:[%s173 + $0xf8] sm:%s165] %v236
              $region41: #{jvp__.85} parent=35 // loop_footer
                %s171 = sadd.s32 1, %s167
              $region42: #{jvp__.85} parent=35 // loop_footer_branch
                %166 = sbr.rel target = $region38
              $region43: #{jvp__.85} parent=35 // loop_exit
                _
            $region36: #{jvp__.85} parent=27 // pred_fallthru
              _
          $region28: #{jvp__.85} parent=23 // pred_fallthru
            _
          %314 = vnop
        $region24: #{jvp__.85} parent=19 // pred_fallthru
          _
      $region20: #{jvp__.85} parent=5 // pred_fallthru
        _
      %p315 = scmp.le.s32.totalorder 1, %s8
      %p316 = scmp.lt.s32.totalorder %s8, 3
      %p317 = pnand %p315, %p316
      %p318 = pneg %p317
      // Predicated region
      $region59: #{jvp__.85} parent=5 // pred_check
        _
      $region60: #{jvp__.85} parent=5 // pred_check_branch
        %320 = sbr.rel (%p317) target = $region62
      $region61: #{jvp__.85} parent=5 // pred_region
        %s321 = ssub.s32 %s8, 1
        %s322 = sand.u32 %s70, 1
        %s323 = sand.u32 %s70, 1
        %s324 = smul.addr %s323, 256
        %s325 = scalar_lea.vmem [#allocation2], %s324
        // Predicated region
        $region63: #{jvp__.85} parent=61 // pred_check
          %p326 = pneg %p83
        $region64: #{jvp__.85} parent=61 // pred_check_branch
          %328 = sbr.rel (%p326) target = $region66
        $region65: #{jvp__.85} parent=61 // pred_region
          _
        $region66: #{jvp__.85} parent=61 // pred_fallthru
          _
        %s329 = smul.u32 4, %s18
        %s330 = smul.u32 2, %s20
        %p331 = scmp.lt.s32.totalorder %s329, 3
        %s332 = scalar_select %p331, %s329, 3
        %p333 = scmp.lt.s32.totalorder %s330, 1
        %s334 = scalar_select %p333, %s330, 1
        %s335 = smul.addr %s332, 2
        %s336 = sadd.s32 %s334, %s335
        %s337 = smul.addr %s336, 4
        %s338 = scalar_lea.vmem %s0, %s337
        %p339 = pneg %p55
        %p340 = pneg %p52
        %s341 = sand.u32 %s70, 1
        %s342 = sand.u32 %s70, 1
        %s343 = smul.addr %s342, 256
        %s344 = scalar_lea.vmem [#allocation2], %s343
        %p345 = pneg %p83
        %p346 = pneg %p80
        %p347 = pneg %p111
        %p348 = pneg %p108
        %s349 = sand.u32 %s98, 1
        %s350 = sand.u32 %s98, 1
        %s351 = smul.addr %s350, 64
        %s352 = scalar_lea.vmem [#allocation3], %s351
        %s353 = smul.u32 4, %s18
        %s354 = smul.u32 2, %s20
        %p355 = scmp.lt.s32.totalorder %s353, 3
        %s356 = scalar_select %p355, %s353, 3
        %p357 = scmp.lt.s32.totalorder %s354, 1
        %s358 = scalar_select %p357, %s354, 1
        %s359 = smul.addr %s356, 2
        %s360 = sadd.s32 %s358, %s359
        %s361 = smul.addr %s360, 4
        %s362 = scalar_lea.vmem %s0, %s361
        %s363 = smul.u32 4, %s18
        %s364 = smul.u32 2, %s20
        %s365 = smul.u32 32, %s20
        %s366 = smul.u32 2, %s19
        %s367 = smul.u32 4, %s18
        %s368 = smul.u32 2, %s19
        %p369 = scmp.eq.s32.totalorder %s20, 0
        // Predicated region
        $region67: #{jvp__.85} parent=61 // pred_check
          %p370 = pneg %p369
        $region68: #{jvp__.85} parent=61 // pred_check_branch
          %372 = sbr.rel (%p370) target = $region70
        $region69: #{jvp__.85} parent=61 // pred_region
          %373 = vst [vmem:[%s352] sm:$0xff] 0.0
          %374 = vst [vmem:[%s352 + $0x8] sm:$0xff] 0.0
          %375 = vst [vmem:[%s352 + $0x10] sm:$0xff] 0.0
          %376 = vst [vmem:[%s352 + $0x18] sm:$0xff] 0.0
          %377 = vst [vmem:[%s352 + $0x20] sm:$0xff] 0.0
          %378 = vst [vmem:[%s352 + $0x28] sm:$0xff] 0.0
          %379 = vst [vmem:[%s352 + $0x30] sm:$0xff] 0.0
          %380 = vst [vmem:[%s352 + $0x38] sm:$0xff] 0.0
        $region70: #{jvp__.85} parent=61 // pred_fallthru
          _
        %v381 = vld [vmem:[%s352] sm:$0xff]
        %v382 = vld [vmem:[%s352 + $0x8] sm:$0xff]
        %v383 = vld [vmem:[%s352 + $0x10] sm:$0xff]
        %v384 = vld [vmem:[%s352 + $0x18] sm:$0xff]
        %v385 = vld [vmem:[%s352 + $0x20] sm:$0xff]
        %v386 = vld [vmem:[%s352 + $0x28] sm:$0xff]
        %v387 = vld [vmem:[%s352 + $0x30] sm:$0xff]
        %v388 = vld [vmem:[%s352 + $0x38] sm:$0xff]
        %v389 = vld [vmem:[%s362] sm:$0xff]
        %v390 = vld [vmem:[%s362 + $0x8] sm:$0xff]
        %v391 = vld [vmem:[%s362 + $0x10] sm:$0xff]
        %v392 = vld [vmem:[%s362 + $0x18] sm:$0xff]
        %v393 = vld [vmem:[%s325] sm:$0xff]
        %v394 = vld [vmem:[%s325 + $0x8] sm:$0xff]
        %v395 = vld [vmem:[%s325 + $0x10] sm:$0xff]
        %v396 = vld [vmem:[%s325 + $0x18] sm:$0xff]
        %v397 = vld [vmem:[%s325 + $0x20] sm:$0xff]
        %v398 = vld [vmem:[%s325 + $0x28] sm:$0xff]
        %v399 = vld [vmem:[%s325 + $0x30] sm:$0xff]
        %v400 = vld [vmem:[%s325 + $0x38] sm:$0xff]
        %v401 = vld [vmem:[%s325 + $0x40] sm:$0xff]
        %v402 = vld [vmem:[%s325 + $0x48] sm:$0xff]
        %v403 = vld [vmem:[%s325 + $0x50] sm:$0xff]
        %v404 = vld [vmem:[%s325 + $0x58] sm:$0xff]
        %v405 = vld [vmem:[%s325 + $0x60] sm:$0xff]
        %v406 = vld [vmem:[%s325 + $0x68] sm:$0xff]
        %v407 = vld [vmem:[%s325 + $0x70] sm:$0xff]
        %v408 = vld [vmem:[%s325 + $0x78] sm:$0xff]
        %v409 = vld [vmem:[%s325 + $0x80] sm:$0xff]
        %v410 = vld [vmem:[%s325 + $0x88] sm:$0xff]
        %v411 = vld [vmem:[%s325 + $0x90] sm:$0xff]
        %v412 = vld [vmem:[%s325 + $0x98] sm:$0xff]
        %v413 = vld [vmem:[%s325 + $0xa0] sm:$0xff]
        %v414 = vld [vmem:[%s325 + $0xa8] sm:$0xff]
        %v415 = vld [vmem:[%s325 + $0xb0] sm:$0xff]
        %v416 = vld [vmem:[%s325 + $0xb8] sm:$0xff]
        %v417 = vld [vmem:[%s325 + $0xc0] sm:$0xff]
        %v418 = vld [vmem:[%s325 + $0xc8] sm:$0xff]
        %v419 = vld [vmem:[%s325 + $0xd0] sm:$0xff]
        %v420 = vld [vmem:[%s325 + $0xd8] sm:$0xff]
        %v421 = vld [vmem:[%s325 + $0xe0] sm:$0xff]
        %v422 = vld [vmem:[%s325 + $0xe8] sm:$0xff]
        %v423 = vld [vmem:[%s325 + $0xf0] sm:$0xff]
        %v424 = vld [vmem:[%s325 + $0xf8] sm:$0xff]
        %v429 = vunpack.c.l.b16 %v389
        %v430 = vunpack.c.h.b16 %v389
        %v431 = vunpack.c.l.b16 %v390
        %v432 = vunpack.c.h.b16 %v390
        %v433 = vunpack.c.l.b16 %v391
        %v434 = vunpack.c.h.b16 %v391
        %v435 = vunpack.c.l.b16 %v392
        %v436 = vunpack.c.h.b16 %v392
        %v437 = vpack.c.b16 %v431, %v429
        %v438 = vpack.c.b16 %v432, %v430
        %v439 = vpack.c.b16 %v435, %v433
        %v440 = vpack.c.b16 %v436, %v434
        %v477 = vunpack.c.l.b16 %v393
        %v478 = vunpack.c.h.b16 %v393
        %v479 = vunpack.c.l.b16 %v394
        %v480 = vunpack.c.h.b16 %v394
        %v481 = vunpack.c.l.b16 %v395
        %v482 = vunpack.c.h.b16 %v395
        %v483 = vunpack.c.l.b16 %v396
        %v484 = vunpack.c.h.b16 %v396
        %v485 = vunpack.c.l.b16 %v397
        %v486 = vunpack.c.h.b16 %v397
        %v487 = vunpack.c.l.b16 %v398
        %v488 = vunpack.c.h.b16 %v398
        %v489 = vunpack.c.l.b16 %v399
        %v490 = vunpack.c.h.b16 %v399
        %v491 = vunpack.c.l.b16 %v400
        %v492 = vunpack.c.h.b16 %v400
        %v493 = vunpack.c.l.b16 %v401
        %v494 = vunpack.c.h.b16 %v401
        %v495 = vunpack.c.l.b16 %v402
        %v496 = vunpack.c.h.b16 %v402
        %v497 = vunpack.c.l.b16 %v403
        %v498 = vunpack.c.h.b16 %v403
        %v499 = vunpack.c.l.b16 %v404
        %v500 = vunpack.c.h.b16 %v404
        %v501 = vunpack.c.l.b16 %v405
        %v502 = vunpack.c.h.b16 %v405
        %v503 = vunpack.c.l.b16 %v406
        %v504 = vunpack.c.h.b16 %v406
        %v505 = vunpack.c.l.b16 %v407
        %v506 = vunpack.c.h.b16 %v407
        %v507 = vunpack.c.l.b16 %v408
        %v508 = vunpack.c.h.b16 %v408
        %v509 = vunpack.c.l.b16 %v409
        %v510 = vunpack.c.h.b16 %v409
        %v511 = vunpack.c.l.b16 %v410
        %v512 = vunpack.c.h.b16 %v410
        %v513 = vunpack.c.l.b16 %v411
        %v514 = vunpack.c.h.b16 %v411
        %v515 = vunpack.c.l.b16 %v412
        %v516 = vunpack.c.h.b16 %v412
        %v517 = vunpack.c.l.b16 %v413
        %v518 = vunpack.c.h.b16 %v413
        %v519 = vunpack.c.l.b16 %v414
        %v520 = vunpack.c.h.b16 %v414
        %v521 = vunpack.c.l.b16 %v415
        %v522 = vunpack.c.h.b16 %v415
        %v523 = vunpack.c.l.b16 %v416
        %v524 = vunpack.c.h.b16 %v416
        %v525 = vunpack.c.l.b16 %v417
        %v526 = vunpack.c.h.b16 %v417
        %v527 = vunpack.c.l.b16 %v418
        %v528 = vunpack.c.h.b16 %v418
        %v529 = vunpack.c.l.b16 %v419
        %v530 = vunpack.c.h.b16 %v419
        %v531 = vunpack.c.l.b16 %v420
        %v532 = vunpack.c.h.b16 %v420
        %v533 = vunpack.c.l.b16 %v421
        %v534 = vunpack.c.h.b16 %v421
        %v535 = vunpack.c.l.b16 %v422
        %v536 = vunpack.c.h.b16 %v422
        %v537 = vunpack.c.l.b16 %v423
        %v538 = vunpack.c.h.b16 %v423
        %v539 = vunpack.c.l.b16 %v424
        %v540 = vunpack.c.h.b16 %v424
        %v541 = vpack.c.b16 %v479, %v477
        %v542 = vpack.c.b16 %v480, %v478
        %v543 = vpack.c.b16 %v483, %v481
        %v544 = vpack.c.b16 %v484, %v482
        %v545 = vpack.c.b16 %v487, %v485
        %v546 = vpack.c.b16 %v488, %v486
        %v547 = vpack.c.b16 %v491, %v489
        %v548 = vpack.c.b16 %v492, %v490
        %v549 = vpack.c.b16 %v495, %v493
        %v550 = vpack.c.b16 %v496, %v494
        %v551 = vpack.c.b16 %v499, %v497
        %v552 = vpack.c.b16 %v500, %v498
        %v553 = vpack.c.b16 %v503, %v501
        %v554 = vpack.c.b16 %v504, %v502
        %v555 = vpack.c.b16 %v507, %v505
        %v556 = vpack.c.b16 %v508, %v506
        %v557 = vpack.c.b16 %v511, %v509
        %v558 = vpack.c.b16 %v512, %v510
        %v559 = vpack.c.b16 %v515, %v513
        %v560 = vpack.c.b16 %v516, %v514
        %v561 = vpack.c.b16 %v519, %v517
        %v562 = vpack.c.b16 %v520, %v518
        %v563 = vpack.c.b16 %v523, %v521
        %v564 = vpack.c.b16 %v524, %v522
        %v565 = vpack.c.b16 %v527, %v525
        %v566 = vpack.c.b16 %v528, %v526
        %v567 = vpack.c.b16 %v531, %v529
        %v568 = vpack.c.b16 %v532, %v530
        %v569 = vpack.c.b16 %v535, %v533
        %v570 = vpack.c.b16 %v536, %v534
        %v571 = vpack.c.b16 %v539, %v537
        %v572 = vpack.c.b16 %v540, %v538
        %605 = vmatpush.bf16.msra.mxu0 %v555
        %606 = vmatpush.bf16.msra.mxu0 %v553
        %607 = vmatpush.bf16.msra.mxu0 %v551
        %608 = vmatpush.bf16.msra.mxu0 %v549
        %609 = vmatpush.bf16.msra.mxu0 %v547
        %610 = vmatpush.bf16.msra.mxu0 %v545
        %611 = vmatpush.bf16.msra.mxu0 %v543
        %612 = vmatpush.bf16.msra.mxu0 %v541
        %613 = vmatmul.bf16.gmra.mxu0 %v437
        %v614 = vpop.f32.mrf.mxu0
        %v615 = vadd.f32 0.0, %v614
        %v616 = vpop.f32.mrf.mxu0
        %v617 = vadd.f32 0.0, %v616
        %618 = vmatmul.bf16.gmra.mxu0 %v439
        %v619 = vpop.f32.mrf.mxu0
        %v620 = vadd.f32 0.0, %v619
        %v621 = vpop.f32.mrf.mxu0
        %v622 = vadd.f32 0.0, %v621
        %623 = vdwg.mxu0
        %624 = vmatpush.bf16.msra.mxu0 %v571
        %625 = vmatpush.bf16.msra.mxu0 %v569
        %626 = vmatpush.bf16.msra.mxu0 %v567
        %627 = vmatpush.bf16.msra.mxu0 %v565
        %628 = vmatpush.bf16.msra.mxu0 %v563
        %629 = vmatpush.bf16.msra.mxu0 %v561
        %630 = vmatpush.bf16.msra.mxu0 %v559
        %631 = vmatpush.bf16.msra.mxu0 %v557
        %632 = vmatmul.bf16.gmra.mxu0 %v438
        %v633 = vpop.f32.mrf.mxu0
        %v634 = vadd.f32 %v615, %v633
        %v635 = vpop.f32.mrf.mxu0
        %v636 = vadd.f32 %v617, %v635
        %637 = vmatmul.bf16.gmra.mxu0 %v440
        %v638 = vpop.f32.mrf.mxu0
        %v639 = vadd.f32 %v620, %v638
        %v640 = vpop.f32.mrf.mxu0
        %v641 = vadd.f32 %v622, %v640
        %642 = vdwg.mxu0
        %643 = vmatpush.bf16.msra.mxu0 %v556
        %644 = vmatpush.bf16.msra.mxu0 %v554
        %645 = vmatpush.bf16.msra.mxu0 %v552
        %646 = vmatpush.bf16.msra.mxu0 %v550
        %647 = vmatpush.bf16.msra.mxu0 %v548
        %648 = vmatpush.bf16.msra.mxu0 %v546
        %649 = vmatpush.bf16.msra.mxu0 %v544
        %650 = vmatpush.bf16.msra.mxu0 %v542
        %651 = vmatmul.bf16.gmra.mxu0 %v437
        %v652 = vpop.f32.mrf.mxu0
        %v653 = vadd.f32 0.0, %v652
        %v654 = vpop.f32.mrf.mxu0
        %v655 = vadd.f32 0.0, %v654
        %656 = vmatmul.bf16.gmra.mxu0 %v439
        %v657 = vpop.f32.mrf.mxu0
        %v658 = vadd.f32 0.0, %v657
        %v659 = vpop.f32.mrf.mxu0
        %v660 = vadd.f32 0.0, %v659
        %661 = vdwg.mxu0
        %662 = vmatpush.bf16.msra.mxu0 %v572
        %663 = vmatpush.bf16.msra.mxu0 %v570
        %664 = vmatpush.bf16.msra.mxu0 %v568
        %665 = vmatpush.bf16.msra.mxu0 %v566
        %666 = vmatpush.bf16.msra.mxu0 %v564
        %667 = vmatpush.bf16.msra.mxu0 %v562
        %668 = vmatpush.bf16.msra.mxu0 %v560
        %669 = vmatpush.bf16.msra.mxu0 %v558
        %670 = vmatmul.bf16.gmra.mxu0 %v438
        %v671 = vpop.f32.mrf.mxu0
        %v672 = vadd.f32 %v653, %v671
        %v673 = vpop.f32.mrf.mxu0
        %v674 = vadd.f32 %v655, %v673
        %675 = vmatmul.bf16.gmra.mxu0 %v440
        %v676 = vpop.f32.mrf.mxu0
        %v677 = vadd.f32 %v658, %v676
        %v678 = vpop.f32.mrf.mxu0
        %v679 = vadd.f32 %v660, %v678
        %680 = vdwg.mxu0
        %v681 = vadd.f32 %v381, %v634
        %v682 = vadd.f32 %v382, %v672
        %v683 = vadd.f32 %v383, %v636
        %v684 = vadd.f32 %v384, %v674
        %v685 = vadd.f32 %v385, %v639
        %v686 = vadd.f32 %v386, %v677
        %v687 = vadd.f32 %v387, %v641
        %v688 = vadd.f32 %v388, %v679
        %689 = vst [vmem:[%s352] sm:$0xff] %v681
        %690 = vst [vmem:[%s352 + $0x8] sm:$0xff] %v682
        %691 = vst [vmem:[%s352 + $0x10] sm:$0xff] %v683
        %692 = vst [vmem:[%s352 + $0x18] sm:$0xff] %v684
        %693 = vst [vmem:[%s352 + $0x20] sm:$0xff] %v685
        %694 = vst [vmem:[%s352 + $0x28] sm:$0xff] %v686
        %695 = vst [vmem:[%s352 + $0x30] sm:$0xff] %v687
        %696 = vst [vmem:[%s352 + $0x38] sm:$0xff] %v688
        %s697 = sand.u32 %s98, 1
        %s698 = sand.u32 %s98, 1
        %s699 = smul.addr %s698, 64
        %s700 = scalar_lea.vmem [#allocation3], %s699
        // Predicated region
        $region71: #{jvp__.85} parent=61 // pred_check
          %p701 = pneg %p108
        $region72: #{jvp__.85} parent=61 // pred_check_branch
          %703 = sbr.rel (%p701) target = $region74
        $region73: #{jvp__.85} parent=61 // pred_region
          %s704 = smul.u32 4, %s18
          %s705 = smul.u32 2, %s19
          %s706 = smul.addr %s704, 4
          %s707 = sadd.s32 %s705, %s706
          %s708 = smul.addr %s707, 8
          %s709 = scalar_lea.vmem %s2, %s708
          // Predicated region
          $region75: #{jvp__.85} parent=73 // pred_check
            _
          $region76: #{jvp__.85} parent=73 // pred_check_branch
            %711 = sbr.rel (0) target = $region78
          $region77: #{jvp__.85} parent=73 // pred_region
            // Predicated region
            $region79: #{jvp__.85} parent=77 // pred_check
              _
            $region80: #{jvp__.85} parent=77 // pred_check_branch
              %713 = sbr.rel (0) target = $region82
            $region81: #{jvp__.85} parent=77 // pred_region
              loop: start=0, step=1, limit=1
              $region83: #{jvp__.85} parent=81 // loop_pre_header
                _
              $region84: #{jvp__.85} parent=81 // loop_header
                %s715 = sphi 0, %s719
                %p716 = scmp.ge.s32.totalorder %s715, 1
                %s720 = sphi %s700, %s700
                %s721 = sphi %s709, %s709
              $region85: #{jvp__.85} parent=81 // loop_header_branch
                %718 = sbr.rel (%p716) target = $region89
              $region86: #{jvp__.85} parent=81 // loop_body
                %v722 = vld [vmem:[%s720] sm:$0xff]
                %723 = vst [vmem:[%s721] sm:$0xff] %v722
                %v724 = vld [vmem:[%s720 + $0x8] sm:$0xff]
                %725 = vst [vmem:[%s721 + $0x8] sm:$0xff] %v724
                %v726 = vld [vmem:[%s720 + $0x10] sm:$0xff]
                %727 = vst [vmem:[%s721 + $0x20] sm:$0xff] %v726
                %v728 = vld [vmem:[%s720 + $0x18] sm:$0xff]
                %729 = vst [vmem:[%s721 + $0x28] sm:$0xff] %v728
                %v730 = vld [vmem:[%s720 + $0x20] sm:$0xff]
                %731 = vst [vmem:[%s721 + $0x40] sm:$0xff] %v730
                %v732 = vld [vmem:[%s720 + $0x28] sm:$0xff]
                %733 = vst [vmem:[%s721 + $0x48] sm:$0xff] %v732
                %v734 = vld [vmem:[%s720 + $0x30] sm:$0xff]
                %735 = vst [vmem:[%s721 + $0x60] sm:$0xff] %v734
                %v736 = vld [vmem:[%s720 + $0x38] sm:$0xff]
                %737 = vst [vmem:[%s721 + $0x68] sm:$0xff] %v736
              $region87: #{jvp__.85} parent=81 // loop_footer
                %s719 = sadd.s32 1, %s715
              $region88: #{jvp__.85} parent=81 // loop_footer_branch
                %714 = sbr.rel target = $region84
              $region89: #{jvp__.85} parent=81 // loop_exit
                _
            $region82: #{jvp__.85} parent=77 // pred_fallthru
              _
            // Predicated region
            $region90: #{jvp__.85} parent=77 // pred_check
              _
            $region91: #{jvp__.85} parent=77 // pred_check_branch
              %739 = sbr.rel target = $region93
            $region92: #{jvp__.85} parent=77 // pred_region
              _
            $region93: #{jvp__.85} parent=77 // pred_fallthru
              _
          $region78: #{jvp__.85} parent=73 // pred_fallthru
            _
          %740 = vnop
        $region74: #{jvp__.85} parent=61 // pred_fallthru
          _
      $region62: #{jvp__.85} parent=5 // pred_fallthru
        _
      %p741 = scmp.le.s32.totalorder 2, %s8
      // Predicated region
      $region94: #{jvp__.85} parent=5 // pred_check
        %p742 = pneg %p741
      $region95: #{jvp__.85} parent=5 // pred_check_branch
        %744 = sbr.rel (%p742) target = $region97
      $region96: #{jvp__.85} parent=5 // pred_region
        %s745 = ssub.s32 %s8, 2
        // Predicated region
        $region98: #{jvp__.85} parent=96 // pred_check
          %p746 = pneg %p114
        $region99: #{jvp__.85} parent=96 // pred_check_branch
          %748 = sbr.rel (%p746) target = $region101
        $region100: #{jvp__.85} parent=96 // pred_region
          %s749 = sand.u32 %s99, 1
          %s750 = sand.u32 %s99, 1
          %s751 = smul.addr %s750, 64
          %s752 = scalar_lea.vmem [#allocation3], %s751
        $region101: #{jvp__.85} parent=96 // pred_fallthru
          _
      $region97: #{jvp__.85} parent=5 // pred_fallthru
        _
    $region6: #{jvp__.85} parent=1 // loop_footer
      %s12 = sadd.s32 1, %s8
    $region7: #{jvp__.85} parent=1 // loop_footer_branch
      %7 = sbr.rel target = $region3
    $region8: #{jvp__.85} parent=1 // loop_exit
      _

// kernel: jvp__.92
$region0: #{jvp__.92}
  #allocation0 [shape = 'u32[]', space=smem, size = 0x4, offset = 0x4, fixed_abs, tag = 'smem constant byte address 0x4 - core index']
  #allocation1 [shape = 'u32[72,128]{1,0:T(1,128)}', space=vmem, size = 0x9000, scoped, tag = 'internal scratch']
  %s0 = inlined_call_operand.vmem [shape: bf16[128,128], index: 0, kind: input, shape index: {}]
  %s1 = inlined_call_operand.vmem [shape: bf16[128,256], index: 1, kind: input, shape index: {}]
  %s2 = inlined_call_operand.vmem [shape: f32[128,256], index: 2, kind: output, shape index: {}]
  %s3 = sld [smem:[#allocation0]]
  $region22: #{jvp__.92} parent=0
    _
  %s5 = ssub.s32 1, %s3
  %s6 = scalar_select 0, %s5, %s3
  // Predicated region
  $region2: #{jvp__.92} parent=0 // pred_check
    _
  $region3: #{jvp__.92} parent=0 // pred_check_branch
    %8 = sbr.rel (0) target = $region5
  $region4: #{jvp__.92} parent=0 // pred_region
    _
  $region5: #{jvp__.92} parent=0 // pred_fallthru
    _
  // Predicated region
  $region6: #{jvp__.92} parent=0 // pred_check
    _
  $region7: #{jvp__.92} parent=0 // pred_check_branch
    %10 = sbr.rel (0) target = $region9
  $region8: #{jvp__.92} parent=0 // pred_region
    _
  $region9: #{jvp__.92} parent=0 // pred_fallthru
    _
  %p11 = scmp.eq.s32.totalorder 0, 0
  // Predicated region
  $region10: #{jvp__.92} parent=0 // pred_check
    %p12 = pneg %p11
  $region11: #{jvp__.92} parent=0 // pred_check_branch
    %14 = sbr.rel (%p12) target = $region13
  $region12: #{jvp__.92} parent=0 // pred_region
    %15 = vst [vmem:[%s2] sm:$0xff] 0.0
    %16 = vst [vmem:[%s2 + $0x8] sm:$0xff] 0.0
    %17 = vst [vmem:[%s2 + $0x10] sm:$0xff] 0.0
    %18 = vst [vmem:[%s2 + $0x18] sm:$0xff] 0.0
    %19 = vst [vmem:[%s2 + $0x20] sm:$0xff] 0.0
    %20 = vst [vmem:[%s2 + $0x28] sm:$0xff] 0.0
    %21 = vst [vmem:[%s2 + $0x30] sm:$0xff] 0.0
    %22 = vst [vmem:[%s2 + $0x38] sm:$0xff] 0.0
    %23 = vst [vmem:[%s2 + $0x40] sm:$0xff] 0.0
    %24 = vst [vmem:[%s2 + $0x48] sm:$0xff] 0.0
    %25 = vst [vmem:[%s2 + $0x50] sm:$0xff] 0.0
    %26 = vst [vmem:[%s2 + $0x58] sm:$0xff] 0.0
    %27 = vst [vmem:[%s2 + $0x60] sm:$0xff] 0.0
    %28 = vst [vmem:[%s2 + $0x68] sm:$0xff] 0.0
    %29 = vst [vmem:[%s2 + $0x70] sm:$0xff] 0.0
    %30 = vst [vmem:[%s2 + $0x78] sm:$0xff] 0.0
    %31 = vst [vmem:[%s2 + $0x80] sm:$0xff] 0.0
    %32 = vst [vmem:[%s2 + $0x88] sm:$0xff] 0.0
    %33 = vst [vmem:[%s2 + $0x90] sm:$0xff] 0.0
    %34 = vst [vmem:[%s2 + $0x98] sm:$0xff] 0.0
    %35 = vst [vmem:[%s2 + $0xa0] sm:$0xff] 0.0
    %36 = vst [vmem:[%s2 + $0xa8] sm:$0xff] 0.0
    %37 = vst [vmem:[%s2 + $0xb0] sm:$0xff] 0.0
    %38 = vst [vmem:[%s2 + $0xb8] sm:$0xff] 0.0
    %39 = vst [vmem:[%s2 + $0xc0] sm:$0xff] 0.0
    %40 = vst [vmem:[%s2 + $0xc8] sm:$0xff] 0.0
    %41 = vst [vmem:[%s2 + $0xd0] sm:$0xff] 0.0
    %42 = vst [vmem:[%s2 + $0xd8] sm:$0xff] 0.0
    %43 = vst [vmem:[%s2 + $0xe0] sm:$0xff] 0.0
    %44 = vst [vmem:[%s2 + $0xe8] sm:$0xff] 0.0
    %45 = vst [vmem:[%s2 + $0xf0] sm:$0xff] 0.0
    %46 = vst [vmem:[%s2 + $0xf8] sm:$0xff] 0.0
  $region13: #{jvp__.92} parent=0 // pred_fallthru
    _
  %v47 = vld [vmem:[%s2] sm:$0xff]
  %v48 = vld [vmem:[%s2 + $0x8] sm:$0xff]
  %v49 = vld [vmem:[%s2 + $0x10] sm:$0xff]
  %v50 = vld [vmem:[%s2 + $0x18] sm:$0xff]
  %v51 = vld [vmem:[%s2 + $0x20] sm:$0xff]
  %v52 = vld [vmem:[%s2 + $0x28] sm:$0xff]
  %v53 = vld [vmem:[%s2 + $0x30] sm:$0xff]
  %v54 = vld [vmem:[%s2 + $0x38] sm:$0xff]
  %v55 = vld [vmem:[%s2 + $0x40] sm:$0xff]
  %v56 = vld [vmem:[%s2 + $0x48] sm:$0xff]
  %v57 = vld [vmem:[%s2 + $0x50] sm:$0xff]
  %v58 = vld [vmem:[%s2 + $0x58] sm:$0xff]
  %v59 = vld [vmem:[%s2 + $0x60] sm:$0xff]
  %v60 = vld [vmem:[%s2 + $0x68] sm:$0xff]
  %v61 = vld [vmem:[%s2 + $0x70] sm:$0xff]
  %v62 = vld [vmem:[%s2 + $0x78] sm:$0xff]
  %v63 = vld [vmem:[%s2 + $0x80] sm:$0xff]
  %v64 = vld [vmem:[%s2 + $0x88] sm:$0xff]
  %v65 = vld [vmem:[%s2 + $0x90] sm:$0xff]
  %v66 = vld [vmem:[%s2 + $0x98] sm:$0xff]
  %v67 = vld [vmem:[%s2 + $0xa0] sm:$0xff]
  %v68 = vld [vmem:[%s2 + $0xa8] sm:$0xff]
  %v69 = vld [vmem:[%s2 + $0xb0] sm:$0xff]
  %v70 = vld [vmem:[%s2 + $0xb8] sm:$0xff]
  %v71 = vld [vmem:[%s2 + $0xc0] sm:$0xff]
  %v72 = vld [vmem:[%s2 + $0xc8] sm:$0xff]
  %v73 = vld [vmem:[%s2 + $0xd0] sm:$0xff]
  %v74 = vld [vmem:[%s2 + $0xd8] sm:$0xff]
  %v75 = vld [vmem:[%s2 + $0xe0] sm:$0xff]
  %v76 = vld [vmem:[%s2 + $0xe8] sm:$0xff]
  %v77 = vld [vmem:[%s2 + $0xf0] sm:$0xff]
  %v78 = vld [vmem:[%s2 + $0xf8] sm:$0xff]
  %v79 = vld [vmem:[%s0] sm:$0xf]
  %v80 = vld [vmem:[%s0 + $0x4] sm:$0xf]
  %v81 = vld [vmem:[%s0 + $0x8] sm:$0xf]
  %v82 = vld [vmem:[%s0 + $0xc] sm:$0xf]
  %v83 = vld [vmem:[%s0 + $0x10] sm:$0xf]
  %v84 = vld [vmem:[%s0 + $0x14] sm:$0xf]
  %v85 = vld [vmem:[%s0 + $0x18] sm:$0xf]
  %v86 = vld [vmem:[%s0 + $0x1c] sm:$0xf]
  %v87 = vld [vmem:[%s0 + $0x20] sm:$0xf]
  %v88 = vld [vmem:[%s0 + $0x24] sm:$0xf]
  %v89 = vld [vmem:[%s0 + $0x28] sm:$0xf]
  %v90 = vld [vmem:[%s0 + $0x2c] sm:$0xf]
  %v91 = vld [vmem:[%s0 + $0x30] sm:$0xf]
  %v92 = vld [vmem:[%s0 + $0x34] sm:$0xf]
  %v93 = vld [vmem:[%s0 + $0x38] sm:$0xf]
  %v94 = vld [vmem:[%s0 + $0x3c] sm:$0xf]
  %v95 = vld [vmem:[%s1] sm:$0xff]
  %v96 = vld [vmem:[%s1 + $0x8] sm:$0xff]
  %v97 = vld [vmem:[%s1 + $0x10] sm:$0xff]
  %v98 = vld [vmem:[%s1 + $0x18] sm:$0xff]
  %v99 = vld [vmem:[%s1 + $0x20] sm:$0xff]
  %v100 = vld [vmem:[%s1 + $0x28] sm:$0xff]
  %v101 = vld [vmem:[%s1 + $0x30] sm:$0xff]
  %v102 = vld [vmem:[%s1 + $0x38] sm:$0xff]
  %v103 = vld [vmem:[%s1 + $0x40] sm:$0xff]
  %v104 = vld [vmem:[%s1 + $0x48] sm:$0xff]
  %v105 = vld [vmem:[%s1 + $0x50] sm:$0xff]
  %v106 = vld [vmem:[%s1 + $0x58] sm:$0xff]
  %v107 = vld [vmem:[%s1 + $0x60] sm:$0xff]
  %v108 = vld [vmem:[%s1 + $0x68] sm:$0xff]
  %v109 = vld [vmem:[%s1 + $0x70] sm:$0xff]
  %v110 = vld [vmem:[%s1 + $0x78] sm:$0xff]
  %v127 = vunpack.c.l.b16 %v79
  %v128 = vunpack.c.l.b16 %v80
  %v129 = vunpack.c.l.b16 %v81
  %v130 = vunpack.c.l.b16 %v82
  %v131 = vunpack.c.l.b16 %v83
  %v132 = vunpack.c.l.b16 %v84
  %v133 = vunpack.c.l.b16 %v85
  %v134 = vunpack.c.l.b16 %v86
  %v135 = vunpack.c.l.b16 %v87
  %v136 = vunpack.c.l.b16 %v88
  %v137 = vunpack.c.l.b16 %v89
  %v138 = vunpack.c.l.b16 %v90
  %v139 = vunpack.c.l.b16 %v91
  %v140 = vunpack.c.l.b16 %v92
  %v141 = vunpack.c.l.b16 %v93
  %v142 = vunpack.c.l.b16 %v94
  %v143 = vpack.c.b16 %v128, %v127
  %v144 = vpack.c.b16 %v130, %v129
  %v145 = vpack.c.b16 %v132, %v131
  %v146 = vpack.c.b16 %v134, %v133
  %v147 = vpack.c.b16 %v136, %v135
  %v148 = vpack.c.b16 %v138, %v137
  %v149 = vpack.c.b16 %v140, %v139
  %v150 = vpack.c.b16 %v142, %v141
  %v175 = vunpack.c.l.b16 %v95
  %v176 = vunpack.c.h.b16 %v95
  %v177 = vunpack.c.l.b16 %v96
  %v178 = vunpack.c.h.b16 %v96
  %v179 = vunpack.c.l.b16 %v97
  %v180 = vunpack.c.h.b16 %v97
  %v181 = vunpack.c.l.b16 %v98
  %v182 = vunpack.c.h.b16 %v98
  %v183 = vunpack.c.l.b16 %v99
  %v184 = vunpack.c.h.b16 %v99
  %v185 = vunpack.c.l.b16 %v100
  %v186 = vunpack.c.h.b16 %v100
  %v187 = vunpack.c.l.b16 %v101
  %v188 = vunpack.c.h.b16 %v101
  %v189 = vunpack.c.l.b16 %v102
  %v190 = vunpack.c.h.b16 %v102
  %v191 = vunpack.c.l.b16 %v103
  %v192 = vunpack.c.h.b16 %v103
  %v193 = vunpack.c.l.b16 %v104
  %v194 = vunpack.c.h.b16 %v104
  %v195 = vunpack.c.l.b16 %v105
  %v196 = vunpack.c.h.b16 %v105
  %v197 = vunpack.c.l.b16 %v106
  %v198 = vunpack.c.h.b16 %v106
  %v199 = vunpack.c.l.b16 %v107
  %v200 = vunpack.c.h.b16 %v107
  %v201 = vunpack.c.l.b16 %v108
  %v202 = vunpack.c.h.b16 %v108
  %v203 = vunpack.c.l.b16 %v109
  %v204 = vunpack.c.h.b16 %v109
  %v205 = vunpack.c.l.b16 %v110
  %v206 = vunpack.c.h.b16 %v110
  %v207 = vpack.c.b16 %v177, %v175
  %v208 = vpack.c.b16 %v178, %v176
  %v209 = vpack.c.b16 %v181, %v179
  %v210 = vpack.c.b16 %v182, %v180
  %v211 = vpack.c.b16 %v185, %v183
  %v212 = vpack.c.b16 %v186, %v184
  %v213 = vpack.c.b16 %v189, %v187
  %v214 = vpack.c.b16 %v190, %v188
  %v215 = vpack.c.b16 %v193, %v191
  %v216 = vpack.c.b16 %v194, %v192
  %v217 = vpack.c.b16 %v197, %v195
  %v218 = vpack.c.b16 %v198, %v196
  %v219 = vpack.c.b16 %v201, %v199
  %v220 = vpack.c.b16 %v202, %v200
  %v221 = vpack.c.b16 %v205, %v203
  %v222 = vpack.c.b16 %v206, %v204
  %239 = vmatpush.bf16.msra.mxu0 %v221
  %240 = vmatpush.bf16.msra.mxu0 %v219
  %241 = vmatpush.bf16.msra.mxu0 %v217
  %242 = vmatpush.bf16.msra.mxu0 %v215
  %243 = vmatpush.bf16.msra.mxu0 %v213
  %244 = vmatpush.bf16.msra.mxu0 %v211
  %245 = vmatpush.bf16.msra.mxu0 %v209
  %246 = vmatpush.bf16.msra.mxu0 %v207
  %247 = vmatmul.bf16.gmra.mxu0 %v143
  %v248 = vpop.f32.mrf.mxu0
  %v249 = vadd.f32 0.0, %v248
  %v250 = vpop.f32.mrf.mxu0
  %v251 = vadd.f32 0.0, %v250
  %252 = vmatmul.bf16.gmra.mxu0 %v144
  %v253 = vpop.f32.mrf.mxu0
  %v254 = vadd.f32 0.0, %v253
  %v255 = vpop.f32.mrf.mxu0
  %v256 = vadd.f32 0.0, %v255
  %257 = vmatmul.bf16.gmra.mxu0 %v145
  %v258 = vpop.f32.mrf.mxu0
  %v259 = vadd.f32 0.0, %v258
  %v260 = vpop.f32.mrf.mxu0
  %v261 = vadd.f32 0.0, %v260
  %262 = vmatmul.bf16.gmra.mxu0 %v146
  %v263 = vpop.f32.mrf.mxu0
  %v264 = vadd.f32 0.0, %v263
  %v265 = vpop.f32.mrf.mxu0
  %v266 = vadd.f32 0.0, %v265
  %267 = vmatmul.bf16.gmra.mxu0 %v147
  %v268 = vpop.f32.mrf.mxu0
  %v269 = vadd.f32 0.0, %v268
  %v270 = vpop.f32.mrf.mxu0
  %v271 = vadd.f32 0.0, %v270
  %272 = vmatmul.bf16.gmra.mxu0 %v148
  %v273 = vpop.f32.mrf.mxu0
  %v274 = vadd.f32 0.0, %v273
  %v275 = vpop.f32.mrf.mxu0
  %v276 = vadd.f32 0.0, %v275
  %277 = vmatmul.bf16.gmra.mxu0 %v149
  %v278 = vpop.f32.mrf.mxu0
  %v279 = vadd.f32 0.0, %v278
  %v280 = vpop.f32.mrf.mxu0
  %v281 = vadd.f32 0.0, %v280
  %282 = vmatmul.bf16.gmra.mxu0 %v150
  %v283 = vpop.f32.mrf.mxu0
  %v284 = vadd.f32 0.0, %v283
  %v285 = vpop.f32.mrf.mxu0
  %v286 = vadd.f32 0.0, %v285
  %287 = vdwg.mxu0
  %288 = vmatpush.bf16.msra.mxu0 %v222
  %289 = vmatpush.bf16.msra.mxu0 %v220
  %290 = vmatpush.bf16.msra.mxu0 %v218
  %291 = vmatpush.bf16.msra.mxu0 %v216
  %292 = vmatpush.bf16.msra.mxu0 %v214
  %293 = vmatpush.bf16.msra.mxu0 %v212
  %294 = vmatpush.bf16.msra.mxu0 %v210
  %295 = vmatpush.bf16.msra.mxu0 %v208
  %296 = vmatmul.bf16.gmra.mxu0 %v143
  %v297 = vpop.f32.mrf.mxu0
  %v298 = vadd.f32 0.0, %v297
  %v299 = vpop.f32.mrf.mxu0
  %v300 = vadd.f32 0.0, %v299
  %301 = vmatmul.bf16.gmra.mxu0 %v144
  %v302 = vpop.f32.mrf.mxu0
  %v303 = vadd.f32 0.0, %v302
  %v304 = vpop.f32.mrf.mxu0
  %v305 = vadd.f32 0.0, %v304
  %306 = vmatmul.bf16.gmra.mxu0 %v145
  %v307 = vpop.f32.mrf.mxu0
  %v308 = vadd.f32 0.0, %v307
  %v309 = vpop.f32.mrf.mxu0
  %v310 = vadd.f32 0.0, %v309
  %311 = vmatmul.bf16.gmra.mxu0 %v146
  %v312 = vpop.f32.mrf.mxu0
  %v313 = vadd.f32 0.0, %v312
  %v314 = vpop.f32.mrf.mxu0
  %v315 = vadd.f32 0.0, %v314
  %316 = vmatmul.bf16.gmra.mxu0 %v147
  %v317 = vpop.f32.mrf.mxu0
  %v318 = vadd.f32 0.0, %v317
  %v319 = vpop.f32.mrf.mxu0
  %v320 = vadd.f32 0.0, %v319
  %321 = vmatmul.bf16.gmra.mxu0 %v148
  %v322 = vpop.f32.mrf.mxu0
  %v323 = vadd.f32 0.0, %v322
  %v324 = vpop.f32.mrf.mxu0
  %v325 = vadd.f32 0.0, %v324
  %326 = vmatmul.bf16.gmra.mxu0 %v149
  %v327 = vpop.f32.mrf.mxu0
  %v328 = vadd.f32 0.0, %v327
  %v329 = vpop.f32.mrf.mxu0
  %v330 = vadd.f32 0.0, %v329
  %331 = vmatmul.bf16.gmra.mxu0 %v150
  %v332 = vpop.f32.mrf.mxu0
  %v333 = vadd.f32 0.0, %v332
  %v334 = vpop.f32.mrf.mxu0
  %v335 = vadd.f32 0.0, %v334
  %336 = vdwg.mxu0
  %v337 = vadd.f32 %v47, %v249
  %v338 = vadd.f32 %v48, %v298
  %v339 = vadd.f32 %v49, %v251
  %v340 = vadd.f32 %v50, %v300
  %v341 = vadd.f32 %v51, %v254
  %v342 = vadd.f32 %v52, %v303
  %v343 = vadd.f32 %v53, %v256
  %v344 = vadd.f32 %v54, %v305
  %v345 = vadd.f32 %v55, %v259
  %v346 = vadd.f32 %v56, %v308
  %v347 = vadd.f32 %v57, %v261
  %v348 = vadd.f32 %v58, %v310
  %v349 = vadd.f32 %v59, %v264
  %v350 = vadd.f32 %v60, %v313
  %v351 = vadd.f32 %v61, %v266
  %v352 = vadd.f32 %v62, %v315
  %v353 = vadd.f32 %v63, %v269
  %v354 = vadd.f32 %v64, %v318
  %v355 = vadd.f32 %v65, %v271
  %v356 = vadd.f32 %v66, %v320
  %v357 = vadd.f32 %v67, %v274
  %v358 = vadd.f32 %v68, %v323
  %v359 = vadd.f32 %v69, %v276
  %v360 = vadd.f32 %v70, %v325
  %v361 = vadd.f32 %v71, %v279
  %v362 = vadd.f32 %v72, %v328
  %v363 = vadd.f32 %v73, %v281
  %v364 = vadd.f32 %v74, %v330
  %v365 = vadd.f32 %v75, %v284
  %v366 = vadd.f32 %v76, %v333
  %v367 = vadd.f32 %v77, %v286
  %v368 = vadd.f32 %v78, %v335
  %369 = vst [vmem:[%s2] sm:$0xff] %v337
  %370 = vst [vmem:[%s2 + $0x8] sm:$0xff] %v338
  %371 = vst [vmem:[%s2 + $0x10] sm:$0xff] %v339
  %372 = vst [vmem:[%s2 + $0x18] sm:$0xff] %v340
  %373 = vst [vmem:[%s2 + $0x20] sm:$0xff] %v341
  %374 = vst [vmem:[%s2 + $0x28] sm:$0xff] %v342
  %375 = vst [vmem:[%s2 + $0x30] sm:$0xff] %v343
  %376 = vst [vmem:[%s2 + $0x38] sm:$0xff] %v344
  %377 = vst [vmem:[%s2 + $0x40] sm:$0xff] %v345
  %378 = vst [vmem:[%s2 + $0x48] sm:$0xff] %v346
  %379 = vst [vmem:[%s2 + $0x50] sm:$0xff] %v347
  %380 = vst [vmem:[%s2 + $0x58] sm:$0xff] %v348
  %381 = vst [vmem:[%s2 + $0x60] sm:$0xff] %v349
  %382 = vst [vmem:[%s2 + $0x68] sm:$0xff] %v350
  %383 = vst [vmem:[%s2 + $0x70] sm:$0xff] %v351
  %384 = vst [vmem:[%s2 + $0x78] sm:$0xff] %v352
  %385 = vst [vmem:[%s2 + $0x80] sm:$0xff] %v353
  %386 = vst [vmem:[%s2 + $0x88] sm:$0xff] %v354
  %387 = vst [vmem:[%s2 + $0x90] sm:$0xff] %v355
  %388 = vst [vmem:[%s2 + $0x98] sm:$0xff] %v356
  %389 = vst [vmem:[%s2 + $0xa0] sm:$0xff] %v357
  %390 = vst [vmem:[%s2 + $0xa8] sm:$0xff] %v358
  %391 = vst [vmem:[%s2 + $0xb0] sm:$0xff] %v359
  %392 = vst [vmem:[%s2 + $0xb8] sm:$0xff] %v360
  %393 = vst [vmem:[%s2 + $0xc0] sm:$0xff] %v361
  %394 = vst [vmem:[%s2 + $0xc8] sm:$0xff] %v362
  %395 = vst [vmem:[%s2 + $0xd0] sm:$0xff] %v363
  %396 = vst [vmem:[%s2 + $0xd8] sm:$0xff] %v364
  %397 = vst [vmem:[%s2 + $0xe0] sm:$0xff] %v365
  %398 = vst [vmem:[%s2 + $0xe8] sm:$0xff] %v366
  %399 = vst [vmem:[%s2 + $0xf0] sm:$0xff] %v367
  %400 = vst [vmem:[%s2 + $0xf8] sm:$0xff] %v368
  // Predicated region
  $region14: #{jvp__.92} parent=0 // pred_check
    _
  $region15: #{jvp__.92} parent=0 // pred_check_branch
    %402 = sbr.rel (0) target = $region17
  $region16: #{jvp__.92} parent=0 // pred_region
    _
  $region17: #{jvp__.92} parent=0 // pred_fallthru
    _
  // Predicated region
  $region18: #{jvp__.92} parent=0 // pred_check
    _
  $region19: #{jvp__.92} parent=0 // pred_check_branch
    %404 = sbr.rel (0) target = $region21
  $region20: #{jvp__.92} parent=0 // pred_region
    _
  $region21: #{jvp__.92} parent=0 // pred_fallthru
    _

// kernel: grad_step_std_forward.1
$region0: #{grad_step_std_forward.1}
  #allocation0 [shape = 'u32[]', space=smem, size = 0x4, offset = 0x4, fixed_abs, tag = 'smem constant byte address 0x4 - core index']
  #allocation1 [shape = 'u32[72,128]{1,0:T(1,128)}', space=vmem, size = 0x9000, scoped, tag = 'internal scratch']
  %s0 = inlined_call_operand.vmem [shape: f32[8,512], index: 0, kind: input, shape index: {}]
  %s1 = inlined_call_operand.vmem [shape: f32[8,512], index: 1, kind: input, shape index: {}]
  %s2 = inlined_call_operand.vmem [shape: f32[8,512], index: 2, kind: output, shape index: {}]
  %s3 = sld [smem:[#allocation0]]
  $region18: #{grad_step_std_forward.1} parent=0
    _
  %s5 = ssub.s32 1, %s3
  %s6 = scalar_select 0, %s5, %s3
  // Predicated region
  $region2: #{grad_step_std_forward.1} parent=0 // pred_check
    _
  $region3: #{grad_step_std_forward.1} parent=0 // pred_check_branch
    %8 = sbr.rel (0) target = $region5
  $region4: #{grad_step_std_forward.1} parent=0 // pred_region
    _
  $region5: #{grad_step_std_forward.1} parent=0 // pred_fallthru
    _
  // Predicated region
  $region6: #{grad_step_std_forward.1} parent=0 // pred_check
    _
  $region7: #{grad_step_std_forward.1} parent=0 // pred_check_branch
    %10 = sbr.rel (0) target = $region9
  $region8: #{grad_step_std_forward.1} parent=0 // pred_region
    _
  $region9: #{grad_step_std_forward.1} parent=0 // pred_fallthru
    _
  %v11 = vld [vmem:[%s0] sm:$0xff]
  %v12 = vld [vmem:[%s0 + $0x8] sm:$0xff]
  %v13 = vld [vmem:[%s0 + $0x10] sm:$0xff]
  %v14 = vld [vmem:[%s0 + $0x18] sm:$0xff]
  %v15 = vld [vmem:[%s1] sm:$0xff]
  %v16 = vld [vmem:[%s1 + $0x8] sm:$0xff]
  %v17 = vld [vmem:[%s1 + $0x10] sm:$0xff]
  %v18 = vld [vmem:[%s1 + $0x18] sm:$0xff]
  %v19 = vsub.f32 %v11, %v15
  %v20 = vsub.f32 %v12, %v16
  %v21 = vsub.f32 %v13, %v17
  %v22 = vsub.f32 %v14, %v18
  %23 = vst [vmem:[%s2] sm:$0xff] %v19
  %24 = vst [vmem:[%s2 + $0x8] sm:$0xff] %v20
  %25 = vst [vmem:[%s2 + $0x10] sm:$0xff] %v21
  %26 = vst [vmem:[%s2 + $0x18] sm:$0xff] %v22
  // Predicated region
  $region10: #{grad_step_std_forward.1} parent=0 // pred_check
    _
  $region11: #{grad_step_std_forward.1} parent=0 // pred_check_branch
    %28 = sbr.rel (0) target = $region13
  $region12: #{grad_step_std_forward.1} parent=0 // pred_region
    _
  $region13: #{grad_step_std_forward.1} parent=0 // pred_fallthru
    _
  // Predicated region
  $region14: #{grad_step_std_forward.1} parent=0 // pred_check
    _
  $region15: #{grad_step_std_forward.1} parent=0 // pred_check_branch
    %30 = sbr.rel (0) target = $region17
  $region16: #{grad_step_std_forward.1} parent=0 // pred_region
    _
  $region17: #{grad_step_std_forward.1} parent=0 // pred_fallthru
    _

</llo_original>
